<compile_context>
chip_gen: v7x
topology: tpu7x:2x2x1
jax: 0.10.0
libtpu: 0.0.40
codegen_flags: <defaults>
</compile_context>

<pallas_src>
import functools
import math

import jax
import jax.numpy as jnp
from jax.experimental import pallas as pl
from jax.experimental.pallas import tpu as pltpu


# ----------------------------- in-kernel helpers -----------------------------

def _layernorm(x, g, b, eps):
    mu = jnp.mean(x, axis=-1, keepdims=True)
    xc = x - mu
    var = jnp.mean(xc * xc, axis=-1, keepdims=True)
    return xc * jax.lax.rsqrt(var + eps) * g + b


def _row_softmax(v):
    m = jnp.max(v, axis=-1, keepdims=True)
    e = jnp.exp(v - m)
    return e * pl.reciprocal(jnp.sum(e, axis=-1, keepdims=True), approx=True)


def _mlp_act(y, activation):
    if activation == "gelu":
        # tanh-approx GELU (BERT intermediate activation).
        # TODO(synk): HF BertModel uses exact erf-GELU; tanh approx is the
        # TPU-friendly stand-in (tiny numerical difference only).
        c = math.sqrt(2.0 / math.pi)
        return 0.5 * y * (1.0 + jnp.tanh(c * (y + 0.044715 * y * y * y)))
    return jnp.maximum(y, 0.0)  # relu


# ------------------- fused whole-transformer-stack kernel --------------------

def _stacked_layers_kernel(*refs, nhead, activation, eps, per_batch_bias,
                           has_pre_ln, pre_ln_eps):
    """All layers of a post-norm transformer stack for one block of batch rows.

    Grid = (batch_block [parallel], layer [arbitrary]).  The running
    activation lives in VMEM scratch `h_scr` across the layer axis; per-layer
    weights arrive via BlockSpec indexed by the layer grid axis (auto
    double-buffered, so layer l+1 weight DMA hides behind layer l compute).
    """
    if has_pre_ln:
        (x_ref, bias_ref, wqkv_ref, bqkv_ref, wo_ref, bo_ref,
         ln1g_ref, ln1b_ref, w1_ref, b1_ref, w2_ref, b2_ref,
         ln2g_ref, ln2b_ref, preg_ref, preb_ref, o_ref, h_scr) = refs
    else:
        (x_ref, bias_ref, wqkv_ref, bqkv_ref, wo_ref, bo_ref,
         ln1g_ref, ln1b_ref, w1_ref, b1_ref, w2_ref, b2_ref,
         ln2g_ref, ln2b_ref, o_ref, h_scr) = refs

    bblk, S, E = x_ref.shape
    dh = E // nhead
    scale = 1.0 / math.sqrt(dh)
    bf16 = jnp.bfloat16
    layer = pl.program_id(1)

    @pl.when(layer == 0)
    def _init():
        if has_pre_ln:                       # fused embedding LayerNorm
            g = preg_ref[...]
            be = preb_ref[...]
            for b in range(bblk):
                h_scr[b] = _layernorm(x_ref[b], g, be, pre_ln_eps)
        else:
            h_scr[...] = x_ref[...]

    wqkv = wqkv_ref[0]; bqkv = bqkv_ref[0]
    wo = wo_ref[0];     bo = bo_ref[0]
    w1 = w1_ref[0];     b1 = b1_ref[0]
    w2 = w2_ref[0];     b2 = b2_ref[0]
    g1 = ln1g_ref[0];   be1 = ln1b_ref[0]
    g2 = ln2g_ref[0];   be2 = ln2b_ref[0]

    for b in range(bblk):                                    # unrolled, small
        xe = h_scr[b]                                        # [S, E] f32
        bias = bias_ref[b] if per_batch_bias else bias_ref[0]

        # fused Q|K|V projection: one lane-dense [S, 3E] MXU matmul
        qkv = jnp.dot(xe.astype(bf16), wqkv,
                      preferred_element_type=jnp.float32) + bqkv

        # all heads; output projection folded per head (no narrow-lane concat)
        attn = jnp.zeros((S, E), jnp.float32)
        for h in range(nhead):
            qh = qkv[:, h * dh:(h + 1) * dh].astype(bf16)
            kh = qkv[:, E + h * dh:E + (h + 1) * dh].astype(bf16)
            vh = qkv[:, 2 * E + h * dh:2 * E + (h + 1) * dh].astype(bf16)
            s = jax.lax.dot_general(qh, kh, (((1,), (1,)), ((), ())),
                                    preferred_element_type=jnp.float32)
            s = s * scale + bias                             # bias broadcasts
            p = _row_softmax(s)                              # f32 softmax
            ctx = jnp.dot(p.astype(bf16), vh,
                          preferred_element_type=jnp.float32)         # [S, dh]
            attn = attn + jnp.dot(ctx.astype(bf16),
                                  wo[h * dh:(h + 1) * dh, :],
                                  preferred_element_type=jnp.float32)
        attn = attn + bo

        # residual + post-LN (f32), feed-forward, residual + post-LN
        h1 = _layernorm(xe + attn, g1, be1, eps)
        ff = jnp.dot(h1.astype(bf16), w1, preferred_element_type=jnp.float32) + b1
        ff = _mlp_act(ff, activation)
        ff = jnp.dot(ff.astype(bf16), w2, preferred_element_type=jnp.float32) + b2
        h_scr[b] = _layernorm(h1 + ff, g2, be2, eps)

    @pl.when(layer == pl.num_programs(1) - 1)
    def _fin():
        o_ref[...] = h_scr[...]


def transformer_stack(x, bias, stack, *, nhead, activation, eps,
                      pre_ln=None, pre_ln_eps=1e-12):
    """x: [Bb, S, E] f32 (attention over axis 1).

    bias: [Bb, 1, S] per-row additive key mask, OR [1, S, S] mask shared by
    all rows (broadcast happens in-kernel, never materialized in HBM).
    stack: dict of per-layer parameters stacked along a leading [L] axis.
    pre_ln: optional (gamma, beta) LayerNorm applied to x before layer 0.
    """
    Bb, S, E = x.shape
    L = stack["wqkv"].shape[0]
    grid_b = 2 if Bb % 2 == 0 else 1       # parallel axis: v7x's 2 TCs split
    bblk = Bb // grid_b
    per_batch_bias = (bias.shape[0] == Bb)
    bias_bblk = bblk if per_batch_bias else 1
    bias_idx = ((lambda b, l: (b, 0, 0)) if per_batch_bias
                else (lambda b, l: (0, 0, 0)))

    def wspec(arr):
        return pl.BlockSpec((1,) + arr.shape[1:], lambda b, l: (l, 0, 0))

    names = ["wqkv", "bqkv", "wo", "bo", "ln1_g", "ln1_b",
             "w1", "b1", "w2", "b2", "ln2_g", "ln2_b"]
    in_specs = [pl.BlockSpec((bblk, S, E), lambda b, l: (b, 0, 0)),
                pl.BlockSpec((bias_bblk,) + bias.shape[1:], bias_idx)]
    in_specs += [wspec(stack[n]) for n in names]
    args = [x, bias] + [stack[n] for n in names]

    has_pre_ln = pre_ln is not None
    if has_pre_ln:
        g, be = pre_ln
        in_specs += [pl.BlockSpec(g.shape, lambda b, l: (0, 0)),
                     pl.BlockSpec(be.shape, lambda b, l: (0, 0))]
        args += [g, be]

    kernel = functools.partial(
        _stacked_layers_kernel, nhead=nhead, activation=activation, eps=eps,
        per_batch_bias=per_batch_bias, has_pre_ln=has_pre_ln,
        pre_ln_eps=pre_ln_eps)

    return pl.pallas_call(
        kernel,
        out_shape=jax.ShapeDtypeStruct((Bb, S, E), jnp.float32),
        grid=(grid_b, L),
        in_specs=in_specs,
        out_specs=pl.BlockSpec((bblk, S, E), lambda b, l: (b, 0, 0)),
        scratch_shapes=[pltpu.VMEM((bblk, S, E), jnp.float32)],
        compiler_params=pltpu.CompilerParams(
            dimension_semantics=("parallel", "arbitrary")),
    )(*args)


# ---------------------- fused classifier-heads kernel ------------------------

def _heads_kernel(cls_ref, seqT_ref, poolw_ref, poolb_ref, actw_ref, actb_ref,
                  sew_ref, seb_ref, action_ref, start_ref, end_ref):
    bf16 = jnp.bfloat16
    B, E, S = seqT_ref.shape

    # BertPooler (tanh) + action head + softmax(dim=1)
    pooled = jnp.tanh(jnp.dot(cls_ref[...].astype(bf16), poolw_ref[...],
                              preferred_element_type=jnp.float32) + poolb_ref[...])
    act = jnp.dot(pooled.astype(bf16), actw_ref[...],
                  preferred_element_type=jnp.float32) + actb_ref[...]
    action_ref[...] = _row_softmax(act)

    # start/end heads fused into one [2, E] x [E, S] lane-dense matmul per row
    sew = sew_ref[...]                       # [2, E] bf16 (row 0 start, 1 end)
    seb = seb_ref[...]                       # [2, 1] f32
    pos = jax.lax.broadcasted_iota(jnp.int32, (1, S), 1)

    start_mask = None
    for b in range(B):                                      # unrolled, B small
        lg = jnp.dot(sew, seqT_ref[b].astype(bf16),
                     preferred_element_type=jnp.float32) + seb        # [2, S]
        st_sm = _row_softmax(lg[0:1, :])
        start_ref[pl.ds(b, 1), :] = st_sm
        if b == 0:
            # start_mask[:, 0:argmax(start_index, dim=1)[0]] = -inf (batch-0 quirk)
            mx = jnp.max(st_sm, axis=-1, keepdims=True)
            idx = jnp.min(jnp.where(st_sm >= mx, pos, S), axis=-1, keepdims=True)
            start_mask = jnp.where(pos < idx, -jnp.inf, 0.0)           # [1, S]
        end_ref[pl.ds(b, 1), :] = _row_softmax(lg[1:2, :] + start_mask)


def heads_pallas(cls, seq_t, params):
    B, E = cls.shape
    S = seq_t.shape[2]
    A = params["action_w"].shape[1]

    def w2d(arr):
        return pl.BlockSpec(arr.shape, lambda i: (0, 0))

    return pl.pallas_call(
        _heads_kernel,
        out_shape=(jax.ShapeDtypeStruct((B, A), jnp.float32),
                   jax.ShapeDtypeStruct((B, S), jnp.float32),
                   jax.ShapeDtypeStruct((B, S), jnp.float32)),
        grid=(1,),
        in_specs=[pl.BlockSpec((B, E), lambda i: (0, 0)),
                  pl.BlockSpec((B, E, S), lambda i: (0, 0, 0)),
                  w2d(params["pool_w"]), w2d(params["pool_b"]),
                  w2d(params["action_w"]), w2d(params["action_b"]),
                  w2d(params["se_w_t"]), w2d(params["se_b"])],
        out_specs=(pl.BlockSpec((B, A), lambda i: (0, 0)),
                   pl.BlockSpec((B, S), lambda i: (0, 0)),
                   pl.BlockSpec((B, S), lambda i: (0, 0))),
    )(cls, seq_t, params["pool_w"], params["pool_b"],
      params["action_w"], params["action_b"], params["se_w_t"], params["se_b"])


# ----------------------------- decoder linear --------------------------------

def _linear_kernel(x_ref, w_ref, b_ref, o_ref):
    o_ref[...] = jnp.dot(x_ref[...].astype(jnp.bfloat16), w_ref[...],
                         preferred_element_type=jnp.float32) + b_ref[...]


def linear_pallas(x, w, b):
    """x: [M, K] f32, w: [K, N] bf16, b: [1, N] f32 -> [M, N] f32."""
    M, K = x.shape
    N = w.shape[1]
    return pl.pallas_call(
        _linear_kernel,
        out_shape=jax.ShapeDtypeStruct((M, N), jnp.float32),
        grid=(1,),
        in_specs=[pl.BlockSpec((M, K), lambda i: (0, 0)),
                  pl.BlockSpec((K, N), lambda i: (0, 0)),
                  pl.BlockSpec((1, N), lambda i: (0, 0))],
        out_specs=pl.BlockSpec((M, N), lambda i: (0, 0)),
    )(x, w, b)


# ----------------------------- model forward ---------------------------------

def bert_classifier_forward(params, input_id, mask, src_mask, *, nhead):
    bert = params["bert"]
    B, S = input_id.shape
    E = bert["word_emb"].shape[1]

    # BERT embeddings (XLA gather); embedding LayerNorm fused into the stack.
    tok = jnp.take(bert["word_emb"], input_id, axis=0)                # [B,S,E]
    pos = bert["pos_emb"][:S][None, :, :]
    typ = bert["type_emb"][0][None, None, :]
    emb = tok + pos + typ

    # compressed additive key mask [B, 1, S]; heads/query broadcast in-kernel
    bert_bias = ((1.0 - mask.astype(jnp.float32)) * -10000.0)[:, None, :]

    seq_output = transformer_stack(
        emb, bert_bias, bert["stack"], nhead=nhead, activation="gelu",
        eps=1e-12, pre_ln=(bert["emb_ln_g"], bert["emb_ln_b"]), pre_ln_eps=1e-12)

    # fused heads kernel: pooler + action + start/end softmaxes + argmax mask
    cls = seq_output[:, 0, :]                                         # [B, E]
    seq_t = jnp.transpose(seq_output, (0, 2, 1))                      # [B, E, S]
    action, start_index, end_index = heads_pallas(cls, seq_t, params)

    # positional-encoding quirk (pe indexed by dim 0 == batch), then the
    # nn.TransformerEncoder which (batch_first=False) attends over that axis.
    src = seq_output + params["pe"][:B]                               # [B, S, E]
    xt = jnp.transpose(src, (1, 0, 2))                                # [S, B, E]
    enc_bias = src_mask.astype(jnp.float32)[None, :, :]               # [1, B, B]
    out_t = transformer_stack(xt, enc_bias, params["enc_stack"], nhead=nhead,
                              activation="relu", eps=1e-5)
    out = jnp.transpose(out_t, (1, 0, 2))                             # [B, S, E]

    output_seq = linear_pallas(out.reshape(B * S, E),
                               params["dec_w"], params["dec_b"]).reshape(B, S, -1)
    return action, start_index, end_index, output_seq


# ----------------------------- parameter init --------------------------------

def make_positional_encoding(max_len, d_model):
    position = jnp.arange(max_len, dtype=jnp.float32)[:, None]
    div_term = jnp.exp(jnp.arange(0, d_model, 2, dtype=jnp.float32)
                       * (-math.log(10000.0) / d_model))
    pe = jnp.zeros((max_len, 1, d_model), jnp.float32)
    pe = pe.at[:, 0, 0::2].set(jnp.sin(position * div_term))
    pe = pe.at[:, 0, 1::2].set(jnp.cos(position * div_term))
    return pe


def init_params(key, *, vocab, max_pos, embed_size, nhead, d_hid, nlayers,
                ntoken, action_len, pe_max_len):
    keys = iter(jax.random.split(key, 256))
    E = embed_size

    def wmat(shape, scale=0.02):
        w = jax.random.normal(next(keys), shape, jnp.float32) * scale
        return w.astype(jnp.bfloat16)          # bf16 MXU weights

    def zeros(shape):
        return jnp.zeros(shape, jnp.float32)

    def ones(shape):
        return jnp.ones(shape, jnp.float32)

    def stack_params(n):
        # per-layer weights stacked along a leading [n] axis (layer grid axis)
        return {
            "wqkv": wmat((n, E, 3 * E)), "bqkv": zeros((n, 1, 3 * E)),  # fused Q|K|V
            "wo": wmat((n, E, E)), "bo": zeros((n, 1, E)),
            "ln1_g": ones((n, 1, E)), "ln1_b": zeros((n, 1, E)),
            "w1": wmat((n, E, d_hid)), "b1": zeros((n, 1, d_hid)),
            "w2": wmat((n, d_hid, E)), "b2": zeros((n, 1, E)),
            "ln2_g": ones((n, 1, E)), "ln2_b": zeros((n, 1, E)),
        }

    bert = {
        "word_emb": jax.random.normal(next(keys), (vocab, E), jnp.float32) * 0.02,
        "pos_emb": jax.random.normal(next(keys), (max_pos, E), jnp.float32) * 0.02,
        "type_emb": jax.random.normal(next(keys), (2, E), jnp.float32) * 0.02,
        "emb_ln_g": ones((1, E)), "emb_ln_b": zeros((1, E)),
        "stack": stack_params(nlayers),
    }

    params = {"bert": bert}
    params["pool_w"] = wmat((E, E))
    params["pool_b"] = zeros((1, E))
    params["action_w"] = wmat((E, action_len))
    params["action_b"] = zeros((1, action_len))
    # start_linear1 / end_linear1 fused, stored pre-transposed ([2, E]):
    # row 0 = start head, row 1 = end head.
    start_w = jax.random.normal(next(keys), (1, E), jnp.float32) * 0.02
    end_w = jax.random.normal(next(keys), (1, E), jnp.float32) * 0.02
    params["se_w_t"] = jnp.concatenate([start_w, end_w], axis=0).astype(jnp.bfloat16)
    params["se_b"] = jnp.zeros((2, 1), jnp.float32)
    # decoder init mirrors init_weights(): uniform(-0.1, 0.1) weight, zero bias
    params["dec_w"] = jax.random.uniform(next(keys), (E, ntoken), jnp.float32,
                                         minval=-0.1, maxval=0.1).astype(jnp.bfloat16)
    params["dec_b"] = zeros((1, ntoken))
    params["enc_stack"] = stack_params(nlayers)
    params["pe"] = make_positional_encoding(pe_max_len, E)
    # TODO(synk): start_linear2 / end_linear2 exist in __init__ but are never
    # used in forward(), so they are not instantiated here.
    return params


# ----------------------------------- main -------------------------------------

if __name__ == "__main__":
    B, S = 2, 8                  # batch, max_input_len
    EMBED = 32                   # embed_size == d_model
    NHEAD = 4
    D_HID = 64
    NLAYERS = 2
    NTOKEN = 48
    ACTION_LEN = 8
    VOCAB = 64

    key = jax.random.PRNGKey(0)
    pkey, ikey = jax.random.split(key)
    params = init_params(pkey, vocab=VOCAB, max_pos=16, embed_size=EMBED,
                         nhead=NHEAD, d_hid=D_HID, nlayers=NLAYERS,
                         ntoken=NTOKEN, action_len=ACTION_LEN, pe_max_len=64)

    input_id = jax.random.randint(ikey, (B, S), 0, VOCAB, dtype=jnp.int32)
    mask = jnp.ones((B, S), jnp.float32)         # attention_mask (all valid)
    src_mask = jnp.zeros((B, B), jnp.float32)    # additive mask, dim-0 attention

    fwd = jax.jit(functools.partial(bert_classifier_forward, nhead=NHEAD))
    action, start_index, end_index, output_seq = fwd(params, input_id, mask, src_mask)
    jax.block_until_ready((action, start_index, end_index, output_seq))

    assert action.shape == (B, ACTION_LEN)
    assert start_index.shape == (B, S)
    assert end_index.shape == (B, S)
    assert output_seq.shape == (B, S, NTOKEN)
    assert bool(jnp.all(jnp.isfinite(action)))
    assert bool(jnp.all(jnp.isfinite(start_index)))
    assert bool(jnp.all(jnp.isfinite(end_index)))
    assert bool(jnp.all(jnp.isfinite(output_seq)))
    print("KERNEL_OK")
</pallas_src>

<mosaic_0001>
module attributes {stable_mosaic.version = 11 : i64} {
  func.func @_heads_kernel(%arg0: i32, %arg1: memref<2x32xf32, #tpu.memory_space<vmem>>, %arg2: memref<2x32x8xf32, #tpu.memory_space<vmem>>, %arg3: memref<32x32xbf16, #tpu.memory_space<vmem>>, %arg4: memref<1x32xf32, #tpu.memory_space<vmem>>, %arg5: memref<32x8xbf16, #tpu.memory_space<vmem>>, %arg6: memref<1x8xf32, #tpu.memory_space<vmem>>, %arg7: memref<2x32xbf16, #tpu.memory_space<vmem>>, %arg8: memref<2x1xf32, #tpu.memory_space<vmem>>, %arg9: memref<2x8xf32, #tpu.memory_space<vmem>>, %arg10: memref<2x8xf32, #tpu.memory_space<vmem>>, %arg11: memref<2x8xf32, #tpu.memory_space<vmem>>) attributes {dimension_semantics = [#tpu.dimension_semantics<arbitrary>], iteration_bounds = array<i64: 1>, scalar_prefetch = 0 : i64, scratch_operands = 0 : i64, tpu.core_type = #tpu.core_type<tc>, window_params = [{pipeline_mode = #tpu.pipeline_mode<synchronous>, transform_indices = @transform_0, window_bounds = array<i64: 2, 32>}, {pipeline_mode = #tpu.pipeline_mode<synchronous>, transform_indices = @transform_1, window_bounds = array<i64: 2, 32, 8>}, {pipeline_mode = #tpu.pipeline_mode<synchronous>, transform_indices = @transform_2, window_bounds = array<i64: 32, 32>}, {pipeline_mode = #tpu.pipeline_mode<synchronous>, transform_indices = @transform_3, window_bounds = array<i64: 1, 32>}, {pipeline_mode = #tpu.pipeline_mode<synchronous>, transform_indices = @transform_4, window_bounds = array<i64: 32, 8>}, {pipeline_mode = #tpu.pipeline_mode<synchronous>, transform_indices = @transform_5, window_bounds = array<i64: 1, 8>}, {pipeline_mode = #tpu.pipeline_mode<synchronous>, transform_indices = @transform_6, window_bounds = array<i64: 2, 32>}, {pipeline_mode = #tpu.pipeline_mode<synchronous>, transform_indices = @transform_7, window_bounds = array<i64: 2, 1>}, {pipeline_mode = #tpu.pipeline_mode<synchronous>, transform_indices = @transform_8, window_bounds = array<i64: 2, 8>}, {pipeline_mode = #tpu.pipeline_mode<synchronous>, transform_indices = @transform_9, window_bounds = array<i64: 2, 8>}, {pipeline_mode = #tpu.pipeline_mode<synchronous>, transform_indices = @transform_10, window_bounds = array<i64: 2, 8>}]} {
    %c0 = arith.constant 0 : index
    %c0_0 = arith.constant 0 : index
    %0 = vector.load %arg1[%c0, %c0_0] : memref<2x32xf32, #tpu.memory_space<vmem>>, vector<2x32xf32>
    %1 = arith.truncf %0 : vector<2x32xf32> to vector<2x32xbf16>
    %c0_1 = arith.constant 0 : index
    %c0_2 = arith.constant 0 : index
    %2 = vector.load %arg3[%c0_1, %c0_2] : memref<32x32xbf16, #tpu.memory_space<vmem>>, vector<32x32xbf16>
    %cst = arith.constant dense<0.000000e+00> : vector<2x32xf32>
    %3 = tpu.matmul %1, %2, %cst {dimension_numbers = #tpu.dot_dimension_numbers<[1], [0], [0], [1], [0, 0, 1, 1], [], []>} : vector<2x32xbf16>, vector<32x32xbf16>, vector<2x32xf32> -> vector<2x32xf32>
    %c0_3 = arith.constant 0 : index
    %c0_4 = arith.constant 0 : index
    %4 = vector.load %arg4[%c0_3, %c0_4] : memref<1x32xf32, #tpu.memory_space<vmem>>, vector<1x32xf32>
    %5 = vector.broadcast %4 : vector<1x32xf32> to vector<2x32xf32>
    %6 = arith.addf %3, %5 : vector<2x32xf32>
    %7 = math.tanh %6 : vector<2x32xf32>
    %8 = arith.truncf %7 : vector<2x32xf32> to vector<2x32xbf16>
    %c0_5 = arith.constant 0 : index
    %c0_6 = arith.constant 0 : index
    %9 = vector.load %arg5[%c0_5, %c0_6] : memref<32x8xbf16, #tpu.memory_space<vmem>>, vector<32x8xbf16>
    %cst_7 = arith.constant dense<0.000000e+00> : vector<2x8xf32>
    %10 = tpu.matmul %8, %9, %cst_7 {dimension_numbers = #tpu.dot_dimension_numbers<[1], [0], [0], [1], [0, 0, 1, 1], [], []>} : vector<2x32xbf16>, vector<32x8xbf16>, vector<2x8xf32> -> vector<2x8xf32>
    %c0_8 = arith.constant 0 : index
    %c0_9 = arith.constant 0 : index
    %11 = vector.load %arg6[%c0_8, %c0_9] : memref<1x8xf32, #tpu.memory_space<vmem>>, vector<1x8xf32>
    %12 = vector.broadcast %11 : vector<1x8xf32> to vector<2x8xf32>
    %13 = arith.addf %10, %12 : vector<2x8xf32>
    %cst_10 = arith.constant dense<0xFF800000> : vector<2xf32>
    %14 = vector.multi_reduction <maximumf>, %13, %cst_10 [1] : vector<2x8xf32> to vector<2xf32>
    %15 = vector.shape_cast %14 : vector<2xf32> to vector<2x1xf32>
    %16 = vector.broadcast %15 : vector<2x1xf32> to vector<2x8xf32>
    %17 = arith.subf %13, %16 : vector<2x8xf32>
    %18 = math.exp %17 : vector<2x8xf32>
    %cst_11 = arith.constant dense<0.000000e+00> : vector<2xf32>
    %19 = vector.multi_reduction <add>, %18, %cst_11 [1] : vector<2x8xf32> to vector<2xf32>
    %20 = vector.shape_cast %19 : vector<2xf32> to vector<2x1xf32>
    %21 = tpu.reciprocal %20 {approx = true} : vector<2x1xf32> -> vector<2x1xf32>
    %22 = vector.broadcast %21 : vector<2x1xf32> to vector<2x8xf32>
    %23 = arith.mulf %18, %22 : vector<2x8xf32>
    %c0_12 = arith.constant 0 : index
    %c0_13 = arith.constant 0 : index
    %24 = vector.load %arg9[%c0_12, %c0_13] : memref<2x8xf32, #tpu.memory_space<vmem>>, vector<2x8xf32>
    tpu.vector_store %arg9[%c0_12, %c0_13], %23 {strides = array<i32>} : memref<2x8xf32, #tpu.memory_space<vmem>>, vector<2x8xf32>,
    %c0_14 = arith.constant 0 : index
    %c0_15 = arith.constant 0 : index
    %25 = vector.load %arg7[%c0_14, %c0_15] : memref<2x32xbf16, #tpu.memory_space<vmem>>, vector<2x32xbf16>
    %c0_16 = arith.constant 0 : index
    %c0_17 = arith.constant 0 : index
    %26 = vector.load %arg8[%c0_16, %c0_17] : memref<2x1xf32, #tpu.memory_space<vmem>>, vector<2x1xf32>
    %27 = tpu.iota {dimensions = array<i32: 1>} : vector<1x8xi32>
    %c0_18 = arith.constant 0 : index
    %c0_19 = arith.constant 0 : index
    %c0_20 = arith.constant 0 : index
    %28 = vector.load %arg2[%c0_18, %c0_19, %c0_20] : memref<2x32x8xf32, #tpu.memory_space<vmem>>, vector<1x32x8xf32>
    %29 = vector.shape_cast %28 : vector<1x32x8xf32> to vector<32x8xf32>
    %30 = arith.truncf %29 : vector<32x8xf32> to vector<32x8xbf16>
    %cst_21 = arith.constant dense<0.000000e+00> : vector<2x8xf32>
    %31 = tpu.matmul %25, %30, %cst_21 {dimension_numbers = #tpu.dot_dimension_numbers<[1], [0], [0], [1], [0, 0, 1, 1], [], []>} : vector<2x32xbf16>, vector<32x8xbf16>, vector<2x8xf32> -> vector<2x8xf32>
    %32 = vector.broadcast %26 : vector<2x1xf32> to vector<2x8xf32>
    %33 = arith.addf %31, %32 : vector<2x8xf32>
    %34 = vector.extract_strided_slice %33 {offsets = [0, 0], sizes = [1, 8], strides = [1, 1]} : vector<2x8xf32> to vector<1x8xf32>
    %cst_22 = arith.constant dense<0xFF800000> : vector<1xf32>
    %35 = vector.multi_reduction <maximumf>, %34, %cst_22 [1] : vector<1x8xf32> to vector<1xf32>
    %36 = vector.shape_cast %35 : vector<1xf32> to vector<1x1xf32>
    %37 = vector.broadcast %36 : vector<1x1xf32> to vector<1x8xf32>
    %38 = arith.subf %34, %37 : vector<1x8xf32>
    %39 = math.exp %38 : vector<1x8xf32>
    %cst_23 = arith.constant dense<0.000000e+00> : vector<1xf32>
    %40 = vector.multi_reduction <add>, %39, %cst_23 [1] : vector<1x8xf32> to vector<1xf32>
    %41 = vector.shape_cast %40 : vector<1xf32> to vector<1x1xf32>
    %42 = tpu.reciprocal %41 {approx = true} : vector<1x1xf32> -> vector<1x1xf32>
    %43 = vector.broadcast %42 : vector<1x1xf32> to vector<1x8xf32>
    %44 = arith.mulf %39, %43 : vector<1x8xf32>
    %c0_24 = arith.constant 0 : index
    %c0_25 = arith.constant 0 : index
    %45 = vector.load %arg10[%c0_24, %c0_25] : memref<2x8xf32, #tpu.memory_space<vmem>>, vector<1x8xf32>
    tpu.vector_store %arg10[%c0_24, %c0_25], %44 {strides = array<i32>} : memref<2x8xf32, #tpu.memory_space<vmem>>, vector<1x8xf32>,
    %cst_26 = arith.constant dense<0xFF800000> : vector<1xf32>
    %46 = vector.multi_reduction <maximumf>, %44, %cst_26 [1] : vector<1x8xf32> to vector<1xf32>
    %47 = vector.shape_cast %46 : vector<1xf32> to vector<1x1xf32>
    %48 = vector.broadcast %47 : vector<1x1xf32> to vector<1x8xf32>
    %49 = arith.cmpf oge, %44, %48 : vector<1x8xf32>
    %c8_i32 = arith.constant 8 : i32
    %50 = vector.broadcast %c8_i32 : i32 to vector<1x8xi32>
    %51 = arith.select %49, %27, %50 : vector<1x8xi1>, vector<1x8xi32>
    %cst_27 = arith.constant dense<2147483647> : vector<1xi32>
    %52 = vector.multi_reduction <minsi>, %51, %cst_27 [1] : vector<1x8xi32> to vector<1xi32>
    %53 = vector.shape_cast %52 : vector<1xi32> to vector<1x1xi32>
    %54 = vector.broadcast %53 : vector<1x1xi32> to vector<1x8xi32>
    %55 = arith.cmpi slt, %27, %54 : vector<1x8xi32>
    %cst_28 = arith.constant 0xFF800000 : f32
    %cst_29 = arith.constant 0.000000e+00 : f32
    %56 = vector.broadcast %cst_28 : f32 to vector<1x8xf32>
    %57 = vector.broadcast %cst_29 : f32 to vector<1x8xf32>
    %58 = arith.select %55, %56, %57 : vector<1x8xi1>, vector<1x8xf32>
    %59 = vector.extract_strided_slice %33 {offsets = [1, 0], sizes = [1, 8], strides = [1, 1]} : vector<2x8xf32> to vector<1x8xf32>
    %60 = arith.addf %59, %58 : vector<1x8xf32>
    %cst_30 = arith.constant dense<0xFF800000> : vector<1xf32>
    %61 = vector.multi_reduction <maximumf>, %60, %cst_30 [1] : vector<1x8xf32> to vector<1xf32>
    %62 = vector.shape_cast %61 : vector<1xf32> to vector<1x1xf32>
    %63 = vector.broadcast %62 : vector<1x1xf32> to vector<1x8xf32>
    %64 = arith.subf %60, %63 : vector<1x8xf32>
    %65 = math.exp %64 : vector<1x8xf32>
    %cst_31 = arith.constant dense<0.000000e+00> : vector<1xf32>
    %66 = vector.multi_reduction <add>, %65, %cst_31 [1] : vector<1x8xf32> to vector<1xf32>
    %67 = vector.shape_cast %66 : vector<1xf32> to vector<1x1xf32>
    %68 = tpu.reciprocal %67 {approx = true} : vector<1x1xf32> -> vector<1x1xf32>
    %69 = vector.broadcast %68 : vector<1x1xf32> to vector<1x8xf32>
    %70 = arith.mulf %65, %69 : vector<1x8xf32>
    %c0_32 = arith.constant 0 : index
    %c0_33 = arith.constant 0 : index
    %71 = vector.load %arg11[%c0_32, %c0_33] : memref<2x8xf32, #tpu.memory_space<vmem>>, vector<1x8xf32>
    tpu.vector_store %arg11[%c0_32, %c0_33], %70 {strides = array<i32>} : memref<2x8xf32, #tpu.memory_space<vmem>>, vector<1x8xf32>,
    %c1 = arith.constant 1 : index
    %c0_34 = arith.constant 0 : index
    %c0_35 = arith.constant 0 : index
    %72 = vector.load %arg2[%c1, %c0_34, %c0_35] : memref<2x32x8xf32, #tpu.memory_space<vmem>>, vector<1x32x8xf32>
    %73 = vector.shape_cast %72 : vector<1x32x8xf32> to vector<32x8xf32>
    %74 = arith.truncf %73 : vector<32x8xf32> to vector<32x8xbf16>
    %cst_36 = arith.constant dense<0.000000e+00> : vector<2x8xf32>
    %75 = tpu.matmul %25, %74, %cst_36 {dimension_numbers = #tpu.dot_dimension_numbers<[1], [0], [0], [1], [0, 0, 1, 1], [], []>} : vector<2x32xbf16>, vector<32x8xbf16>, vector<2x8xf32> -> vector<2x8xf32>
    %76 = vector.broadcast %26 : vector<2x1xf32> to vector<2x8xf32>
    %77 = arith.addf %75, %76 : vector<2x8xf32>
    %78 = vector.extract_strided_slice %77 {offsets = [0, 0], sizes = [1, 8], strides = [1, 1]} : vector<2x8xf32> to vector<1x8xf32>
    %cst_37 = arith.constant dense<0xFF800000> : vector<1xf32>
    %79 = vector.multi_reduction <maximumf>, %78, %cst_37 [1] : vector<1x8xf32> to vector<1xf32>
    %80 = vector.shape_cast %79 : vector<1xf32> to vector<1x1xf32>
    %81 = vector.broadcast %80 : vector<1x1xf32> to vector<1x8xf32>
    %82 = arith.subf %78, %81 : vector<1x8xf32>
    %83 = math.exp %82 : vector<1x8xf32>
    %cst_38 = arith.constant dense<0.000000e+00> : vector<1xf32>
    %84 = vector.multi_reduction <add>, %83, %cst_38 [1] : vector<1x8xf32> to vector<1xf32>
    %85 = vector.shape_cast %84 : vector<1xf32> to vector<1x1xf32>
    %86 = tpu.reciprocal %85 {approx = true} : vector<1x1xf32> -> vector<1x1xf32>
    %87 = vector.broadcast %86 : vector<1x1xf32> to vector<1x8xf32>
    %88 = arith.mulf %83, %87 : vector<1x8xf32>
    %c1_39 = arith.constant 1 : index
    %c0_40 = arith.constant 0 : index
    %89 = vector.load %arg10[%c1_39, %c0_40] : memref<2x8xf32, #tpu.memory_space<vmem>>, vector<1x8xf32>
    tpu.vector_store %arg10[%c1_39, %c0_40], %88 {strides = array<i32>} : memref<2x8xf32, #tpu.memory_space<vmem>>, vector<1x8xf32>,
    %90 = vector.extract_strided_slice %77 {offsets = [1, 0], sizes = [1, 8], strides = [1, 1]} : vector<2x8xf32> to vector<1x8xf32>
    %91 = arith.addf %90, %58 : vector<1x8xf32>
    %cst_41 = arith.constant dense<0xFF800000> : vector<1xf32>
    %92 = vector.multi_reduction <maximumf>, %91, %cst_41 [1] : vector<1x8xf32> to vector<1xf32>
    %93 = vector.shape_cast %92 : vector<1xf32> to vector<1x1xf32>
    %94 = vector.broadcast %93 : vector<1x1xf32> to vector<1x8xf32>
    %95 = arith.subf %91, %94 : vector<1x8xf32>
    %96 = math.exp %95 : vector<1x8xf32>
    %cst_42 = arith.constant dense<0.000000e+00> : vector<1xf32>
    %97 = vector.multi_reduction <add>, %96, %cst_42 [1] : vector<1x8xf32> to vector<1xf32>
    %98 = vector.shape_cast %97 : vector<1xf32> to vector<1x1xf32>
    %99 = tpu.reciprocal %98 {approx = true} : vector<1x1xf32> -> vector<1x1xf32>
    %100 = vector.broadcast %99 : vector<1x1xf32> to vector<1x8xf32>
    %101 = arith.mulf %96, %100 : vector<1x8xf32>
    %c1_43 = arith.constant 1 : index
    %c0_44 = arith.constant 0 : index
    %102 = vector.load %arg11[%c1_43, %c0_44] : memref<2x8xf32, #tpu.memory_space<vmem>>, vector<1x8xf32>
    tpu.vector_store %arg11[%c1_43, %c0_44], %101 {strides = array<i32>} : memref<2x8xf32, #tpu.memory_space<vmem>>, vector<1x8xf32>,
    return
  }
  func.func @transform_0(%arg0: i32) -> (i32, i32) {
    %c0_i32 = arith.constant 0 : i32
    %c0_i32_0 = arith.constant 0 : i32
    %c0_i32_1 = arith.constant 0 : i32
    return %c0_i32, %c0_i32_0 : i32, i32
  }
  func.func @transform_1(%arg0: i32) -> (i32, i32, i32) {
    %c0_i32 = arith.constant 0 : i32
    %c0_i32_0 = arith.constant 0 : i32
    %c0_i32_1 = arith.constant 0 : i32
    %c0_i32_2 = arith.constant 0 : i32
    return %c0_i32, %c0_i32_0, %c0_i32_1 : i32, i32, i32
  }
  func.func @transform_2(%arg0: i32) -> (i32, i32) {
    %c0_i32 = arith.constant 0 : i32
    %c0_i32_0 = arith.constant 0 : i32
    %c0_i32_1 = arith.constant 0 : i32
    return %c0_i32, %c0_i32_0 : i32, i32
  }
  func.func @transform_3(%arg0: i32) -> (i32, i32) {
    %c0_i32 = arith.constant 0 : i32
    %c0_i32_0 = arith.constant 0 : i32
    %c0_i32_1 = arith.constant 0 : i32
    return %c0_i32, %c0_i32_0 : i32, i32
  }
  func.func @transform_4(%arg0: i32) -> (i32, i32) {
    %c0_i32 = arith.constant 0 : i32
    %c0_i32_0 = arith.constant 0 : i32
    %c0_i32_1 = arith.constant 0 : i32
    return %c0_i32, %c0_i32_0 : i32, i32
  }
  func.func @transform_5(%arg0: i32) -> (i32, i32) {
    %c0_i32 = arith.constant 0 : i32
    %c0_i32_0 = arith.constant 0 : i32
    %c0_i32_1 = arith.constant 0 : i32
    return %c0_i32, %c0_i32_0 : i32, i32
  }
  func.func @transform_6(%arg0: i32) -> (i32, i32) {
    %c0_i32 = arith.constant 0 : i32
    %c0_i32_0 = arith.constant 0 : i32
    %c0_i32_1 = arith.constant 0 : i32
    return %c0_i32, %c0_i32_0 : i32, i32
  }
  func.func @transform_7(%arg0: i32) -> (i32, i32) {
    %c0_i32 = arith.constant 0 : i32
    %c0_i32_0 = arith.constant 0 : i32
    %c0_i32_1 = arith.constant 0 : i32
    return %c0_i32, %c0_i32_0 : i32, i32
  }
  func.func @transform_8(%arg0: i32) -> (i32, i32) {
    %c0_i32 = arith.constant 0 : i32
    %c0_i32_0 = arith.constant 0 : i32
    %c0_i32_1 = arith.constant 0 : i32
    return %c0_i32, %c0_i32_0 : i32, i32
  }
  func.func @transform_9(%arg0: i32) -> (i32, i32) {
    %c0_i32 = arith.constant 0 : i32
    %c0_i32_0 = arith.constant 0 : i32
    %c0_i32_1 = arith.constant 0 : i32
    return %c0_i32, %c0_i32_0 : i32, i32
  }
  func.func @transform_10(%arg0: i32) -> (i32, i32) {
    %c0_i32 = arith.constant 0 : i32
    %c0_i32_0 = arith.constant 0 : i32
    %c0_i32_1 = arith.constant 0 : i32
    return %c0_i32, %c0_i32_0 : i32, i32
  }
}

module attributes {stable_mosaic.version = 11 : i64} {
  func.func @_stacked_layers_kernel(%arg0: i32, %arg1: i32, %arg2: memref<1x8x32xf32, #tpu.memory_space<vmem>>, %arg3: memref<1x1x8xf32, #tpu.memory_space<vmem>>, %arg4: memref<1x32x96xbf16, #tpu.memory_space<vmem>>, %arg5: memref<1x1x96xf32, #tpu.memory_space<vmem>>, %arg6: memref<1x32x32xbf16, #tpu.memory_space<vmem>>, %arg7: memref<1x1x32xf32, #tpu.memory_space<vmem>>, %arg8: memref<1x1x32xf32, #tpu.memory_space<vmem>>, %arg9: memref<1x1x32xf32, #tpu.memory_space<vmem>>, %arg10: memref<1x32x64xbf16, #tpu.memory_space<vmem>>, %arg11: memref<1x1x64xf32, #tpu.memory_space<vmem>>, %arg12: memref<1x64x32xbf16, #tpu.memory_space<vmem>>, %arg13: memref<1x1x32xf32, #tpu.memory_space<vmem>>, %arg14: memref<1x1x32xf32, #tpu.memory_space<vmem>>, %arg15: memref<1x1x32xf32, #tpu.memory_space<vmem>>, %arg16: memref<1x32xf32, #tpu.memory_space<vmem>>, %arg17: memref<1x32xf32, #tpu.memory_space<vmem>>, %arg18: memref<1x8x32xf32, #tpu.memory_space<vmem>>, %arg19: memref<1x8x32xf32, #tpu.memory_space<vmem>>) attributes {dimension_semantics = [#tpu.dimension_semantics<parallel>, #tpu.dimension_semantics<arbitrary>], iteration_bounds = array<i64: 2, 2>, scalar_prefetch = 0 : i64, scratch_operands = 1 : i64, tpu.core_type = #tpu.core_type<tc>, window_params = [{transform_indices = @transform_0, window_bounds = array<i64: 1, 8, 32>}, {transform_indices = @transform_1, window_bounds = array<i64: 1, 1, 8>}, {transform_indices = @transform_2, window_bounds = array<i64: 1, 32, 96>}, {transform_indices = @transform_3, window_bounds = array<i64: 1, 1, 96>}, {transform_indices = @transform_4, window_bounds = array<i64: 1, 32, 32>}, {transform_indices = @transform_5, window_bounds = array<i64: 1, 1, 32>}, {transform_indices = @transform_6, window_bounds = array<i64: 1, 1, 32>}, {transform_indices = @transform_7, window_bounds = array<i64: 1, 1, 32>}, {transform_indices = @transform_8, window_bounds = array<i64: 1, 32, 64>}, {transform_indices = @transform_9, window_bounds = array<i64: 1, 1, 64>}, {transform_indices = @transform_10, window_bounds = array<i64: 1, 64, 32>}, {transform_indices = @transform_11, window_bounds = array<i64: 1, 1, 32>}, {transform_indices = @transform_12, window_bounds = array<i64: 1, 1, 32>}, {transform_indices = @transform_13, window_bounds = array<i64: 1, 1, 32>}, {pipeline_mode = #tpu.pipeline_mode<synchronous>, transform_indices = @transform_14, window_bounds = array<i64: 1, 32>}, {pipeline_mode = #tpu.pipeline_mode<synchronous>, transform_indices = @transform_15, window_bounds = array<i64: 1, 32>}, {transform_indices = @transform_16, window_bounds = array<i64: 1, 8, 32>}]} {
    %c0_i32 = arith.constant 0 : i32
    %0 = arith.cmpi eq, %arg1, %c0_i32 : i32
    %1 = arith.extui %0 : i1 to i32
    %c0_i32_0 = arith.constant 0 : i32
    %2 = arith.cmpi ne, %1, %c0_i32_0 : i32
    scf.if %2 {
      %c0_87 = arith.constant 0 : index
      %c0_88 = arith.constant 0 : index
      %215 = vector.load %arg16[%c0_87, %c0_88] : memref<1x32xf32, #tpu.memory_space<vmem>>, vector<1x32xf32>
      %c0_89 = arith.constant 0 : index
      %c0_90 = arith.constant 0 : index
      %216 = vector.load %arg17[%c0_89, %c0_90] : memref<1x32xf32, #tpu.memory_space<vmem>>, vector<1x32xf32>
      %c0_91 = arith.constant 0 : index
      %c0_92 = arith.constant 0 : index
      %c0_93 = arith.constant 0 : index
      %217 = vector.load %arg2[%c0_91, %c0_92, %c0_93] : memref<1x8x32xf32, #tpu.memory_space<vmem>>, vector<1x8x32xf32>
      %218 = vector.shape_cast %217 : vector<1x8x32xf32> to vector<8x32xf32>
      %cst_94 = arith.constant dense<0.000000e+00> : vector<8xf32>
      %219 = vector.multi_reduction <add>, %218, %cst_94 [1] : vector<8x32xf32> to vector<8xf32>
      %220 = vector.shape_cast %219 : vector<8xf32> to vector<8x1xf32>
      %cst_95 = arith.constant 3.200000e+01 : f32
      %221 = vector.broadcast %cst_95 : f32 to vector<8x1xf32>
      %222 = arith.divf %220, %221 : vector<8x1xf32>
      %223 = vector.broadcast %222 : vector<8x1xf32> to vector<8x32xf32>
      %224 = arith.subf %218, %223 : vector<8x32xf32>
      %225 = arith.mulf %224, %224 : vector<8x32xf32>
      %cst_96 = arith.constant dense<0.000000e+00> : vector<8xf32>
      %226 = vector.multi_reduction <add>, %225, %cst_96 [1] : vector<8x32xf32> to vector<8xf32>
      %227 = vector.shape_cast %226 : vector<8xf32> to vector<8x1xf32>
      %cst_97 = arith.constant 3.200000e+01 : f32
      %228 = vector.broadcast %cst_97 : f32 to vector<8x1xf32>
      %229 = arith.divf %227, %228 : vector<8x1xf32>
      %cst_98 = arith.constant 9.99999996E-13 : f32
      %230 = vector.broadcast %cst_98 : f32 to vector<8x1xf32>
      %231 = arith.addf %229, %230 : vector<8x1xf32>
      %232 = math.rsqrt %231 : vector<8x1xf32>
      %233 = vector.broadcast %232 : vector<8x1xf32> to vector<8x32xf32>
      %234 = arith.mulf %224, %233 : vector<8x32xf32>
      %235 = vector.broadcast %215 : vector<1x32xf32> to vector<8x32xf32>
      %236 = arith.mulf %234, %235 : vector<8x32xf32>
      %237 = vector.broadcast %216 : vector<1x32xf32> to vector<8x32xf32>
      %238 = arith.addf %236, %237 : vector<8x32xf32>
      %c0_99 = arith.constant 0 : index
      %c0_100 = arith.constant 0 : index
      %c0_101 = arith.constant 0 : index
      %239 = vector.load %arg19[%c0_99, %c0_100, %c0_101] : memref<1x8x32xf32, #tpu.memory_space<vmem>>, vector<1x8x32xf32>
      %240 = vector.shape_cast %239 : vector<1x8x32xf32> to vector<8x32xf32>
      %241 = vector.shape_cast %238 : vector<8x32xf32> to vector<1x8x32xf32>
      tpu.vector_store %arg19[%c0_99, %c0_100, %c0_101], %241 {strides = array<i32>} : memref<1x8x32xf32, #tpu.memory_space<vmem>>, vector<1x8x32xf32>,
    } else {
    }
    %c0 = arith.constant 0 : index
    %c0_1 = arith.constant 0 : index
    %c0_2 = arith.constant 0 : index
    %3 = vector.load %arg4[%c0, %c0_1, %c0_2] : memref<1x32x96xbf16, #tpu.memory_space<vmem>>, vector<1x32x96xbf16>
    %4 = vector.shape_cast %3 : vector<1x32x96xbf16> to vector<32x96xbf16>
    %c0_3 = arith.constant 0 : index
    %c0_4 = arith.constant 0 : index
    %c0_5 = arith.constant 0 : index
    %5 = vector.load %arg5[%c0_3, %c0_4, %c0_5] : memref<1x1x96xf32, #tpu.memory_space<vmem>>, vector<1x1x96xf32>
    %6 = vector.shape_cast %5 : vector<1x1x96xf32> to vector<1x96xf32>
    %c0_6 = arith.constant 0 : index
    %c0_7 = arith.constant 0 : index
    %c0_8 = arith.constant 0 : index
    %7 = vector.load %arg6[%c0_6, %c0_7, %c0_8] : memref<1x32x32xbf16, #tpu.memory_space<vmem>>, vector<1x32x32xbf16>
    %8 = vector.shape_cast %7 : vector<1x32x32xbf16> to vector<32x32xbf16>
    %c0_9 = arith.constant 0 : index
    %c0_10 = arith.constant 0 : index
    %c0_11 = arith.constant 0 : index
    %9 = vector.load %arg7[%c0_9, %c0_10, %c0_11] : memref<1x1x32xf32, #tpu.memory_space<vmem>>, vector<1x1x32xf32>
    %10 = vector.shape_cast %9 : vector<1x1x32xf32> to vector<1x32xf32>
    %c0_12 = arith.constant 0 : index
    %c0_13 = arith.constant 0 : index
    %c0_14 = arith.constant 0 : index
    %11 = vector.load %arg10[%c0_12, %c0_13, %c0_14] : memref<1x32x64xbf16, #tpu.memory_space<vmem>>, vector<1x32x64xbf16>
    %12 = vector.shape_cast %11 : vector<1x32x64xbf16> to vector<32x64xbf16>
    %c0_15 = arith.constant 0 : index
    %c0_16 = arith.constant 0 : index
    %c0_17 = arith.constant 0 : index
    %13 = vector.load %arg11[%c0_15, %c0_16, %c0_17] : memref<1x1x64xf32, #tpu.memory_space<vmem>>, vector<1x1x64xf32>
    %14 = vector.shape_cast %13 : vector<1x1x64xf32> to vector<1x64xf32>
    %c0_18 = arith.constant 0 : index
    %c0_19 = arith.constant 0 : index
    %c0_20 = arith.constant 0 : index
    %15 = vector.load %arg12[%c0_18, %c0_19, %c0_20] : memref<1x64x32xbf16, #tpu.memory_space<vmem>>, vector<1x64x32xbf16>
    %16 = vector.shape_cast %15 : vector<1x64x32xbf16> to vector<64x32xbf16>
    %c0_21 = arith.constant 0 : index
    %c0_22 = arith.constant 0 : index
    %c0_23 = arith.constant 0 : index
    %17 = vector.load %arg13[%c0_21, %c0_22, %c0_23] : memref<1x1x32xf32, #tpu.memory_space<vmem>>, vector<1x1x32xf32>
    %18 = vector.shape_cast %17 : vector<1x1x32xf32> to vector<1x32xf32>
    %c0_24 = arith.constant 0 : index
    %c0_25 = arith.constant 0 : index
    %c0_26 = arith.constant 0 : index
    %19 = vector.load %arg8[%c0_24, %c0_25, %c0_26] : memref<1x1x32xf32, #tpu.memory_space<vmem>>, vector<1x1x32xf32>
    %20 = vector.shape_cast %19 : vector<1x1x32xf32> to vector<1x32xf32>
    %c0_27 = arith.constant 0 : index
    %c0_28 = arith.constant 0 : index
    %c0_29 = arith.constant 0 : index
    %21 = vector.load %arg9[%c0_27, %c0_28, %c0_29] : memref<1x1x32xf32, #tpu.memory_space<vmem>>, vector<1x1x32xf32>
    %22 = vector.shape_cast %21 : vector<1x1x32xf32> to vector<1x32xf32>
    %c0_30 = arith.constant 0 : index
    %c0_31 = arith.constant 0 : index
    %c0_32 = arith.constant 0 : index
    %23 = vector.load %arg14[%c0_30, %c0_31, %c0_32] : memref<1x1x32xf32, #tpu.memory_space<vmem>>, vector<1x1x32xf32>
    %24 = vector.shape_cast %23 : vector<1x1x32xf32> to vector<1x32xf32>
    %c0_33 = arith.constant 0 : index
    %c0_34 = arith.constant 0 : index
    %c0_35 = arith.constant 0 : index
    %25 = vector.load %arg15[%c0_33, %c0_34, %c0_35] : memref<1x1x32xf32, #tpu.memory_space<vmem>>, vector<1x1x32xf32>
    %26 = vector.shape_cast %25 : vector<1x1x32xf32> to vector<1x32xf32>
    %c0_36 = arith.constant 0 : index
    %c0_37 = arith.constant 0 : index
    %c0_38 = arith.constant 0 : index
    %27 = vector.load %arg19[%c0_36, %c0_37, %c0_38] : memref<1x8x32xf32, #tpu.memory_space<vmem>>, vector<1x8x32xf32>
    %28 = vector.shape_cast %27 : vector<1x8x32xf32> to vector<8x32xf32>
    %c0_39 = arith.constant 0 : index
    %c0_40 = arith.constant 0 : index
    %c0_41 = arith.constant 0 : index
    %29 = vector.load %arg3[%c0_39, %c0_40, %c0_41] : memref<1x1x8xf32, #tpu.memory_space<vmem>>, vector<1x1x8xf32>
    %30 = vector.shape_cast %29 : vector<1x1x8xf32> to vector<1x8xf32>
    %31 = arith.truncf %28 : vector<8x32xf32> to vector<8x32xbf16>
    %cst = arith.constant dense<0.000000e+00> : vector<8x96xf32>
    %32 = tpu.matmul %31, %4, %cst {dimension_numbers = #tpu.dot_dimension_numbers<[1], [0], [0], [1], [0, 0, 1, 1], [], []>} : vector<8x32xbf16>, vector<32x96xbf16>, vector<8x96xf32> -> vector<8x96xf32>
    %33 = vector.broadcast %6 : vector<1x96xf32> to vector<8x96xf32>
    %34 = arith.addf %32, %33 : vector<8x96xf32>
    %cst_42 = arith.constant 0.000000e+00 : f32
    %35 = vector.broadcast %cst_42 : f32 to vector<8x32xf32>
    %36 = vector.extract_strided_slice %34 {offsets = [0, 0], sizes = [8, 8], strides = [1, 1]} : vector<8x96xf32> to vector<8x8xf32>
    %37 = arith.truncf %36 : vector<8x8xf32> to vector<8x8xbf16>
    %38 = vector.extract_strided_slice %34 {offsets = [0, 32], sizes = [8, 8], strides = [1, 1]} : vector<8x96xf32> to vector<8x8xf32>
    %39 = arith.truncf %38 : vector<8x8xf32> to vector<8x8xbf16>
    %40 = vector.extract_strided_slice %34 {offsets = [0, 64], sizes = [8, 8], strides = [1, 1]} : vector<8x96xf32> to vector<8x8xf32>
    %41 = arith.truncf %40 : vector<8x8xf32> to vector<8x8xbf16>
    %cst_43 = arith.constant dense<0.000000e+00> : vector<8x8xf32>
    %42 = tpu.matmul %37, %39, %cst_43 {dimension_numbers = #tpu.dot_dimension_numbers<[1], [1], [0], [0], [0, 0, 1, 0], [], []>} : vector<8x8xbf16>, vector<8x8xbf16>, vector<8x8xf32> -> vector<8x8xf32>
    %cst_44 = arith.constant 0.353553385 : f32
    %43 = vector.broadcast %cst_44 : f32 to vector<8x8xf32>
    %44 = arith.mulf %42, %43 : vector<8x8xf32>
    %45 = vector.broadcast %30 : vector<1x8xf32> to vector<8x8xf32>
    %46 = arith.addf %44, %45 : vector<8x8xf32>
    %cst_45 = arith.constant dense<0xFF800000> : vector<8xf32>
    %47 = vector.multi_reduction <maximumf>, %46, %cst_45 [1] : vector<8x8xf32> to vector<8xf32>
    %48 = vector.shape_cast %47 : vector<8xf32> to vector<8x1xf32>
    %49 = vector.broadcast %48 : vector<8x1xf32> to vector<8x8xf32>
    %50 = arith.subf %46, %49 : vector<8x8xf32>
    %51 = math.exp %50 : vector<8x8xf32>
    %cst_46 = arith.constant dense<0.000000e+00> : vector<8xf32>
    %52 = vector.multi_reduction <add>, %51, %cst_46 [1] : vector<8x8xf32> to vector<8xf32>
    %53 = vector.shape_cast %52 : vector<8xf32> to vector<8x1xf32>
    %54 = tpu.reciprocal %53 {approx = true} : vector<8x1xf32> -> vector<8x1xf32>
    %55 = vector.broadcast %54 : vector<8x1xf32> to vector<8x8xf32>
    %56 = arith.mulf %51, %55 : vector<8x8xf32>
    %57 = arith.truncf %56 : vector<8x8xf32> to vector<8x8xbf16>
    %cst_47 = arith.constant dense<0.000000e+00> : vector<8x8xf32>
    %58 = tpu.matmul %57, %41, %cst_47 {dimension_numbers = #tpu.dot_dimension_numbers<[1], [0], [0], [1], [0, 0, 1, 1], [], []>} : vector<8x8xbf16>, vector<8x8xbf16>, vector<8x8xf32> -> vector<8x8xf32>
    %59 = arith.truncf %58 : vector<8x8xf32> to vector<8x8xbf16>
    %60 = vector.extract_strided_slice %8 {offsets = [0, 0], sizes = [8, 32], strides = [1, 1]} : vector<32x32xbf16> to vector<8x32xbf16>
    %cst_48 = arith.constant dense<0.000000e+00> : vector<8x32xf32>
    %61 = tpu.matmul %59, %60, %cst_48 {dimension_numbers = #tpu.dot_dimension_numbers<[1], [0], [0], [1], [0, 0, 1, 1], [], []>} : vector<8x8xbf16>, vector<8x32xbf16>, vector<8x32xf32> -> vector<8x32xf32>
    %62 = arith.addf %35, %61 : vector<8x32xf32>
    %63 = vector.extract_strided_slice %34 {offsets = [0, 8], sizes = [8, 8], strides = [1, 1]} : vector<8x96xf32> to vector<8x8xf32>
    %64 = arith.truncf %63 : vector<8x8xf32> to vector<8x8xbf16>
    %65 = vector.extract_strided_slice %34 {offsets = [0, 40], sizes = [8, 8], strides = [1, 1]} : vector<8x96xf32> to vector<8x8xf32>
    %66 = arith.truncf %65 : vector<8x8xf32> to vector<8x8xbf16>
    %67 = vector.extract_strided_slice %34 {offsets = [0, 72], sizes = [8, 8], strides = [1, 1]} : vector<8x96xf32> to vector<8x8xf32>
    %68 = arith.truncf %67 : vector<8x8xf32> to vector<8x8xbf16>
    %cst_49 = arith.constant dense<0.000000e+00> : vector<8x8xf32>
    %69 = tpu.matmul %64, %66, %cst_49 {dimension_numbers = #tpu.dot_dimension_numbers<[1], [1], [0], [0], [0, 0, 1, 0], [], []>} : vector<8x8xbf16>, vector<8x8xbf16>, vector<8x8xf32> -> vector<8x8xf32>
    %cst_50 = arith.constant 0.353553385 : f32
    %70 = vector.broadcast %cst_50 : f32 to vector<8x8xf32>
    %71 = arith.mulf %69, %70 : vector<8x8xf32>
    %72 = vector.broadcast %30 : vector<1x8xf32> to vector<8x8xf32>
    %73 = arith.addf %71, %72 : vector<8x8xf32>
    %cst_51 = arith.constant dense<0xFF800000> : vector<8xf32>
    %74 = vector.multi_reduction <maximumf>, %73, %cst_51 [1] : vector<8x8xf32> to vector<8xf32>
    %75 = vector.shape_cast %74 : vector<8xf32> to vector<8x1xf32>
    %76 = vector.broadcast %75 : vector<8x1xf32> to vector<8x8xf32>
    %77 = arith.subf %73, %76 : vector<8x8xf32>
    %78 = math.exp %77 : vector<8x8xf32>
    %cst_52 = arith.constant dense<0.000000e+00> : vector<8xf32>
    %79 = vector.multi_reduction <add>, %78, %cst_52 [1] : vector<8x8xf32> to vector<8xf32>
    %80 = vector.shape_cast %79 : vector<8xf32> to vector<8x1xf32>
    %81 = tpu.reciprocal %80 {approx = true} : vector<8x1xf32> -> vector<8x1xf32>
    %82 = vector.broadcast %81 : vector<8x1xf32> to vector<8x8xf32>
    %83 = arith.mulf %78, %82 : vector<8x8xf32>
    %84 = arith.truncf %83 : vector<8x8xf32> to vector<8x8xbf16>
    %cst_53 = arith.constant dense<0.000000e+00> : vector<8x8xf32>
    %85 = tpu.matmul %84, %68, %cst_53 {dimension_numbers = #tpu.dot_dimension_numbers<[1], [0], [0], [1], [0, 0, 1, 1], [], []>} : vector<8x8xbf16>, vector<8x8xbf16>, vector<8x8xf32> -> vector<8x8xf32>
    %86 = arith.truncf %85 : vector<8x8xf32> to vector<8x8xbf16>
    %87 = vector.extract_strided_slice %8 {offsets = [8, 0], sizes = [8, 32], strides = [1, 1]} : vector<32x32xbf16> to vector<8x32xbf16>
    %cst_54 = arith.constant dense<0.000000e+00> : vector<8x32xf32>
    %88 = tpu.matmul %86, %87, %cst_54 {dimension_numbers = #tpu.dot_dimension_numbers<[1], [0], [0], [1], [0, 0, 1, 1], [], []>} : vector<8x8xbf16>, vector<8x32xbf16>, vector<8x32xf32> -> vector<8x32xf32>
    %89 = arith.addf %62, %88 : vector<8x32xf32>
    %90 = vector.extract_strided_slice %34 {offsets = [0, 16], sizes = [8, 8], strides = [1, 1]} : vector<8x96xf32> to vector<8x8xf32>
    %91 = arith.truncf %90 : vector<8x8xf32> to vector<8x8xbf16>
    %92 = vector.extract_strided_slice %34 {offsets = [0, 48], sizes = [8, 8], strides = [1, 1]} : vector<8x96xf32> to vector<8x8xf32>
    %93 = arith.truncf %92 : vector<8x8xf32> to vector<8x8xbf16>
    %94 = vector.extract_strided_slice %34 {offsets = [0, 80], sizes = [8, 8], strides = [1, 1]} : vector<8x96xf32> to vector<8x8xf32>
    %95 = arith.truncf %94 : vector<8x8xf32> to vector<8x8xbf16>
    %cst_55 = arith.constant dense<0.000000e+00> : vector<8x8xf32>
    %96 = tpu.matmul %91, %93, %cst_55 {dimension_numbers = #tpu.dot_dimension_numbers<[1], [1], [0], [0], [0, 0, 1, 0], [], []>} : vector<8x8xbf16>, vector<8x8xbf16>, vector<8x8xf32> -> vector<8x8xf32>
    %cst_56 = arith.constant 0.353553385 : f32
    %97 = vector.broadcast %cst_56 : f32 to vector<8x8xf32>
    %98 = arith.mulf %96, %97 : vector<8x8xf32>
    %99 = vector.broadcast %30 : vector<1x8xf32> to vector<8x8xf32>
    %100 = arith.addf %98, %99 : vector<8x8xf32>
    %cst_57 = arith.constant dense<0xFF800000> : vector<8xf32>
    %101 = vector.multi_reduction <maximumf>, %100, %cst_57 [1] : vector<8x8xf32> to vector<8xf32>
    %102 = vector.shape_cast %101 : vector<8xf32> to vector<8x1xf32>
    %103 = vector.broadcast %102 : vector<8x1xf32> to vector<8x8xf32>
    %104 = arith.subf %100, %103 : vector<8x8xf32>
    %105 = math.exp %104 : vector<8x8xf32>
    %cst_58 = arith.constant dense<0.000000e+00> : vector<8xf32>
    %106 = vector.multi_reduction <add>, %105, %cst_58 [1] : vector<8x8xf32> to vector<8xf32>
    %107 = vector.shape_cast %106 : vector<8xf32> to vector<8x1xf32>
    %108 = tpu.reciprocal %107 {approx = true} : vector<8x1xf32> -> vector<8x1xf32>
    %109 = vector.broadcast %108 : vector<8x1xf32> to vector<8x8xf32>
    %110 = arith.mulf %105, %109 : vector<8x8xf32>
    %111 = arith.truncf %110 : vector<8x8xf32> to vector<8x8xbf16>
    %cst_59 = arith.constant dense<0.000000e+00> : vector<8x8xf32>
    %112 = tpu.matmul %111, %95, %cst_59 {dimension_numbers = #tpu.dot_dimension_numbers<[1], [0], [0], [1], [0, 0, 1, 1], [], []>} : vector<8x8xbf16>, vector<8x8xbf16>, vector<8x8xf32> -> vector<8x8xf32>
    %113 = arith.truncf %112 : vector<8x8xf32> to vector<8x8xbf16>
    %114 = vector.extract_strided_slice %8 {offsets = [16, 0], sizes = [8, 32], strides = [1, 1]} : vector<32x32xbf16> to vector<8x32xbf16>
    %cst_60 = arith.constant dense<0.000000e+00> : vector<8x32xf32>
    %115 = tpu.matmul %113, %114, %cst_60 {dimension_numbers = #tpu.dot_dimension_numbers<[1], [0], [0], [1], [0, 0, 1, 1], [], []>} : vector<8x8xbf16>, vector<8x32xbf16>, vector<8x32xf32> -> vector<8x32xf32>
    %116 = arith.addf %89, %115 : vector<8x32xf32>
    %117 = vector.extract_strided_slice %34 {offsets = [0, 24], sizes = [8, 8], strides = [1, 1]} : vector<8x96xf32> to vector<8x8xf32>
    %118 = arith.truncf %117 : vector<8x8xf32> to vector<8x8xbf16>
    %119 = vector.extract_strided_slice %34 {offsets = [0, 56], sizes = [8, 8], strides = [1, 1]} : vector<8x96xf32> to vector<8x8xf32>
    %120 = arith.truncf %119 : vector<8x8xf32> to vector<8x8xbf16>
    %121 = vector.extract_strided_slice %34 {offsets = [0, 88], sizes = [8, 8], strides = [1, 1]} : vector<8x96xf32> to vector<8x8xf32>
    %122 = arith.truncf %121 : vector<8x8xf32> to vector<8x8xbf16>
    %cst_61 = arith.constant dense<0.000000e+00> : vector<8x8xf32>
    %123 = tpu.matmul %118, %120, %cst_61 {dimension_numbers = #tpu.dot_dimension_numbers<[1], [1], [0], [0], [0, 0, 1, 0], [], []>} : vector<8x8xbf16>, vector<8x8xbf16>, vector<8x8xf32> -> vector<8x8xf32>
    %cst_62 = arith.constant 0.353553385 : f32
    %124 = vector.broadcast %cst_62 : f32 to vector<8x8xf32>
    %125 = arith.mulf %123, %124 : vector<8x8xf32>
    %126 = vector.broadcast %30 : vector<1x8xf32> to vector<8x8xf32>
    %127 = arith.addf %125, %126 : vector<8x8xf32>
    %cst_63 = arith.constant dense<0xFF800000> : vector<8xf32>
    %128 = vector.multi_reduction <maximumf>, %127, %cst_63 [1] : vector<8x8xf32> to vector<8xf32>
    %129 = vector.shape_cast %128 : vector<8xf32> to vector<8x1xf32>
    %130 = vector.broadcast %129 : vector<8x1xf32> to vector<8x8xf32>
    %131 = arith.subf %127, %130 : vector<8x8xf32>
    %132 = math.exp %131 : vector<8x8xf32>
    %cst_64 = arith.constant dense<0.000000e+00> : vector<8xf32>
    %133 = vector.multi_reduction <add>, %132, %cst_64 [1] : vector<8x8xf32> to vector<8xf32>
    %134 = vector.shape_cast %133 : vector<8xf32> to vector<8x1xf32>
    %135 = tpu.reciprocal %134 {approx = true} : vector<8x1xf32> -> vector<8x1xf32>
    %136 = vector.broadcast %135 : vector<8x1xf32> to vector<8x8xf32>
    %137 = arith.mulf %132, %136 : vector<8x8xf32>
    %138 = arith.truncf %137 : vector<8x8xf32> to vector<8x8xbf16>
    %cst_65 = arith.constant dense<0.000000e+00> : vector<8x8xf32>
    %139 = tpu.matmul %138, %122, %cst_65 {dimension_numbers = #tpu.dot_dimension_numbers<[1], [0], [0], [1], [0, 0, 1, 1], [], []>} : vector<8x8xbf16>, vector<8x8xbf16>, vector<8x8xf32> -> vector<8x8xf32>
    %140 = arith.truncf %139 : vector<8x8xf32> to vector<8x8xbf16>
    %141 = vector.extract_strided_slice %8 {offsets = [24, 0], sizes = [8, 32], strides = [1, 1]} : vector<32x32xbf16> to vector<8x32xbf16>
    %cst_66 = arith.constant dense<0.000000e+00> : vector<8x32xf32>
    %142 = tpu.matmul %140, %141, %cst_66 {dimension_numbers = #tpu.dot_dimension_numbers<[1], [0], [0], [1], [0, 0, 1, 1], [], []>} : vector<8x8xbf16>, vector<8x32xbf16>, vector<8x32xf32> -> vector<8x32xf32>
    %143 = arith.addf %116, %142 : vector<8x32xf32>
    %144 = vector.broadcast %10 : vector<1x32xf32> to vector<8x32xf32>
    %145 = arith.addf %143, %144 : vector<8x32xf32>
    %146 = arith.addf %28, %145 : vector<8x32xf32>
    %cst_67 = arith.constant dense<0.000000e+00> : vector<8xf32>
    %147 = vector.multi_reduction <add>, %146, %cst_67 [1] : vector<8x32xf32> to vector<8xf32>
    %148 = vector.shape_cast %147 : vector<8xf32> to vector<8x1xf32>
    %cst_68 = arith.constant 3.200000e+01 : f32
    %149 = vector.broadcast %cst_68 : f32 to vector<8x1xf32>
    %150 = arith.divf %148, %149 : vector<8x1xf32>
    %151 = vector.broadcast %150 : vector<8x1xf32> to vector<8x32xf32>
    %152 = arith.subf %146, %151 : vector<8x32xf32>
    %153 = arith.mulf %152, %152 : vector<8x32xf32>
    %cst_69 = arith.constant dense<0.000000e+00> : vector<8xf32>
    %154 = vector.multi_reduction <add>, %153, %cst_69 [1] : vector<8x32xf32> to vector<8xf32>
    %155 = vector.shape_cast %154 : vector<8xf32> to vector<8x1xf32>
    %cst_70 = arith.constant 3.200000e+01 : f32
    %156 = vector.broadcast %cst_70 : f32 to vector<8x1xf32>
    %157 = arith.divf %155, %156 : vector<8x1xf32>
    %cst_71 = arith.constant 9.99999996E-13 : f32
    %158 = vector.broadcast %cst_71 : f32 to vector<8x1xf32>
    %159 = arith.addf %157, %158 : vector<8x1xf32>
    %160 = math.rsqrt %159 : vector<8x1xf32>
    %161 = vector.broadcast %160 : vector<8x1xf32> to vector<8x32xf32>
    %162 = arith.mulf %152, %161 : vector<8x32xf32>
    %163 = vector.broadcast %20 : vector<1x32xf32> to vector<8x32xf32>
    %164 = arith.mulf %162, %163 : vector<8x32xf32>
    %165 = vector.broadcast %22 : vector<1x32xf32> to vector<8x32xf32>
    %166 = arith.addf %164, %165 : vector<8x32xf32>
    %167 = arith.truncf %166 : vector<8x32xf32> to vector<8x32xbf16>
    %cst_72 = arith.constant dense<0.000000e+00> : vector<8x64xf32>
    %168 = tpu.matmul %167, %12, %cst_72 {dimension_numbers = #tpu.dot_dimension_numbers<[1], [0], [0], [1], [0, 0, 1, 1], [], []>} : vector<8x32xbf16>, vector<32x64xbf16>, vector<8x64xf32> -> vector<8x64xf32>
    %169 = vector.broadcast %14 : vector<1x64xf32> to vector<8x64xf32>
    %170 = arith.addf %168, %169 : vector<8x64xf32>
    %cst_73 = arith.constant 5.000000e-01 : f32
    %171 = vector.broadcast %cst_73 : f32 to vector<8x64xf32>
    %172 = arith.mulf %171, %170 : vector<8x64xf32>
    %cst_74 = arith.constant 4.471500e-02 : f32
    %173 = vector.broadcast %cst_74 : f32 to vector<8x64xf32>
    %174 = arith.mulf %173, %170 : vector<8x64xf32>
    %175 = arith.mulf %174, %170 : vector<8x64xf32>
    %176 = arith.mulf %175, %170 : vector<8x64xf32>
    %177 = arith.addf %170, %176 : vector<8x64xf32>
    %cst_75 = arith.constant 0.797884583 : f32
    %178 = vector.broadcast %cst_75 : f32 to vector<8x64xf32>
    %179 = arith.mulf %178, %177 : vector<8x64xf32>
    %180 = math.tanh %179 : vector<8x64xf32>
    %cst_76 = arith.constant 1.000000e+00 : f32
    %181 = vector.broadcast %cst_76 : f32 to vector<8x64xf32>
    %182 = arith.addf %181, %180 : vector<8x64xf32>
    %183 = arith.mulf %172, %182 : vector<8x64xf32>
    %184 = arith.truncf %183 : vector<8x64xf32> to vector<8x64xbf16>
    %cst_77 = arith.constant dense<0.000000e+00> : vector<8x32xf32>
    %185 = tpu.matmul %184, %16, %cst_77 {dimension_numbers = #tpu.dot_dimension_numbers<[1], [0], [0], [1], [0, 0, 1, 1], [], []>} : vector<8x64xbf16>, vector<64x32xbf16>, vector<8x32xf32> -> vector<8x32xf32>
    %186 = vector.broadcast %18 : vector<1x32xf32> to vector<8x32xf32>
    %187 = arith.addf %185, %186 : vector<8x32xf32>
    %188 = arith.addf %166, %187 : vector<8x32xf32>
    %cst_78 = arith.constant dense<0.000000e+00> : vector<8xf32>
    %189 = vector.multi_reduction <add>, %188, %cst_78 [1] : vector<8x32xf32> to vector<8xf32>
    %190 = vector.shape_cast %189 : vector<8xf32> to vector<8x1xf32>
    %cst_79 = arith.constant 3.200000e+01 : f32
    %191 = vector.broadcast %cst_79 : f32 to vector<8x1xf32>
    %192 = arith.divf %190, %191 : vector<8x1xf32>
    %193 = vector.broadcast %192 : vector<8x1xf32> to vector<8x32xf32>
    %194 = arith.subf %188, %193 : vector<8x32xf32>
    %195 = arith.mulf %194, %194 : vector<8x32xf32>
    %cst_80 = arith.constant dense<0.000000e+00> : vector<8xf32>
    %196 = vector.multi_reduction <add>, %195, %cst_80 [1] : vector<8x32xf32> to vector<8xf32>
    %197 = vector.shape_cast %196 : vector<8xf32> to vector<8x1xf32>
    %cst_81 = arith.constant 3.200000e+01 : f32
    %198 = vector.broadcast %cst_81 : f32 to vector<8x1xf32>
    %199 = arith.divf %197, %198 : vector<8x1xf32>
    %cst_82 = arith.constant 9.99999996E-13 : f32
    %200 = vector.broadcast %cst_82 : f32 to vector<8x1xf32>
    %201 = arith.addf %199, %200 : vector<8x1xf32>
    %202 = math.rsqrt %201 : vector<8x1xf32>
    %203 = vector.broadcast %202 : vector<8x1xf32> to vector<8x32xf32>
    %204 = arith.mulf %194, %203 : vector<8x32xf32>
    %205 = vector.broadcast %24 : vector<1x32xf32> to vector<8x32xf32>
    %206 = arith.mulf %204, %205 : vector<8x32xf32>
    %207 = vector.broadcast %26 : vector<1x32xf32> to vector<8x32xf32>
    %208 = arith.addf %206, %207 : vector<8x32xf32>
    %c0_83 = arith.constant 0 : index
    %c0_84 = arith.constant 0 : index
    %c0_85 = arith.constant 0 : index
    %209 = vector.load %arg19[%c0_83, %c0_84, %c0_85] : memref<1x8x32xf32, #tpu.memory_space<vmem>>, vector<1x8x32xf32>
    %210 = vector.shape_cast %209 : vector<1x8x32xf32> to vector<8x32xf32>
    %211 = vector.shape_cast %208 : vector<8x32xf32> to vector<1x8x32xf32>
    tpu.vector_store %arg19[%c0_83, %c0_84, %c0_85], %211 {strides = array<i32>} : memref<1x8x32xf32, #tpu.memory_space<vmem>>, vector<1x8x32xf32>,
    %c1_i32 = arith.constant 1 : i32
    %212 = arith.cmpi eq, %arg1, %c1_i32 : i32
    %213 = arith.extui %212 : i1 to i32
    %c0_i32_86 = arith.constant 0 : i32
    %214 = arith.cmpi ne, %213, %c0_i32_86 : i32
    scf.if %214 {
      %c0_87 = arith.constant 0 : index
      %c0_88 = arith.constant 0 : index
      %c0_89 = arith.constant 0 : index
      %215 = vector.load %arg19[%c0_87, %c0_88, %c0_89] : memref<1x8x32xf32, #tpu.memory_space<vmem>>, vector<1x8x32xf32>
      %c0_90 = arith.constant 0 : index
      %c0_91 = arith.constant 0 : index
      %c0_92 = arith.constant 0 : index
      %216 = vector.load %arg18[%c0_90, %c0_91, %c0_92] : memref<1x8x32xf32, #tpu.memory_space<vmem>>, vector<1x8x32xf32>
      tpu.vector_store %arg18[%c0_90, %c0_91, %c0_92], %215 {strides = array<i32>} : memref<1x8x32xf32, #tpu.memory_space<vmem>>, vector<1x8x32xf32>,
    } else {
    }
    return
  }
  func.func @transform_0(%arg0: i32, %arg1: i32) -> (i32, i32, i32) {
    %c0_i32 = arith.constant 0 : i32
    %c0_i32_0 = arith.constant 0 : i32
    %c0_i32_1 = arith.constant 0 : i32
    return %arg0, %c0_i32, %c0_i32_0 : i32, i32, i32
  }
  func.func @transform_1(%arg0: i32, %arg1: i32) -> (i32, i32, i32) {
    %c0_i32 = arith.constant 0 : i32
    %c0_i32_0 = arith.constant 0 : i32
    %c0_i32_1 = arith.constant 0 : i32
    return %arg0, %c0_i32, %c0_i32_0 : i32, i32, i32
  }
  func.func @transform_2(%arg0: i32, %arg1: i32) -> (i32, i32, i32) {
    %c0_i32 = arith.constant 0 : i32
    %c0_i32_0 = arith.constant 0 : i32
    %c0_i32_1 = arith.constant 0 : i32
    return %arg1, %c0_i32, %c0_i32_0 : i32, i32, i32
  }
  func.func @transform_3(%arg0: i32, %arg1: i32) -> (i32, i32, i32) {
    %c0_i32 = arith.constant 0 : i32
    %c0_i32_0 = arith.constant 0 : i32
    %c0_i32_1 = arith.constant 0 : i32
    return %arg1, %c0_i32, %c0_i32_0 : i32, i32, i32
  }
  func.func @transform_4(%arg0: i32, %arg1: i32) -> (i32, i32, i32) {
    %c0_i32 = arith.constant 0 : i32
    %c0_i32_0 = arith.constant 0 : i32
    %c0_i32_1 = arith.constant 0 : i32
    return %arg1, %c0_i32, %c0_i32_0 : i32, i32, i32
  }
  func.func @transform_5(%arg0: i32, %arg1: i32) -> (i32, i32, i32) {
    %c0_i32 = arith.constant 0 : i32
    %c0_i32_0 = arith.constant 0 : i32
    %c0_i32_1 = arith.constant 0 : i32
    return %arg1, %c0_i32, %c0_i32_0 : i32, i32, i32
  }
  func.func @transform_6(%arg0: i32, %arg1: i32) -> (i32, i32, i32) {
    %c0_i32 = arith.constant 0 : i32
    %c0_i32_0 = arith.constant 0 : i32
    %c0_i32_1 = arith.constant 0 : i32
    return %arg1, %c0_i32, %c0_i32_0 : i32, i32, i32
  }
  func.func @transform_7(%arg0: i32, %arg1: i32) -> (i32, i32, i32) {
    %c0_i32 = arith.constant 0 : i32
    %c0_i32_0 = arith.constant 0 : i32
    %c0_i32_1 = arith.constant 0 : i32
    return %arg1, %c0_i32, %c0_i32_0 : i32, i32, i32
  }
  func.func @transform_8(%arg0: i32, %arg1: i32) -> (i32, i32, i32) {
    %c0_i32 = arith.constant 0 : i32
    %c0_i32_0 = arith.constant 0 : i32
    %c0_i32_1 = arith.constant 0 : i32
    return %arg1, %c0_i32, %c0_i32_0 : i32, i32, i32
  }
  func.func @transform_9(%arg0: i32, %arg1: i32) -> (i32, i32, i32) {
    %c0_i32 = arith.constant 0 : i32
    %c0_i32_0 = arith.constant 0 : i32
    %c0_i32_1 = arith.constant 0 : i32
    return %arg1, %c0_i32, %c0_i32_0 : i32, i32, i32
  }
  func.func @transform_10(%arg0: i32, %arg1: i32) -> (i32, i32, i32) {
    %c0_i32 = arith.constant 0 : i32
    %c0_i32_0 = arith.constant 0 : i32
    %c0_i32_1 = arith.constant 0 : i32
    return %arg1, %c0_i32, %c0_i32_0 : i32, i32, i32
  }
  func.func @transform_11(%arg0: i32, %arg1: i32) -> (i32, i32, i32) {
    %c0_i32 = arith.constant 0 : i32
    %c0_i32_0 = arith.constant 0 : i32
    %c0_i32_1 = arith.constant 0 : i32
    return %arg1, %c0_i32, %c0_i32_0 : i32, i32, i32
  }
  func.func @transform_12(%arg0: i32, %arg1: i32) -> (i32, i32, i32) {
    %c0_i32 = arith.constant 0 : i32
    %c0_i32_0 = arith.constant 0 : i32
    %c0_i32_1 = arith.constant 0 : i32
    return %arg1, %c0_i32, %c0_i32_0 : i32, i32, i32
  }
  func.func @transform_13(%arg0: i32, %arg1: i32) -> (i32, i32, i32) {
    %c0_i32 = arith.constant 0 : i32
    %c0_i32_0 = arith.constant 0 : i32
    %c0_i32_1 = arith.constant 0 : i32
    return %arg1, %c0_i32, %c0_i32_0 : i32, i32, i32
  }
  func.func @transform_14(%arg0: i32, %arg1: i32) -> (i32, i32) {
    %c0_i32 = arith.constant 0 : i32
    %c0_i32_0 = arith.constant 0 : i32
    %c0_i32_1 = arith.constant 0 : i32
    return %c0_i32, %c0_i32_0 : i32, i32
  }
  func.func @transform_15(%arg0: i32, %arg1: i32) -> (i32, i32) {
    %c0_i32 = arith.constant 0 : i32
    %c0_i32_0 = arith.constant 0 : i32
    %c0_i32_1 = arith.constant 0 : i32
    return %c0_i32, %c0_i32_0 : i32, i32
  }
  func.func @transform_16(%arg0: i32, %arg1: i32) -> (i32, i32, i32) {
    %c0_i32 = arith.constant 0 : i32
    %c0_i32_0 = arith.constant 0 : i32
    %c0_i32_1 = arith.constant 0 : i32
    return %arg0, %c0_i32, %c0_i32_0 : i32, i32, i32
  }
}

module attributes {stable_mosaic.version = 11 : i64} {
  func.func @_linear_kernel(%arg0: i32, %arg1: memref<16x32xf32, #tpu.memory_space<vmem>>, %arg2: memref<32x48xbf16, #tpu.memory_space<vmem>>, %arg3: memref<1x48xf32, #tpu.memory_space<vmem>>, %arg4: memref<16x48xf32, #tpu.memory_space<vmem>>) attributes {dimension_semantics = [#tpu.dimension_semantics<arbitrary>], iteration_bounds = array<i64: 1>, scalar_prefetch = 0 : i64, scratch_operands = 0 : i64, tpu.core_type = #tpu.core_type<tc>, window_params = [{pipeline_mode = #tpu.pipeline_mode<synchronous>, transform_indices = @transform_0, window_bounds = array<i64: 16, 32>}, {pipeline_mode = #tpu.pipeline_mode<synchronous>, transform_indices = @transform_1, window_bounds = array<i64: 32, 48>}, {pipeline_mode = #tpu.pipeline_mode<synchronous>, transform_indices = @transform_2, window_bounds = array<i64: 1, 48>}, {pipeline_mode = #tpu.pipeline_mode<synchronous>, transform_indices = @transform_3, window_bounds = array<i64: 16, 48>}]} {
    %c0 = arith.constant 0 : index
    %c0_0 = arith.constant 0 : index
    %0 = vector.load %arg1[%c0, %c0_0] : memref<16x32xf32, #tpu.memory_space<vmem>>, vector<16x32xf32>
    %1 = arith.truncf %0 : vector<16x32xf32> to vector<16x32xbf16>
    %c0_1 = arith.constant 0 : index
    %c0_2 = arith.constant 0 : index
    %2 = vector.load %arg2[%c0_1, %c0_2] : memref<32x48xbf16, #tpu.memory_space<vmem>>, vector<32x48xbf16>
    %cst = arith.constant dense<0.000000e+00> : vector<16x48xf32>
    %3 = tpu.matmul %1, %2, %cst {dimension_numbers = #tpu.dot_dimension_numbers<[1], [0], [0], [1], [0, 0, 1, 1], [], []>} : vector<16x32xbf16>, vector<32x48xbf16>, vector<16x48xf32> -> vector<16x48xf32>
    %c0_3 = arith.constant 0 : index
    %c0_4 = arith.constant 0 : index
    %4 = vector.load %arg3[%c0_3, %c0_4] : memref<1x48xf32, #tpu.memory_space<vmem>>, vector<1x48xf32>
    %5 = vector.broadcast %4 : vector<1x48xf32> to vector<16x48xf32>
    %6 = arith.addf %3, %5 : vector<16x48xf32>
    %c0_5 = arith.constant 0 : index
    %c0_6 = arith.constant 0 : index
    %7 = vector.load %arg4[%c0_5, %c0_6] : memref<16x48xf32, #tpu.memory_space<vmem>>, vector<16x48xf32>
    tpu.vector_store %arg4[%c0_5, %c0_6], %6 {strides = array<i32>} : memref<16x48xf32, #tpu.memory_space<vmem>>, vector<16x48xf32>,
    return
  }
  func.func @transform_0(%arg0: i32) -> (i32, i32) {
    %c0_i32 = arith.constant 0 : i32
    %c0_i32_0 = arith.constant 0 : i32
    %c0_i32_1 = arith.constant 0 : i32
    return %c0_i32, %c0_i32_0 : i32, i32
  }
  func.func @transform_1(%arg0: i32) -> (i32, i32) {
    %c0_i32 = arith.constant 0 : i32
    %c0_i32_0 = arith.constant 0 : i32
    %c0_i32_1 = arith.constant 0 : i32
    return %c0_i32, %c0_i32_0 : i32, i32
  }
  func.func @transform_2(%arg0: i32) -> (i32, i32) {
    %c0_i32 = arith.constant 0 : i32
    %c0_i32_0 = arith.constant 0 : i32
    %c0_i32_1 = arith.constant 0 : i32
    return %c0_i32, %c0_i32_0 : i32, i32
  }
  func.func @transform_3(%arg0: i32) -> (i32, i32) {
    %c0_i32 = arith.constant 0 : i32
    %c0_i32_0 = arith.constant 0 : i32
    %c0_i32_1 = arith.constant 0 : i32
    return %c0_i32, %c0_i32_0 : i32, i32
  }
}

module attributes {stable_mosaic.version = 11 : i64} {
  func.func @_stacked_layers_kernel(%arg0: i32, %arg1: i32, %arg2: memref<4x2x32xf32, #tpu.memory_space<vmem>>, %arg3: memref<1x2x2xf32, #tpu.memory_space<vmem>>, %arg4: memref<1x32x96xbf16, #tpu.memory_space<vmem>>, %arg5: memref<1x1x96xf32, #tpu.memory_space<vmem>>, %arg6: memref<1x32x32xbf16, #tpu.memory_space<vmem>>, %arg7: memref<1x1x32xf32, #tpu.memory_space<vmem>>, %arg8: memref<1x1x32xf32, #tpu.memory_space<vmem>>, %arg9: memref<1x1x32xf32, #tpu.memory_space<vmem>>, %arg10: memref<1x32x64xbf16, #tpu.memory_space<vmem>>, %arg11: memref<1x1x64xf32, #tpu.memory_space<vmem>>, %arg12: memref<1x64x32xbf16, #tpu.memory_space<vmem>>, %arg13: memref<1x1x32xf32, #tpu.memory_space<vmem>>, %arg14: memref<1x1x32xf32, #tpu.memory_space<vmem>>, %arg15: memref<1x1x32xf32, #tpu.memory_space<vmem>>, %arg16: memref<4x2x32xf32, #tpu.memory_space<vmem>>, %arg17: memref<4x2x32xf32, #tpu.memory_space<vmem>>) attributes {dimension_semantics = [#tpu.dimension_semantics<parallel>, #tpu.dimension_semantics<arbitrary>], iteration_bounds = array<i64: 2, 2>, scalar_prefetch = 0 : i64, scratch_operands = 1 : i64, tpu.core_type = #tpu.core_type<tc>, window_params = [{transform_indices = @transform_0, window_bounds = array<i64: 4, 2, 32>}, {pipeline_mode = #tpu.pipeline_mode<synchronous>, transform_indices = @transform_1, window_bounds = array<i64: 1, 2, 2>}, {transform_indices = @transform_2, window_bounds = array<i64: 1, 32, 96>}, {transform_indices = @transform_3, window_bounds = array<i64: 1, 1, 96>}, {transform_indices = @transform_4, window_bounds = array<i64: 1, 32, 32>}, {transform_indices = @transform_5, window_bounds = array<i64: 1, 1, 32>}, {transform_indices = @transform_6, window_bounds = array<i64: 1, 1, 32>}, {transform_indices = @transform_7, window_bounds = array<i64: 1, 1, 32>}, {transform_indices = @transform_8, window_bounds = array<i64: 1, 32, 64>}, {transform_indices = @transform_9, window_bounds = array<i64: 1, 1, 64>}, {transform_indices = @transform_10, window_bounds = array<i64: 1, 64, 32>}, {transform_indices = @transform_11, window_bounds = array<i64: 1, 1, 32>}, {transform_indices = @transform_12, window_bounds = array<i64: 1, 1, 32>}, {transform_indices = @transform_13, window_bounds = array<i64: 1, 1, 32>}, {transform_indices = @transform_14, window_bounds = array<i64: 4, 2, 32>}]} {
    %c0_i32 = arith.constant 0 : i32
    %0 = arith.cmpi eq, %arg1, %c0_i32 : i32
    %1 = arith.extui %0 : i1 to i32
    %c0_i32_0 = arith.constant 0 : i32
    %2 = arith.cmpi ne, %1, %c0_i32_0 : i32
    scf.if %2 {
      %c0_225 = arith.constant 0 : index
      %c0_226 = arith.constant 0 : index
      %c0_227 = arith.constant 0 : index
      %710 = vector.load %arg2[%c0_225, %c0_226, %c0_227] : memref<4x2x32xf32, #tpu.memory_space<vmem>>, vector<4x2x32xf32>
      %c0_228 = arith.constant 0 : index
      %c0_229 = arith.constant 0 : index
      %c0_230 = arith.constant 0 : index
      %711 = vector.load %arg17[%c0_228, %c0_229, %c0_230] : memref<4x2x32xf32, #tpu.memory_space<vmem>>, vector<4x2x32xf32>
      tpu.vector_store %arg17[%c0_228, %c0_229, %c0_230], %710 {strides = array<i32>} : memref<4x2x32xf32, #tpu.memory_space<vmem>>, vector<4x2x32xf32>,
    } else {
    }
    %c0 = arith.constant 0 : index
    %c0_1 = arith.constant 0 : index
    %c0_2 = arith.constant 0 : index
    %3 = vector.load %arg4[%c0, %c0_1, %c0_2] : memref<1x32x96xbf16, #tpu.memory_space<vmem>>, vector<1x32x96xbf16>
    %4 = vector.shape_cast %3 : vector<1x32x96xbf16> to vector<32x96xbf16>
    %c0_3 = arith.constant 0 : index
    %c0_4 = arith.constant 0 : index
    %c0_5 = arith.constant 0 : index
    %5 = vector.load %arg5[%c0_3, %c0_4, %c0_5] : memref<1x1x96xf32, #tpu.memory_space<vmem>>, vector<1x1x96xf32>
    %6 = vector.shape_cast %5 : vector<1x1x96xf32> to vector<1x96xf32>
    %c0_6 = arith.constant 0 : index
    %c0_7 = arith.constant 0 : index
    %c0_8 = arith.constant 0 : index
    %7 = vector.load %arg6[%c0_6, %c0_7, %c0_8] : memref<1x32x32xbf16, #tpu.memory_space<vmem>>, vector<1x32x32xbf16>
    %8 = vector.shape_cast %7 : vector<1x32x32xbf16> to vector<32x32xbf16>
    %c0_9 = arith.constant 0 : index
    %c0_10 = arith.constant 0 : index
    %c0_11 = arith.constant 0 : index
    %9 = vector.load %arg7[%c0_9, %c0_10, %c0_11] : memref<1x1x32xf32, #tpu.memory_space<vmem>>, vector<1x1x32xf32>
    %10 = vector.shape_cast %9 : vector<1x1x32xf32> to vector<1x32xf32>
    %c0_12 = arith.constant 0 : index
    %c0_13 = arith.constant 0 : index
    %c0_14 = arith.constant 0 : index
    %11 = vector.load %arg10[%c0_12, %c0_13, %c0_14] : memref<1x32x64xbf16, #tpu.memory_space<vmem>>, vector<1x32x64xbf16>
    %12 = vector.shape_cast %11 : vector<1x32x64xbf16> to vector<32x64xbf16>
    %c0_15 = arith.constant 0 : index
    %c0_16 = arith.constant 0 : index
    %c0_17 = arith.constant 0 : index
    %13 = vector.load %arg11[%c0_15, %c0_16, %c0_17] : memref<1x1x64xf32, #tpu.memory_space<vmem>>, vector<1x1x64xf32>
    %14 = vector.shape_cast %13 : vector<1x1x64xf32> to vector<1x64xf32>
    %c0_18 = arith.constant 0 : index
    %c0_19 = arith.constant 0 : index
    %c0_20 = arith.constant 0 : index
    %15 = vector.load %arg12[%c0_18, %c0_19, %c0_20] : memref<1x64x32xbf16, #tpu.memory_space<vmem>>, vector<1x64x32xbf16>
    %16 = vector.shape_cast %15 : vector<1x64x32xbf16> to vector<64x32xbf16>
    %c0_21 = arith.constant 0 : index
    %c0_22 = arith.constant 0 : index
    %c0_23 = arith.constant 0 : index
    %17 = vector.load %arg13[%c0_21, %c0_22, %c0_23] : memref<1x1x32xf32, #tpu.memory_space<vmem>>, vector<1x1x32xf32>
    %18 = vector.shape_cast %17 : vector<1x1x32xf32> to vector<1x32xf32>
    %c0_24 = arith.constant 0 : index
    %c0_25 = arith.constant 0 : index
    %c0_26 = arith.constant 0 : index
    %19 = vector.load %arg8[%c0_24, %c0_25, %c0_26] : memref<1x1x32xf32, #tpu.memory_space<vmem>>, vector<1x1x32xf32>
    %20 = vector.shape_cast %19 : vector<1x1x32xf32> to vector<1x32xf32>
    %c0_27 = arith.constant 0 : index
    %c0_28 = arith.constant 0 : index
    %c0_29 = arith.constant 0 : index
    %21 = vector.load %arg9[%c0_27, %c0_28, %c0_29] : memref<1x1x32xf32, #tpu.memory_space<vmem>>, vector<1x1x32xf32>
    %22 = vector.shape_cast %21 : vector<1x1x32xf32> to vector<1x32xf32>
    %c0_30 = arith.constant 0 : index
    %c0_31 = arith.constant 0 : index
    %c0_32 = arith.constant 0 : index
    %23 = vector.load %arg14[%c0_30, %c0_31, %c0_32] : memref<1x1x32xf32, #tpu.memory_space<vmem>>, vector<1x1x32xf32>
    %24 = vector.shape_cast %23 : vector<1x1x32xf32> to vector<1x32xf32>
    %c0_33 = arith.constant 0 : index
    %c0_34 = arith.constant 0 : index
    %c0_35 = arith.constant 0 : index
    %25 = vector.load %arg15[%c0_33, %c0_34, %c0_35] : memref<1x1x32xf32, #tpu.memory_space<vmem>>, vector<1x1x32xf32>
    %26 = vector.shape_cast %25 : vector<1x1x32xf32> to vector<1x32xf32>
    %c0_36 = arith.constant 0 : index
    %c0_37 = arith.constant 0 : index
    %c0_38 = arith.constant 0 : index
    %27 = vector.load %arg17[%c0_36, %c0_37, %c0_38] : memref<4x2x32xf32, #tpu.memory_space<vmem>>, vector<1x2x32xf32>
    %28 = vector.shape_cast %27 : vector<1x2x32xf32> to vector<2x32xf32>
    %c0_39 = arith.constant 0 : index
    %c0_40 = arith.constant 0 : index
    %c0_41 = arith.constant 0 : index
    %29 = vector.load %arg3[%c0_39, %c0_40, %c0_41] : memref<1x2x2xf32, #tpu.memory_space<vmem>>, vector<1x2x2xf32>
    %30 = vector.shape_cast %29 : vector<1x2x2xf32> to vector<2x2xf32>
    %31 = arith.truncf %28 : vector<2x32xf32> to vector<2x32xbf16>
    %cst = arith.constant dense<0.000000e+00> : vector<2x96xf32>
    %32 = tpu.matmul %31, %4, %cst {dimension_numbers = #tpu.dot_dimension_numbers<[1], [0], [0], [1], [0, 0, 1, 1], [], []>} : vector<2x32xbf16>, vector<32x96xbf16>, vector<2x96xf32> -> vector<2x96xf32>
    %33 = vector.broadcast %6 : vector<1x96xf32> to vector<2x96xf32>
    %34 = arith.addf %32, %33 : vector<2x96xf32>
    %cst_42 = arith.constant 0.000000e+00 : f32
    %35 = vector.broadcast %cst_42 : f32 to vector<2x32xf32>
    %36 = vector.extract_strided_slice %34 {offsets = [0, 0], sizes = [2, 8], strides = [1, 1]} : vector<2x96xf32> to vector<2x8xf32>
    %37 = arith.truncf %36 : vector<2x8xf32> to vector<2x8xbf16>
    %38 = vector.extract_strided_slice %34 {offsets = [0, 32], sizes = [2, 8], strides = [1, 1]} : vector<2x96xf32> to vector<2x8xf32>
    %39 = arith.truncf %38 : vector<2x8xf32> to vector<2x8xbf16>
    %40 = vector.extract_strided_slice %34 {offsets = [0, 64], sizes = [2, 8], strides = [1, 1]} : vector<2x96xf32> to vector<2x8xf32>
    %41 = arith.truncf %40 : vector<2x8xf32> to vector<2x8xbf16>
    %cst_43 = arith.constant dense<0.000000e+00> : vector<2x2xf32>
    %42 = tpu.matmul %37, %39, %cst_43 {dimension_numbers = #tpu.dot_dimension_numbers<[1], [1], [0], [0], [0, 0, 1, 0], [], []>} : vector<2x8xbf16>, vector<2x8xbf16>, vector<2x2xf32> -> vector<2x2xf32>
    %cst_44 = arith.constant 0.353553385 : f32
    %43 = vector.broadcast %cst_44 : f32 to vector<2x2xf32>
    %44 = arith.mulf %42, %43 : vector<2x2xf32>
    %45 = arith.addf %44, %30 : vector<2x2xf32>
    %cst_45 = arith.constant dense<0xFF800000> : vector<2xf32>
    %46 = vector.multi_reduction <maximumf>, %45, %cst_45 [1] : vector<2x2xf32> to vector<2xf32>
    %47 = vector.shape_cast %46 : vector<2xf32> to vector<2x1xf32>
    %48 = vector.broadcast %47 : vector<2x1xf32> to vector<2x2xf32>
    %49 = arith.subf %45, %48 : vector<2x2xf32>
    %50 = math.exp %49 : vector<2x2xf32>
    %cst_46 = arith.constant dense<0.000000e+00> : vector<2xf32>
    %51 = vector.multi_reduction <add>, %50, %cst_46 [1] : vector<2x2xf32> to vector<2xf32>
    %52 = vector.shape_cast %51 : vector<2xf32> to vector<2x1xf32>
    %53 = tpu.reciprocal %52 {approx = true} : vector<2x1xf32> -> vector<2x1xf32>
    %54 = vector.broadcast %53 : vector<2x1xf32> to vector<2x2xf32>
    %55 = arith.mulf %50, %54 : vector<2x2xf32>
    %56 = arith.truncf %55 : vector<2x2xf32> to vector<2x2xbf16>
    %cst_47 = arith.constant dense<0.000000e+00> : vector<2x8xf32>
    %57 = tpu.matmul %56, %41, %cst_47 {dimension_numbers = #tpu.dot_dimension_numbers<[1], [0], [0], [1], [0, 0, 1, 1], [], []>} : vector<2x2xbf16>, vector<2x8xbf16>, vector<2x8xf32> -> vector<2x8xf32>
    %58 = arith.truncf %57 : vector<2x8xf32> to vector<2x8xbf16>
    %59 = vector.extract_strided_slice %8 {offsets = [0, 0], sizes = [8, 32], strides = [1, 1]} : vector<32x32xbf16> to vector<8x32xbf16>
    %cst_48 = arith.constant dense<0.000000e+00> : vector<2x32xf32>
    %60 = tpu.matmul %58, %59, %cst_48 {dimension_numbers = #tpu.dot_dimension_numbers<[1], [0], [0], [1], [0, 0, 1, 1], [], []>} : vector<2x8xbf16>, vector<8x32xbf16>, vector<2x32xf32> -> vector<2x32xf32>
    %61 = arith.addf %35, %60 : vector<2x32xf32>
    %62 = vector.extract_strided_slice %34 {offsets = [0, 8], sizes = [2, 8], strides = [1, 1]} : vector<2x96xf32> to vector<2x8xf32>
    %63 = arith.truncf %62 : vector<2x8xf32> to vector<2x8xbf16>
    %64 = vector.extract_strided_slice %34 {offsets = [0, 40], sizes = [2, 8], strides = [1, 1]} : vector<2x96xf32> to vector<2x8xf32>
    %65 = arith.truncf %64 : vector<2x8xf32> to vector<2x8xbf16>
    %66 = vector.extract_strided_slice %34 {offsets = [0, 72], sizes = [2, 8], strides = [1, 1]} : vector<2x96xf32> to vector<2x8xf32>
    %67 = arith.truncf %66 : vector<2x8xf32> to vector<2x8xbf16>
    %cst_49 = arith.constant dense<0.000000e+00> : vector<2x2xf32>
    %68 = tpu.matmul %63, %65, %cst_49 {dimension_numbers = #tpu.dot_dimension_numbers<[1], [1], [0], [0], [0, 0, 1, 0], [], []>} : vector<2x8xbf16>, vector<2x8xbf16>, vector<2x2xf32> -> vector<2x2xf32>
    %cst_50 = arith.constant 0.353553385 : f32
    %69 = vector.broadcast %cst_50 : f32 to vector<2x2xf32>
    %70 = arith.mulf %68, %69 : vector<2x2xf32>
    %71 = arith.addf %70, %30 : vector<2x2xf32>
    %cst_51 = arith.constant dense<0xFF800000> : vector<2xf32>
    %72 = vector.multi_reduction <maximumf>, %71, %cst_51 [1] : vector<2x2xf32> to vector<2xf32>
    %73 = vector.shape_cast %72 : vector<2xf32> to vector<2x1xf32>
    %74 = vector.broadcast %73 : vector<2x1xf32> to vector<2x2xf32>
    %75 = arith.subf %71, %74 : vector<2x2xf32>
    %76 = math.exp %75 : vector<2x2xf32>
    %cst_52 = arith.constant dense<0.000000e+00> : vector<2xf32>
    %77 = vector.multi_reduction <add>, %76, %cst_52 [1] : vector<2x2xf32> to vector<2xf32>
    %78 = vector.shape_cast %77 : vector<2xf32> to vector<2x1xf32>
    %79 = tpu.reciprocal %78 {approx = true} : vector<2x1xf32> -> vector<2x1xf32>
    %80 = vector.broadcast %79 : vector<2x1xf32> to vector<2x2xf32>
    %81 = arith.mulf %76, %80 : vector<2x2xf32>
    %82 = arith.truncf %81 : vector<2x2xf32> to vector<2x2xbf16>
    %cst_53 = arith.constant dense<0.000000e+00> : vector<2x8xf32>
    %83 = tpu.matmul %82, %67, %cst_53 {dimension_numbers = #tpu.dot_dimension_numbers<[1], [0], [0], [1], [0, 0, 1, 1], [], []>} : vector<2x2xbf16>, vector<2x8xbf16>, vector<2x8xf32> -> vector<2x8xf32>
    %84 = arith.truncf %83 : vector<2x8xf32> to vector<2x8xbf16>
    %85 = vector.extract_strided_slice %8 {offsets = [8, 0], sizes = [8, 32], strides = [1, 1]} : vector<32x32xbf16> to vector<8x32xbf16>
    %cst_54 = arith.constant dense<0.000000e+00> : vector<2x32xf32>
    %86 = tpu.matmul %84, %85, %cst_54 {dimension_numbers = #tpu.dot_dimension_numbers<[1], [0], [0], [1], [0, 0, 1, 1], [], []>} : vector<2x8xbf16>, vector<8x32xbf16>, vector<2x32xf32> -> vector<2x32xf32>
    %87 = arith.addf %61, %86 : vector<2x32xf32>
    %88 = vector.extract_strided_slice %34 {offsets = [0, 16], sizes = [2, 8], strides = [1, 1]} : vector<2x96xf32> to vector<2x8xf32>
    %89 = arith.truncf %88 : vector<2x8xf32> to vector<2x8xbf16>
    %90 = vector.extract_strided_slice %34 {offsets = [0, 48], sizes = [2, 8], strides = [1, 1]} : vector<2x96xf32> to vector<2x8xf32>
    %91 = arith.truncf %90 : vector<2x8xf32> to vector<2x8xbf16>
    %92 = vector.extract_strided_slice %34 {offsets = [0, 80], sizes = [2, 8], strides = [1, 1]} : vector<2x96xf32> to vector<2x8xf32>
    %93 = arith.truncf %92 : vector<2x8xf32> to vector<2x8xbf16>
    %cst_55 = arith.constant dense<0.000000e+00> : vector<2x2xf32>
    %94 = tpu.matmul %89, %91, %cst_55 {dimension_numbers = #tpu.dot_dimension_numbers<[1], [1], [0], [0], [0, 0, 1, 0], [], []>} : vector<2x8xbf16>, vector<2x8xbf16>, vector<2x2xf32> -> vector<2x2xf32>
    %cst_56 = arith.constant 0.353553385 : f32
    %95 = vector.broadcast %cst_56 : f32 to vector<2x2xf32>
    %96 = arith.mulf %94, %95 : vector<2x2xf32>
    %97 = arith.addf %96, %30 : vector<2x2xf32>
    %cst_57 = arith.constant dense<0xFF800000> : vector<2xf32>
    %98 = vector.multi_reduction <maximumf>, %97, %cst_57 [1] : vector<2x2xf32> to vector<2xf32>
    %99 = vector.shape_cast %98 : vector<2xf32> to vector<2x1xf32>
    %100 = vector.broadcast %99 : vector<2x1xf32> to vector<2x2xf32>
    %101 = arith.subf %97, %100 : vector<2x2xf32>
    %102 = math.exp %101 : vector<2x2xf32>
    %cst_58 = arith.constant dense<0.000000e+00> : vector<2xf32>
    %103 = vector.multi_reduction <add>, %102, %cst_58 [1] : vector<2x2xf32> to vector<2xf32>
    %104 = vector.shape_cast %103 : vector<2xf32> to vector<2x1xf32>
    %105 = tpu.reciprocal %104 {approx = true} : vector<2x1xf32> -> vector<2x1xf32>
    %106 = vector.broadcast %105 : vector<2x1xf32> to vector<2x2xf32>
    %107 = arith.mulf %102, %106 : vector<2x2xf32>
    %108 = arith.truncf %107 : vector<2x2xf32> to vector<2x2xbf16>
    %cst_59 = arith.constant dense<0.000000e+00> : vector<2x8xf32>
    %109 = tpu.matmul %108, %93, %cst_59 {dimension_numbers = #tpu.dot_dimension_numbers<[1], [0], [0], [1], [0, 0, 1, 1], [], []>} : vector<2x2xbf16>, vector<2x8xbf16>, vector<2x8xf32> -> vector<2x8xf32>
    %110 = arith.truncf %109 : vector<2x8xf32> to vector<2x8xbf16>
    %111 = vector.extract_strided_slice %8 {offsets = [16, 0], sizes = [8, 32], strides = [1, 1]} : vector<32x32xbf16> to vector<8x32xbf16>
    %cst_60 = arith.constant dense<0.000000e+00> : vector<2x32xf32>
    %112 = tpu.matmul %110, %111, %cst_60 {dimension_numbers = #tpu.dot_dimension_numbers<[1], [0], [0], [1], [0, 0, 1, 1], [], []>} : vector<2x8xbf16>, vector<8x32xbf16>, vector<2x32xf32> -> vector<2x32xf32>
    %113 = arith.addf %87, %112 : vector<2x32xf32>
    %114 = vector.extract_strided_slice %34 {offsets = [0, 24], sizes = [2, 8], strides = [1, 1]} : vector<2x96xf32> to vector<2x8xf32>
    %115 = arith.truncf %114 : vector<2x8xf32> to vector<2x8xbf16>
    %116 = vector.extract_strided_slice %34 {offsets = [0, 56], sizes = [2, 8], strides = [1, 1]} : vector<2x96xf32> to vector<2x8xf32>
    %117 = arith.truncf %116 : vector<2x8xf32> to vector<2x8xbf16>
    %118 = vector.extract_strided_slice %34 {offsets = [0, 88], sizes = [2, 8], strides = [1, 1]} : vector<2x96xf32> to vector<2x8xf32>
    %119 = arith.truncf %118 : vector<2x8xf32> to vector<2x8xbf16>
    %cst_61 = arith.constant dense<0.000000e+00> : vector<2x2xf32>
    %120 = tpu.matmul %115, %117, %cst_61 {dimension_numbers = #tpu.dot_dimension_numbers<[1], [1], [0], [0], [0, 0, 1, 0], [], []>} : vector<2x8xbf16>, vector<2x8xbf16>, vector<2x2xf32> -> vector<2x2xf32>
    %cst_62 = arith.constant 0.353553385 : f32
    %121 = vector.broadcast %cst_62 : f32 to vector<2x2xf32>
    %122 = arith.mulf %120, %121 : vector<2x2xf32>
    %123 = arith.addf %122, %30 : vector<2x2xf32>
    %cst_63 = arith.constant dense<0xFF800000> : vector<2xf32>
    %124 = vector.multi_reduction <maximumf>, %123, %cst_63 [1] : vector<2x2xf32> to vector<2xf32>
    %125 = vector.shape_cast %124 : vector<2xf32> to vector<2x1xf32>
    %126 = vector.broadcast %125 : vector<2x1xf32> to vector<2x2xf32>
    %127 = arith.subf %123, %126 : vector<2x2xf32>
    %128 = math.exp %127 : vector<2x2xf32>
    %cst_64 = arith.constant dense<0.000000e+00> : vector<2xf32>
    %129 = vector.multi_reduction <add>, %128, %cst_64 [1] : vector<2x2xf32> to vector<2xf32>
    %130 = vector.shape_cast %129 : vector<2xf32> to vector<2x1xf32>
    %131 = tpu.reciprocal %130 {approx = true} : vector<2x1xf32> -> vector<2x1xf32>
    %132 = vector.broadcast %131 : vector<2x1xf32> to vector<2x2xf32>
    %133 = arith.mulf %128, %132 : vector<2x2xf32>
    %134 = arith.truncf %133 : vector<2x2xf32> to vector<2x2xbf16>
    %cst_65 = arith.constant dense<0.000000e+00> : vector<2x8xf32>
    %135 = tpu.matmul %134, %119, %cst_65 {dimension_numbers = #tpu.dot_dimension_numbers<[1], [0], [0], [1], [0, 0, 1, 1], [], []>} : vector<2x2xbf16>, vector<2x8xbf16>, vector<2x8xf32> -> vector<2x8xf32>
    %136 = arith.truncf %135 : vector<2x8xf32> to vector<2x8xbf16>
    %137 = vector.extract_strided_slice %8 {offsets = [24, 0], sizes = [8, 32], strides = [1, 1]} : vector<32x32xbf16> to vector<8x32xbf16>
    %cst_66 = arith.constant dense<0.000000e+00> : vector<2x32xf32>
    %138 = tpu.matmul %136, %137, %cst_66 {dimension_numbers = #tpu.dot_dimension_numbers<[1], [0], [0], [1], [0, 0, 1, 1], [], []>} : vector<2x8xbf16>, vector<8x32xbf16>, vector<2x32xf32> -> vector<2x32xf32>
    %139 = arith.addf %113, %138 : vector<2x32xf32>
    %140 = vector.broadcast %10 : vector<1x32xf32> to vector<2x32xf32>
    %141 = arith.addf %139, %140 : vector<2x32xf32>
    %142 = arith.addf %28, %141 : vector<2x32xf32>
    %cst_67 = arith.constant dense<0.000000e+00> : vector<2xf32>
    %143 = vector.multi_reduction <add>, %142, %cst_67 [1] : vector<2x32xf32> to vector<2xf32>
    %144 = vector.shape_cast %143 : vector<2xf32> to vector<2x1xf32>
    %cst_68 = arith.constant 3.200000e+01 : f32
    %145 = vector.broadcast %cst_68 : f32 to vector<2x1xf32>
    %146 = arith.divf %144, %145 : vector<2x1xf32>
    %147 = vector.broadcast %146 : vector<2x1xf32> to vector<2x32xf32>
    %148 = arith.subf %142, %147 : vector<2x32xf32>
    %149 = arith.mulf %148, %148 : vector<2x32xf32>
    %cst_69 = arith.constant dense<0.000000e+00> : vector<2xf32>
    %150 = vector.multi_reduction <add>, %149, %cst_69 [1] : vector<2x32xf32> to vector<2xf32>
    %151 = vector.shape_cast %150 : vector<2xf32> to vector<2x1xf32>
    %cst_70 = arith.constant 3.200000e+01 : f32
    %152 = vector.broadcast %cst_70 : f32 to vector<2x1xf32>
    %153 = arith.divf %151, %152 : vector<2x1xf32>
    %cst_71 = arith.constant 9.99999974E-6 : f32
    %154 = vector.broadcast %cst_71 : f32 to vector<2x1xf32>
    %155 = arith.addf %153, %154 : vector<2x1xf32>
    %156 = math.rsqrt %155 : vector<2x1xf32>
    %157 = vector.broadcast %156 : vector<2x1xf32> to vector<2x32xf32>
    %158 = arith.mulf %148, %157 : vector<2x32xf32>
    %159 = vector.broadcast %20 : vector<1x32xf32> to vector<2x32xf32>
    %160 = arith.mulf %158, %159 : vector<2x32xf32>
    %161 = vector.broadcast %22 : vector<1x32xf32> to vector<2x32xf32>
    %162 = arith.addf %160, %161 : vector<2x32xf32>
    %163 = arith.truncf %162 : vector<2x32xf32> to vector<2x32xbf16>
    %cst_72 = arith.constant dense<0.000000e+00> : vector<2x64xf32>
    %164 = tpu.matmul %163, %12, %cst_72 {dimension_numbers = #tpu.dot_dimension_numbers<[1], [0], [0], [1], [0, 0, 1, 1], [], []>} : vector<2x32xbf16>, vector<32x64xbf16>, vector<2x64xf32> -> vector<2x64xf32>
    %165 = vector.broadcast %14 : vector<1x64xf32> to vector<2x64xf32>
    %166 = arith.addf %164, %165 : vector<2x64xf32>
    %cst_73 = arith.constant 0.000000e+00 : f32
    %167 = vector.broadcast %cst_73 : f32 to vector<2x64xf32>
    %168 = arith.maximumf %166, %167 : vector<2x64xf32>
    %169 = arith.truncf %168 : vector<2x64xf32> to vector<2x64xbf16>
    %cst_74 = arith.constant dense<0.000000e+00> : vector<2x32xf32>
    %170 = tpu.matmul %169, %16, %cst_74 {dimension_numbers = #tpu.dot_dimension_numbers<[1], [0], [0], [1], [0, 0, 1, 1], [], []>} : vector<2x64xbf16>, vector<64x32xbf16>, vector<2x32xf32> -> vector<2x32xf32>
    %171 = vector.broadcast %18 : vector<1x32xf32> to vector<2x32xf32>
    %172 = arith.addf %170, %171 : vector<2x32xf32>
    %173 = arith.addf %162, %172 : vector<2x32xf32>
    %cst_75 = arith.constant dense<0.000000e+00> : vector<2xf32>
    %174 = vector.multi_reduction <add>, %173, %cst_75 [1] : vector<2x32xf32> to vector<2xf32>
    %175 = vector.shape_cast %174 : vector<2xf32> to vector<2x1xf32>
    %cst_76 = arith.constant 3.200000e+01 : f32
    %176 = vector.broadcast %cst_76 : f32 to vector<2x1xf32>
    %177 = arith.divf %175, %176 : vector<2x1xf32>
    %178 = vector.broadcast %177 : vector<2x1xf32> to vector<2x32xf32>
    %179 = arith.subf %173, %178 : vector<2x32xf32>
    %180 = arith.mulf %179, %179 : vector<2x32xf32>
    %cst_77 = arith.constant dense<0.000000e+00> : vector<2xf32>
    %181 = vector.multi_reduction <add>, %180, %cst_77 [1] : vector<2x32xf32> to vector<2xf32>
    %182 = vector.shape_cast %181 : vector<2xf32> to vector<2x1xf32>
    %cst_78 = arith.constant 3.200000e+01 : f32
    %183 = vector.broadcast %cst_78 : f32 to vector<2x1xf32>
    %184 = arith.divf %182, %183 : vector<2x1xf32>
    %cst_79 = arith.constant 9.99999974E-6 : f32
    %185 = vector.broadcast %cst_79 : f32 to vector<2x1xf32>
    %186 = arith.addf %184, %185 : vector<2x1xf32>
    %187 = math.rsqrt %186 : vector<2x1xf32>
    %188 = vector.broadcast %187 : vector<2x1xf32> to vector<2x32xf32>
    %189 = arith.mulf %179, %188 : vector<2x32xf32>
    %190 = vector.broadcast %24 : vector<1x32xf32> to vector<2x32xf32>
    %191 = arith.mulf %189, %190 : vector<2x32xf32>
    %192 = vector.broadcast %26 : vector<1x32xf32> to vector<2x32xf32>
    %193 = arith.addf %191, %192 : vector<2x32xf32>
    %c0_80 = arith.constant 0 : index
    %c0_81 = arith.constant 0 : index
    %c0_82 = arith.constant 0 : index
    %194 = vector.load %arg17[%c0_80, %c0_81, %c0_82] : memref<4x2x32xf32, #tpu.memory_space<vmem>>, vector<1x2x32xf32>
    %195 = vector.shape_cast %194 : vector<1x2x32xf32> to vector<2x32xf32>
    %196 = vector.shape_cast %193 : vector<2x32xf32> to vector<1x2x32xf32>
    tpu.vector_store %arg17[%c0_80, %c0_81, %c0_82], %196 {strides = array<i32>} : memref<4x2x32xf32, #tpu.memory_space<vmem>>, vector<1x2x32xf32>,
    %c1 = arith.constant 1 : index
    %c0_83 = arith.constant 0 : index
    %c0_84 = arith.constant 0 : index
    %197 = vector.load %arg17[%c1, %c0_83, %c0_84] : memref<4x2x32xf32, #tpu.memory_space<vmem>>, vector<1x2x32xf32>
    %198 = vector.shape_cast %197 : vector<1x2x32xf32> to vector<2x32xf32>
    %c0_85 = arith.constant 0 : index
    %c0_86 = arith.constant 0 : index
    %c0_87 = arith.constant 0 : index
    %199 = vector.load %arg3[%c0_85, %c0_86, %c0_87] : memref<1x2x2xf32, #tpu.memory_space<vmem>>, vector<1x2x2xf32>
    %200 = vector.shape_cast %199 : vector<1x2x2xf32> to vector<2x2xf32>
    %201 = arith.truncf %198 : vector<2x32xf32> to vector<2x32xbf16>
    %cst_88 = arith.constant dense<0.000000e+00> : vector<2x96xf32>
    %202 = tpu.matmul %201, %4, %cst_88 {dimension_numbers = #tpu.dot_dimension_numbers<[1], [0], [0], [1], [0, 0, 1, 1], [], []>} : vector<2x32xbf16>, vector<32x96xbf16>, vector<2x96xf32> -> vector<2x96xf32>
    %203 = vector.broadcast %6 : vector<1x96xf32> to vector<2x96xf32>
    %204 = arith.addf %202, %203 : vector<2x96xf32>
    %cst_89 = arith.constant 0.000000e+00 : f32
    %205 = vector.broadcast %cst_89 : f32 to vector<2x32xf32>
    %206 = vector.extract_strided_slice %204 {offsets = [0, 0], sizes = [2, 8], strides = [1, 1]} : vector<2x96xf32> to vector<2x8xf32>
    %207 = arith.truncf %206 : vector<2x8xf32> to vector<2x8xbf16>
    %208 = vector.extract_strided_slice %204 {offsets = [0, 32], sizes = [2, 8], strides = [1, 1]} : vector<2x96xf32> to vector<2x8xf32>
    %209 = arith.truncf %208 : vector<2x8xf32> to vector<2x8xbf16>
    %210 = vector.extract_strided_slice %204 {offsets = [0, 64], sizes = [2, 8], strides = [1, 1]} : vector<2x96xf32> to vector<2x8xf32>
    %211 = arith.truncf %210 : vector<2x8xf32> to vector<2x8xbf16>
    %cst_90 = arith.constant dense<0.000000e+00> : vector<2x2xf32>
    %212 = tpu.matmul %207, %209, %cst_90 {dimension_numbers = #tpu.dot_dimension_numbers<[1], [1], [0], [0], [0, 0, 1, 0], [], []>} : vector<2x8xbf16>, vector<2x8xbf16>, vector<2x2xf32> -> vector<2x2xf32>
    %cst_91 = arith.constant 0.353553385 : f32
    %213 = vector.broadcast %cst_91 : f32 to vector<2x2xf32>
    %214 = arith.mulf %212, %213 : vector<2x2xf32>
    %215 = arith.addf %214, %200 : vector<2x2xf32>
    %cst_92 = arith.constant dense<0xFF800000> : vector<2xf32>
    %216 = vector.multi_reduction <maximumf>, %215, %cst_92 [1] : vector<2x2xf32> to vector<2xf32>
    %217 = vector.shape_cast %216 : vector<2xf32> to vector<2x1xf32>
    %218 = vector.broadcast %217 : vector<2x1xf32> to vector<2x2xf32>
    %219 = arith.subf %215, %218 : vector<2x2xf32>
    %220 = math.exp %219 : vector<2x2xf32>
    %cst_93 = arith.constant dense<0.000000e+00> : vector<2xf32>
    %221 = vector.multi_reduction <add>, %220, %cst_93 [1] : vector<2x2xf32> to vector<2xf32>
    %222 = vector.shape_cast %221 : vector<2xf32> to vector<2x1xf32>
    %223 = tpu.reciprocal %222 {approx = true} : vector<2x1xf32> -> vector<2x1xf32>
    %224 = vector.broadcast %223 : vector<2x1xf32> to vector<2x2xf32>
    %225 = arith.mulf %220, %224 : vector<2x2xf32>
    %226 = arith.truncf %225 : vector<2x2xf32> to vector<2x2xbf16>
    %cst_94 = arith.constant dense<0.000000e+00> : vector<2x8xf32>
    %227 = tpu.matmul %226, %211, %cst_94 {dimension_numbers = #tpu.dot_dimension_numbers<[1], [0], [0], [1], [0, 0, 1, 1], [], []>} : vector<2x2xbf16>, vector<2x8xbf16>, vector<2x8xf32> -> vector<2x8xf32>
    %228 = arith.truncf %227 : vector<2x8xf32> to vector<2x8xbf16>
    %229 = vector.extract_strided_slice %8 {offsets = [0, 0], sizes = [8, 32], strides = [1, 1]} : vector<32x32xbf16> to vector<8x32xbf16>
    %cst_95 = arith.constant dense<0.000000e+00> : vector<2x32xf32>
    %230 = tpu.matmul %228, %229, %cst_95 {dimension_numbers = #tpu.dot_dimension_numbers<[1], [0], [0], [1], [0, 0, 1, 1], [], []>} : vector<2x8xbf16>, vector<8x32xbf16>, vector<2x32xf32> -> vector<2x32xf32>
    %231 = arith.addf %205, %230 : vector<2x32xf32>
    %232 = vector.extract_strided_slice %204 {offsets = [0, 8], sizes = [2, 8], strides = [1, 1]} : vector<2x96xf32> to vector<2x8xf32>
    %233 = arith.truncf %232 : vector<2x8xf32> to vector<2x8xbf16>
    %234 = vector.extract_strided_slice %204 {offsets = [0, 40], sizes = [2, 8], strides = [1, 1]} : vector<2x96xf32> to vector<2x8xf32>
    %235 = arith.truncf %234 : vector<2x8xf32> to vector<2x8xbf16>
    %236 = vector.extract_strided_slice %204 {offsets = [0, 72], sizes = [2, 8], strides = [1, 1]} : vector<2x96xf32> to vector<2x8xf32>
    %237 = arith.truncf %236 : vector<2x8xf32> to vector<2x8xbf16>
    %cst_96 = arith.constant dense<0.000000e+00> : vector<2x2xf32>
    %238 = tpu.matmul %233, %235, %cst_96 {dimension_numbers = #tpu.dot_dimension_numbers<[1], [1], [0], [0], [0, 0, 1, 0], [], []>} : vector<2x8xbf16>, vector<2x8xbf16>, vector<2x2xf32> -> vector<2x2xf32>
    %cst_97 = arith.constant 0.353553385 : f32
    %239 = vector.broadcast %cst_97 : f32 to vector<2x2xf32>
    %240 = arith.mulf %238, %239 : vector<2x2xf32>
    %241 = arith.addf %240, %200 : vector<2x2xf32>
    %cst_98 = arith.constant dense<0xFF800000> : vector<2xf32>
    %242 = vector.multi_reduction <maximumf>, %241, %cst_98 [1] : vector<2x2xf32> to vector<2xf32>
    %243 = vector.shape_cast %242 : vector<2xf32> to vector<2x1xf32>
    %244 = vector.broadcast %243 : vector<2x1xf32> to vector<2x2xf32>
    %245 = arith.subf %241, %244 : vector<2x2xf32>
    %246 = math.exp %245 : vector<2x2xf32>
    %cst_99 = arith.constant dense<0.000000e+00> : vector<2xf32>
    %247 = vector.multi_reduction <add>, %246, %cst_99 [1] : vector<2x2xf32> to vector<2xf32>
    %248 = vector.shape_cast %247 : vector<2xf32> to vector<2x1xf32>
    %249 = tpu.reciprocal %248 {approx = true} : vector<2x1xf32> -> vector<2x1xf32>
    %250 = vector.broadcast %249 : vector<2x1xf32> to vector<2x2xf32>
    %251 = arith.mulf %246, %250 : vector<2x2xf32>
    %252 = arith.truncf %251 : vector<2x2xf32> to vector<2x2xbf16>
    %cst_100 = arith.constant dense<0.000000e+00> : vector<2x8xf32>
    %253 = tpu.matmul %252, %237, %cst_100 {dimension_numbers = #tpu.dot_dimension_numbers<[1], [0], [0], [1], [0, 0, 1, 1], [], []>} : vector<2x2xbf16>, vector<2x8xbf16>, vector<2x8xf32> -> vector<2x8xf32>
    %254 = arith.truncf %253 : vector<2x8xf32> to vector<2x8xbf16>
    %255 = vector.extract_strided_slice %8 {offsets = [8, 0], sizes = [8, 32], strides = [1, 1]} : vector<32x32xbf16> to vector<8x32xbf16>
    %cst_101 = arith.constant dense<0.000000e+00> : vector<2x32xf32>
    %256 = tpu.matmul %254, %255, %cst_101 {dimension_numbers = #tpu.dot_dimension_numbers<[1], [0], [0], [1], [0, 0, 1, 1], [], []>} : vector<2x8xbf16>, vector<8x32xbf16>, vector<2x32xf32> -> vector<2x32xf32>
    %257 = arith.addf %231, %256 : vector<2x32xf32>
    %258 = vector.extract_strided_slice %204 {offsets = [0, 16], sizes = [2, 8], strides = [1, 1]} : vector<2x96xf32> to vector<2x8xf32>
    %259 = arith.truncf %258 : vector<2x8xf32> to vector<2x8xbf16>
    %260 = vector.extract_strided_slice %204 {offsets = [0, 48], sizes = [2, 8], strides = [1, 1]} : vector<2x96xf32> to vector<2x8xf32>
    %261 = arith.truncf %260 : vector<2x8xf32> to vector<2x8xbf16>
    %262 = vector.extract_strided_slice %204 {offsets = [0, 80], sizes = [2, 8], strides = [1, 1]} : vector<2x96xf32> to vector<2x8xf32>
    %263 = arith.truncf %262 : vector<2x8xf32> to vector<2x8xbf16>
    %cst_102 = arith.constant dense<0.000000e+00> : vector<2x2xf32>
    %264 = tpu.matmul %259, %261, %cst_102 {dimension_numbers = #tpu.dot_dimension_numbers<[1], [1], [0], [0], [0, 0, 1, 0], [], []>} : vector<2x8xbf16>, vector<2x8xbf16>, vector<2x2xf32> -> vector<2x2xf32>
    %cst_103 = arith.constant 0.353553385 : f32
    %265 = vector.broadcast %cst_103 : f32 to vector<2x2xf32>
    %266 = arith.mulf %264, %265 : vector<2x2xf32>
    %267 = arith.addf %266, %200 : vector<2x2xf32>
    %cst_104 = arith.constant dense<0xFF800000> : vector<2xf32>
    %268 = vector.multi_reduction <maximumf>, %267, %cst_104 [1] : vector<2x2xf32> to vector<2xf32>
    %269 = vector.shape_cast %268 : vector<2xf32> to vector<2x1xf32>
    %270 = vector.broadcast %269 : vector<2x1xf32> to vector<2x2xf32>
    %271 = arith.subf %267, %270 : vector<2x2xf32>
    %272 = math.exp %271 : vector<2x2xf32>
    %cst_105 = arith.constant dense<0.000000e+00> : vector<2xf32>
    %273 = vector.multi_reduction <add>, %272, %cst_105 [1] : vector<2x2xf32> to vector<2xf32>
    %274 = vector.shape_cast %273 : vector<2xf32> to vector<2x1xf32>
    %275 = tpu.reciprocal %274 {approx = true} : vector<2x1xf32> -> vector<2x1xf32>
    %276 = vector.broadcast %275 : vector<2x1xf32> to vector<2x2xf32>
    %277 = arith.mulf %272, %276 : vector<2x2xf32>
    %278 = arith.truncf %277 : vector<2x2xf32> to vector<2x2xbf16>
    %cst_106 = arith.constant dense<0.000000e+00> : vector<2x8xf32>
    %279 = tpu.matmul %278, %263, %cst_106 {dimension_numbers = #tpu.dot_dimension_numbers<[1], [0], [0], [1], [0, 0, 1, 1], [], []>} : vector<2x2xbf16>, vector<2x8xbf16>, vector<2x8xf32> -> vector<2x8xf32>
    %280 = arith.truncf %279 : vector<2x8xf32> to vector<2x8xbf16>
    %281 = vector.extract_strided_slice %8 {offsets = [16, 0], sizes = [8, 32], strides = [1, 1]} : vector<32x32xbf16> to vector<8x32xbf16>
    %cst_107 = arith.constant dense<0.000000e+00> : vector<2x32xf32>
    %282 = tpu.matmul %280, %281, %cst_107 {dimension_numbers = #tpu.dot_dimension_numbers<[1], [0], [0], [1], [0, 0, 1, 1], [], []>} : vector<2x8xbf16>, vector<8x32xbf16>, vector<2x32xf32> -> vector<2x32xf32>
    %283 = arith.addf %257, %282 : vector<2x32xf32>
    %284 = vector.extract_strided_slice %204 {offsets = [0, 24], sizes = [2, 8], strides = [1, 1]} : vector<2x96xf32> to vector<2x8xf32>
    %285 = arith.truncf %284 : vector<2x8xf32> to vector<2x8xbf16>
    %286 = vector.extract_strided_slice %204 {offsets = [0, 56], sizes = [2, 8], strides = [1, 1]} : vector<2x96xf32> to vector<2x8xf32>
    %287 = arith.truncf %286 : vector<2x8xf32> to vector<2x8xbf16>
    %288 = vector.extract_strided_slice %204 {offsets = [0, 88], sizes = [2, 8], strides = [1, 1]} : vector<2x96xf32> to vector<2x8xf32>
    %289 = arith.truncf %288 : vector<2x8xf32> to vector<2x8xbf16>
    %cst_108 = arith.constant dense<0.000000e+00> : vector<2x2xf32>
    %290 = tpu.matmul %285, %287, %cst_108 {dimension_numbers = #tpu.dot_dimension_numbers<[1], [1], [0], [0], [0, 0, 1, 0], [], []>} : vector<2x8xbf16>, vector<2x8xbf16>, vector<2x2xf32> -> vector<2x2xf32>
    %cst_109 = arith.constant 0.353553385 : f32
    %291 = vector.broadcast %cst_109 : f32 to vector<2x2xf32>
    %292 = arith.mulf %290, %291 : vector<2x2xf32>
    %293 = arith.addf %292, %200 : vector<2x2xf32>
    %cst_110 = arith.constant dense<0xFF800000> : vector<2xf32>
    %294 = vector.multi_reduction <maximumf>, %293, %cst_110 [1] : vector<2x2xf32> to vector<2xf32>
    %295 = vector.shape_cast %294 : vector<2xf32> to vector<2x1xf32>
    %296 = vector.broadcast %295 : vector<2x1xf32> to vector<2x2xf32>
    %297 = arith.subf %293, %296 : vector<2x2xf32>
    %298 = math.exp %297 : vector<2x2xf32>
    %cst_111 = arith.constant dense<0.000000e+00> : vector<2xf32>
    %299 = vector.multi_reduction <add>, %298, %cst_111 [1] : vector<2x2xf32> to vector<2xf32>
    %300 = vector.shape_cast %299 : vector<2xf32> to vector<2x1xf32>
    %301 = tpu.reciprocal %300 {approx = true} : vector<2x1xf32> -> vector<2x1xf32>
    %302 = vector.broadcast %301 : vector<2x1xf32> to vector<2x2xf32>
    %303 = arith.mulf %298, %302 : vector<2x2xf32>
    %304 = arith.truncf %303 : vector<2x2xf32> to vector<2x2xbf16>
    %cst_112 = arith.constant dense<0.000000e+00> : vector<2x8xf32>
    %305 = tpu.matmul %304, %289, %cst_112 {dimension_numbers = #tpu.dot_dimension_numbers<[1], [0], [0], [1], [0, 0, 1, 1], [], []>} : vector<2x2xbf16>, vector<2x8xbf16>, vector<2x8xf32> -> vector<2x8xf32>
    %306 = arith.truncf %305 : vector<2x8xf32> to vector<2x8xbf16>
    %307 = vector.extract_strided_slice %8 {offsets = [24, 0], sizes = [8, 32], strides = [1, 1]} : vector<32x32xbf16> to vector<8x32xbf16>
    %cst_113 = arith.constant dense<0.000000e+00> : vector<2x32xf32>
    %308 = tpu.matmul %306, %307, %cst_113 {dimension_numbers = #tpu.dot_dimension_numbers<[1], [0], [0], [1], [0, 0, 1, 1], [], []>} : vector<2x8xbf16>, vector<8x32xbf16>, vector<2x32xf32> -> vector<2x32xf32>
    %309 = arith.addf %283, %308 : vector<2x32xf32>
    %310 = vector.broadcast %10 : vector<1x32xf32> to vector<2x32xf32>
    %311 = arith.addf %309, %310 : vector<2x32xf32>
    %312 = arith.addf %198, %311 : vector<2x32xf32>
    %cst_114 = arith.constant dense<0.000000e+00> : vector<2xf32>
    %313 = vector.multi_reduction <add>, %312, %cst_114 [1] : vector<2x32xf32> to vector<2xf32>
    %314 = vector.shape_cast %313 : vector<2xf32> to vector<2x1xf32>
    %cst_115 = arith.constant 3.200000e+01 : f32
    %315 = vector.broadcast %cst_115 : f32 to vector<2x1xf32>
    %316 = arith.divf %314, %315 : vector<2x1xf32>
    %317 = vector.broadcast %316 : vector<2x1xf32> to vector<2x32xf32>
    %318 = arith.subf %312, %317 : vector<2x32xf32>
    %319 = arith.mulf %318, %318 : vector<2x32xf32>
    %cst_116 = arith.constant dense<0.000000e+00> : vector<2xf32>
    %320 = vector.multi_reduction <add>, %319, %cst_116 [1] : vector<2x32xf32> to vector<2xf32>
    %321 = vector.shape_cast %320 : vector<2xf32> to vector<2x1xf32>
    %cst_117 = arith.constant 3.200000e+01 : f32
    %322 = vector.broadcast %cst_117 : f32 to vector<2x1xf32>
    %323 = arith.divf %321, %322 : vector<2x1xf32>
    %cst_118 = arith.constant 9.99999974E-6 : f32
    %324 = vector.broadcast %cst_118 : f32 to vector<2x1xf32>
    %325 = arith.addf %323, %324 : vector<2x1xf32>
    %326 = math.rsqrt %325 : vector<2x1xf32>
    %327 = vector.broadcast %326 : vector<2x1xf32> to vector<2x32xf32>
    %328 = arith.mulf %318, %327 : vector<2x32xf32>
    %329 = vector.broadcast %20 : vector<1x32xf32> to vector<2x32xf32>
    %330 = arith.mulf %328, %329 : vector<2x32xf32>
    %331 = vector.broadcast %22 : vector<1x32xf32> to vector<2x32xf32>
    %332 = arith.addf %330, %331 : vector<2x32xf32>
    %333 = arith.truncf %332 : vector<2x32xf32> to vector<2x32xbf16>
    %cst_119 = arith.constant dense<0.000000e+00> : vector<2x64xf32>
    %334 = tpu.matmul %333, %12, %cst_119 {dimension_numbers = #tpu.dot_dimension_numbers<[1], [0], [0], [1], [0, 0, 1, 1], [], []>} : vector<2x32xbf16>, vector<32x64xbf16>, vector<2x64xf32> -> vector<2x64xf32>
    %335 = vector.broadcast %14 : vector<1x64xf32> to vector<2x64xf32>
    %336 = arith.addf %334, %335 : vector<2x64xf32>
    %cst_120 = arith.constant 0.000000e+00 : f32
    %337 = vector.broadcast %cst_120 : f32 to vector<2x64xf32>
    %338 = arith.maximumf %336, %337 : vector<2x64xf32>
    %339 = arith.truncf %338 : vector<2x64xf32> to vector<2x64xbf16>
    %cst_121 = arith.constant dense<0.000000e+00> : vector<2x32xf32>
    %340 = tpu.matmul %339, %16, %cst_121 {dimension_numbers = #tpu.dot_dimension_numbers<[1], [0], [0], [1], [0, 0, 1, 1], [], []>} : vector<2x64xbf16>, vector<64x32xbf16>, vector<2x32xf32> -> vector<2x32xf32>
    %341 = vector.broadcast %18 : vector<1x32xf32> to vector<2x32xf32>
    %342 = arith.addf %340, %341 : vector<2x32xf32>
    %343 = arith.addf %332, %342 : vector<2x32xf32>
    %cst_122 = arith.constant dense<0.000000e+00> : vector<2xf32>
    %344 = vector.multi_reduction <add>, %343, %cst_122 [1] : vector<2x32xf32> to vector<2xf32>
    %345 = vector.shape_cast %344 : vector<2xf32> to vector<2x1xf32>
    %cst_123 = arith.constant 3.200000e+01 : f32
    %346 = vector.broadcast %cst_123 : f32 to vector<2x1xf32>
    %347 = arith.divf %345, %346 : vector<2x1xf32>
    %348 = vector.broadcast %347 : vector<2x1xf32> to vector<2x32xf32>
    %349 = arith.subf %343, %348 : vector<2x32xf32>
    %350 = arith.mulf %349, %349 : vector<2x32xf32>
    %cst_124 = arith.constant dense<0.000000e+00> : vector<2xf32>
    %351 = vector.multi_reduction <add>, %350, %cst_124 [1] : vector<2x32xf32> to vector<2xf32>
    %352 = vector.shape_cast %351 : vector<2xf32> to vector<2x1xf32>
    %cst_125 = arith.constant 3.200000e+01 : f32
    %353 = vector.broadcast %cst_125 : f32 to vector<2x1xf32>
    %354 = arith.divf %352, %353 : vector<2x1xf32>
    %cst_126 = arith.constant 9.99999974E-6 : f32
    %355 = vector.broadcast %cst_126 : f32 to vector<2x1xf32>
    %356 = arith.addf %354, %355 : vector<2x1xf32>
    %357 = math.rsqrt %356 : vector<2x1xf32>
    %358 = vector.broadcast %357 : vector<2x1xf32> to vector<2x32xf32>
    %359 = arith.mulf %349, %358 : vector<2x32xf32>
    %360 = vector.broadcast %24 : vector<1x32xf32> to vector<2x32xf32>
    %361 = arith.mulf %359, %360 : vector<2x32xf32>
    %362 = vector.broadcast %26 : vector<1x32xf32> to vector<2x32xf32>
    %363 = arith.addf %361, %362 : vector<2x32xf32>
    %c1_127 = arith.constant 1 : index
    %c0_128 = arith.constant 0 : index
    %c0_129 = arith.constant 0 : index
    %364 = vector.load %arg17[%c1_127, %c0_128, %c0_129] : memref<4x2x32xf32, #tpu.memory_space<vmem>>, vector<1x2x32xf32>
    %365 = vector.shape_cast %364 : vector<1x2x32xf32> to vector<2x32xf32>
    %366 = vector.shape_cast %363 : vector<2x32xf32> to vector<1x2x32xf32>
    tpu.vector_store %arg17[%c1_127, %c0_128, %c0_129], %366 {strides = array<i32>} : memref<4x2x32xf32, #tpu.memory_space<vmem>>, vector<1x2x32xf32>,
    %c2 = arith.constant 2 : index
    %c0_130 = arith.constant 0 : index
    %c0_131 = arith.constant 0 : index
    %367 = vector.load %arg17[%c2, %c0_130, %c0_131] : memref<4x2x32xf32, #tpu.memory_space<vmem>>, vector<1x2x32xf32>
    %368 = vector.shape_cast %367 : vector<1x2x32xf32> to vector<2x32xf32>
    %c0_132 = arith.constant 0 : index
    %c0_133 = arith.constant 0 : index
    %c0_134 = arith.constant 0 : index
    %369 = vector.load %arg3[%c0_132, %c0_133, %c0_134] : memref<1x2x2xf32, #tpu.memory_space<vmem>>, vector<1x2x2xf32>
    %370 = vector.shape_cast %369 : vector<1x2x2xf32> to vector<2x2xf32>
    %371 = arith.truncf %368 : vector<2x32xf32> to vector<2x32xbf16>
    %cst_135 = arith.constant dense<0.000000e+00> : vector<2x96xf32>
    %372 = tpu.matmul %371, %4, %cst_135 {dimension_numbers = #tpu.dot_dimension_numbers<[1], [0], [0], [1], [0, 0, 1, 1], [], []>} : vector<2x32xbf16>, vector<32x96xbf16>, vector<2x96xf32> -> vector<2x96xf32>
    %373 = vector.broadcast %6 : vector<1x96xf32> to vector<2x96xf32>
    %374 = arith.addf %372, %373 : vector<2x96xf32>
    %cst_136 = arith.constant 0.000000e+00 : f32
    %375 = vector.broadcast %cst_136 : f32 to vector<2x32xf32>
    %376 = vector.extract_strided_slice %374 {offsets = [0, 0], sizes = [2, 8], strides = [1, 1]} : vector<2x96xf32> to vector<2x8xf32>
    %377 = arith.truncf %376 : vector<2x8xf32> to vector<2x8xbf16>
    %378 = vector.extract_strided_slice %374 {offsets = [0, 32], sizes = [2, 8], strides = [1, 1]} : vector<2x96xf32> to vector<2x8xf32>
    %379 = arith.truncf %378 : vector<2x8xf32> to vector<2x8xbf16>
    %380 = vector.extract_strided_slice %374 {offsets = [0, 64], sizes = [2, 8], strides = [1, 1]} : vector<2x96xf32> to vector<2x8xf32>
    %381 = arith.truncf %380 : vector<2x8xf32> to vector<2x8xbf16>
    %cst_137 = arith.constant dense<0.000000e+00> : vector<2x2xf32>
    %382 = tpu.matmul %377, %379, %cst_137 {dimension_numbers = #tpu.dot_dimension_numbers<[1], [1], [0], [0], [0, 0, 1, 0], [], []>} : vector<2x8xbf16>, vector<2x8xbf16>, vector<2x2xf32> -> vector<2x2xf32>
    %cst_138 = arith.constant 0.353553385 : f32
    %383 = vector.broadcast %cst_138 : f32 to vector<2x2xf32>
    %384 = arith.mulf %382, %383 : vector<2x2xf32>
    %385 = arith.addf %384, %370 : vector<2x2xf32>
    %cst_139 = arith.constant dense<0xFF800000> : vector<2xf32>
    %386 = vector.multi_reduction <maximumf>, %385, %cst_139 [1] : vector<2x2xf32> to vector<2xf32>
    %387 = vector.shape_cast %386 : vector<2xf32> to vector<2x1xf32>
    %388 = vector.broadcast %387 : vector<2x1xf32> to vector<2x2xf32>
    %389 = arith.subf %385, %388 : vector<2x2xf32>
    %390 = math.exp %389 : vector<2x2xf32>
    %cst_140 = arith.constant dense<0.000000e+00> : vector<2xf32>
    %391 = vector.multi_reduction <add>, %390, %cst_140 [1] : vector<2x2xf32> to vector<2xf32>
    %392 = vector.shape_cast %391 : vector<2xf32> to vector<2x1xf32>
    %393 = tpu.reciprocal %392 {approx = true} : vector<2x1xf32> -> vector<2x1xf32>
    %394 = vector.broadcast %393 : vector<2x1xf32> to vector<2x2xf32>
    %395 = arith.mulf %390, %394 : vector<2x2xf32>
    %396 = arith.truncf %395 : vector<2x2xf32> to vector<2x2xbf16>
    %cst_141 = arith.constant dense<0.000000e+00> : vector<2x8xf32>
    %397 = tpu.matmul %396, %381, %cst_141 {dimension_numbers = #tpu.dot_dimension_numbers<[1], [0], [0], [1], [0, 0, 1, 1], [], []>} : vector<2x2xbf16>, vector<2x8xbf16>, vector<2x8xf32> -> vector<2x8xf32>
    %398 = arith.truncf %397 : vector<2x8xf32> to vector<2x8xbf16>
    %399 = vector.extract_strided_slice %8 {offsets = [0, 0], sizes = [8, 32], strides = [1, 1]} : vector<32x32xbf16> to vector<8x32xbf16>
    %cst_142 = arith.constant dense<0.000000e+00> : vector<2x32xf32>
    %400 = tpu.matmul %398, %399, %cst_142 {dimension_numbers = #tpu.dot_dimension_numbers<[1], [0], [0], [1], [0, 0, 1, 1], [], []>} : vector<2x8xbf16>, vector<8x32xbf16>, vector<2x32xf32> -> vector<2x32xf32>
    %401 = arith.addf %375, %400 : vector<2x32xf32>
    %402 = vector.extract_strided_slice %374 {offsets = [0, 8], sizes = [2, 8], strides = [1, 1]} : vector<2x96xf32> to vector<2x8xf32>
    %403 = arith.truncf %402 : vector<2x8xf32> to vector<2x8xbf16>
    %404 = vector.extract_strided_slice %374 {offsets = [0, 40], sizes = [2, 8], strides = [1, 1]} : vector<2x96xf32> to vector<2x8xf32>
    %405 = arith.truncf %404 : vector<2x8xf32> to vector<2x8xbf16>
    %406 = vector.extract_strided_slice %374 {offsets = [0, 72], sizes = [2, 8], strides = [1, 1]} : vector<2x96xf32> to vector<2x8xf32>
    %407 = arith.truncf %406 : vector<2x8xf32> to vector<2x8xbf16>
    %cst_143 = arith.constant dense<0.000000e+00> : vector<2x2xf32>
    %408 = tpu.matmul %403, %405, %cst_143 {dimension_numbers = #tpu.dot_dimension_numbers<[1], [1], [0], [0], [0, 0, 1, 0], [], []>} : vector<2x8xbf16>, vector<2x8xbf16>, vector<2x2xf32> -> vector<2x2xf32>
    %cst_144 = arith.constant 0.353553385 : f32
    %409 = vector.broadcast %cst_144 : f32 to vector<2x2xf32>
    %410 = arith.mulf %408, %409 : vector<2x2xf32>
    %411 = arith.addf %410, %370 : vector<2x2xf32>
    %cst_145 = arith.constant dense<0xFF800000> : vector<2xf32>
    %412 = vector.multi_reduction <maximumf>, %411, %cst_145 [1] : vector<2x2xf32> to vector<2xf32>
    %413 = vector.shape_cast %412 : vector<2xf32> to vector<2x1xf32>
    %414 = vector.broadcast %413 : vector<2x1xf32> to vector<2x2xf32>
    %415 = arith.subf %411, %414 : vector<2x2xf32>
    %416 = math.exp %415 : vector<2x2xf32>
    %cst_146 = arith.constant dense<0.000000e+00> : vector<2xf32>
    %417 = vector.multi_reduction <add>, %416, %cst_146 [1] : vector<2x2xf32> to vector<2xf32>
    %418 = vector.shape_cast %417 : vector<2xf32> to vector<2x1xf32>
    %419 = tpu.reciprocal %418 {approx = true} : vector<2x1xf32> -> vector<2x1xf32>
    %420 = vector.broadcast %419 : vector<2x1xf32> to vector<2x2xf32>
    %421 = arith.mulf %416, %420 : vector<2x2xf32>
    %422 = arith.truncf %421 : vector<2x2xf32> to vector<2x2xbf16>
    %cst_147 = arith.constant dense<0.000000e+00> : vector<2x8xf32>
    %423 = tpu.matmul %422, %407, %cst_147 {dimension_numbers = #tpu.dot_dimension_numbers<[1], [0], [0], [1], [0, 0, 1, 1], [], []>} : vector<2x2xbf16>, vector<2x8xbf16>, vector<2x8xf32> -> vector<2x8xf32>
    %424 = arith.truncf %423 : vector<2x8xf32> to vector<2x8xbf16>
    %425 = vector.extract_strided_slice %8 {offsets = [8, 0], sizes = [8, 32], strides = [1, 1]} : vector<32x32xbf16> to vector<8x32xbf16>
    %cst_148 = arith.constant dense<0.000000e+00> : vector<2x32xf32>
    %426 = tpu.matmul %424, %425, %cst_148 {dimension_numbers = #tpu.dot_dimension_numbers<[1], [0], [0], [1], [0, 0, 1, 1], [], []>} : vector<2x8xbf16>, vector<8x32xbf16>, vector<2x32xf32> -> vector<2x32xf32>
    %427 = arith.addf %401, %426 : vector<2x32xf32>
    %428 = vector.extract_strided_slice %374 {offsets = [0, 16], sizes = [2, 8], strides = [1, 1]} : vector<2x96xf32> to vector<2x8xf32>
    %429 = arith.truncf %428 : vector<2x8xf32> to vector<2x8xbf16>
    %430 = vector.extract_strided_slice %374 {offsets = [0, 48], sizes = [2, 8], strides = [1, 1]} : vector<2x96xf32> to vector<2x8xf32>
    %431 = arith.truncf %430 : vector<2x8xf32> to vector<2x8xbf16>
    %432 = vector.extract_strided_slice %374 {offsets = [0, 80], sizes = [2, 8], strides = [1, 1]} : vector<2x96xf32> to vector<2x8xf32>
    %433 = arith.truncf %432 : vector<2x8xf32> to vector<2x8xbf16>
    %cst_149 = arith.constant dense<0.000000e+00> : vector<2x2xf32>
    %434 = tpu.matmul %429, %431, %cst_149 {dimension_numbers = #tpu.dot_dimension_numbers<[1], [1], [0], [0], [0, 0, 1, 0], [], []>} : vector<2x8xbf16>, vector<2x8xbf16>, vector<2x2xf32> -> vector<2x2xf32>
    %cst_150 = arith.constant 0.353553385 : f32
    %435 = vector.broadcast %cst_150 : f32 to vector<2x2xf32>
    %436 = arith.mulf %434, %435 : vector<2x2xf32>
    %437 = arith.addf %436, %370 : vector<2x2xf32>
    %cst_151 = arith.constant dense<0xFF800000> : vector<2xf32>
    %438 = vector.multi_reduction <maximumf>, %437, %cst_151 [1] : vector<2x2xf32> to vector<2xf32>
    %439 = vector.shape_cast %438 : vector<2xf32> to vector<2x1xf32>
    %440 = vector.broadcast %439 : vector<2x1xf32> to vector<2x2xf32>
    %441 = arith.subf %437, %440 : vector<2x2xf32>
    %442 = math.exp %441 : vector<2x2xf32>
    %cst_152 = arith.constant dense<0.000000e+00> : vector<2xf32>
    %443 = vector.multi_reduction <add>, %442, %cst_152 [1] : vector<2x2xf32> to vector<2xf32>
    %444 = vector.shape_cast %443 : vector<2xf32> to vector<2x1xf32>
    %445 = tpu.reciprocal %444 {approx = true} : vector<2x1xf32> -> vector<2x1xf32>
    %446 = vector.broadcast %445 : vector<2x1xf32> to vector<2x2xf32>
    %447 = arith.mulf %442, %446 : vector<2x2xf32>
    %448 = arith.truncf %447 : vector<2x2xf32> to vector<2x2xbf16>
    %cst_153 = arith.constant dense<0.000000e+00> : vector<2x8xf32>
    %449 = tpu.matmul %448, %433, %cst_153 {dimension_numbers = #tpu.dot_dimension_numbers<[1], [0], [0], [1], [0, 0, 1, 1], [], []>} : vector<2x2xbf16>, vector<2x8xbf16>, vector<2x8xf32> -> vector<2x8xf32>
    %450 = arith.truncf %449 : vector<2x8xf32> to vector<2x8xbf16>
    %451 = vector.extract_strided_slice %8 {offsets = [16, 0], sizes = [8, 32], strides = [1, 1]} : vector<32x32xbf16> to vector<8x32xbf16>
    %cst_154 = arith.constant dense<0.000000e+00> : vector<2x32xf32>
    %452 = tpu.matmul %450, %451, %cst_154 {dimension_numbers = #tpu.dot_dimension_numbers<[1], [0], [0], [1], [0, 0, 1, 1], [], []>} : vector<2x8xbf16>, vector<8x32xbf16>, vector<2x32xf32> -> vector<2x32xf32>
    %453 = arith.addf %427, %452 : vector<2x32xf32>
    %454 = vector.extract_strided_slice %374 {offsets = [0, 24], sizes = [2, 8], strides = [1, 1]} : vector<2x96xf32> to vector<2x8xf32>
    %455 = arith.truncf %454 : vector<2x8xf32> to vector<2x8xbf16>
    %456 = vector.extract_strided_slice %374 {offsets = [0, 56], sizes = [2, 8], strides = [1, 1]} : vector<2x96xf32> to vector<2x8xf32>
    %457 = arith.truncf %456 : vector<2x8xf32> to vector<2x8xbf16>
    %458 = vector.extract_strided_slice %374 {offsets = [0, 88], sizes = [2, 8], strides = [1, 1]} : vector<2x96xf32> to vector<2x8xf32>
    %459 = arith.truncf %458 : vector<2x8xf32> to vector<2x8xbf16>
    %cst_155 = arith.constant dense<0.000000e+00> : vector<2x2xf32>
    %460 = tpu.matmul %455, %457, %cst_155 {dimension_numbers = #tpu.dot_dimension_numbers<[1], [1], [0], [0], [0, 0, 1, 0], [], []>} : vector<2x8xbf16>, vector<2x8xbf16>, vector<2x2xf32> -> vector<2x2xf32>
    %cst_156 = arith.constant 0.353553385 : f32
    %461 = vector.broadcast %cst_156 : f32 to vector<2x2xf32>
    %462 = arith.mulf %460, %461 : vector<2x2xf32>
    %463 = arith.addf %462, %370 : vector<2x2xf32>
    %cst_157 = arith.constant dense<0xFF800000> : vector<2xf32>
    %464 = vector.multi_reduction <maximumf>, %463, %cst_157 [1] : vector<2x2xf32> to vector<2xf32>
    %465 = vector.shape_cast %464 : vector<2xf32> to vector<2x1xf32>
    %466 = vector.broadcast %465 : vector<2x1xf32> to vector<2x2xf32>
    %467 = arith.subf %463, %466 : vector<2x2xf32>
    %468 = math.exp %467 : vector<2x2xf32>
    %cst_158 = arith.constant dense<0.000000e+00> : vector<2xf32>
    %469 = vector.multi_reduction <add>, %468, %cst_158 [1] : vector<2x2xf32> to vector<2xf32>
    %470 = vector.shape_cast %469 : vector<2xf32> to vector<2x1xf32>
    %471 = tpu.reciprocal %470 {approx = true} : vector<2x1xf32> -> vector<2x1xf32>
    %472 = vector.broadcast %471 : vector<2x1xf32> to vector<2x2xf32>
    %473 = arith.mulf %468, %472 : vector<2x2xf32>
    %474 = arith.truncf %473 : vector<2x2xf32> to vector<2x2xbf16>
    %cst_159 = arith.constant dense<0.000000e+00> : vector<2x8xf32>
    %475 = tpu.matmul %474, %459, %cst_159 {dimension_numbers = #tpu.dot_dimension_numbers<[1], [0], [0], [1], [0, 0, 1, 1], [], []>} : vector<2x2xbf16>, vector<2x8xbf16>, vector<2x8xf32> -> vector<2x8xf32>
    %476 = arith.truncf %475 : vector<2x8xf32> to vector<2x8xbf16>
    %477 = vector.extract_strided_slice %8 {offsets = [24, 0], sizes = [8, 32], strides = [1, 1]} : vector<32x32xbf16> to vector<8x32xbf16>
    %cst_160 = arith.constant dense<0.000000e+00> : vector<2x32xf32>
    %478 = tpu.matmul %476, %477, %cst_160 {dimension_numbers = #tpu.dot_dimension_numbers<[1], [0], [0], [1], [0, 0, 1, 1], [], []>} : vector<2x8xbf16>, vector<8x32xbf16>, vector<2x32xf32> -> vector<2x32xf32>
    %479 = arith.addf %453, %478 : vector<2x32xf32>
    %480 = vector.broadcast %10 : vector<1x32xf32> to vector<2x32xf32>
    %481 = arith.addf %479, %480 : vector<2x32xf32>
    %482 = arith.addf %368, %481 : vector<2x32xf32>
    %cst_161 = arith.constant dense<0.000000e+00> : vector<2xf32>
    %483 = vector.multi_reduction <add>, %482, %cst_161 [1] : vector<2x32xf32> to vector<2xf32>
    %484 = vector.shape_cast %483 : vector<2xf32> to vector<2x1xf32>
    %cst_162 = arith.constant 3.200000e+01 : f32
    %485 = vector.broadcast %cst_162 : f32 to vector<2x1xf32>
    %486 = arith.divf %484, %485 : vector<2x1xf32>
    %487 = vector.broadcast %486 : vector<2x1xf32> to vector<2x32xf32>
    %488 = arith.subf %482, %487 : vector<2x32xf32>
    %489 = arith.mulf %488, %488 : vector<2x32xf32>
    %cst_163 = arith.constant dense<0.000000e+00> : vector<2xf32>
    %490 = vector.multi_reduction <add>, %489, %cst_163 [1] : vector<2x32xf32> to vector<2xf32>
    %491 = vector.shape_cast %490 : vector<2xf32> to vector<2x1xf32>
    %cst_164 = arith.constant 3.200000e+01 : f32
    %492 = vector.broadcast %cst_164 : f32 to vector<2x1xf32>
    %493 = arith.divf %491, %492 : vector<2x1xf32>
    %cst_165 = arith.constant 9.99999974E-6 : f32
    %494 = vector.broadcast %cst_165 : f32 to vector<2x1xf32>
    %495 = arith.addf %493, %494 : vector<2x1xf32>
    %496 = math.rsqrt %495 : vector<2x1xf32>
    %497 = vector.broadcast %496 : vector<2x1xf32> to vector<2x32xf32>
    %498 = arith.mulf %488, %497 : vector<2x32xf32>
    %499 = vector.broadcast %20 : vector<1x32xf32> to vector<2x32xf32>
    %500 = arith.mulf %498, %499 : vector<2x32xf32>
    %501 = vector.broadcast %22 : vector<1x32xf32> to vector<2x32xf32>
    %502 = arith.addf %500, %501 : vector<2x32xf32>
    %503 = arith.truncf %502 : vector<2x32xf32> to vector<2x32xbf16>
    %cst_166 = arith.constant dense<0.000000e+00> : vector<2x64xf32>
    %504 = tpu.matmul %503, %12, %cst_166 {dimension_numbers = #tpu.dot_dimension_numbers<[1], [0], [0], [1], [0, 0, 1, 1], [], []>} : vector<2x32xbf16>, vector<32x64xbf16>, vector<2x64xf32> -> vector<2x64xf32>
    %505 = vector.broadcast %14 : vector<1x64xf32> to vector<2x64xf32>
    %506 = arith.addf %504, %505 : vector<2x64xf32>
    %cst_167 = arith.constant 0.000000e+00 : f32
    %507 = vector.broadcast %cst_167 : f32 to vector<2x64xf32>
    %508 = arith.maximumf %506, %507 : vector<2x64xf32>
    %509 = arith.truncf %508 : vector<2x64xf32> to vector<2x64xbf16>
    %cst_168 = arith.constant dense<0.000000e+00> : vector<2x32xf32>
    %510 = tpu.matmul %509, %16, %cst_168 {dimension_numbers = #tpu.dot_dimension_numbers<[1], [0], [0], [1], [0, 0, 1, 1], [], []>} : vector<2x64xbf16>, vector<64x32xbf16>, vector<2x32xf32> -> vector<2x32xf32>
    %511 = vector.broadcast %18 : vector<1x32xf32> to vector<2x32xf32>
    %512 = arith.addf %510, %511 : vector<2x32xf32>
    %513 = arith.addf %502, %512 : vector<2x32xf32>
    %cst_169 = arith.constant dense<0.000000e+00> : vector<2xf32>
    %514 = vector.multi_reduction <add>, %513, %cst_169 [1] : vector<2x32xf32> to vector<2xf32>
    %515 = vector.shape_cast %514 : vector<2xf32> to vector<2x1xf32>
    %cst_170 = arith.constant 3.200000e+01 : f32
    %516 = vector.broadcast %cst_170 : f32 to vector<2x1xf32>
    %517 = arith.divf %515, %516 : vector<2x1xf32>
    %518 = vector.broadcast %517 : vector<2x1xf32> to vector<2x32xf32>
    %519 = arith.subf %513, %518 : vector<2x32xf32>
    %520 = arith.mulf %519, %519 : vector<2x32xf32>
    %cst_171 = arith.constant dense<0.000000e+00> : vector<2xf32>
    %521 = vector.multi_reduction <add>, %520, %cst_171 [1] : vector<2x32xf32> to vector<2xf32>
    %522 = vector.shape_cast %521 : vector<2xf32> to vector<2x1xf32>
    %cst_172 = arith.constant 3.200000e+01 : f32
    %523 = vector.broadcast %cst_172 : f32 to vector<2x1xf32>
    %524 = arith.divf %522, %523 : vector<2x1xf32>
    %cst_173 = arith.constant 9.99999974E-6 : f32
    %525 = vector.broadcast %cst_173 : f32 to vector<2x1xf32>
    %526 = arith.addf %524, %525 : vector<2x1xf32>
    %527 = math.rsqrt %526 : vector<2x1xf32>
    %528 = vector.broadcast %527 : vector<2x1xf32> to vector<2x32xf32>
    %529 = arith.mulf %519, %528 : vector<2x32xf32>
    %530 = vector.broadcast %24 : vector<1x32xf32> to vector<2x32xf32>
    %531 = arith.mulf %529, %530 : vector<2x32xf32>
    %532 = vector.broadcast %26 : vector<1x32xf32> to vector<2x32xf32>
    %533 = arith.addf %531, %532 : vector<2x32xf32>
    %c2_174 = arith.constant 2 : index
    %c0_175 = arith.constant 0 : index
    %c0_176 = arith.constant 0 : index
    %534 = vector.load %arg17[%c2_174, %c0_175, %c0_176] : memref<4x2x32xf32, #tpu.memory_space<vmem>>, vector<1x2x32xf32>
    %535 = vector.shape_cast %534 : vector<1x2x32xf32> to vector<2x32xf32>
    %536 = vector.shape_cast %533 : vector<2x32xf32> to vector<1x2x32xf32>
    tpu.vector_store %arg17[%c2_174, %c0_175, %c0_176], %536 {strides = array<i32>} : memref<4x2x32xf32, #tpu.memory_space<vmem>>, vector<1x2x32xf32>,
    %c3 = arith.constant 3 : index
    %c0_177 = arith.constant 0 : index
    %c0_178 = arith.constant 0 : index
    %537 = vector.load %arg17[%c3, %c0_177, %c0_178] : memref<4x2x32xf32, #tpu.memory_space<vmem>>, vector<1x2x32xf32>
    %538 = vector.shape_cast %537 : vector<1x2x32xf32> to vector<2x32xf32>
    %c0_179 = arith.constant 0 : index
    %c0_180 = arith.constant 0 : index
    %c0_181 = arith.constant 0 : index
    %539 = vector.load %arg3[%c0_179, %c0_180, %c0_181] : memref<1x2x2xf32, #tpu.memory_space<vmem>>, vector<1x2x2xf32>
    %540 = vector.shape_cast %539 : vector<1x2x2xf32> to vector<2x2xf32>
    %541 = arith.truncf %538 : vector<2x32xf32> to vector<2x32xbf16>
    %cst_182 = arith.constant dense<0.000000e+00> : vector<2x96xf32>
    %542 = tpu.matmul %541, %4, %cst_182 {dimension_numbers = #tpu.dot_dimension_numbers<[1], [0], [0], [1], [0, 0, 1, 1], [], []>} : vector<2x32xbf16>, vector<32x96xbf16>, vector<2x96xf32> -> vector<2x96xf32>
    %543 = vector.broadcast %6 : vector<1x96xf32> to vector<2x96xf32>
    %544 = arith.addf %542, %543 : vector<2x96xf32>
    %cst_183 = arith.constant 0.000000e+00 : f32
    %545 = vector.broadcast %cst_183 : f32 to vector<2x32xf32>
    %546 = vector.extract_strided_slice %544 {offsets = [0, 0], sizes = [2, 8], strides = [1, 1]} : vector<2x96xf32> to vector<2x8xf32>
    %547 = arith.truncf %546 : vector<2x8xf32> to vector<2x8xbf16>
    %548 = vector.extract_strided_slice %544 {offsets = [0, 32], sizes = [2, 8], strides = [1, 1]} : vector<2x96xf32> to vector<2x8xf32>
    %549 = arith.truncf %548 : vector<2x8xf32> to vector<2x8xbf16>
    %550 = vector.extract_strided_slice %544 {offsets = [0, 64], sizes = [2, 8], strides = [1, 1]} : vector<2x96xf32> to vector<2x8xf32>
    %551 = arith.truncf %550 : vector<2x8xf32> to vector<2x8xbf16>
    %cst_184 = arith.constant dense<0.000000e+00> : vector<2x2xf32>
    %552 = tpu.matmul %547, %549, %cst_184 {dimension_numbers = #tpu.dot_dimension_numbers<[1], [1], [0], [0], [0, 0, 1, 0], [], []>} : vector<2x8xbf16>, vector<2x8xbf16>, vector<2x2xf32> -> vector<2x2xf32>
    %cst_185 = arith.constant 0.353553385 : f32
    %553 = vector.broadcast %cst_185 : f32 to vector<2x2xf32>
    %554 = arith.mulf %552, %553 : vector<2x2xf32>
    %555 = arith.addf %554, %540 : vector<2x2xf32>
    %cst_186 = arith.constant dense<0xFF800000> : vector<2xf32>
    %556 = vector.multi_reduction <maximumf>, %555, %cst_186 [1] : vector<2x2xf32> to vector<2xf32>
    %557 = vector.shape_cast %556 : vector<2xf32> to vector<2x1xf32>
    %558 = vector.broadcast %557 : vector<2x1xf32> to vector<2x2xf32>
    %559 = arith.subf %555, %558 : vector<2x2xf32>
    %560 = math.exp %559 : vector<2x2xf32>
    %cst_187 = arith.constant dense<0.000000e+00> : vector<2xf32>
    %561 = vector.multi_reduction <add>, %560, %cst_187 [1] : vector<2x2xf32> to vector<2xf32>
    %562 = vector.shape_cast %561 : vector<2xf32> to vector<2x1xf32>
    %563 = tpu.reciprocal %562 {approx = true} : vector<2x1xf32> -> vector<2x1xf32>
    %564 = vector.broadcast %563 : vector<2x1xf32> to vector<2x2xf32>
    %565 = arith.mulf %560, %564 : vector<2x2xf32>
    %566 = arith.truncf %565 : vector<2x2xf32> to vector<2x2xbf16>
    %cst_188 = arith.constant dense<0.000000e+00> : vector<2x8xf32>
    %567 = tpu.matmul %566, %551, %cst_188 {dimension_numbers = #tpu.dot_dimension_numbers<[1], [0], [0], [1], [0, 0, 1, 1], [], []>} : vector<2x2xbf16>, vector<2x8xbf16>, vector<2x8xf32> -> vector<2x8xf32>
    %568 = arith.truncf %567 : vector<2x8xf32> to vector<2x8xbf16>
    %569 = vector.extract_strided_slice %8 {offsets = [0, 0], sizes = [8, 32], strides = [1, 1]} : vector<32x32xbf16> to vector<8x32xbf16>
    %cst_189 = arith.constant dense<0.000000e+00> : vector<2x32xf32>
    %570 = tpu.matmul %568, %569, %cst_189 {dimension_numbers = #tpu.dot_dimension_numbers<[1], [0], [0], [1], [0, 0, 1, 1], [], []>} : vector<2x8xbf16>, vector<8x32xbf16>, vector<2x32xf32> -> vector<2x32xf32>
    %571 = arith.addf %545, %570 : vector<2x32xf32>
    %572 = vector.extract_strided_slice %544 {offsets = [0, 8], sizes = [2, 8], strides = [1, 1]} : vector<2x96xf32> to vector<2x8xf32>
    %573 = arith.truncf %572 : vector<2x8xf32> to vector<2x8xbf16>
    %574 = vector.extract_strided_slice %544 {offsets = [0, 40], sizes = [2, 8], strides = [1, 1]} : vector<2x96xf32> to vector<2x8xf32>
    %575 = arith.truncf %574 : vector<2x8xf32> to vector<2x8xbf16>
    %576 = vector.extract_strided_slice %544 {offsets = [0, 72], sizes = [2, 8], strides = [1, 1]} : vector<2x96xf32> to vector<2x8xf32>
    %577 = arith.truncf %576 : vector<2x8xf32> to vector<2x8xbf16>
    %cst_190 = arith.constant dense<0.000000e+00> : vector<2x2xf32>
    %578 = tpu.matmul %573, %575, %cst_190 {dimension_numbers = #tpu.dot_dimension_numbers<[1], [1], [0], [0], [0, 0, 1, 0], [], []>} : vector<2x8xbf16>, vector<2x8xbf16>, vector<2x2xf32> -> vector<2x2xf32>
    %cst_191 = arith.constant 0.353553385 : f32
    %579 = vector.broadcast %cst_191 : f32 to vector<2x2xf32>
    %580 = arith.mulf %578, %579 : vector<2x2xf32>
    %581 = arith.addf %580, %540 : vector<2x2xf32>
    %cst_192 = arith.constant dense<0xFF800000> : vector<2xf32>
    %582 = vector.multi_reduction <maximumf>, %581, %cst_192 [1] : vector<2x2xf32> to vector<2xf32>
    %583 = vector.shape_cast %582 : vector<2xf32> to vector<2x1xf32>
    %584 = vector.broadcast %583 : vector<2x1xf32> to vector<2x2xf32>
    %585 = arith.subf %581, %584 : vector<2x2xf32>
    %586 = math.exp %585 : vector<2x2xf32>
    %cst_193 = arith.constant dense<0.000000e+00> : vector<2xf32>
    %587 = vector.multi_reduction <add>, %586, %cst_193 [1] : vector<2x2xf32> to vector<2xf32>
    %588 = vector.shape_cast %587 : vector<2xf32> to vector<2x1xf32>
    %589 = tpu.reciprocal %588 {approx = true} : vector<2x1xf32> -> vector<2x1xf32>
    %590 = vector.broadcast %589 : vector<2x1xf32> to vector<2x2xf32>
    %591 = arith.mulf %586, %590 : vector<2x2xf32>
    %592 = arith.truncf %591 : vector<2x2xf32> to vector<2x2xbf16>
    %cst_194 = arith.constant dense<0.000000e+00> : vector<2x8xf32>
    %593 = tpu.matmul %592, %577, %cst_194 {dimension_numbers = #tpu.dot_dimension_numbers<[1], [0], [0], [1], [0, 0, 1, 1], [], []>} : vector<2x2xbf16>, vector<2x8xbf16>, vector<2x8xf32> -> vector<2x8xf32>
    %594 = arith.truncf %593 : vector<2x8xf32> to vector<2x8xbf16>
    %595 = vector.extract_strided_slice %8 {offsets = [8, 0], sizes = [8, 32], strides = [1, 1]} : vector<32x32xbf16> to vector<8x32xbf16>
    %cst_195 = arith.constant dense<0.000000e+00> : vector<2x32xf32>
    %596 = tpu.matmul %594, %595, %cst_195 {dimension_numbers = #tpu.dot_dimension_numbers<[1], [0], [0], [1], [0, 0, 1, 1], [], []>} : vector<2x8xbf16>, vector<8x32xbf16>, vector<2x32xf32> -> vector<2x32xf32>
    %597 = arith.addf %571, %596 : vector<2x32xf32>
    %598 = vector.extract_strided_slice %544 {offsets = [0, 16], sizes = [2, 8], strides = [1, 1]} : vector<2x96xf32> to vector<2x8xf32>
    %599 = arith.truncf %598 : vector<2x8xf32> to vector<2x8xbf16>
    %600 = vector.extract_strided_slice %544 {offsets = [0, 48], sizes = [2, 8], strides = [1, 1]} : vector<2x96xf32> to vector<2x8xf32>
    %601 = arith.truncf %600 : vector<2x8xf32> to vector<2x8xbf16>
    %602 = vector.extract_strided_slice %544 {offsets = [0, 80], sizes = [2, 8], strides = [1, 1]} : vector<2x96xf32> to vector<2x8xf32>
    %603 = arith.truncf %602 : vector<2x8xf32> to vector<2x8xbf16>
    %cst_196 = arith.constant dense<0.000000e+00> : vector<2x2xf32>
    %604 = tpu.matmul %599, %601, %cst_196 {dimension_numbers = #tpu.dot_dimension_numbers<[1], [1], [0], [0], [0, 0, 1, 0], [], []>} : vector<2x8xbf16>, vector<2x8xbf16>, vector<2x2xf32> -> vector<2x2xf32>
    %cst_197 = arith.constant 0.353553385 : f32
    %605 = vector.broadcast %cst_197 : f32 to vector<2x2xf32>
    %606 = arith.mulf %604, %605 : vector<2x2xf32>
    %607 = arith.addf %606, %540 : vector<2x2xf32>
    %cst_198 = arith.constant dense<0xFF800000> : vector<2xf32>
    %608 = vector.multi_reduction <maximumf>, %607, %cst_198 [1] : vector<2x2xf32> to vector<2xf32>
    %609 = vector.shape_cast %608 : vector<2xf32> to vector<2x1xf32>
    %610 = vector.broadcast %609 : vector<2x1xf32> to vector<2x2xf32>
    %611 = arith.subf %607, %610 : vector<2x2xf32>
    %612 = math.exp %611 : vector<2x2xf32>
    %cst_199 = arith.constant dense<0.000000e+00> : vector<2xf32>
    %613 = vector.multi_reduction <add>, %612, %cst_199 [1] : vector<2x2xf32> to vector<2xf32>
    %614 = vector.shape_cast %613 : vector<2xf32> to vector<2x1xf32>
    %615 = tpu.reciprocal %614 {approx = true} : vector<2x1xf32> -> vector<2x1xf32>
    %616 = vector.broadcast %615 : vector<2x1xf32> to vector<2x2xf32>
    %617 = arith.mulf %612, %616 : vector<2x2xf32>
    %618 = arith.truncf %617 : vector<2x2xf32> to vector<2x2xbf16>
    %cst_200 = arith.constant dense<0.000000e+00> : vector<2x8xf32>
    %619 = tpu.matmul %618, %603, %cst_200 {dimension_numbers = #tpu.dot_dimension_numbers<[1], [0], [0], [1], [0, 0, 1, 1], [], []>} : vector<2x2xbf16>, vector<2x8xbf16>, vector<2x8xf32> -> vector<2x8xf32>
    %620 = arith.truncf %619 : vector<2x8xf32> to vector<2x8xbf16>
    %621 = vector.extract_strided_slice %8 {offsets = [16, 0], sizes = [8, 32], strides = [1, 1]} : vector<32x32xbf16> to vector<8x32xbf16>
    %cst_201 = arith.constant dense<0.000000e+00> : vector<2x32xf32>
    %622 = tpu.matmul %620, %621, %cst_201 {dimension_numbers = #tpu.dot_dimension_numbers<[1], [0], [0], [1], [0, 0, 1, 1], [], []>} : vector<2x8xbf16>, vector<8x32xbf16>, vector<2x32xf32> -> vector<2x32xf32>
    %623 = arith.addf %597, %622 : vector<2x32xf32>
    %624 = vector.extract_strided_slice %544 {offsets = [0, 24], sizes = [2, 8], strides = [1, 1]} : vector<2x96xf32> to vector<2x8xf32>
    %625 = arith.truncf %624 : vector<2x8xf32> to vector<2x8xbf16>
    %626 = vector.extract_strided_slice %544 {offsets = [0, 56], sizes = [2, 8], strides = [1, 1]} : vector<2x96xf32> to vector<2x8xf32>
    %627 = arith.truncf %626 : vector<2x8xf32> to vector<2x8xbf16>
    %628 = vector.extract_strided_slice %544 {offsets = [0, 88], sizes = [2, 8], strides = [1, 1]} : vector<2x96xf32> to vector<2x8xf32>
    %629 = arith.truncf %628 : vector<2x8xf32> to vector<2x8xbf16>
    %cst_202 = arith.constant dense<0.000000e+00> : vector<2x2xf32>
    %630 = tpu.matmul %625, %627, %cst_202 {dimension_numbers = #tpu.dot_dimension_numbers<[1], [1], [0], [0], [0, 0, 1, 0], [], []>} : vector<2x8xbf16>, vector<2x8xbf16>, vector<2x2xf32> -> vector<2x2xf32>
    %cst_203 = arith.constant 0.353553385 : f32
    %631 = vector.broadcast %cst_203 : f32 to vector<2x2xf32>
    %632 = arith.mulf %630, %631 : vector<2x2xf32>
    %633 = arith.addf %632, %540 : vector<2x2xf32>
    %cst_204 = arith.constant dense<0xFF800000> : vector<2xf32>
    %634 = vector.multi_reduction <maximumf>, %633, %cst_204 [1] : vector<2x2xf32> to vector<2xf32>
    %635 = vector.shape_cast %634 : vector<2xf32> to vector<2x1xf32>
    %636 = vector.broadcast %635 : vector<2x1xf32> to vector<2x2xf32>
    %637 = arith.subf %633, %636 : vector<2x2xf32>
    %638 = math.exp %637 : vector<2x2xf32>
    %cst_205 = arith.constant dense<0.000000e+00> : vector<2xf32>
    %639 = vector.multi_reduction <add>, %638, %cst_205 [1] : vector<2x2xf32> to vector<2xf32>
    %640 = vector.shape_cast %639 : vector<2xf32> to vector<2x1xf32>
    %641 = tpu.reciprocal %640 {approx = true} : vector<2x1xf32> -> vector<2x1xf32>
    %642 = vector.broadcast %641 : vector<2x1xf32> to vector<2x2xf32>
    %643 = arith.mulf %638, %642 : vector<2x2xf32>
    %644 = arith.truncf %643 : vector<2x2xf32> to vector<2x2xbf16>
    %cst_206 = arith.constant dense<0.000000e+00> : vector<2x8xf32>
    %645 = tpu.matmul %644, %629, %cst_206 {dimension_numbers = #tpu.dot_dimension_numbers<[1], [0], [0], [1], [0, 0, 1, 1], [], []>} : vector<2x2xbf16>, vector<2x8xbf16>, vector<2x8xf32> -> vector<2x8xf32>
    %646 = arith.truncf %645 : vector<2x8xf32> to vector<2x8xbf16>
    %647 = vector.extract_strided_slice %8 {offsets = [24, 0], sizes = [8, 32], strides = [1, 1]} : vector<32x32xbf16> to vector<8x32xbf16>
    %cst_207 = arith.constant dense<0.000000e+00> : vector<2x32xf32>
    %648 = tpu.matmul %646, %647, %cst_207 {dimension_numbers = #tpu.dot_dimension_numbers<[1], [0], [0], [1], [0, 0, 1, 1], [], []>} : vector<2x8xbf16>, vector<8x32xbf16>, vector<2x32xf32> -> vector<2x32xf32>
    %649 = arith.addf %623, %648 : vector<2x32xf32>
    %650 = vector.broadcast %10 : vector<1x32xf32> to vector<2x32xf32>
    %651 = arith.addf %649, %650 : vector<2x32xf32>
    %652 = arith.addf %538, %651 : vector<2x32xf32>
    %cst_208 = arith.constant dense<0.000000e+00> : vector<2xf32>
    %653 = vector.multi_reduction <add>, %652, %cst_208 [1] : vector<2x32xf32> to vector<2xf32>
    %654 = vector.shape_cast %653 : vector<2xf32> to vector<2x1xf32>
    %cst_209 = arith.constant 3.200000e+01 : f32
    %655 = vector.broadcast %cst_209 : f32 to vector<2x1xf32>
    %656 = arith.divf %654, %655 : vector<2x1xf32>
    %657 = vector.broadcast %656 : vector<2x1xf32> to vector<2x32xf32>
    %658 = arith.subf %652, %657 : vector<2x32xf32>
    %659 = arith.mulf %658, %658 : vector<2x32xf32>
    %cst_210 = arith.constant dense<0.000000e+00> : vector<2xf32>
    %660 = vector.multi_reduction <add>, %659, %cst_210 [1] : vector<2x32xf32> to vector<2xf32>
    %661 = vector.shape_cast %660 : vector<2xf32> to vector<2x1xf32>
    %cst_211 = arith.constant 3.200000e+01 : f32
    %662 = vector.broadcast %cst_211 : f32 to vector<2x1xf32>
    %663 = arith.divf %661, %662 : vector<2x1xf32>
    %cst_212 = arith.constant 9.99999974E-6 : f32
    %664 = vector.broadcast %cst_212 : f32 to vector<2x1xf32>
    %665 = arith.addf %663, %664 : vector<2x1xf32>
    %666 = math.rsqrt %665 : vector<2x1xf32>
    %667 = vector.broadcast %666 : vector<2x1xf32> to vector<2x32xf32>
    %668 = arith.mulf %658, %667 : vector<2x32xf32>
    %669 = vector.broadcast %20 : vector<1x32xf32> to vector<2x32xf32>
    %670 = arith.mulf %668, %669 : vector<2x32xf32>
    %671 = vector.broadcast %22 : vector<1x32xf32> to vector<2x32xf32>
    %672 = arith.addf %670, %671 : vector<2x32xf32>
    %673 = arith.truncf %672 : vector<2x32xf32> to vector<2x32xbf16>
    %cst_213 = arith.constant dense<0.000000e+00> : vector<2x64xf32>
    %674 = tpu.matmul %673, %12, %cst_213 {dimension_numbers = #tpu.dot_dimension_numbers<[1], [0], [0], [1], [0, 0, 1, 1], [], []>} : vector<2x32xbf16>, vector<32x64xbf16>, vector<2x64xf32> -> vector<2x64xf32>
    %675 = vector.broadcast %14 : vector<1x64xf32> to vector<2x64xf32>
    %676 = arith.addf %674, %675 : vector<2x64xf32>
    %cst_214 = arith.constant 0.000000e+00 : f32
    %677 = vector.broadcast %cst_214 : f32 to vector<2x64xf32>
    %678 = arith.maximumf %676, %677 : vector<2x64xf32>
    %679 = arith.truncf %678 : vector<2x64xf32> to vector<2x64xbf16>
    %cst_215 = arith.constant dense<0.000000e+00> : vector<2x32xf32>
    %680 = tpu.matmul %679, %16, %cst_215 {dimension_numbers = #tpu.dot_dimension_numbers<[1], [0], [0], [1], [0, 0, 1, 1], [], []>} : vector<2x64xbf16>, vector<64x32xbf16>, vector<2x32xf32> -> vector<2x32xf32>
    %681 = vector.broadcast %18 : vector<1x32xf32> to vector<2x32xf32>
    %682 = arith.addf %680, %681 : vector<2x32xf32>
    %683 = arith.addf %672, %682 : vector<2x32xf32>
    %cst_216 = arith.constant dense<0.000000e+00> : vector<2xf32>
    %684 = vector.multi_reduction <add>, %683, %cst_216 [1] : vector<2x32xf32> to vector<2xf32>
    %685 = vector.shape_cast %684 : vector<2xf32> to vector<2x1xf32>
    %cst_217 = arith.constant 3.200000e+01 : f32
    %686 = vector.broadcast %cst_217 : f32 to vector<2x1xf32>
    %687 = arith.divf %685, %686 : vector<2x1xf32>
    %688 = vector.broadcast %687 : vector<2x1xf32> to vector<2x32xf32>
    %689 = arith.subf %683, %688 : vector<2x32xf32>
    %690 = arith.mulf %689, %689 : vector<2x32xf32>
    %cst_218 = arith.constant dense<0.000000e+00> : vector<2xf32>
    %691 = vector.multi_reduction <add>, %690, %cst_218 [1] : vector<2x32xf32> to vector<2xf32>
    %692 = vector.shape_cast %691 : vector<2xf32> to vector<2x1xf32>
    %cst_219 = arith.constant 3.200000e+01 : f32
    %693 = vector.broadcast %cst_219 : f32 to vector<2x1xf32>
    %694 = arith.divf %692, %693 : vector<2x1xf32>
    %cst_220 = arith.constant 9.99999974E-6 : f32
    %695 = vector.broadcast %cst_220 : f32 to vector<2x1xf32>
    %696 = arith.addf %694, %695 : vector<2x1xf32>
    %697 = math.rsqrt %696 : vector<2x1xf32>
    %698 = vector.broadcast %697 : vector<2x1xf32> to vector<2x32xf32>
    %699 = arith.mulf %689, %698 : vector<2x32xf32>
    %700 = vector.broadcast %24 : vector<1x32xf32> to vector<2x32xf32>
    %701 = arith.mulf %699, %700 : vector<2x32xf32>
    %702 = vector.broadcast %26 : vector<1x32xf32> to vector<2x32xf32>
    %703 = arith.addf %701, %702 : vector<2x32xf32>
    %c3_221 = arith.constant 3 : index
    %c0_222 = arith.constant 0 : index
    %c0_223 = arith.constant 0 : index
    %704 = vector.load %arg17[%c3_221, %c0_222, %c0_223] : memref<4x2x32xf32, #tpu.memory_space<vmem>>, vector<1x2x32xf32>
    %705 = vector.shape_cast %704 : vector<1x2x32xf32> to vector<2x32xf32>
    %706 = vector.shape_cast %703 : vector<2x32xf32> to vector<1x2x32xf32>
    tpu.vector_store %arg17[%c3_221, %c0_222, %c0_223], %706 {strides = array<i32>} : memref<4x2x32xf32, #tpu.memory_space<vmem>>, vector<1x2x32xf32>,
    %c1_i32 = arith.constant 1 : i32
    %707 = arith.cmpi eq, %arg1, %c1_i32 : i32
    %708 = arith.extui %707 : i1 to i32
    %c0_i32_224 = arith.constant 0 : i32
    %709 = arith.cmpi ne, %708, %c0_i32_224 : i32
    scf.if %709 {
      %c0_225 = arith.constant 0 : index
      %c0_226 = arith.constant 0 : index
      %c0_227 = arith.constant 0 : index
      %710 = vector.load %arg17[%c0_225, %c0_226, %c0_227] : memref<4x2x32xf32, #tpu.memory_space<vmem>>, vector<4x2x32xf32>
      %c0_228 = arith.constant 0 : index
      %c0_229 = arith.constant 0 : index
      %c0_230 = arith.constant 0 : index
      %711 = vector.load %arg16[%c0_228, %c0_229, %c0_230] : memref<4x2x32xf32, #tpu.memory_space<vmem>>, vector<4x2x32xf32>
      tpu.vector_store %arg16[%c0_228, %c0_229, %c0_230], %710 {strides = array<i32>} : memref<4x2x32xf32, #tpu.memory_space<vmem>>, vector<4x2x32xf32>,
    } else {
    }
    return
  }
  func.func @transform_0(%arg0: i32, %arg1: i32) -> (i32, i32, i32) {
    %c0_i32 = arith.constant 0 : i32
    %c0_i32_0 = arith.constant 0 : i32
    %c0_i32_1 = arith.constant 0 : i32
    return %arg0, %c0_i32, %c0_i32_0 : i32, i32, i32
  }
  func.func @transform_1(%arg0: i32, %arg1: i32) -> (i32, i32, i32) {
    %c0_i32 = arith.constant 0 : i32
    %c0_i32_0 = arith.constant 0 : i32
    %c0_i32_1 = arith.constant 0 : i32
    %c0_i32_2 = arith.constant 0 : i32
    return %c0_i32, %c0_i32_0, %c0_i32_1 : i32, i32, i32
  }
  func.func @transform_2(%arg0: i32, %arg1: i32) -> (i32, i32, i32) {
    %c0_i32 = arith.constant 0 : i32
    %c0_i32_0 = arith.constant 0 : i32
    %c0_i32_1 = arith.constant 0 : i32
    return %arg1, %c0_i32, %c0_i32_0 : i32, i32, i32
  }
  func.func @transform_3(%arg0: i32, %arg1: i32) -> (i32, i32, i32) {
    %c0_i32 = arith.constant 0 : i32
    %c0_i32_0 = arith.constant 0 : i32
    %c0_i32_1 = arith.constant 0 : i32
    return %arg1, %c0_i32, %c0_i32_0 : i32, i32, i32
  }
  func.func @transform_4(%arg0: i32, %arg1: i32) -> (i32, i32, i32) {
    %c0_i32 = arith.constant 0 : i32
    %c0_i32_0 = arith.constant 0 : i32
    %c0_i32_1 = arith.constant 0 : i32
    return %arg1, %c0_i32, %c0_i32_0 : i32, i32, i32
  }
  func.func @transform_5(%arg0: i32, %arg1: i32) -> (i32, i32, i32) {
    %c0_i32 = arith.constant 0 : i32
    %c0_i32_0 = arith.constant 0 : i32
    %c0_i32_1 = arith.constant 0 : i32
    return %arg1, %c0_i32, %c0_i32_0 : i32, i32, i32
  }
  func.func @transform_6(%arg0: i32, %arg1: i32) -> (i32, i32, i32) {
    %c0_i32 = arith.constant 0 : i32
    %c0_i32_0 = arith.constant 0 : i32
    %c0_i32_1 = arith.constant 0 : i32
    return %arg1, %c0_i32, %c0_i32_0 : i32, i32, i32
  }
  func.func @transform_7(%arg0: i32, %arg1: i32) -> (i32, i32, i32) {
    %c0_i32 = arith.constant 0 : i32
    %c0_i32_0 = arith.constant 0 : i32
    %c0_i32_1 = arith.constant 0 : i32
    return %arg1, %c0_i32, %c0_i32_0 : i32, i32, i32
  }
  func.func @transform_8(%arg0: i32, %arg1: i32) -> (i32, i32, i32) {
    %c0_i32 = arith.constant 0 : i32
    %c0_i32_0 = arith.constant 0 : i32
    %c0_i32_1 = arith.constant 0 : i32
    return %arg1, %c0_i32, %c0_i32_0 : i32, i32, i32
  }
  func.func @transform_9(%arg0: i32, %arg1: i32) -> (i32, i32, i32) {
    %c0_i32 = arith.constant 0 : i32
    %c0_i32_0 = arith.constant 0 : i32
    %c0_i32_1 = arith.constant 0 : i32
    return %arg1, %c0_i32, %c0_i32_0 : i32, i32, i32
  }
  func.func @transform_10(%arg0: i32, %arg1: i32) -> (i32, i32, i32) {
    %c0_i32 = arith.constant 0 : i32
    %c0_i32_0 = arith.constant 0 : i32
    %c0_i32_1 = arith.constant 0 : i32
    return %arg1, %c0_i32, %c0_i32_0 : i32, i32, i32
  }
  func.func @transform_11(%arg0: i32, %arg1: i32) -> (i32, i32, i32) {
    %c0_i32 = arith.constant 0 : i32
    %c0_i32_0 = arith.constant 0 : i32
    %c0_i32_1 = arith.constant 0 : i32
    return %arg1, %c0_i32, %c0_i32_0 : i32, i32, i32
  }
  func.func @transform_12(%arg0: i32, %arg1: i32) -> (i32, i32, i32) {
    %c0_i32 = arith.constant 0 : i32
    %c0_i32_0 = arith.constant 0 : i32
    %c0_i32_1 = arith.constant 0 : i32
    return %arg1, %c0_i32, %c0_i32_0 : i32, i32, i32
  }
  func.func @transform_13(%arg0: i32, %arg1: i32) -> (i32, i32, i32) {
    %c0_i32 = arith.constant 0 : i32
    %c0_i32_0 = arith.constant 0 : i32
    %c0_i32_1 = arith.constant 0 : i32
    return %arg1, %c0_i32, %c0_i32_0 : i32, i32, i32
  }
  func.func @transform_14(%arg0: i32, %arg1: i32) -> (i32, i32, i32) {
    %c0_i32 = arith.constant 0 : i32
    %c0_i32_0 = arith.constant 0 : i32
    %c0_i32_1 = arith.constant 0 : i32
    return %arg0, %c0_i32, %c0_i32_0 : i32, i32, i32
  }
}

</mosaic_0001>

<llo_original>
// kernel: bert_classifier_forward.7
$region0: #{bert_classifier_forward.7}
  #allocation0 [shape = 'u32[]', space=smem, size = 0x4, offset = 0x4, fixed_abs, tag = 'smem constant byte address 0x4 - core index']
  #allocation1 [shape = 'u32[144,128]{1,0:T(1,128)}', space=vmem, size = 0x12000, scoped, tag = 'internal scratch']
  %s0 = inlined_call_operand.vmem [shape: f32[16,32], index: 0, kind: input, shape index: {}]
  %s1 = inlined_call_operand.vmem [shape: bf16[32,48], index: 1, kind: input, shape index: {}]
  %s2 = inlined_call_operand.vmem [shape: f32[1,48], index: 2, kind: input, shape index: {}]
  %s3 = inlined_call_operand.hbm [shape: f32[16,48], index: 3, kind: output, shape index: {}]
  %s4 = sld [smem:[#allocation0]]
  $region22: #{bert_classifier_forward.7} parent=0
    _
  %s6 = ssub.s32 1, %s4
  %s7 = scalar_select 0, %s6, %s4
  $region1: #{bert_classifier_forward.7} parent=0
    #allocation2 [shape = 'u8[8192]{0}', space=vmem, size = 0x2000, scoped, tag = 'output window, operand 0, single buffered']
    #allocation3 [shape = 's32[1]{0}', space=sflag, size = 0x4, scoped, tag = 'scoped memory for bert_classifier_forward.7']
    %8 = vsyncpa [#allocation3], 0
    // Predicated region
    $region2: #{bert_classifier_forward.7} parent=1 // pred_check
      _
    $region3: #{bert_classifier_forward.7} parent=1 // pred_check_branch
      %10 = sbr.rel (0) target = $region5
    $region4: #{bert_classifier_forward.7} parent=1 // pred_region
      _
    $region5: #{bert_classifier_forward.7} parent=1 // pred_fallthru
      _
    // Predicated region
    $region6: #{bert_classifier_forward.7} parent=1 // pred_check
      _
    $region7: #{bert_classifier_forward.7} parent=1 // pred_check_branch
      %12 = sbr.rel (0) target = $region9
    $region8: #{bert_classifier_forward.7} parent=1 // pred_region
      _
    $region9: #{bert_classifier_forward.7} parent=1 // pred_fallthru
      _
    // Predicated region
    $region10: #{bert_classifier_forward.7} parent=1 // pred_check
      _
    $region11: #{bert_classifier_forward.7} parent=1 // pred_check_branch
      %14 = sbr.rel (0) target = $region13
    $region12: #{bert_classifier_forward.7} parent=1 // pred_region
      _
    $region13: #{bert_classifier_forward.7} parent=1 // pred_fallthru
      _
    %v16 = vld [vmem:[%s0] sm:$0xff]
    %v17 = vld [vmem:[%s0 + $0x8] sm:$0xff]
    %v18 = vpack.c.bf16 %v17, %v16
    %v19 = vld [vmem:[%s1] sm:$0xf]
    %v20 = vld [vmem:[%s1 + $0x4] sm:$0xf]
    %v21 = vld [vmem:[%s1 + $0x8] sm:$0xf]
    %v22 = vld [vmem:[%s1 + $0xc] sm:$0xf]
    %v23 = vld [vmem:[%s2] sm:$0x1]
    %v25 = vlaneseq
    %v26 = vshrl.u32 %v25, 7
    %v27 = vsub.s32 0, %v26
    %v28 = vrot.slane %v23, %v27
    %v34 = vunpack.c.l.b16 %v19
    %v35 = vunpack.c.l.b16 %v20
    %v36 = vunpack.c.l.b16 %v21
    %v37 = vunpack.c.l.b16 %v22
    %v38 = vpack.c.b16 %v35, %v34
    %v39 = vpack.c.b16 %v37, %v36
    %vm42 = vcmask 261120
    %v44 = vsel %vm42, %v18, 0
    %46 = vmatprep.subr.bf16.mxu0 0
    %47 = vmatpush1.bf16.msra.mxu0 %v38
    %48 = vmatprep.subr.bf16.mxu0 0
    %49 = vmatpush1.bf16.msra.mxu0 %v39
    %50 = vmatprep.subr.bf16.mxu0 0
    %51 = vmatpush1.bf16.msra.mxu0 0
    %52 = vmatprep.subr.bf16.mxu0 0
    %53 = vmatpush1.bf16.msra.mxu0 0
    %54 = vmatprep.subr.bf16.mxu0 0
    %55 = vmatpush1.bf16.msra.mxu0 0
    %56 = vmatprep.subr.bf16.mxu0 0
    %57 = vmatpush1.bf16.msra.mxu0 0
    %58 = vmatprep.subr.bf16.mxu0 0
    %59 = vmatpush1.bf16.msra.mxu0 0
    %60 = vmatprep.subr.bf16.mxu0 0
    %61 = vmatpush1.bf16.msra.mxu0 0
    %62 = vmatprep.subr.bf16.mxu0 0
    %63 = vmatpush1.bf16.msra.mxu0 0
    %64 = vmatprep.subr.bf16.mxu0 0
    %65 = vmatpush1.bf16.msra.mxu0 0
    %66 = vmatprep.subr.bf16.mxu0 0
    %67 = vmatpush1.bf16.msra.mxu0 0
    %68 = vmatprep.subr.bf16.mxu0 0
    %69 = vmatpush1.bf16.msra.mxu0 0
    %70 = vmatprep.subr.bf16.mxu0 0
    %71 = vmatpush1.bf16.msra.mxu0 0
    %72 = vmatprep.subr.bf16.mxu0 0
    %73 = vmatpush1.bf16.msra.mxu0 0
    %74 = vmatprep.subr.bf16.mxu0 0
    %75 = vmatpush1.bf16.msra.mxu0 0
    %76 = vmatprep.subr.bf16.mxu0 0
    %77 = vmatpush1.bf16.msra.mxu0 0
    %78 = vmatprep.mubr.bf16.mxu0 0
    %79 = vmatmul.mubr.bf16.gmra.mrb[0].mxu0 %v44
    %v80 = vpop.f32.mrb[0].mxu0
    %v81 = vadd.f32 %v28, %v80
    %v82 = vpop.f32.mrb[0].mxu0
    %v83 = vpop.f32.mrb[0].mxu0
    %v84 = vadd.f32 %v28, %v83
    %v85 = vpop.f32.mrb[0].mxu0
    %86 = vdwg.mxu0
    %vm87 = vcmask 392192
    %88 = vst.msk [vmem:[#allocation2] sm:$0xff] %vm87, %v81
    %89 = vst.msk [vmem:[#allocation2 + $0x8] sm:$0xff] %vm87, %v84
    // Predicated region
    $region14: #{bert_classifier_forward.7} parent=1 // pred_check
      _
    $region15: #{bert_classifier_forward.7} parent=1 // pred_check_branch
      %91 = sbr.rel (0) target = $region17
    $region16: #{bert_classifier_forward.7} parent=1 // pred_region
      %s93 = ssub.s32 256, 256
      %94 = vsyncadd [#allocation3], %s93
      %s95 = sshll.u32 [#allocation2], 4
      %s96 = int_to_ptr.vmem [resolvable:$true] %s95
      %101 = dma.vmem_to_hbm [thread:$0]  %s96, 256, %s3, [#allocation3], 128, 128, 8
    $region17: #{bert_classifier_forward.7} parent=1 // pred_fallthru
      _
    // Predicated region
    $region18: #{bert_classifier_forward.7} parent=1 // pred_check
      _
    $region19: #{bert_classifier_forward.7} parent=1 // pred_check_branch
      %103 = sbr.rel (0) target = $region21
    $region20: #{bert_classifier_forward.7} parent=1 // pred_region
      %104 = dma.done [#allocation3], 256
    $region21: #{bert_classifier_forward.7} parent=1 // pred_fallthru
      _
    %105 = vsyncpa [#allocation3], 1

// kernel: bert_classifier_forward.5
$region0: #{bert_classifier_forward.5}
  #allocation0 [shape = 'u32[]', space=smem, size = 0x4, offset = 0x4, fixed_abs, tag = 'smem constant byte address 0x4 - core index']
  #allocation1 [shape = 'u32[144,128]{1,0:T(1,128)}', space=vmem, size = 0x12000, scoped, tag = 'internal scratch']
  %s0 = inlined_call_operand.vmem [shape: f32[2,32], index: 0, kind: input, shape index: {}]
  %s1 = inlined_call_operand.vmem [shape: f32[2,32,8], index: 1, kind: input, shape index: {}]
  %s2 = inlined_call_operand.vmem [shape: bf16[32,32], index: 2, kind: input, shape index: {}]
  %s3 = inlined_call_operand.vmem [shape: f32[1,32], index: 3, kind: input, shape index: {}]
  %s4 = inlined_call_operand.vmem [shape: bf16[32,8], index: 4, kind: input, shape index: {}]
  %s5 = inlined_call_operand.vmem [shape: f32[1,8], index: 5, kind: input, shape index: {}]
  %s6 = inlined_call_operand.vmem [shape: bf16[2,32], index: 6, kind: input, shape index: {}]
  %s7 = inlined_call_operand.vmem [shape: f32[2,1], index: 7, kind: input, shape index: {}]
  %s8 = inlined_call_operand.hbm [shape: f32[2,8], index: 8, kind: output, shape index: {0}]
  %s9 = inlined_call_operand.hbm [shape: f32[2,8], index: 9, kind: output, shape index: {1}]
  %s10 = inlined_call_operand.hbm [shape: f32[2,8], index: 10, kind: output, shape index: {2}]
  %11 = xla_tuple %s8, %s9, %s10
  %s12 = sld [smem:[#allocation0]]
  $region58: #{bert_classifier_forward.5} parent=0
    _
  %s14 = ssub.s32 1, %s12
  %s15 = scalar_select 0, %s14, %s12
  $region1: #{bert_classifier_forward.5} parent=0
    #allocation2 [shape = 'u8[1024]{0}', space=vmem, size = 0x400, scoped, tag = 'output window, operand 0, single buffered']
    #allocation3 [shape = 's32[1]{0}', space=sflag, size = 0x4, scoped, tag = 'scoped memory for bert_classifier_forward.5']
    #allocation4 [shape = 'u8[1024]{0}', space=vmem, size = 0x400, scoped, tag = 'output window, operand 1, single buffered']
    #allocation5 [shape = 's32[1]{0}', space=sflag, size = 0x4, scoped, tag = 'scoped memory for bert_classifier_forward.5']
    #allocation6 [shape = 'u8[1024]{0}', space=vmem, size = 0x400, scoped, tag = 'output window, operand 2, single buffered']
    %16 = vsyncpa [#allocation3], 0
    %17 = vsyncpa [#allocation5], 0
    // Predicated region
    $region2: #{bert_classifier_forward.5} parent=1 // pred_check
      _
    $region3: #{bert_classifier_forward.5} parent=1 // pred_check_branch
      %19 = sbr.rel (0) target = $region5
    $region4: #{bert_classifier_forward.5} parent=1 // pred_region
      _
    $region5: #{bert_classifier_forward.5} parent=1 // pred_fallthru
      _
    // Predicated region
    $region6: #{bert_classifier_forward.5} parent=1 // pred_check
      _
    $region7: #{bert_classifier_forward.5} parent=1 // pred_check_branch
      %21 = sbr.rel (0) target = $region9
    $region8: #{bert_classifier_forward.5} parent=1 // pred_region
      _
    $region9: #{bert_classifier_forward.5} parent=1 // pred_fallthru
      _
    // Predicated region
    $region10: #{bert_classifier_forward.5} parent=1 // pred_check
      _
    $region11: #{bert_classifier_forward.5} parent=1 // pred_check_branch
      %23 = sbr.rel (0) target = $region13
    $region12: #{bert_classifier_forward.5} parent=1 // pred_region
      _
    $region13: #{bert_classifier_forward.5} parent=1 // pred_fallthru
      _
    // Predicated region
    $region14: #{bert_classifier_forward.5} parent=1 // pred_check
      _
    $region15: #{bert_classifier_forward.5} parent=1 // pred_check_branch
      %25 = sbr.rel (0) target = $region17
    $region16: #{bert_classifier_forward.5} parent=1 // pred_region
      _
    $region17: #{bert_classifier_forward.5} parent=1 // pred_fallthru
      _
    // Predicated region
    $region18: #{bert_classifier_forward.5} parent=1 // pred_check
      _
    $region19: #{bert_classifier_forward.5} parent=1 // pred_check_branch
      %27 = sbr.rel (0) target = $region21
    $region20: #{bert_classifier_forward.5} parent=1 // pred_region
      _
    $region21: #{bert_classifier_forward.5} parent=1 // pred_fallthru
      _
    // Predicated region
    $region22: #{bert_classifier_forward.5} parent=1 // pred_check
      _
    $region23: #{bert_classifier_forward.5} parent=1 // pred_check_branch
      %29 = sbr.rel (0) target = $region25
    $region24: #{bert_classifier_forward.5} parent=1 // pred_region
      _
    $region25: #{bert_classifier_forward.5} parent=1 // pred_fallthru
      _
    // Predicated region
    $region26: #{bert_classifier_forward.5} parent=1 // pred_check
      _
    $region27: #{bert_classifier_forward.5} parent=1 // pred_check_branch
      %31 = sbr.rel (0) target = $region29
    $region28: #{bert_classifier_forward.5} parent=1 // pred_region
      _
    $region29: #{bert_classifier_forward.5} parent=1 // pred_fallthru
      _
    // Predicated region
    $region30: #{bert_classifier_forward.5} parent=1 // pred_check
      _
    $region31: #{bert_classifier_forward.5} parent=1 // pred_check_branch
      %33 = sbr.rel (0) target = $region33
    $region32: #{bert_classifier_forward.5} parent=1 // pred_region
      _
    $region33: #{bert_classifier_forward.5} parent=1 // pred_fallthru
      _
    %v35 = vld [vmem:[%s0] sm:$0x3]
    %v36 = vpack.c.bf16 %v35, %v35
    %v37 = vld [vmem:[%s2] sm:$0xf]
    %v38 = vld [vmem:[%s2 + $0x4] sm:$0xf]
    %v39 = vld [vmem:[%s2 + $0x8] sm:$0xf]
    %v40 = vld [vmem:[%s2 + $0xc] sm:$0xf]
    %v41 = vld [vmem:[%s3] sm:$0x1]
    %v43 = vlaneseq
    %v44 = vshrl.u32 %v43, 7
    %v45 = vsub.s32 0, %v44
    %v46 = vrot.slane %v41, %v45
    %v52 = vunpack.c.l.b16 %v37
    %v53 = vunpack.c.l.b16 %v38
    %v54 = vunpack.c.l.b16 %v39
    %v55 = vunpack.c.l.b16 %v40
    %v56 = vpack.c.b16 %v53, %v52
    %v57 = vpack.c.b16 %v55, %v54
    %vm60 = vcmask 261120
    %v62 = vsel %vm60, %v36, 0
    %64 = vmatprep.subr.bf16.mxu0 0
    %65 = vmatpush1.bf16.msra.mxu0 %v56
    %66 = vmatprep.subr.bf16.mxu0 0
    %67 = vmatpush1.bf16.msra.mxu0 %v57
    %68 = vmatprep.subr.bf16.mxu0 0
    %69 = vmatpush1.bf16.msra.mxu0 0
    %70 = vmatprep.subr.bf16.mxu0 0
    %71 = vmatpush1.bf16.msra.mxu0 0
    %72 = vmatprep.subr.bf16.mxu0 0
    %73 = vmatpush1.bf16.msra.mxu0 0
    %74 = vmatprep.subr.bf16.mxu0 0
    %75 = vmatpush1.bf16.msra.mxu0 0
    %76 = vmatprep.subr.bf16.mxu0 0
    %77 = vmatpush1.bf16.msra.mxu0 0
    %78 = vmatprep.subr.bf16.mxu0 0
    %79 = vmatpush1.bf16.msra.mxu0 0
    %80 = vmatprep.subr.bf16.mxu0 0
    %81 = vmatpush1.bf16.msra.mxu0 0
    %82 = vmatprep.subr.bf16.mxu0 0
    %83 = vmatpush1.bf16.msra.mxu0 0
    %84 = vmatprep.subr.bf16.mxu0 0
    %85 = vmatpush1.bf16.msra.mxu0 0
    %86 = vmatprep.subr.bf16.mxu0 0
    %87 = vmatpush1.bf16.msra.mxu0 0
    %88 = vmatprep.subr.bf16.mxu0 0
    %89 = vmatpush1.bf16.msra.mxu0 0
    %90 = vmatprep.subr.bf16.mxu0 0
    %91 = vmatpush1.bf16.msra.mxu0 0
    %92 = vmatprep.subr.bf16.mxu0 0
    %93 = vmatpush1.bf16.msra.mxu0 0
    %94 = vmatprep.subr.bf16.mxu0 0
    %95 = vmatpush1.bf16.msra.mxu0 0
    %96 = vmatprep.mubr.bf16.mxu0 0
    %97 = vmatmul.mubr.bf16.gmra.mrb[0].mxu0 %v62
    %v98 = vpop.f32.mrb[0].mxu0
    %v99 = vadd.f32 %v46, %v98
    %v100 = vpop.f32.mrb[0].mxu0
    %v101 = vpop.f32.mrb[0].mxu0
    %v102 = vpop.f32.mrb[0].mxu0
    %103 = vdwg.mxu0
    %v104 = vtanh.pop %v99
    %v105 = vpack.c.bf16 %v104, %v104
    %v106 = vld [vmem:[%s4] sm:$0xf]
    %v107 = vld [vmem:[%s4 + $0x4] sm:$0xf]
    %v108 = vld [vmem:[%s4 + $0x8] sm:$0xf]
    %v109 = vld [vmem:[%s4 + $0xc] sm:$0xf]
    %v110 = vld [vmem:[%s5] sm:$0x1]
    %v112 = vlaneseq
    %v113 = vshrl.u32 %v112, 7
    %v114 = vsub.s32 0, %v113
    %v115 = vrot.slane %v110, %v114
    %v121 = vunpack.c.l.b16 %v106
    %v122 = vunpack.c.l.b16 %v107
    %v123 = vunpack.c.l.b16 %v108
    %v124 = vunpack.c.l.b16 %v109
    %v125 = vpack.c.b16 %v122, %v121
    %v126 = vpack.c.b16 %v124, %v123
    %v130 = vsel %vm60, %v105, 0
    %132 = vmatprep.subr.bf16.mxu0 0
    %133 = vmatpush1.bf16.msra.mxu0 %v125
    %134 = vmatprep.subr.bf16.mxu0 0
    %135 = vmatpush1.bf16.msra.mxu0 %v126
    %136 = vmatprep.subr.bf16.mxu0 0
    %137 = vmatpush1.bf16.msra.mxu0 0
    %138 = vmatprep.subr.bf16.mxu0 0
    %139 = vmatpush1.bf16.msra.mxu0 0
    %140 = vmatprep.subr.bf16.mxu0 0
    %141 = vmatpush1.bf16.msra.mxu0 0
    %142 = vmatprep.subr.bf16.mxu0 0
    %143 = vmatpush1.bf16.msra.mxu0 0
    %144 = vmatprep.subr.bf16.mxu0 0
    %145 = vmatpush1.bf16.msra.mxu0 0
    %146 = vmatprep.subr.bf16.mxu0 0
    %147 = vmatpush1.bf16.msra.mxu0 0
    %148 = vmatprep.subr.bf16.mxu0 0
    %149 = vmatpush1.bf16.msra.mxu0 0
    %150 = vmatprep.subr.bf16.mxu0 0
    %151 = vmatpush1.bf16.msra.mxu0 0
    %152 = vmatprep.subr.bf16.mxu0 0
    %153 = vmatpush1.bf16.msra.mxu0 0
    %154 = vmatprep.subr.bf16.mxu0 0
    %155 = vmatpush1.bf16.msra.mxu0 0
    %156 = vmatprep.subr.bf16.mxu0 0
    %157 = vmatpush1.bf16.msra.mxu0 0
    %158 = vmatprep.subr.bf16.mxu0 0
    %159 = vmatpush1.bf16.msra.mxu0 0
    %160 = vmatprep.subr.bf16.mxu0 0
    %161 = vmatpush1.bf16.msra.mxu0 0
    %162 = vmatprep.subr.bf16.mxu0 0
    %163 = vmatpush1.bf16.msra.mxu0 0
    %164 = vmatprep.mubr.bf16.mxu0 0
    %165 = vmatmul.mubr.bf16.gmra.mrb[0].mxu0 %v130
    %v166 = vpop.f32.mrb[0].mxu0
    %v167 = vadd.f32 %v115, %v166
    %v168 = vpop.f32.mrb[0].mxu0
    %v169 = vpop.f32.mrb[0].mxu0
    %v170 = vpop.f32.mrb[0].mxu0
    %171 = vdwg.mxu0
    %vm172 = vcmask 58368
    %v173 = vsel %vm172, %v167, -inf
    %174 = vmax.xlane.f32.xlu0 %v173
    %v175 = vpop.xlane.xlu0 %174
    %v176 = vsub.f32 %v167, %v175
    %v177 = vmul.f32 %v176, 1.442695
    %v178 = vpow.pop %v177
    %v179 = vsel %vm172, %v178, 0.0
    %180 = vadd.xlane.f32.xlu0 %v179
    %v181 = vpop.xlane.xlu0 %180
    %v182 = vrcp.pop %v181
    %v183 = vmul.f32 %v178, %v182
    %184 = vst.msk [vmem:[#allocation2] sm:$0x3] %vm172, %v183
    %v185 = vld [vmem:[%s6] sm:$0x1]
    %v186 = vld [vmem:[%s7] sm:$0x3]
    %v187 = vlaneseq
    %v188 = vand.u32 %v187, 127
    %v189 = vld [vmem:[%s1] sm:$0xff]
    %v190 = vld [vmem:[%s1 + $0x8] sm:$0xff]
    %v191 = vld [vmem:[%s1 + $0x10] sm:$0xff]
    %v192 = vld [vmem:[%s1 + $0x18] sm:$0xff]
    %v193 = vpack.c.bf16 %v190, %v189
    %v194 = vpack.c.bf16 %v192, %v191
    %196 = vset.pattern.permute.xlu0 0
    %197 = vperm.xlu0 %196, %v186
    %v198 = vpop.permute.xlu0 %197
    %v201 = vsel %vm60, %v185, 0
    %203 = vmatprep.subr.bf16.mxu0 0
    %204 = vmatpush1.bf16.msra.mxu0 %v193
    %205 = vmatprep.subr.bf16.mxu0 0
    %206 = vmatpush1.bf16.msra.mxu0 %v194
    %207 = vmatprep.subr.bf16.mxu0 0
    %208 = vmatpush1.bf16.msra.mxu0 0
    %209 = vmatprep.subr.bf16.mxu0 0
    %210 = vmatpush1.bf16.msra.mxu0 0
    %211 = vmatprep.subr.bf16.mxu0 0
    %212 = vmatpush1.bf16.msra.mxu0 0
    %213 = vmatprep.subr.bf16.mxu0 0
    %214 = vmatpush1.bf16.msra.mxu0 0
    %215 = vmatprep.subr.bf16.mxu0 0
    %216 = vmatpush1.bf16.msra.mxu0 0
    %217 = vmatprep.subr.bf16.mxu0 0
    %218 = vmatpush1.bf16.msra.mxu0 0
    %219 = vmatprep.subr.bf16.mxu0 0
    %220 = vmatpush1.bf16.msra.mxu0 0
    %221 = vmatprep.subr.bf16.mxu0 0
    %222 = vmatpush1.bf16.msra.mxu0 0
    %223 = vmatprep.subr.bf16.mxu0 0
    %224 = vmatpush1.bf16.msra.mxu0 0
    %225 = vmatprep.subr.bf16.mxu0 0
    %226 = vmatpush1.bf16.msra.mxu0 0
    %227 = vmatprep.subr.bf16.mxu0 0
    %228 = vmatpush1.bf16.msra.mxu0 0
    %229 = vmatprep.subr.bf16.mxu0 0
    %230 = vmatpush1.bf16.msra.mxu0 0
    %231 = vmatprep.subr.bf16.mxu0 0
    %232 = vmatpush1.bf16.msra.mxu0 0
    %233 = vmatprep.subr.bf16.mxu0 0
    %234 = vmatpush1.bf16.msra.mxu0 0
    %235 = vmatprep.mubr.bf16.mxu0 0
    %236 = vmatmul.mubr.bf16.gmra.mrb[0].mxu0 %v201
    %v237 = vpop.f32.mrb[0].mxu0
    %v238 = vadd.f32 %v198, %v237
    %v239 = vpop.f32.mrb[0].mxu0
    %v240 = vpop.f32.mrb[0].mxu0
    %v241 = vpop.f32.mrb[0].mxu0
    %242 = vdwg.mxu0
    %vm243 = vcmask 57344
    %v244 = vsel %vm243, %v238, -inf
    %245 = vmax.xlane.f32.xlu0 %v244
    %v246 = vpop.xlane.xlu0 %245
    %v247 = vsub.f32 %v238, %v246
    %v248 = vmul.f32 %v247, 1.442695
    %v249 = vpow.pop %v248
    %v250 = vsel %vm243, %v249, 0.0
    %251 = vadd.xlane.f32.xlu0 %v250
    %v252 = vpop.xlane.xlu0 %251
    %v253 = vrcp.pop %v252
    %v254 = vmul.f32 %v249, %v253
    %255 = vst.msk [vmem:[#allocation4] sm:$0x1] %vm243, %v254
    %v256 = vsel %vm243, %v254, -inf
    %257 = vmax.xlane.f32.xlu0 %v256
    %v258 = vpop.xlane.xlu0 %257
    %vm259 = vcmp.ge.f32.partialorder %v254, %v258
    %v260 = vsel %vm259, %v188, 8
    %v261 = vsel %vm243, %v260, 2147483647
    %v262 = vand.u32 %v261, 65535
    %v263 = vshra.s32 %v261, 16
    %v264 = vcvt.s32.f32 %v262
    %v265 = vcvt.s32.f32 %v263
    %266 = vmin.xlane.f32.xlu0 %v265
    %v267 = vpop.xlane.xlu0 %266
    %vm268 = vcmp.eq.f32.partialorder %v265, %v267
    %v269 = vsel %vm268, %v264, inf
    %270 = vmin.xlane.f32.xlu0 %v269
    %v271 = vpop.xlane.xlu0 %270
    %v272 = vcvt.f32.s32 %v271
    %v273 = vcvt.f32.s32 %v267
    %v274 = vshll.u32 %v273, 16
    %v275 = vadd.s32 %v274, %v272
    %vm276 = vcmp.lt.s32.totalorder %v188, %v275
    %v277 = vsel %vm276, -inf, 0.0
    %v279 = vrot.slane %v277, 7
    %v281 = vadd.f32 %v238, %v279
    %vm282 = vcmask 58369
    %v283 = vsel %vm282, %v281, -inf
    %284 = vmax.xlane.f32.xlu0 %v283
    %v285 = vpop.xlane.xlu0 %284
    %v286 = vsub.f32 %v281, %v285
    %v287 = vmul.f32 %v286, 1.442695
    %v288 = vpow.pop %v287
    %v289 = vsel %vm282, %v288, 0.0
    %290 = vadd.xlane.f32.xlu0 %v289
    %v291 = vpop.xlane.xlu0 %290
    %v292 = vrcp.pop %v291
    %v293 = vmul.f32 %v288, %v292
    %294 = vst.msk [vmem:[#allocation6 - $0x1] sm:$0x2] %vm282, %v293
    %s295 = scalar_lea.vmem %s1, 32
    %v296 = vld [vmem:[%s295] sm:$0xff]
    %v297 = vld [vmem:[%s295 + $0x8] sm:$0xff]
    %v298 = vld [vmem:[%s295 + $0x10] sm:$0xff]
    %v299 = vld [vmem:[%s295 + $0x18] sm:$0xff]
    %v300 = vpack.c.bf16 %v297, %v296
    %v301 = vpack.c.bf16 %v299, %v298
    %302 = vmatprep.subr.bf16.mxu0 0
    %303 = vmatpush1.bf16.msra.mxu0 %v300
    %304 = vmatprep.subr.bf16.mxu0 0
    %305 = vmatpush1.bf16.msra.mxu0 %v301
    %306 = vmatprep.subr.bf16.mxu0 0
    %307 = vmatpush1.bf16.msra.mxu0 0
    %308 = vmatprep.subr.bf16.mxu0 0
    %309 = vmatpush1.bf16.msra.mxu0 0
    %310 = vmatprep.subr.bf16.mxu0 0
    %311 = vmatpush1.bf16.msra.mxu0 0
    %312 = vmatprep.subr.bf16.mxu0 0
    %313 = vmatpush1.bf16.msra.mxu0 0
    %314 = vmatprep.subr.bf16.mxu0 0
    %315 = vmatpush1.bf16.msra.mxu0 0
    %316 = vmatprep.subr.bf16.mxu0 0
    %317 = vmatpush1.bf16.msra.mxu0 0
    %318 = vmatprep.subr.bf16.mxu0 0
    %319 = vmatpush1.bf16.msra.mxu0 0
    %320 = vmatprep.subr.bf16.mxu0 0
    %321 = vmatpush1.bf16.msra.mxu0 0
    %322 = vmatprep.subr.bf16.mxu0 0
    %323 = vmatpush1.bf16.msra.mxu0 0
    %324 = vmatprep.subr.bf16.mxu0 0
    %325 = vmatpush1.bf16.msra.mxu0 0
    %326 = vmatprep.subr.bf16.mxu0 0
    %327 = vmatpush1.bf16.msra.mxu0 0
    %328 = vmatprep.subr.bf16.mxu0 0
    %329 = vmatpush1.bf16.msra.mxu0 0
    %330 = vmatprep.subr.bf16.mxu0 0
    %331 = vmatpush1.bf16.msra.mxu0 0
    %332 = vmatprep.subr.bf16.mxu0 0
    %333 = vmatpush1.bf16.msra.mxu0 0
    %334 = vmatprep.mubr.bf16.mxu0 0
    %335 = vmatmul.mubr.bf16.gmra.mrb[0].mxu0 %v201
    %v336 = vpop.f32.mrb[0].mxu0
    %v337 = vadd.f32 %v198, %v336
    %v338 = vpop.f32.mrb[0].mxu0
    %v339 = vpop.f32.mrb[0].mxu0
    %v340 = vpop.f32.mrb[0].mxu0
    %341 = vdwg.mxu0
    %v342 = vsel %vm243, %v337, -inf
    %343 = vmax.xlane.f32.xlu0 %v342
    %v344 = vpop.xlane.xlu0 %343
    %v345 = vsub.f32 %v337, %v344
    %v346 = vmul.f32 %v345, 1.442695
    %v347 = vpow.pop %v346
    %v348 = vsel %vm243, %v347, 0.0
    %349 = vadd.xlane.f32.xlu0 %v348
    %v350 = vpop.xlane.xlu0 %349
    %v351 = vrcp.pop %v350
    %v352 = vmul.f32 %v347, %v351
    %353 = vst.msk [vmem:[#allocation4 + $0x1] sm:$0x1] %vm243, %v352
    %v354 = vadd.f32 %v337, %v279
    %v355 = vsel %vm282, %v354, -inf
    %356 = vmax.xlane.f32.xlu0 %v355
    %v357 = vpop.xlane.xlu0 %356
    %v358 = vsub.f32 %v354, %v357
    %v359 = vmul.f32 %v358, 1.442695
    %v360 = vpow.pop %v359
    %v361 = vsel %vm282, %v360, 0.0
    %362 = vadd.xlane.f32.xlu0 %v361
    %v363 = vpop.xlane.xlu0 %362
    %v364 = vrcp.pop %v363
    %v365 = vmul.f32 %v360, %v364
    %366 = vst.msk [vmem:[#allocation6] sm:$0x2] %vm282, %v365
    // Predicated region
    $region34: #{bert_classifier_forward.5} parent=1 // pred_check
      _
    $region35: #{bert_classifier_forward.5} parent=1 // pred_check_branch
      %368 = sbr.rel (0) target = $region37
    $region36: #{bert_classifier_forward.5} parent=1 // pred_region
      %s370 = ssub.s32 32, 32
      %371 = vsyncadd [#allocation3], %s370
      %s373 = sshll.u32 [#allocation2], 4
      %s374 = int_to_ptr.vmem [resolvable:$true] %s373
      %376 = dma.vmem_to_hbm [thread:$0]  %s374, 32, %s8, [#allocation3]
    $region37: #{bert_classifier_forward.5} parent=1 // pred_fallthru
      _
    // Predicated region
    $region38: #{bert_classifier_forward.5} parent=1 // pred_check
      _
    $region39: #{bert_classifier_forward.5} parent=1 // pred_check_branch
      %378 = sbr.rel (0) target = $region41
    $region40: #{bert_classifier_forward.5} parent=1 // pred_region
      %s380 = ssub.s32 32, 32
      %381 = vsyncadd [#allocation5], %s380
      %s383 = sshll.u32 [#allocation4], 4
      %s384 = int_to_ptr.vmem [resolvable:$true] %s383
      %386 = dma.vmem_to_hbm [thread:$0]  %s384, 32, %s9, [#allocation5]
    $region41: #{bert_classifier_forward.5} parent=1 // pred_fallthru
      _
    // Predicated region
    $region42: #{bert_classifier_forward.5} parent=1 // pred_check
      _
    $region43: #{bert_classifier_forward.5} parent=1 // pred_check_branch
      %388 = sbr.rel (0) target = $region45
    $region44: #{bert_classifier_forward.5} parent=1 // pred_region
      %s390 = ssub.s32 32, 32
      %391 = vsyncadd [#allocation5], %s390
      %s393 = sshll.u32 [#allocation6], 4
      %s394 = int_to_ptr.vmem [resolvable:$true] %s393
      %396 = dma.vmem_to_hbm [thread:$0]  %s394, 32, %s10, [#allocation5]
    $region45: #{bert_classifier_forward.5} parent=1 // pred_fallthru
      _
    // Predicated region
    $region46: #{bert_classifier_forward.5} parent=1 // pred_check
      _
    $region47: #{bert_classifier_forward.5} parent=1 // pred_check_branch
      %398 = sbr.rel (0) target = $region49
    $region48: #{bert_classifier_forward.5} parent=1 // pred_region
      %399 = dma.done [#allocation3], 32
    $region49: #{bert_classifier_forward.5} parent=1 // pred_fallthru
      _
    // Predicated region
    $region50: #{bert_classifier_forward.5} parent=1 // pred_check
      _
    $region51: #{bert_classifier_forward.5} parent=1 // pred_check_branch
      %401 = sbr.rel (0) target = $region53
    $region52: #{bert_classifier_forward.5} parent=1 // pred_region
      %402 = dma.done [#allocation5], 32
    $region53: #{bert_classifier_forward.5} parent=1 // pred_fallthru
      _
    // Predicated region
    $region54: #{bert_classifier_forward.5} parent=1 // pred_check
      _
    $region55: #{bert_classifier_forward.5} parent=1 // pred_check_branch
      %404 = sbr.rel (0) target = $region57
    $region56: #{bert_classifier_forward.5} parent=1 // pred_region
      %405 = dma.done [#allocation5], 32
    $region57: #{bert_classifier_forward.5} parent=1 // pred_fallthru
      _
    %406 = vsyncpa [#allocation3], 1
    %407 = vsyncpa [#allocation5], 1

// kernel: bert_classifier_forward.4
$region0: #{bert_classifier_forward.4}
  #allocation0 [shape = 'u32[]', space=smem, size = 0x4, offset = 0x4, fixed_abs, tag = 'smem constant byte address 0x4 - core index']
  #allocation1 [shape = 'u32[144,128]{1,0:T(1,128)}', space=vmem, size = 0x12000, scoped, tag = 'internal scratch']
  #allocation2 [shape = 'f32[1,8,32]{2,1,0:T(8,128)}', space=vmem, size = 0x1000, scoped, tag = 'scratch operand']
  %s0 = inlined_call_operand.vmem [shape: f32[2,8,32], index: 0, kind: input, shape index: {}]
  %s1 = inlined_call_operand.vmem [shape: f32[2,1,8], index: 1, kind: input, shape index: {}]
  %s2 = inlined_call_operand.vmem [shape: bf16[2,32,96], index: 2, kind: input, shape index: {}]
  %s3 = inlined_call_operand.vmem [shape: f32[2,1,96], index: 3, kind: input, shape index: {}]
  %s4 = inlined_call_operand.vmem [shape: bf16[2,32,32], index: 4, kind: input, shape index: {}]
  %s5 = inlined_call_operand.vmem [shape: f32[2,1,32], index: 5, kind: input, shape index: {}]
  %s6 = inlined_call_operand.vmem [shape: f32[2,1,32], index: 6, kind: input, shape index: {}]
  %s7 = inlined_call_operand.vmem [shape: f32[2,1,32], index: 7, kind: input, shape index: {}]
  %s8 = inlined_call_operand.vmem [shape: bf16[2,32,64], index: 8, kind: input, shape index: {}]
  %s9 = inlined_call_operand.vmem [shape: f32[2,1,64], index: 9, kind: input, shape index: {}]
  %s10 = inlined_call_operand.vmem [shape: bf16[2,64,32], index: 10, kind: input, shape index: {}]
  %s11 = inlined_call_operand.vmem [shape: f32[2,1,32], index: 11, kind: input, shape index: {}]
  %s12 = inlined_call_operand.vmem [shape: f32[2,1,32], index: 12, kind: input, shape index: {}]
  %s13 = inlined_call_operand.vmem [shape: f32[2,1,32], index: 13, kind: input, shape index: {}]
  %s14 = inlined_call_operand.vmem [shape: f32[1,32], index: 14, kind: input, shape index: {}]
  %s15 = inlined_call_operand.vmem [shape: f32[1,32], index: 15, kind: input, shape index: {}]
  %s16 = inlined_call_operand.vmem [shape: f32[2,8,32], index: 16, kind: output, shape index: {}]
  %s17 = sld [smem:[#allocation0]]
  $region105: #{bert_classifier_forward.4} parent=0
    _
  %s19 = ssub.s32 1, %s17
  %s20 = scalar_select 0, %s19, %s17
  loop: start=0, step=1, limit=6
  $region2: #{bert_classifier_forward.4} parent=0 // loop_pre_header
    _
  $region3: #{bert_classifier_forward.4} parent=0 // loop_header
    %s22 = sphi 0, %s26
    %p23 = scmp.ge.s32.totalorder %s22, 6
    %s29 = sphi 0, %s41
    %s30 = sphi 0, %s37
    %s31 = sphi 0, %s29
    %s32 = sphi 0, %s30
    %s33 = sphi 0, %s31
    %s34 = sphi 0, %s32
    %s44 = sphi 0, %s46
    %s47 = sphi 0, %s44
    %s48 = sphi 0, %s47
    %s64 = sphi 0, %s48
    %s70 = sphi 0, %s72
    %s73 = sphi 0, %s70
    %s74 = sphi 0, %s73
    %s90 = sphi 0, %s74
    %s96 = sphi 0, %s98
    %s99 = sphi 0, %s96
    %s100 = sphi 0, %s99
    %s116 = sphi 0, %s100
    %s122 = sphi 0, %s124
    %s125 = sphi 0, %s122
    %s126 = sphi 0, %s125
    %s142 = sphi 0, %s126
    %s148 = sphi 0, %s150
    %s151 = sphi 0, %s148
    %s152 = sphi 0, %s151
    %s168 = sphi 0, %s152
    %s174 = sphi 0, %s176
    %s177 = sphi 0, %s174
    %s178 = sphi 0, %s177
    %s194 = sphi 0, %s178
    %s200 = sphi 0, %s202
    %s203 = sphi 0, %s200
    %s204 = sphi 0, %s203
    %s220 = sphi 0, %s204
    %s226 = sphi 0, %s228
    %s229 = sphi 0, %s226
    %s230 = sphi 0, %s229
    %s246 = sphi 0, %s230
    %s252 = sphi 0, %s254
    %s255 = sphi 0, %s252
    %s256 = sphi 0, %s255
    %s272 = sphi 0, %s256
    %s278 = sphi 0, %s280
    %s281 = sphi 0, %s278
    %s282 = sphi 0, %s281
    %s298 = sphi 0, %s282
    %s304 = sphi 0, %s306
    %s307 = sphi 0, %s304
    %s308 = sphi 0, %s307
    %s324 = sphi 0, %s308
    %s330 = sphi 0, %s332
    %s333 = sphi 0, %s330
    %s334 = sphi 0, %s333
    %s350 = sphi 0, %s334
    %s356 = sphi 0, %s358
    %s359 = sphi 0, %s356
    %s360 = sphi 0, %s359
    %s376 = sphi 0, %s360
    %s382 = sphi 0, %s384
    %s385 = sphi 0, %s382
    %s386 = sphi 0, %s385
    %s402 = sphi 0, %s386
    %s406 = sphi 0, %s406
    %s408 = sphi 0, %s406
    %s409 = sphi 0, %s408
    %s423 = sphi 0, %s409
    %s427 = sphi 0, %s427
    %s429 = sphi 0, %s427
    %s430 = sphi 0, %s429
    %s444 = sphi 0, %s430
    %s450 = sphi 0, %s452
    %s453 = sphi 0, %s450
    %s454 = sphi 0, %s453
    %s470 = sphi 0, %s454
  $region4: #{bert_classifier_forward.4} parent=0 // loop_header_branch
    %25 = sbr.rel (%p23) target = $region8
  $region5: #{bert_classifier_forward.4} parent=0 // loop_body
    %s27 = ssub.s32 %s22, 1
    %s28 = ssub.s32 %s22, 2
    %s35 = sadd.s32 1, %s30
    %p36 = scmp.ge.s32.totalorder %s35, 2
    %s37 = scalar_select %p36, 0, %s35
    %s38 = sadd.s32 1, %s29
    %s39 = scalar_select %p36, %s38, %s29
    %p40 = scmp.ge.s32.totalorder %s39, 2
    %s41 = scalar_select %p40, 0, %s39
    %s42 = ssub.s32 %s29, %s41
    %p43 = scmp.eq.s32.totalorder %s42, 0
    %s45 = sadd.s32 %s44, 1
    %s46 = scalar_select %p43, %s44, %s45
    %p49 = pneg %p43
    %p50 = scmp.eq.s32.totalorder %s22, 3
    %p51 = por %p49, %p50
    %p52 = scmp.ne.s32.totalorder %s44, %s47
    %p53 = scmp.eq.s32.totalorder %s22, 0
    %p54 = por %p52, %p53
    %p55 = scmp.ne.s32.totalorder %s44, %s47
    %p56 = scmp.eq.s32.totalorder %s27, 3
    %p57 = por %p55, %p56
    %p58 = scmp.ne.s32.totalorder %s47, %s48
    %p59 = scmp.eq.s32.totalorder %s27, 0
    %p60 = por %p58, %p59
    %p61 = scmp.ne.s32.totalorder %s47, %s48
    %p62 = scmp.eq.s32.totalorder %s28, 3
    %p63 = por %p61, %p62
    %p65 = scmp.ne.s32.totalorder %s48, %s64
    %p66 = scmp.eq.s32.totalorder %s28, 0
    %p67 = por %p65, %p66
    %s68 = ssub.s32 %s29, %s41
    %p69 = scmp.eq.s32.totalorder %s68, 0
    %s71 = sadd.s32 %s70, 1
    %s72 = scalar_select %p69, %s70, %s71
    %p75 = pneg %p69
    %p76 = scmp.eq.s32.totalorder %s22, 3
    %p77 = por %p75, %p76
    %p78 = scmp.ne.s32.totalorder %s70, %s73
    %p79 = scmp.eq.s32.totalorder %s22, 0
    %p80 = por %p78, %p79
    %p81 = scmp.ne.s32.totalorder %s70, %s73
    %p82 = scmp.eq.s32.totalorder %s27, 3
    %p83 = por %p81, %p82
    %p84 = scmp.ne.s32.totalorder %s73, %s74
    %p85 = scmp.eq.s32.totalorder %s27, 0
    %p86 = por %p84, %p85
    %p87 = scmp.ne.s32.totalorder %s73, %s74
    %p88 = scmp.eq.s32.totalorder %s28, 3
    %p89 = por %p87, %p88
    %p91 = scmp.ne.s32.totalorder %s74, %s90
    %p92 = scmp.eq.s32.totalorder %s28, 0
    %p93 = por %p91, %p92
    %s94 = ssub.s32 %s30, %s37
    %p95 = scmp.eq.s32.totalorder %s94, 0
    %s97 = sadd.s32 %s96, 1
    %s98 = scalar_select %p95, %s96, %s97
    %p101 = pneg %p95
    %p102 = scmp.eq.s32.totalorder %s22, 3
    %p103 = por %p101, %p102
    %p104 = scmp.ne.s32.totalorder %s96, %s99
    %p105 = scmp.eq.s32.totalorder %s22, 0
    %p106 = por %p104, %p105
    %p107 = scmp.ne.s32.totalorder %s96, %s99
    %p108 = scmp.eq.s32.totalorder %s27, 3
    %p109 = por %p107, %p108
    %p110 = scmp.ne.s32.totalorder %s99, %s100
    %p111 = scmp.eq.s32.totalorder %s27, 0
    %p112 = por %p110, %p111
    %p113 = scmp.ne.s32.totalorder %s99, %s100
    %p114 = scmp.eq.s32.totalorder %s28, 3
    %p115 = por %p113, %p114
    %p117 = scmp.ne.s32.totalorder %s100, %s116
    %p118 = scmp.eq.s32.totalorder %s28, 0
    %p119 = por %p117, %p118
    %s120 = ssub.s32 %s30, %s37
    %p121 = scmp.eq.s32.totalorder %s120, 0
    %s123 = sadd.s32 %s122, 1
    %s124 = scalar_select %p121, %s122, %s123
    %p127 = pneg %p121
    %p128 = scmp.eq.s32.totalorder %s22, 3
    %p129 = por %p127, %p128
    %p130 = scmp.ne.s32.totalorder %s122, %s125
    %p131 = scmp.eq.s32.totalorder %s22, 0
    %p132 = por %p130, %p131
    %p133 = scmp.ne.s32.totalorder %s122, %s125
    %p134 = scmp.eq.s32.totalorder %s27, 3
    %p135 = por %p133, %p134
    %p136 = scmp.ne.s32.totalorder %s125, %s126
    %p137 = scmp.eq.s32.totalorder %s27, 0
    %p138 = por %p136, %p137
    %p139 = scmp.ne.s32.totalorder %s125, %s126
    %p140 = scmp.eq.s32.totalorder %s28, 3
    %p141 = por %p139, %p140
    %p143 = scmp.ne.s32.totalorder %s126, %s142
    %p144 = scmp.eq.s32.totalorder %s28, 0
    %p145 = por %p143, %p144
    %s146 = ssub.s32 %s30, %s37
    %p147 = scmp.eq.s32.totalorder %s146, 0
    %s149 = sadd.s32 %s148, 1
    %s150 = scalar_select %p147, %s148, %s149
    %p153 = pneg %p147
    %p154 = scmp.eq.s32.totalorder %s22, 3
    %p155 = por %p153, %p154
    %p156 = scmp.ne.s32.totalorder %s148, %s151
    %p157 = scmp.eq.s32.totalorder %s22, 0
    %p158 = por %p156, %p157
    %p159 = scmp.ne.s32.totalorder %s148, %s151
    %p160 = scmp.eq.s32.totalorder %s27, 3
    %p161 = por %p159, %p160
    %p162 = scmp.ne.s32.totalorder %s151, %s152
    %p163 = scmp.eq.s32.totalorder %s27, 0
    %p164 = por %p162, %p163
    %p165 = scmp.ne.s32.totalorder %s151, %s152
    %p166 = scmp.eq.s32.totalorder %s28, 3
    %p167 = por %p165, %p166
    %p169 = scmp.ne.s32.totalorder %s152, %s168
    %p170 = scmp.eq.s32.totalorder %s28, 0
    %p171 = por %p169, %p170
    %s172 = ssub.s32 %s30, %s37
    %p173 = scmp.eq.s32.totalorder %s172, 0
    %s175 = sadd.s32 %s174, 1
    %s176 = scalar_select %p173, %s174, %s175
    %p179 = pneg %p173
    %p180 = scmp.eq.s32.totalorder %s22, 3
    %p181 = por %p179, %p180
    %p182 = scmp.ne.s32.totalorder %s174, %s177
    %p183 = scmp.eq.s32.totalorder %s22, 0
    %p184 = por %p182, %p183
    %p185 = scmp.ne.s32.totalorder %s174, %s177
    %p186 = scmp.eq.s32.totalorder %s27, 3
    %p187 = por %p185, %p186
    %p188 = scmp.ne.s32.totalorder %s177, %s178
    %p189 = scmp.eq.s32.totalorder %s27, 0
    %p190 = por %p188, %p189
    %p191 = scmp.ne.s32.totalorder %s177, %s178
    %p192 = scmp.eq.s32.totalorder %s28, 3
    %p193 = por %p191, %p192
    %p195 = scmp.ne.s32.totalorder %s178, %s194
    %p196 = scmp.eq.s32.totalorder %s28, 0
    %p197 = por %p195, %p196
    %s198 = ssub.s32 %s30, %s37
    %p199 = scmp.eq.s32.totalorder %s198, 0
    %s201 = sadd.s32 %s200, 1
    %s202 = scalar_select %p199, %s200, %s201
    %p205 = pneg %p199
    %p206 = scmp.eq.s32.totalorder %s22, 3
    %p207 = por %p205, %p206
    %p208 = scmp.ne.s32.totalorder %s200, %s203
    %p209 = scmp.eq.s32.totalorder %s22, 0
    %p210 = por %p208, %p209
    %p211 = scmp.ne.s32.totalorder %s200, %s203
    %p212 = scmp.eq.s32.totalorder %s27, 3
    %p213 = por %p211, %p212
    %p214 = scmp.ne.s32.totalorder %s203, %s204
    %p215 = scmp.eq.s32.totalorder %s27, 0
    %p216 = por %p214, %p215
    %p217 = scmp.ne.s32.totalorder %s203, %s204
    %p218 = scmp.eq.s32.totalorder %s28, 3
    %p219 = por %p217, %p218
    %p221 = scmp.ne.s32.totalorder %s204, %s220
    %p222 = scmp.eq.s32.totalorder %s28, 0
    %p223 = por %p221, %p222
    %s224 = ssub.s32 %s30, %s37
    %p225 = scmp.eq.s32.totalorder %s224, 0
    %s227 = sadd.s32 %s226, 1
    %s228 = scalar_select %p225, %s226, %s227
    %p231 = pneg %p225
    %p232 = scmp.eq.s32.totalorder %s22, 3
    %p233 = por %p231, %p232
    %p234 = scmp.ne.s32.totalorder %s226, %s229
    %p235 = scmp.eq.s32.totalorder %s22, 0
    %p236 = por %p234, %p235
    %p237 = scmp.ne.s32.totalorder %s226, %s229
    %p238 = scmp.eq.s32.totalorder %s27, 3
    %p239 = por %p237, %p238
    %p240 = scmp.ne.s32.totalorder %s229, %s230
    %p241 = scmp.eq.s32.totalorder %s27, 0
    %p242 = por %p240, %p241
    %p243 = scmp.ne.s32.totalorder %s229, %s230
    %p244 = scmp.eq.s32.totalorder %s28, 3
    %p245 = por %p243, %p244
    %p247 = scmp.ne.s32.totalorder %s230, %s246
    %p248 = scmp.eq.s32.totalorder %s28, 0
    %p249 = por %p247, %p248
    %s250 = ssub.s32 %s30, %s37
    %p251 = scmp.eq.s32.totalorder %s250, 0
    %s253 = sadd.s32 %s252, 1
    %s254 = scalar_select %p251, %s252, %s253
    %p257 = pneg %p251
    %p258 = scmp.eq.s32.totalorder %s22, 3
    %p259 = por %p257, %p258
    %p260 = scmp.ne.s32.totalorder %s252, %s255
    %p261 = scmp.eq.s32.totalorder %s22, 0
    %p262 = por %p260, %p261
    %p263 = scmp.ne.s32.totalorder %s252, %s255
    %p264 = scmp.eq.s32.totalorder %s27, 3
    %p265 = por %p263, %p264
    %p266 = scmp.ne.s32.totalorder %s255, %s256
    %p267 = scmp.eq.s32.totalorder %s27, 0
    %p268 = por %p266, %p267
    %p269 = scmp.ne.s32.totalorder %s255, %s256
    %p270 = scmp.eq.s32.totalorder %s28, 3
    %p271 = por %p269, %p270
    %p273 = scmp.ne.s32.totalorder %s256, %s272
    %p274 = scmp.eq.s32.totalorder %s28, 0
    %p275 = por %p273, %p274
    %s276 = ssub.s32 %s30, %s37
    %p277 = scmp.eq.s32.totalorder %s276, 0
    %s279 = sadd.s32 %s278, 1
    %s280 = scalar_select %p277, %s278, %s279
    %p283 = pneg %p277
    %p284 = scmp.eq.s32.totalorder %s22, 3
    %p285 = por %p283, %p284
    %p286 = scmp.ne.s32.totalorder %s278, %s281
    %p287 = scmp.eq.s32.totalorder %s22, 0
    %p288 = por %p286, %p287
    %p289 = scmp.ne.s32.totalorder %s278, %s281
    %p290 = scmp.eq.s32.totalorder %s27, 3
    %p291 = por %p289, %p290
    %p292 = scmp.ne.s32.totalorder %s281, %s282
    %p293 = scmp.eq.s32.totalorder %s27, 0
    %p294 = por %p292, %p293
    %p295 = scmp.ne.s32.totalorder %s281, %s282
    %p296 = scmp.eq.s32.totalorder %s28, 3
    %p297 = por %p295, %p296
    %p299 = scmp.ne.s32.totalorder %s282, %s298
    %p300 = scmp.eq.s32.totalorder %s28, 0
    %p301 = por %p299, %p300
    %s302 = ssub.s32 %s30, %s37
    %p303 = scmp.eq.s32.totalorder %s302, 0
    %s305 = sadd.s32 %s304, 1
    %s306 = scalar_select %p303, %s304, %s305
    %p309 = pneg %p303
    %p310 = scmp.eq.s32.totalorder %s22, 3
    %p311 = por %p309, %p310
    %p312 = scmp.ne.s32.totalorder %s304, %s307
    %p313 = scmp.eq.s32.totalorder %s22, 0
    %p314 = por %p312, %p313
    %p315 = scmp.ne.s32.totalorder %s304, %s307
    %p316 = scmp.eq.s32.totalorder %s27, 3
    %p317 = por %p315, %p316
    %p318 = scmp.ne.s32.totalorder %s307, %s308
    %p319 = scmp.eq.s32.totalorder %s27, 0
    %p320 = por %p318, %p319
    %p321 = scmp.ne.s32.totalorder %s307, %s308
    %p322 = scmp.eq.s32.totalorder %s28, 3
    %p323 = por %p321, %p322
    %p325 = scmp.ne.s32.totalorder %s308, %s324
    %p326 = scmp.eq.s32.totalorder %s28, 0
    %p327 = por %p325, %p326
    %s328 = ssub.s32 %s30, %s37
    %p329 = scmp.eq.s32.totalorder %s328, 0
    %s331 = sadd.s32 %s330, 1
    %s332 = scalar_select %p329, %s330, %s331
    %p335 = pneg %p329
    %p336 = scmp.eq.s32.totalorder %s22, 3
    %p337 = por %p335, %p336
    %p338 = scmp.ne.s32.totalorder %s330, %s333
    %p339 = scmp.eq.s32.totalorder %s22, 0
    %p340 = por %p338, %p339
    %p341 = scmp.ne.s32.totalorder %s330, %s333
    %p342 = scmp.eq.s32.totalorder %s27, 3
    %p343 = por %p341, %p342
    %p344 = scmp.ne.s32.totalorder %s333, %s334
    %p345 = scmp.eq.s32.totalorder %s27, 0
    %p346 = por %p344, %p345
    %p347 = scmp.ne.s32.totalorder %s333, %s334
    %p348 = scmp.eq.s32.totalorder %s28, 3
    %p349 = por %p347, %p348
    %p351 = scmp.ne.s32.totalorder %s334, %s350
    %p352 = scmp.eq.s32.totalorder %s28, 0
    %p353 = por %p351, %p352
    %s354 = ssub.s32 %s30, %s37
    %p355 = scmp.eq.s32.totalorder %s354, 0
    %s357 = sadd.s32 %s356, 1
    %s358 = scalar_select %p355, %s356, %s357
    %p361 = pneg %p355
    %p362 = scmp.eq.s32.totalorder %s22, 3
    %p363 = por %p361, %p362
    %p364 = scmp.ne.s32.totalorder %s356, %s359
    %p365 = scmp.eq.s32.totalorder %s22, 0
    %p366 = por %p364, %p365
    %p367 = scmp.ne.s32.totalorder %s356, %s359
    %p368 = scmp.eq.s32.totalorder %s27, 3
    %p369 = por %p367, %p368
    %p370 = scmp.ne.s32.totalorder %s359, %s360
    %p371 = scmp.eq.s32.totalorder %s27, 0
    %p372 = por %p370, %p371
    %p373 = scmp.ne.s32.totalorder %s359, %s360
    %p374 = scmp.eq.s32.totalorder %s28, 3
    %p375 = por %p373, %p374
    %p377 = scmp.ne.s32.totalorder %s360, %s376
    %p378 = scmp.eq.s32.totalorder %s28, 0
    %p379 = por %p377, %p378
    %s380 = ssub.s32 %s30, %s37
    %p381 = scmp.eq.s32.totalorder %s380, 0
    %s383 = sadd.s32 %s382, 1
    %s384 = scalar_select %p381, %s382, %s383
    %p387 = pneg %p381
    %p388 = scmp.eq.s32.totalorder %s22, 3
    %p389 = por %p387, %p388
    %p390 = scmp.ne.s32.totalorder %s382, %s385
    %p391 = scmp.eq.s32.totalorder %s22, 0
    %p392 = por %p390, %p391
    %p393 = scmp.ne.s32.totalorder %s382, %s385
    %p394 = scmp.eq.s32.totalorder %s27, 3
    %p395 = por %p393, %p394
    %p396 = scmp.ne.s32.totalorder %s385, %s386
    %p397 = scmp.eq.s32.totalorder %s27, 0
    %p398 = por %p396, %p397
    %p399 = scmp.ne.s32.totalorder %s385, %s386
    %p400 = scmp.eq.s32.totalorder %s28, 3
    %p401 = por %p399, %p400
    %p403 = scmp.ne.s32.totalorder %s386, %s402
    %p404 = scmp.eq.s32.totalorder %s28, 0
    %p405 = por %p403, %p404
    %s407 = sadd.s32 %s406, 1
    %p410 = scmp.eq.s32.totalorder %s22, 3
    %p411 = scmp.ne.s32.totalorder %s406, %s408
    %p412 = scmp.eq.s32.totalorder %s22, 0
    %p413 = por %p411, %p412
    %p414 = scmp.ne.s32.totalorder %s406, %s408
    %p415 = scmp.eq.s32.totalorder %s27, 3
    %p416 = por %p414, %p415
    %p417 = scmp.ne.s32.totalorder %s408, %s409
    %p418 = scmp.eq.s32.totalorder %s27, 0
    %p419 = por %p417, %p418
    %p420 = scmp.ne.s32.totalorder %s408, %s409
    %p421 = scmp.eq.s32.totalorder %s28, 3
    %p422 = por %p420, %p421
    %p424 = scmp.ne.s32.totalorder %s409, %s423
    %p425 = scmp.eq.s32.totalorder %s28, 0
    %p426 = por %p424, %p425
    %s428 = sadd.s32 %s427, 1
    %p431 = scmp.eq.s32.totalorder %s22, 3
    %p432 = scmp.ne.s32.totalorder %s427, %s429
    %p433 = scmp.eq.s32.totalorder %s22, 0
    %p434 = por %p432, %p433
    %p435 = scmp.ne.s32.totalorder %s427, %s429
    %p436 = scmp.eq.s32.totalorder %s27, 3
    %p437 = por %p435, %p436
    %p438 = scmp.ne.s32.totalorder %s429, %s430
    %p439 = scmp.eq.s32.totalorder %s27, 0
    %p440 = por %p438, %p439
    %p441 = scmp.ne.s32.totalorder %s429, %s430
    %p442 = scmp.eq.s32.totalorder %s28, 3
    %p443 = por %p441, %p442
    %p445 = scmp.ne.s32.totalorder %s430, %s444
    %p446 = scmp.eq.s32.totalorder %s28, 0
    %p447 = por %p445, %p446
    %s448 = ssub.s32 %s29, %s41
    %p449 = scmp.eq.s32.totalorder %s448, 0
    %s451 = sadd.s32 %s450, 1
    %s452 = scalar_select %p449, %s450, %s451
    %p455 = pneg %p449
    %p456 = scmp.eq.s32.totalorder %s22, 3
    %p457 = por %p455, %p456
    %p458 = scmp.ne.s32.totalorder %s450, %s453
    %p459 = scmp.eq.s32.totalorder %s22, 0
    %p460 = por %p458, %p459
    %p461 = scmp.ne.s32.totalorder %s450, %s453
    %p462 = scmp.eq.s32.totalorder %s27, 3
    %p463 = por %p461, %p462
    %p464 = scmp.ne.s32.totalorder %s453, %s454
    %p465 = scmp.eq.s32.totalorder %s27, 0
    %p466 = por %p464, %p465
    %p467 = scmp.ne.s32.totalorder %s453, %s454
    %p468 = scmp.eq.s32.totalorder %s28, 3
    %p469 = por %p467, %p468
    %p471 = scmp.ne.s32.totalorder %s454, %s470
    %p472 = scmp.eq.s32.totalorder %s28, 0
    %p473 = por %p471, %p472
    %p474 = scmp.le.s32.totalorder 1, %s22
    %p475 = scmp.lt.s32.totalorder %s22, 5
    %p476 = pnand %p474, %p475
    %p477 = pneg %p476
    // Predicated region
    $region9: #{bert_classifier_forward.4} parent=5 // pred_check
      _
    $region10: #{bert_classifier_forward.4} parent=5 // pred_check_branch
      %479 = sbr.rel (%p476) target = $region12
    $region11: #{bert_classifier_forward.4} parent=5 // pred_region
      %s480 = ssub.s32 %s22, 1
      // Predicated region
      $region13: #{bert_classifier_forward.4} parent=11 // pred_check
        %p481 = pneg %p419
      $region14: #{bert_classifier_forward.4} parent=11 // pred_check_branch
        %483 = sbr.rel (%p481) target = $region16
      $region15: #{bert_classifier_forward.4} parent=11 // pred_region
        _
      $region16: #{bert_classifier_forward.4} parent=11 // pred_fallthru
        _
      // Predicated region
      $region17: #{bert_classifier_forward.4} parent=11 // pred_check
        %p484 = pneg %p440
      $region18: #{bert_classifier_forward.4} parent=11 // pred_check_branch
        %486 = sbr.rel (%p484) target = $region20
      $region19: #{bert_classifier_forward.4} parent=11 // pred_region
        _
      $region20: #{bert_classifier_forward.4} parent=11 // pred_fallthru
        _
    $region12: #{bert_classifier_forward.4} parent=5 // pred_fallthru
      _
    %p487 = scmp.lt.s32.totalorder %s22, 4
    // Predicated region
    $region21: #{bert_classifier_forward.4} parent=5 // pred_check
      %p488 = pneg %p487
    $region22: #{bert_classifier_forward.4} parent=5 // pred_check_branch
      %490 = sbr.rel (%p488) target = $region24
    $region23: #{bert_classifier_forward.4} parent=5 // pred_region
      // Predicated region
      $region25: #{bert_classifier_forward.4} parent=23 // pred_check
        %p491 = pneg %p54
      $region26: #{bert_classifier_forward.4} parent=23 // pred_check_branch
        %493 = sbr.rel (%p491) target = $region28
      $region27: #{bert_classifier_forward.4} parent=23 // pred_region
        %p494 = scmp.lt.s32.totalorder %s29, 1
        %s495 = scalar_select %p494, %s29, 1
        %s496 = smul.addr %s495, 8
        %s497 = scalar_lea.vmem %s0, %s496
      $region28: #{bert_classifier_forward.4} parent=23 // pred_fallthru
        _
      // Predicated region
      $region29: #{bert_classifier_forward.4} parent=23 // pred_check
        %p498 = pneg %p80
      $region30: #{bert_classifier_forward.4} parent=23 // pred_check_branch
        %500 = sbr.rel (%p498) target = $region32
      $region31: #{bert_classifier_forward.4} parent=23 // pred_region
        %p501 = scmp.lt.s32.totalorder %s29, 1
        %s502 = scalar_select %p501, %s29, 1
        %s503 = scalar_lea.vmem %s1, %s502
      $region32: #{bert_classifier_forward.4} parent=23 // pred_fallthru
        _
      // Predicated region
      $region33: #{bert_classifier_forward.4} parent=23 // pred_check
        %p504 = pneg %p106
      $region34: #{bert_classifier_forward.4} parent=23 // pred_check_branch
        %506 = sbr.rel (%p504) target = $region36
      $region35: #{bert_classifier_forward.4} parent=23 // pred_region
        %p507 = scmp.lt.s32.totalorder %s30, 1
        %s508 = scalar_select %p507, %s30, 1
        %s509 = smul.addr %s508, 4
        %s510 = smul.addr %s509, 4
        %s511 = scalar_lea.vmem %s2, %s510
      $region36: #{bert_classifier_forward.4} parent=23 // pred_fallthru
        _
      // Predicated region
      $region37: #{bert_classifier_forward.4} parent=23 // pred_check
        %p512 = pneg %p132
      $region38: #{bert_classifier_forward.4} parent=23 // pred_check_branch
        %514 = sbr.rel (%p512) target = $region40
      $region39: #{bert_classifier_forward.4} parent=23 // pred_region
        %p515 = scmp.lt.s32.totalorder %s30, 1
        %s516 = scalar_select %p515, %s30, 1
        %s517 = scalar_lea.vmem %s3, %s516
      $region40: #{bert_classifier_forward.4} parent=23 // pred_fallthru
        _
      // Predicated region
      $region41: #{bert_classifier_forward.4} parent=23 // pred_check
        %p518 = pneg %p158
      $region42: #{bert_classifier_forward.4} parent=23 // pred_check_branch
        %520 = sbr.rel (%p518) target = $region44
      $region43: #{bert_classifier_forward.4} parent=23 // pred_region
        %p521 = scmp.lt.s32.totalorder %s30, 1
        %s522 = scalar_select %p521, %s30, 1
        %s523 = smul.addr %s522, 4
        %s524 = smul.addr %s523, 4
        %s525 = scalar_lea.vmem %s4, %s524
      $region44: #{bert_classifier_forward.4} parent=23 // pred_fallthru
        _
      // Predicated region
      $region45: #{bert_classifier_forward.4} parent=23 // pred_check
        %p526 = pneg %p184
      $region46: #{bert_classifier_forward.4} parent=23 // pred_check_branch
        %528 = sbr.rel (%p526) target = $region48
      $region47: #{bert_classifier_forward.4} parent=23 // pred_region
        %p529 = scmp.lt.s32.totalorder %s30, 1
        %s530 = scalar_select %p529, %s30, 1
        %s531 = scalar_lea.vmem %s5, %s530
      $region48: #{bert_classifier_forward.4} parent=23 // pred_fallthru
        _
      // Predicated region
      $region49: #{bert_classifier_forward.4} parent=23 // pred_check
        %p532 = pneg %p210
      $region50: #{bert_classifier_forward.4} parent=23 // pred_check_branch
        %534 = sbr.rel (%p532) target = $region52
      $region51: #{bert_classifier_forward.4} parent=23 // pred_region
        %p535 = scmp.lt.s32.totalorder %s30, 1
        %s536 = scalar_select %p535, %s30, 1
        %s537 = scalar_lea.vmem %s6, %s536
      $region52: #{bert_classifier_forward.4} parent=23 // pred_fallthru
        _
      // Predicated region
      $region53: #{bert_classifier_forward.4} parent=23 // pred_check
        %p538 = pneg %p236
      $region54: #{bert_classifier_forward.4} parent=23 // pred_check_branch
        %540 = sbr.rel (%p538) target = $region56
      $region55: #{bert_classifier_forward.4} parent=23 // pred_region
        %p541 = scmp.lt.s32.totalorder %s30, 1
        %s542 = scalar_select %p541, %s30, 1
        %s543 = scalar_lea.vmem %s7, %s542
      $region56: #{bert_classifier_forward.4} parent=23 // pred_fallthru
        _
      // Predicated region
      $region57: #{bert_classifier_forward.4} parent=23 // pred_check
        %p544 = pneg %p262
      $region58: #{bert_classifier_forward.4} parent=23 // pred_check_branch
        %546 = sbr.rel (%p544) target = $region60
      $region59: #{bert_classifier_forward.4} parent=23 // pred_region
        %p547 = scmp.lt.s32.totalorder %s30, 1
        %s548 = scalar_select %p547, %s30, 1
        %s549 = smul.addr %s548, 4
        %s550 = smul.addr %s549, 4
        %s551 = scalar_lea.vmem %s8, %s550
      $region60: #{bert_classifier_forward.4} parent=23 // pred_fallthru
        _
      // Predicated region
      $region61: #{bert_classifier_forward.4} parent=23 // pred_check
        %p552 = pneg %p288
      $region62: #{bert_classifier_forward.4} parent=23 // pred_check_branch
        %554 = sbr.rel (%p552) target = $region64
      $region63: #{bert_classifier_forward.4} parent=23 // pred_region
        %p555 = scmp.lt.s32.totalorder %s30, 1
        %s556 = scalar_select %p555, %s30, 1
        %s557 = scalar_lea.vmem %s9, %s556
      $region64: #{bert_classifier_forward.4} parent=23 // pred_fallthru
        _
      // Predicated region
      $region65: #{bert_classifier_forward.4} parent=23 // pred_check
        %p558 = pneg %p314
      $region66: #{bert_classifier_forward.4} parent=23 // pred_check_branch
        %560 = sbr.rel (%p558) target = $region68
      $region67: #{bert_classifier_forward.4} parent=23 // pred_region
        %p561 = scmp.lt.s32.totalorder %s30, 1
        %s562 = scalar_select %p561, %s30, 1
        %s563 = smul.addr %s562, 8
        %s564 = smul.addr %s563, 4
        %s565 = scalar_lea.vmem %s10, %s564
      $region68: #{bert_classifier_forward.4} parent=23 // pred_fallthru
        _
      // Predicated region
      $region69: #{bert_classifier_forward.4} parent=23 // pred_check
        %p566 = pneg %p340
      $region70: #{bert_classifier_forward.4} parent=23 // pred_check_branch
        %568 = sbr.rel (%p566) target = $region72
      $region71: #{bert_classifier_forward.4} parent=23 // pred_region
        %p569 = scmp.lt.s32.totalorder %s30, 1
        %s570 = scalar_select %p569, %s30, 1
        %s571 = scalar_lea.vmem %s11, %s570
      $region72: #{bert_classifier_forward.4} parent=23 // pred_fallthru
        _
      // Predicated region
      $region73: #{bert_classifier_forward.4} parent=23 // pred_check
        %p572 = pneg %p366
      $region74: #{bert_classifier_forward.4} parent=23 // pred_check_branch
        %574 = sbr.rel (%p572) target = $region76
      $region75: #{bert_classifier_forward.4} parent=23 // pred_region
        %p575 = scmp.lt.s32.totalorder %s30, 1
        %s576 = scalar_select %p575, %s30, 1
        %s577 = scalar_lea.vmem %s12, %s576
      $region76: #{bert_classifier_forward.4} parent=23 // pred_fallthru
        _
      // Predicated region
      $region77: #{bert_classifier_forward.4} parent=23 // pred_check
        %p578 = pneg %p392
      $region78: #{bert_classifier_forward.4} parent=23 // pred_check_branch
        %580 = sbr.rel (%p578) target = $region80
      $region79: #{bert_classifier_forward.4} parent=23 // pred_region
        %p581 = scmp.lt.s32.totalorder %s30, 1
        %s582 = scalar_select %p581, %s30, 1
        %s583 = scalar_lea.vmem %s13, %s582
      $region80: #{bert_classifier_forward.4} parent=23 // pred_fallthru
        _
    $region24: #{bert_classifier_forward.4} parent=5 // pred_fallthru
      _
    %p584 = scmp.le.s32.totalorder 1, %s22
    %p585 = scmp.lt.s32.totalorder %s22, 5
    %p586 = pnand %p584, %p585
    %p587 = pneg %p586
    // Predicated region
    $region81: #{bert_classifier_forward.4} parent=5 // pred_check
      _
    $region82: #{bert_classifier_forward.4} parent=5 // pred_check_branch
      %589 = sbr.rel (%p586) target = $region84
    $region83: #{bert_classifier_forward.4} parent=5 // pred_region
      %s590 = ssub.s32 %s22, 1
      %p591 = scmp.lt.s32.totalorder %s31, 1
      %s592 = scalar_select %p591, %s31, 1
      %s593 = smul.addr %s592, 8
      %s594 = scalar_lea.vmem %s0, %s593
      %p595 = pneg %p60
      %p596 = pneg %p57
      %p597 = scmp.lt.s32.totalorder %s31, 1
      %s598 = scalar_select %p597, %s31, 1
      %s599 = scalar_lea.vmem %s1, %s598
      %p600 = pneg %p86
      %p601 = pneg %p83
      %p602 = scmp.lt.s32.totalorder %s32, 1
      %s603 = scalar_select %p602, %s32, 1
      %s604 = smul.addr %s603, 4
      %s605 = smul.addr %s604, 4
      %s606 = scalar_lea.vmem %s2, %s605
      %p607 = pneg %p112
      %p608 = pneg %p109
      %p609 = scmp.lt.s32.totalorder %s32, 1
      %s610 = scalar_select %p609, %s32, 1
      %s611 = scalar_lea.vmem %s3, %s610
      %p612 = pneg %p138
      %p613 = pneg %p135
      %p614 = scmp.lt.s32.totalorder %s32, 1
      %s615 = scalar_select %p614, %s32, 1
      %s616 = smul.addr %s615, 4
      %s617 = smul.addr %s616, 4
      %s618 = scalar_lea.vmem %s4, %s617
      %p619 = pneg %p164
      %p620 = pneg %p161
      %p621 = scmp.lt.s32.totalorder %s32, 1
      %s622 = scalar_select %p621, %s32, 1
      %s623 = scalar_lea.vmem %s5, %s622
      %p624 = pneg %p190
      %p625 = pneg %p187
      %p626 = scmp.lt.s32.totalorder %s32, 1
      %s627 = scalar_select %p626, %s32, 1
      %s628 = scalar_lea.vmem %s6, %s627
      %p629 = pneg %p216
      %p630 = pneg %p213
      %p631 = scmp.lt.s32.totalorder %s32, 1
      %s632 = scalar_select %p631, %s32, 1
      %s633 = scalar_lea.vmem %s7, %s632
      %p634 = pneg %p242
      %p635 = pneg %p239
      %p636 = scmp.lt.s32.totalorder %s32, 1
      %s637 = scalar_select %p636, %s32, 1
      %s638 = smul.addr %s637, 4
      %s639 = smul.addr %s638, 4
      %s640 = scalar_lea.vmem %s8, %s639
      %p641 = pneg %p268
      %p642 = pneg %p265
      %p643 = scmp.lt.s32.totalorder %s32, 1
      %s644 = scalar_select %p643, %s32, 1
      %s645 = scalar_lea.vmem %s9, %s644
      %p646 = pneg %p294
      %p647 = pneg %p291
      %p648 = scmp.lt.s32.totalorder %s32, 1
      %s649 = scalar_select %p648, %s32, 1
      %s650 = smul.addr %s649, 8
      %s651 = smul.addr %s650, 4
      %s652 = scalar_lea.vmem %s10, %s651
      %p653 = pneg %p320
      %p654 = pneg %p317
      %p655 = scmp.lt.s32.totalorder %s32, 1
      %s656 = scalar_select %p655, %s32, 1
      %s657 = scalar_lea.vmem %s11, %s656
      %p658 = pneg %p346
      %p659 = pneg %p343
      %p660 = scmp.lt.s32.totalorder %s32, 1
      %s661 = scalar_select %p660, %s32, 1
      %s662 = scalar_lea.vmem %s12, %s661
      %p663 = pneg %p372
      %p664 = pneg %p369
      %p665 = scmp.lt.s32.totalorder %s32, 1
      %s666 = scalar_select %p665, %s32, 1
      %s667 = scalar_lea.vmem %s13, %s666
      %p668 = pneg %p398
      %p669 = pneg %p395
      %p670 = pneg %p419
      %p671 = pneg %p416
      %p672 = pneg %p440
      %p673 = pneg %p437
      %p674 = pneg %p466
      %p675 = pneg %p463
      %p676 = scmp.lt.s32.totalorder %s31, 1
      %s677 = scalar_select %p676, %s31, 1
      %s678 = smul.addr %s677, 8
      %s679 = scalar_lea.vmem %s16, %s678
      %p680 = scmp.lt.s32.totalorder %s31, 1
      %s681 = scalar_select %p680, %s31, 1
      %s682 = smul.addr %s681, 8
      %s683 = scalar_lea.vmem %s0, %s682
      %p684 = scmp.lt.s32.totalorder %s31, 1
      %s685 = scalar_select %p684, %s31, 1
      %s686 = scalar_lea.vmem %s1, %s685
      %p687 = scmp.lt.s32.totalorder %s32, 1
      %s688 = scalar_select %p687, %s32, 1
      %s689 = smul.addr %s688, 4
      %s690 = smul.addr %s689, 4
      %s691 = scalar_lea.vmem %s2, %s690
      %p692 = scmp.lt.s32.totalorder %s32, 1
      %s693 = scalar_select %p692, %s32, 1
      %s694 = scalar_lea.vmem %s3, %s693
      %p695 = scmp.lt.s32.totalorder %s32, 1
      %s696 = scalar_select %p695, %s32, 1
      %s697 = smul.addr %s696, 4
      %s698 = smul.addr %s697, 4
      %s699 = scalar_lea.vmem %s4, %s698
      %p700 = scmp.lt.s32.totalorder %s32, 1
      %s701 = scalar_select %p700, %s32, 1
      %s702 = scalar_lea.vmem %s5, %s701
      %p703 = scmp.lt.s32.totalorder %s32, 1
      %s704 = scalar_select %p703, %s32, 1
      %s705 = scalar_lea.vmem %s6, %s704
      %p706 = scmp.lt.s32.totalorder %s32, 1
      %s707 = scalar_select %p706, %s32, 1
      %s708 = scalar_lea.vmem %s7, %s707
      %p709 = scmp.lt.s32.totalorder %s32, 1
      %s710 = scalar_select %p709, %s32, 1
      %s711 = smul.addr %s710, 4
      %s712 = smul.addr %s711, 4
      %s713 = scalar_lea.vmem %s8, %s712
      %p714 = scmp.lt.s32.totalorder %s32, 1
      %s715 = scalar_select %p714, %s32, 1
      %s716 = scalar_lea.vmem %s9, %s715
      %p717 = scmp.lt.s32.totalorder %s32, 1
      %s718 = scalar_select %p717, %s32, 1
      %s719 = smul.addr %s718, 8
      %s720 = smul.addr %s719, 4
      %s721 = scalar_lea.vmem %s10, %s720
      %p722 = scmp.lt.s32.totalorder %s32, 1
      %s723 = scalar_select %p722, %s32, 1
      %s724 = scalar_lea.vmem %s11, %s723
      %p725 = scmp.lt.s32.totalorder %s32, 1
      %s726 = scalar_select %p725, %s32, 1
      %s727 = scalar_lea.vmem %s12, %s726
      %p728 = scmp.lt.s32.totalorder %s32, 1
      %s729 = scalar_select %p728, %s32, 1
      %s730 = scalar_lea.vmem %s13, %s729
      %p731 = scmp.lt.s32.totalorder %s31, 1
      %s732 = scalar_select %p731, %s31, 1
      %s733 = smul.addr %s732, 8
      %s734 = scalar_lea.vmem %s16, %s733
      %p736 = scmp.eq.s32.totalorder %s32, 0
      // Predicated region
      $region85: #{bert_classifier_forward.4} parent=83 // pred_check
        %p737 = pneg %p736
      $region86: #{bert_classifier_forward.4} parent=83 // pred_check_branch
        %739 = sbr.rel (%p737) target = $region88
      $region87: #{bert_classifier_forward.4} parent=83 // pred_region
        %v740 = vld [vmem:[%s14] sm:$0x1]
        %v741 = vld [vmem:[%s15] sm:$0x1]
        %v742 = vld [vmem:[%s683] sm:$0xff]
        %vm743 = vcmask 261120
        %v744 = vsel %vm743, %v742, 0.0
        %745 = vadd.xlane.f32.xlu0 %v744
        %v746 = vpop.xlane.xlu0 %745
        %v747 = vrcp.pop 32.0
        %v748 = vmul.f32 %v746, %v747
        %v749 = vsub.f32 %v742, %v748
        %v750 = vmul.f32 %v749, %v749
        %v751 = vsel %vm743, %v750, 0.0
        %752 = vadd.xlane.f32.xlu0 %v751
        %v753 = vpop.xlane.xlu0 %752
        %v754 = vmul.f32 %v753, %v747
        %v755 = vadd.f32 %v754, 1e-12
        %v756 = vrsqrt.pop %v755
        %v757 = vmul.f32 %v749, %v756
        %v759 = vlaneseq
        %v760 = vshrl.u32 %v759, 7
        %v761 = vsub.s32 0, %v760
        %v762 = vrot.slane %v740, %v761
        %v764 = vmul.f32 %v757, %v762
        %v766 = vlaneseq
        %v767 = vshrl.u32 %v766, 7
        %v768 = vsub.s32 0, %v767
        %v769 = vrot.slane %v741, %v768
        %v771 = vadd.f32 %v764, %v769
        %772 = vst.msk [vmem:[#allocation2] sm:$0xff] %vm743, %v771
      $region88: #{bert_classifier_forward.4} parent=83 // pred_fallthru
        _
      %v773 = vld [vmem:[%s691] sm:$0xf]
      %v774 = vld [vmem:[%s691 + $0x4] sm:$0xf]
      %v775 = vld [vmem:[%s691 + $0x8] sm:$0xf]
      %v776 = vld [vmem:[%s691 + $0xc] sm:$0xf]
      %v777 = vld [vmem:[%s694] sm:$0x1]
      %v778 = vld [vmem:[%s699] sm:$0xf]
      %v779 = vld [vmem:[%s699 + $0x4] sm:$0xf]
      %v780 = vld [vmem:[%s699 + $0x8] sm:$0xf]
      %v781 = vld [vmem:[%s699 + $0xc] sm:$0xf]
      %v782 = vld [vmem:[%s702] sm:$0x1]
      %v783 = vld [vmem:[%s713] sm:$0xf]
      %v784 = vld [vmem:[%s713 + $0x4] sm:$0xf]
      %v785 = vld [vmem:[%s713 + $0x8] sm:$0xf]
      %v786 = vld [vmem:[%s713 + $0xc] sm:$0xf]
      %v787 = vld [vmem:[%s716] sm:$0x1]
      %v788 = vld [vmem:[%s721] sm:$0xf]
      %v789 = vld [vmem:[%s721 + $0x4] sm:$0xf]
      %v790 = vld [vmem:[%s721 + $0x8] sm:$0xf]
      %v791 = vld [vmem:[%s721 + $0xc] sm:$0xf]
      %v792 = vld [vmem:[%s721 + $0x10] sm:$0xf]
      %v793 = vld [vmem:[%s721 + $0x14] sm:$0xf]
      %v794 = vld [vmem:[%s721 + $0x18] sm:$0xf]
      %v795 = vld [vmem:[%s721 + $0x1c] sm:$0xf]
      %v796 = vld [vmem:[%s724] sm:$0x1]
      %v797 = vld [vmem:[%s705] sm:$0x1]
      %v798 = vld [vmem:[%s708] sm:$0x1]
      %v799 = vld [vmem:[%s727] sm:$0x1]
      %v800 = vld [vmem:[%s730] sm:$0x1]
      %v801 = vld [vmem:[#allocation2] sm:$0xff]
      %v802 = vld [vmem:[%s686] sm:$0x1]
      %v803 = vpack.c.bf16 %v801, %v801
      %v805 = vlaneseq
      %v806 = vshrl.u32 %v805, 7
      %v807 = vsub.s32 0, %v806
      %v808 = vrot.slane %v777, %v807
      %v814 = vunpack.c.l.b16 %v773
      %v815 = vunpack.c.l.b16 %v774
      %v816 = vunpack.c.l.b16 %v775
      %v817 = vunpack.c.l.b16 %v776
      %v818 = vpack.c.b16 %v815, %v814
      %v819 = vpack.c.b16 %v817, %v816
      %vm822 = vcmask 261120
      %v824 = vsel %vm822, %v803, 0
      %826 = vmatprep.subr.bf16.mxu0 0
      %827 = vmatpush1.bf16.msra.mxu0 %v818
      %828 = vmatprep.subr.bf16.mxu0 0
      %829 = vmatpush1.bf16.msra.mxu0 %v819
      %830 = vmatprep.subr.bf16.mxu0 0
      %831 = vmatpush1.bf16.msra.mxu0 0
      %832 = vmatprep.subr.bf16.mxu0 0
      %833 = vmatpush1.bf16.msra.mxu0 0
      %834 = vmatprep.subr.bf16.mxu0 0
      %835 = vmatpush1.bf16.msra.mxu0 0
      %836 = vmatprep.subr.bf16.mxu0 0
      %837 = vmatpush1.bf16.msra.mxu0 0
      %838 = vmatprep.subr.bf16.mxu0 0
      %839 = vmatpush1.bf16.msra.mxu0 0
      %840 = vmatprep.subr.bf16.mxu0 0
      %841 = vmatpush1.bf16.msra.mxu0 0
      %842 = vmatprep.subr.bf16.mxu0 0
      %843 = vmatpush1.bf16.msra.mxu0 0
      %844 = vmatprep.subr.bf16.mxu0 0
      %845 = vmatpush1.bf16.msra.mxu0 0
      %846 = vmatprep.subr.bf16.mxu0 0
      %847 = vmatpush1.bf16.msra.mxu0 0
      %848 = vmatprep.subr.bf16.mxu0 0
      %849 = vmatpush1.bf16.msra.mxu0 0
      %850 = vmatprep.subr.bf16.mxu0 0
      %851 = vmatpush1.bf16.msra.mxu0 0
      %852 = vmatprep.subr.bf16.mxu0 0
      %853 = vmatpush1.bf16.msra.mxu0 0
      %854 = vmatprep.subr.bf16.mxu0 0
      %855 = vmatpush1.bf16.msra.mxu0 0
      %856 = vmatprep.subr.bf16.mxu0 0
      %857 = vmatpush1.bf16.msra.mxu0 0
      %858 = vmatprep.mubr.bf16.mxu0 0
      %859 = vmatmul.mubr.bf16.gmra.mrb[0].mxu0 %v824
      %v860 = vpop.f32.mrb[0].mxu0
      %v861 = vadd.f32 %v808, %v860
      %v862 = vpop.f32.mrb[0].mxu0
      %v863 = vpop.f32.mrb[0].mxu0
      %v864 = vpop.f32.mrb[0].mxu0
      %865 = vdwg.mxu0
      %v866 = vpack.c.bf16 %v861, %v861
      %868 = vrot.lane.b32.xlu0 %v866, 96
      %v869 = vpop.permute.xlu0 %868
      %vm870 = vcmask 64512
      %v872 = vsel %vm870, %v866, 0
      %v875 = vsel %vm870, %v869, 0
      %877 = vmatprep.subr.bf16.mxu0 0
      %878 = vmatpush1.bf16.xpose.msra.mxu0 %v875
      %879 = vmatprep.subr.bf16.mxu0 0
      %880 = vmatpush1.bf16.xpose.msra.mxu0 0
      %881 = vmatprep.subr.bf16.mxu0 0
      %882 = vmatpush1.bf16.xpose.msra.mxu0 0
      %883 = vmatprep.subr.bf16.mxu0 0
      %884 = vmatpush1.bf16.xpose.msra.mxu0 0
      %885 = vmatprep.subr.bf16.mxu0 0
      %886 = vmatpush1.bf16.xpose.msra.mxu0 0
      %887 = vmatprep.subr.bf16.mxu0 0
      %888 = vmatpush1.bf16.xpose.msra.mxu0 0
      %889 = vmatprep.subr.bf16.mxu0 0
      %890 = vmatpush1.bf16.xpose.msra.mxu0 0
      %891 = vmatprep.subr.bf16.mxu0 0
      %892 = vmatpush1.bf16.xpose.msra.mxu0 0
      %893 = vmatprep.subr.bf16.mxu0 0
      %894 = vmatpush1.bf16.xpose.msra.mxu0 0
      %895 = vmatprep.subr.bf16.mxu0 0
      %896 = vmatpush1.bf16.xpose.msra.mxu0 0
      %897 = vmatprep.subr.bf16.mxu0 0
      %898 = vmatpush1.bf16.xpose.msra.mxu0 0
      %899 = vmatprep.subr.bf16.mxu0 0
      %900 = vmatpush1.bf16.xpose.msra.mxu0 0
      %901 = vmatprep.subr.bf16.mxu0 0
      %902 = vmatpush1.bf16.xpose.msra.mxu0 0
      %903 = vmatprep.subr.bf16.mxu0 0
      %904 = vmatpush1.bf16.xpose.msra.mxu0 0
      %905 = vmatprep.subr.bf16.mxu0 0
      %906 = vmatpush1.bf16.xpose.msra.mxu0 0
      %907 = vmatprep.subr.bf16.mxu0 0
      %908 = vmatpush1.bf16.xpose.msra.mxu0 0
      %909 = vmatprep.mubr.bf16.mxu0 0
      %910 = vmatmul.mubr.bf16.gmra.mrb[0].mxu0 %v872
      %v911 = vpop.f32.mrb[0].mxu0
      %v912 = vadd.f32 0.0, %v911
      %v913 = vpop.f32.mrb[0].mxu0
      %v914 = vpop.f32.mrb[0].mxu0
      %v915 = vpop.f32.mrb[0].mxu0
      %916 = vdwg.mxu0
      %v917 = vmul.f32 %v912, 0.35355338
      %v919 = vlaneseq
      %v920 = vshrl.u32 %v919, 7
      %v921 = vsub.s32 0, %v920
      %v922 = vrot.slane %v802, %v921
      %v924 = vadd.f32 %v917, %v922
      %v925 = vsel %vm870, %v924, -inf
      %926 = vmax.xlane.f32.xlu0 %v925
      %v927 = vpop.xlane.xlu0 %926
      %v928 = vsub.f32 %v924, %v927
      %v929 = vmul.f32 %v928, 1.442695
      %v930 = vpow.pop %v929
      %v931 = vsel %vm870, %v930, 0.0
      %932 = vadd.xlane.f32.xlu0 %v931
      %v933 = vpop.xlane.xlu0 %932
      %v934 = vrcp.pop %v933
      %v935 = vmul.f32 %v930, %v934
      %v936 = vpack.c.bf16 %v935, %v935
      %937 = vrot.lane.b32.xlu0 %v866, 64
      %v938 = vpop.permute.xlu0 %937
      %v940 = vsel %vm870, %v936, 0
      %vm942 = vcmask 1043456
      %v944 = vsel %vm942, %v938, 0
      %946 = vmatprep.subr.bf16.mxu0 0
      %947 = vmatpush1.bf16.msra.mxu0 %v944
      %948 = vmatprep.subr.bf16.mxu0 0
      %949 = vmatpush1.bf16.msra.mxu0 0
      %950 = vmatprep.subr.bf16.mxu0 0
      %951 = vmatpush1.bf16.msra.mxu0 0
      %952 = vmatprep.subr.bf16.mxu0 0
      %953 = vmatpush1.bf16.msra.mxu0 0
      %954 = vmatprep.subr.bf16.mxu0 0
      %955 = vmatpush1.bf16.msra.mxu0 0
      %956 = vmatprep.subr.bf16.mxu0 0
      %957 = vmatpush1.bf16.msra.mxu0 0
      %958 = vmatprep.subr.bf16.mxu0 0
      %959 = vmatpush1.bf16.msra.mxu0 0
      %960 = vmatprep.subr.bf16.mxu0 0
      %961 = vmatpush1.bf16.msra.mxu0 0
      %962 = vmatprep.subr.bf16.mxu0 0
      %963 = vmatpush1.bf16.msra.mxu0 0
      %964 = vmatprep.subr.bf16.mxu0 0
      %965 = vmatpush1.bf16.msra.mxu0 0
      %966 = vmatprep.subr.bf16.mxu0 0
      %967 = vmatpush1.bf16.msra.mxu0 0
      %968 = vmatprep.subr.bf16.mxu0 0
      %969 = vmatpush1.bf16.msra.mxu0 0
      %970 = vmatprep.subr.bf16.mxu0 0
      %971 = vmatpush1.bf16.msra.mxu0 0
      %972 = vmatprep.subr.bf16.mxu0 0
      %973 = vmatpush1.bf16.msra.mxu0 0
      %974 = vmatprep.subr.bf16.mxu0 0
      %975 = vmatpush1.bf16.msra.mxu0 0
      %976 = vmatprep.subr.bf16.mxu0 0
      %977 = vmatpush1.bf16.msra.mxu0 0
      %978 = vmatprep.mubr.bf16.mxu0 0
      %979 = vmatmul.mubr.bf16.gmra.mrb[0].mxu0 %v940
      %v980 = vpop.f32.mrb[0].mxu0
      %v981 = vadd.f32 0.0, %v980
      %v982 = vpop.f32.mrb[0].mxu0
      %v983 = vpop.f32.mrb[0].mxu0
      %v984 = vpop.f32.mrb[0].mxu0
      %985 = vdwg.mxu0
      %v986 = vpack.c.bf16 %v981, %v981
      %987 = vrot.lane.b32.xlu0 %v866, 120
      %v988 = vpop.permute.xlu0 %987
      %989 = vrot.lane.b32.xlu0 %v866, 88
      %v990 = vpop.permute.xlu0 %989
      %v992 = vsel %vm870, %v988, 0
      %v995 = vsel %vm870, %v990, 0
      %997 = vmatprep.subr.bf16.mxu0 0
      %998 = vmatpush1.bf16.xpose.msra.mxu0 %v995
      %999 = vmatprep.subr.bf16.mxu0 0
      %1000 = vmatpush1.bf16.xpose.msra.mxu0 0
      %1001 = vmatprep.subr.bf16.mxu0 0
      %1002 = vmatpush1.bf16.xpose.msra.mxu0 0
      %1003 = vmatprep.subr.bf16.mxu0 0
      %1004 = vmatpush1.bf16.xpose.msra.mxu0 0
      %1005 = vmatprep.subr.bf16.mxu0 0
      %1006 = vmatpush1.bf16.xpose.msra.mxu0 0
      %1007 = vmatprep.subr.bf16.mxu0 0
      %1008 = vmatpush1.bf16.xpose.msra.mxu0 0
      %1009 = vmatprep.subr.bf16.mxu0 0
      %1010 = vmatpush1.bf16.xpose.msra.mxu0 0
      %1011 = vmatprep.subr.bf16.mxu0 0
      %1012 = vmatpush1.bf16.xpose.msra.mxu0 0
      %1013 = vmatprep.subr.bf16.mxu0 0
      %1014 = vmatpush1.bf16.xpose.msra.mxu0 0
      %1015 = vmatprep.subr.bf16.mxu0 0
      %1016 = vmatpush1.bf16.xpose.msra.mxu0 0
      %1017 = vmatprep.subr.bf16.mxu0 0
      %1018 = vmatpush1.bf16.xpose.msra.mxu0 0
      %1019 = vmatprep.subr.bf16.mxu0 0
      %1020 = vmatpush1.bf16.xpose.msra.mxu0 0
      %1021 = vmatprep.subr.bf16.mxu0 0
      %1022 = vmatpush1.bf16.xpose.msra.mxu0 0
      %1023 = vmatprep.subr.bf16.mxu0 0
      %1024 = vmatpush1.bf16.xpose.msra.mxu0 0
      %1025 = vmatprep.subr.bf16.mxu0 0
      %1026 = vmatpush1.bf16.xpose.msra.mxu0 0
      %1027 = vmatprep.subr.bf16.mxu0 0
      %1028 = vmatpush1.bf16.xpose.msra.mxu0 0
      %1029 = vmatprep.mubr.bf16.mxu0 0
      %1030 = vmatmul.mubr.bf16.gmra.mrb[0].mxu0 %v992
      %v1031 = vpop.f32.mrb[0].mxu0
      %v1032 = vadd.f32 0.0, %v1031
      %v1033 = vpop.f32.mrb[0].mxu0
      %v1034 = vpop.f32.mrb[0].mxu0
      %v1035 = vpop.f32.mrb[0].mxu0
      %1036 = vdwg.mxu0
      %v1037 = vmul.f32 %v1032, 0.35355338
      %v1038 = vadd.f32 %v1037, %v922
      %v1039 = vsel %vm870, %v1038, -inf
      %1040 = vmax.xlane.f32.xlu0 %v1039
      %v1041 = vpop.xlane.xlu0 %1040
      %v1042 = vsub.f32 %v1038, %v1041
      %v1043 = vmul.f32 %v1042, 1.442695
      %v1044 = vpow.pop %v1043
      %v1045 = vsel %vm870, %v1044, 0.0
      %1046 = vadd.xlane.f32.xlu0 %v1045
      %v1047 = vpop.xlane.xlu0 %1046
      %v1048 = vrcp.pop %v1047
      %v1049 = vmul.f32 %v1044, %v1048
      %v1050 = vpack.c.bf16 %v1049, %v1049
      %1051 = vrot.lane.b32.xlu0 %v866, 56
      %v1052 = vpop.permute.xlu0 %1051
      %v1054 = vsel %vm870, %v1050, 0
      %v1057 = vsel %vm942, %v1052, 0
      %1059 = vmatprep.subr.bf16.mxu0 0
      %1060 = vmatpush1.bf16.msra.mxu0 %v1057
      %1061 = vmatprep.subr.bf16.mxu0 0
      %1062 = vmatpush1.bf16.msra.mxu0 0
      %1063 = vmatprep.subr.bf16.mxu0 0
      %1064 = vmatpush1.bf16.msra.mxu0 0
      %1065 = vmatprep.subr.bf16.mxu0 0
      %1066 = vmatpush1.bf16.msra.mxu0 0
      %1067 = vmatprep.subr.bf16.mxu0 0
      %1068 = vmatpush1.bf16.msra.mxu0 0
      %1069 = vmatprep.subr.bf16.mxu0 0
      %1070 = vmatpush1.bf16.msra.mxu0 0
      %1071 = vmatprep.subr.bf16.mxu0 0
      %1072 = vmatpush1.bf16.msra.mxu0 0
      %1073 = vmatprep.subr.bf16.mxu0 0
      %1074 = vmatpush1.bf16.msra.mxu0 0
      %1075 = vmatprep.subr.bf16.mxu0 0
      %1076 = vmatpush1.bf16.msra.mxu0 0
      %1077 = vmatprep.subr.bf16.mxu0 0
      %1078 = vmatpush1.bf16.msra.mxu0 0
      %1079 = vmatprep.subr.bf16.mxu0 0
      %1080 = vmatpush1.bf16.msra.mxu0 0
      %1081 = vmatprep.subr.bf16.mxu0 0
      %1082 = vmatpush1.bf16.msra.mxu0 0
      %1083 = vmatprep.subr.bf16.mxu0 0
      %1084 = vmatpush1.bf16.msra.mxu0 0
      %1085 = vmatprep.subr.bf16.mxu0 0
      %1086 = vmatpush1.bf16.msra.mxu0 0
      %1087 = vmatprep.subr.bf16.mxu0 0
      %1088 = vmatpush1.bf16.msra.mxu0 0
      %1089 = vmatprep.subr.bf16.mxu0 0
      %1090 = vmatpush1.bf16.msra.mxu0 0
      %1091 = vmatprep.mubr.bf16.mxu0 0
      %1092 = vmatmul.mubr.bf16.gmra.mrb[0].mxu0 %v1054
      %v1093 = vpop.f32.mrb[0].mxu0
      %v1094 = vadd.f32 0.0, %v1093
      %v1095 = vpop.f32.mrb[0].mxu0
      %v1096 = vpop.f32.mrb[0].mxu0
      %v1097 = vpop.f32.mrb[0].mxu0
      %1098 = vdwg.mxu0
      %v1099 = vpack.c.bf16 %v1094, %v1094
      %v1101 = vsel %vm870, %v1099, 0
      %v1104 = vsel %vm942, %v779, 0
      %1106 = vmatprep.subr.bf16.mxu0 0
      %1107 = vmatpush1.bf16.msra.mxu0 %v1104
      %1108 = vmatprep.subr.bf16.mxu0 0
      %1109 = vmatpush1.bf16.msra.mxu0 0
      %1110 = vmatprep.subr.bf16.mxu0 0
      %1111 = vmatpush1.bf16.msra.mxu0 0
      %1112 = vmatprep.subr.bf16.mxu0 0
      %1113 = vmatpush1.bf16.msra.mxu0 0
      %1114 = vmatprep.subr.bf16.mxu0 0
      %1115 = vmatpush1.bf16.msra.mxu0 0
      %1116 = vmatprep.subr.bf16.mxu0 0
      %1117 = vmatpush1.bf16.msra.mxu0 0
      %1118 = vmatprep.subr.bf16.mxu0 0
      %1119 = vmatpush1.bf16.msra.mxu0 0
      %1120 = vmatprep.subr.bf16.mxu0 0
      %1121 = vmatpush1.bf16.msra.mxu0 0
      %1122 = vmatprep.subr.bf16.mxu0 0
      %1123 = vmatpush1.bf16.msra.mxu0 0
      %1124 = vmatprep.subr.bf16.mxu0 0
      %1125 = vmatpush1.bf16.msra.mxu0 0
      %1126 = vmatprep.subr.bf16.mxu0 0
      %1127 = vmatpush1.bf16.msra.mxu0 0
      %1128 = vmatprep.subr.bf16.mxu0 0
      %1129 = vmatpush1.bf16.msra.mxu0 0
      %1130 = vmatprep.subr.bf16.mxu0 0
      %1131 = vmatpush1.bf16.msra.mxu0 0
      %1132 = vmatprep.subr.bf16.mxu0 0
      %1133 = vmatpush1.bf16.msra.mxu0 0
      %1134 = vmatprep.subr.bf16.mxu0 0
      %1135 = vmatpush1.bf16.msra.mxu0 0
      %1136 = vmatprep.subr.bf16.mxu0 0
      %1137 = vmatpush1.bf16.msra.mxu0 0
      %1138 = vmatprep.mubr.bf16.mxu0 0
      %1139 = vmatmul.mubr.bf16.gmra.mrb[0].mxu0 %v1101
      %v1140 = vpop.f32.mrb[0].mxu0
      %v1141 = vadd.f32 0.0, %v1140
      %v1142 = vpop.f32.mrb[0].mxu0
      %v1143 = vpop.f32.mrb[0].mxu0
      %v1144 = vpop.f32.mrb[0].mxu0
      %1145 = vdwg.mxu0
      %v1147 = vsel %vm870, %v986, 0
      %v1150 = vsel %vm942, %v778, 0
      %1152 = vmatprep.subr.bf16.mxu0 0
      %1153 = vmatpush1.bf16.msra.mxu0 %v1150
      %1154 = vmatprep.subr.bf16.mxu0 0
      %1155 = vmatpush1.bf16.msra.mxu0 0
      %1156 = vmatprep.subr.bf16.mxu0 0
      %1157 = vmatpush1.bf16.msra.mxu0 0
      %1158 = vmatprep.subr.bf16.mxu0 0
      %1159 = vmatpush1.bf16.msra.mxu0 0
      %1160 = vmatprep.subr.bf16.mxu0 0
      %1161 = vmatpush1.bf16.msra.mxu0 0
      %1162 = vmatprep.subr.bf16.mxu0 0
      %1163 = vmatpush1.bf16.msra.mxu0 0
      %1164 = vmatprep.subr.bf16.mxu0 0
      %1165 = vmatpush1.bf16.msra.mxu0 0
      %1166 = vmatprep.subr.bf16.mxu0 0
      %1167 = vmatpush1.bf16.msra.mxu0 0
      %1168 = vmatprep.subr.bf16.mxu0 0
      %1169 = vmatpush1.bf16.msra.mxu0 0
      %1170 = vmatprep.subr.bf16.mxu0 0
      %1171 = vmatpush1.bf16.msra.mxu0 0
      %1172 = vmatprep.subr.bf16.mxu0 0
      %1173 = vmatpush1.bf16.msra.mxu0 0
      %1174 = vmatprep.subr.bf16.mxu0 0
      %1175 = vmatpush1.bf16.msra.mxu0 0
      %1176 = vmatprep.subr.bf16.mxu0 0
      %1177 = vmatpush1.bf16.msra.mxu0 0
      %1178 = vmatprep.subr.bf16.mxu0 0
      %1179 = vmatpush1.bf16.msra.mxu0 0
      %1180 = vmatprep.subr.bf16.mxu0 0
      %1181 = vmatpush1.bf16.msra.mxu0 0
      %1182 = vmatprep.subr.bf16.mxu0 0
      %1183 = vmatpush1.bf16.msra.mxu0 0
      %1184 = vmatprep.mubr.bf16.mxu0 0
      %1185 = vmatmul.mubr.bf16.gmra.mrb[0].mxu0 %v1147
      %v1186 = vpop.f32.mrb[0].mxu0
      %v1187 = vadd.f32 %v1141, %v1186
      %v1188 = vpop.f32.mrb[0].mxu0
      %v1189 = vpop.f32.mrb[0].mxu0
      %v1190 = vpop.f32.mrb[0].mxu0
      %1191 = vdwg.mxu0
      %1192 = vrot.lane.b32.xlu0 %v866, 112
      %v1193 = vpop.permute.xlu0 %1192
      %1194 = vrot.lane.b32.xlu0 %v866, 80
      %v1195 = vpop.permute.xlu0 %1194
      %v1197 = vsel %vm870, %v1193, 0
      %v1200 = vsel %vm870, %v1195, 0
      %1202 = vmatprep.subr.bf16.mxu0 0
      %1203 = vmatpush1.bf16.xpose.msra.mxu0 %v1200
      %1204 = vmatprep.subr.bf16.mxu0 0
      %1205 = vmatpush1.bf16.xpose.msra.mxu0 0
      %1206 = vmatprep.subr.bf16.mxu0 0
      %1207 = vmatpush1.bf16.xpose.msra.mxu0 0
      %1208 = vmatprep.subr.bf16.mxu0 0
      %1209 = vmatpush1.bf16.xpose.msra.mxu0 0
      %1210 = vmatprep.subr.bf16.mxu0 0
      %1211 = vmatpush1.bf16.xpose.msra.mxu0 0
      %1212 = vmatprep.subr.bf16.mxu0 0
      %1213 = vmatpush1.bf16.xpose.msra.mxu0 0
      %1214 = vmatprep.subr.bf16.mxu0 0
      %1215 = vmatpush1.bf16.xpose.msra.mxu0 0
      %1216 = vmatprep.subr.bf16.mxu0 0
      %1217 = vmatpush1.bf16.xpose.msra.mxu0 0
      %1218 = vmatprep.subr.bf16.mxu0 0
      %1219 = vmatpush1.bf16.xpose.msra.mxu0 0
      %1220 = vmatprep.subr.bf16.mxu0 0
      %1221 = vmatpush1.bf16.xpose.msra.mxu0 0
      %1222 = vmatprep.subr.bf16.mxu0 0
      %1223 = vmatpush1.bf16.xpose.msra.mxu0 0
      %1224 = vmatprep.subr.bf16.mxu0 0
      %1225 = vmatpush1.bf16.xpose.msra.mxu0 0
      %1226 = vmatprep.subr.bf16.mxu0 0
      %1227 = vmatpush1.bf16.xpose.msra.mxu0 0
      %1228 = vmatprep.subr.bf16.mxu0 0
      %1229 = vmatpush1.bf16.xpose.msra.mxu0 0
      %1230 = vmatprep.subr.bf16.mxu0 0
      %1231 = vmatpush1.bf16.xpose.msra.mxu0 0
      %1232 = vmatprep.subr.bf16.mxu0 0
      %1233 = vmatpush1.bf16.xpose.msra.mxu0 0
      %1234 = vmatprep.mubr.bf16.mxu0 0
      %1235 = vmatmul.mubr.bf16.gmra.mrb[0].mxu0 %v1197
      %v1236 = vpop.f32.mrb[0].mxu0
      %v1237 = vadd.f32 0.0, %v1236
      %v1238 = vpop.f32.mrb[0].mxu0
      %v1239 = vpop.f32.mrb[0].mxu0
      %v1240 = vpop.f32.mrb[0].mxu0
      %1241 = vdwg.mxu0
      %v1242 = vmul.f32 %v1237, 0.35355338
      %v1243 = vadd.f32 %v1242, %v922
      %v1244 = vsel %vm870, %v1243, -inf
      %1245 = vmax.xlane.f32.xlu0 %v1244
      %v1246 = vpop.xlane.xlu0 %1245
      %v1247 = vsub.f32 %v1243, %v1246
      %v1248 = vmul.f32 %v1247, 1.442695
      %v1249 = vpow.pop %v1248
      %v1250 = vsel %vm870, %v1249, 0.0
      %1251 = vadd.xlane.f32.xlu0 %v1250
      %v1252 = vpop.xlane.xlu0 %1251
      %v1253 = vrcp.pop %v1252
      %v1254 = vmul.f32 %v1249, %v1253
      %v1255 = vpack.c.bf16 %v1254, %v1254
      %1256 = vrot.lane.b32.xlu0 %v866, 48
      %v1257 = vpop.permute.xlu0 %1256
      %v1259 = vsel %vm870, %v1255, 0
      %v1262 = vsel %vm942, %v1257, 0
      %1264 = vmatprep.subr.bf16.mxu0 0
      %1265 = vmatpush1.bf16.msra.mxu0 %v1262
      %1266 = vmatprep.subr.bf16.mxu0 0
      %1267 = vmatpush1.bf16.msra.mxu0 0
      %1268 = vmatprep.subr.bf16.mxu0 0
      %1269 = vmatpush1.bf16.msra.mxu0 0
      %1270 = vmatprep.subr.bf16.mxu0 0
      %1271 = vmatpush1.bf16.msra.mxu0 0
      %1272 = vmatprep.subr.bf16.mxu0 0
      %1273 = vmatpush1.bf16.msra.mxu0 0
      %1274 = vmatprep.subr.bf16.mxu0 0
      %1275 = vmatpush1.bf16.msra.mxu0 0
      %1276 = vmatprep.subr.bf16.mxu0 0
      %1277 = vmatpush1.bf16.msra.mxu0 0
      %1278 = vmatprep.subr.bf16.mxu0 0
      %1279 = vmatpush1.bf16.msra.mxu0 0
      %1280 = vmatprep.subr.bf16.mxu0 0
      %1281 = vmatpush1.bf16.msra.mxu0 0
      %1282 = vmatprep.subr.bf16.mxu0 0
      %1283 = vmatpush1.bf16.msra.mxu0 0
      %1284 = vmatprep.subr.bf16.mxu0 0
      %1285 = vmatpush1.bf16.msra.mxu0 0
      %1286 = vmatprep.subr.bf16.mxu0 0
      %1287 = vmatpush1.bf16.msra.mxu0 0
      %1288 = vmatprep.subr.bf16.mxu0 0
      %1289 = vmatpush1.bf16.msra.mxu0 0
      %1290 = vmatprep.subr.bf16.mxu0 0
      %1291 = vmatpush1.bf16.msra.mxu0 0
      %1292 = vmatprep.subr.bf16.mxu0 0
      %1293 = vmatpush1.bf16.msra.mxu0 0
      %1294 = vmatprep.subr.bf16.mxu0 0
      %1295 = vmatpush1.bf16.msra.mxu0 0
      %1296 = vmatprep.mubr.bf16.mxu0 0
      %1297 = vmatmul.mubr.bf16.gmra.mrb[0].mxu0 %v1259
      %v1298 = vpop.f32.mrb[0].mxu0
      %v1299 = vadd.f32 0.0, %v1298
      %v1300 = vpop.f32.mrb[0].mxu0
      %v1301 = vpop.f32.mrb[0].mxu0
      %v1302 = vpop.f32.mrb[0].mxu0
      %1303 = vdwg.mxu0
      %v1304 = vpack.c.bf16 %v1299, %v1299
      %v1306 = vsel %vm870, %v1304, 0
      %v1309 = vsel %vm942, %v780, 0
      %1311 = vmatprep.subr.bf16.mxu0 0
      %1312 = vmatpush1.bf16.msra.mxu0 %v1309
      %1313 = vmatprep.subr.bf16.mxu0 0
      %1314 = vmatpush1.bf16.msra.mxu0 0
      %1315 = vmatprep.subr.bf16.mxu0 0
      %1316 = vmatpush1.bf16.msra.mxu0 0
      %1317 = vmatprep.subr.bf16.mxu0 0
      %1318 = vmatpush1.bf16.msra.mxu0 0
      %1319 = vmatprep.subr.bf16.mxu0 0
      %1320 = vmatpush1.bf16.msra.mxu0 0
      %1321 = vmatprep.subr.bf16.mxu0 0
      %1322 = vmatpush1.bf16.msra.mxu0 0
      %1323 = vmatprep.subr.bf16.mxu0 0
      %1324 = vmatpush1.bf16.msra.mxu0 0
      %1325 = vmatprep.subr.bf16.mxu0 0
      %1326 = vmatpush1.bf16.msra.mxu0 0
      %1327 = vmatprep.subr.bf16.mxu0 0
      %1328 = vmatpush1.bf16.msra.mxu0 0
      %1329 = vmatprep.subr.bf16.mxu0 0
      %1330 = vmatpush1.bf16.msra.mxu0 0
      %1331 = vmatprep.subr.bf16.mxu0 0
      %1332 = vmatpush1.bf16.msra.mxu0 0
      %1333 = vmatprep.subr.bf16.mxu0 0
      %1334 = vmatpush1.bf16.msra.mxu0 0
      %1335 = vmatprep.subr.bf16.mxu0 0
      %1336 = vmatpush1.bf16.msra.mxu0 0
      %1337 = vmatprep.subr.bf16.mxu0 0
      %1338 = vmatpush1.bf16.msra.mxu0 0
      %1339 = vmatprep.subr.bf16.mxu0 0
      %1340 = vmatpush1.bf16.msra.mxu0 0
      %1341 = vmatprep.subr.bf16.mxu0 0
      %1342 = vmatpush1.bf16.msra.mxu0 0
      %1343 = vmatprep.mubr.bf16.mxu0 0
      %1344 = vmatmul.mubr.bf16.gmra.mrb[0].mxu0 %v1306
      %v1345 = vpop.f32.mrb[0].mxu0
      %v1346 = vadd.f32 0.0, %v1345
      %v1347 = vpop.f32.mrb[0].mxu0
      %v1348 = vpop.f32.mrb[0].mxu0
      %v1349 = vpop.f32.mrb[0].mxu0
      %1350 = vdwg.mxu0
      %v1351 = vadd.f32 %v1187, %v1346
      %1352 = vrot.lane.b32.xlu0 %v866, 104
      %v1353 = vpop.permute.xlu0 %1352
      %1354 = vrot.lane.b32.xlu0 %v866, 72
      %v1355 = vpop.permute.xlu0 %1354
      %v1357 = vsel %vm870, %v1353, 0
      %v1360 = vsel %vm870, %v1355, 0
      %1362 = vmatprep.subr.bf16.mxu0 0
      %1363 = vmatpush1.bf16.xpose.msra.mxu0 %v1360
      %1364 = vmatprep.subr.bf16.mxu0 0
      %1365 = vmatpush1.bf16.xpose.msra.mxu0 0
      %1366 = vmatprep.subr.bf16.mxu0 0
      %1367 = vmatpush1.bf16.xpose.msra.mxu0 0
      %1368 = vmatprep.subr.bf16.mxu0 0
      %1369 = vmatpush1.bf16.xpose.msra.mxu0 0
      %1370 = vmatprep.subr.bf16.mxu0 0
      %1371 = vmatpush1.bf16.xpose.msra.mxu0 0
      %1372 = vmatprep.subr.bf16.mxu0 0
      %1373 = vmatpush1.bf16.xpose.msra.mxu0 0
      %1374 = vmatprep.subr.bf16.mxu0 0
      %1375 = vmatpush1.bf16.xpose.msra.mxu0 0
      %1376 = vmatprep.subr.bf16.mxu0 0
      %1377 = vmatpush1.bf16.xpose.msra.mxu0 0
      %1378 = vmatprep.subr.bf16.mxu0 0
      %1379 = vmatpush1.bf16.xpose.msra.mxu0 0
      %1380 = vmatprep.subr.bf16.mxu0 0
      %1381 = vmatpush1.bf16.xpose.msra.mxu0 0
      %1382 = vmatprep.subr.bf16.mxu0 0
      %1383 = vmatpush1.bf16.xpose.msra.mxu0 0
      %1384 = vmatprep.subr.bf16.mxu0 0
      %1385 = vmatpush1.bf16.xpose.msra.mxu0 0
      %1386 = vmatprep.subr.bf16.mxu0 0
      %1387 = vmatpush1.bf16.xpose.msra.mxu0 0
      %1388 = vmatprep.subr.bf16.mxu0 0
      %1389 = vmatpush1.bf16.xpose.msra.mxu0 0
      %1390 = vmatprep.subr.bf16.mxu0 0
      %1391 = vmatpush1.bf16.xpose.msra.mxu0 0
      %1392 = vmatprep.subr.bf16.mxu0 0
      %1393 = vmatpush1.bf16.xpose.msra.mxu0 0
      %1394 = vmatprep.mubr.bf16.mxu0 0
      %1395 = vmatmul.mubr.bf16.gmra.mrb[0].mxu0 %v1357
      %v1396 = vpop.f32.mrb[0].mxu0
      %v1397 = vadd.f32 0.0, %v1396
      %v1398 = vpop.f32.mrb[0].mxu0
      %v1399 = vpop.f32.mrb[0].mxu0
      %v1400 = vpop.f32.mrb[0].mxu0
      %1401 = vdwg.mxu0
      %v1402 = vmul.f32 %v1397, 0.35355338
      %v1403 = vadd.f32 %v1402, %v922
      %v1404 = vsel %vm870, %v1403, -inf
      %1405 = vmax.xlane.f32.xlu0 %v1404
      %v1406 = vpop.xlane.xlu0 %1405
      %v1407 = vsub.f32 %v1403, %v1406
      %v1408 = vmul.f32 %v1407, 1.442695
      %v1409 = vpow.pop %v1408
      %v1410 = vsel %vm870, %v1409, 0.0
      %1411 = vadd.xlane.f32.xlu0 %v1410
      %v1412 = vpop.xlane.xlu0 %1411
      %v1413 = vrcp.pop %v1412
      %v1414 = vmul.f32 %v1409, %v1413
      %v1415 = vpack.c.bf16 %v1414, %v1414
      %1416 = vrot.lane.b32.xlu0 %v866, 40
      %v1417 = vpop.permute.xlu0 %1416
      %v1419 = vsel %vm870, %v1415, 0
      %v1422 = vsel %vm942, %v1417, 0
      %1424 = vmatprep.subr.bf16.mxu0 0
      %1425 = vmatpush1.bf16.msra.mxu0 %v1422
      %1426 = vmatprep.subr.bf16.mxu0 0
      %1427 = vmatpush1.bf16.msra.mxu0 0
      %1428 = vmatprep.subr.bf16.mxu0 0
      %1429 = vmatpush1.bf16.msra.mxu0 0
      %1430 = vmatprep.subr.bf16.mxu0 0
      %1431 = vmatpush1.bf16.msra.mxu0 0
      %1432 = vmatprep.subr.bf16.mxu0 0
      %1433 = vmatpush1.bf16.msra.mxu0 0
      %1434 = vmatprep.subr.bf16.mxu0 0
      %1435 = vmatpush1.bf16.msra.mxu0 0
      %1436 = vmatprep.subr.bf16.mxu0 0
      %1437 = vmatpush1.bf16.msra.mxu0 0
      %1438 = vmatprep.subr.bf16.mxu0 0
      %1439 = vmatpush1.bf16.msra.mxu0 0
      %1440 = vmatprep.subr.bf16.mxu0 0
      %1441 = vmatpush1.bf16.msra.mxu0 0
      %1442 = vmatprep.subr.bf16.mxu0 0
      %1443 = vmatpush1.bf16.msra.mxu0 0
      %1444 = vmatprep.subr.bf16.mxu0 0
      %1445 = vmatpush1.bf16.msra.mxu0 0
      %1446 = vmatprep.subr.bf16.mxu0 0
      %1447 = vmatpush1.bf16.msra.mxu0 0
      %1448 = vmatprep.subr.bf16.mxu0 0
      %1449 = vmatpush1.bf16.msra.mxu0 0
      %1450 = vmatprep.subr.bf16.mxu0 0
      %1451 = vmatpush1.bf16.msra.mxu0 0
      %1452 = vmatprep.subr.bf16.mxu0 0
      %1453 = vmatpush1.bf16.msra.mxu0 0
      %1454 = vmatprep.subr.bf16.mxu0 0
      %1455 = vmatpush1.bf16.msra.mxu0 0
      %1456 = vmatprep.mubr.bf16.mxu0 0
      %1457 = vmatmul.mubr.bf16.gmra.mrb[0].mxu0 %v1419
      %v1458 = vpop.f32.mrb[0].mxu0
      %v1459 = vadd.f32 0.0, %v1458
      %v1460 = vpop.f32.mrb[0].mxu0
      %v1461 = vpop.f32.mrb[0].mxu0
      %v1462 = vpop.f32.mrb[0].mxu0
      %1463 = vdwg.mxu0
      %v1464 = vpack.c.bf16 %v1459, %v1459
      %v1466 = vsel %vm870, %v1464, 0
      %v1469 = vsel %vm942, %v781, 0
      %1471 = vmatprep.subr.bf16.mxu0 0
      %1472 = vmatpush1.bf16.msra.mxu0 %v1469
      %1473 = vmatprep.subr.bf16.mxu0 0
      %1474 = vmatpush1.bf16.msra.mxu0 0
      %1475 = vmatprep.subr.bf16.mxu0 0
      %1476 = vmatpush1.bf16.msra.mxu0 0
      %1477 = vmatprep.subr.bf16.mxu0 0
      %1478 = vmatpush1.bf16.msra.mxu0 0
      %1479 = vmatprep.subr.bf16.mxu0 0
      %1480 = vmatpush1.bf16.msra.mxu0 0
      %1481 = vmatprep.subr.bf16.mxu0 0
      %1482 = vmatpush1.bf16.msra.mxu0 0
      %1483 = vmatprep.subr.bf16.mxu0 0
      %1484 = vmatpush1.bf16.msra.mxu0 0
      %1485 = vmatprep.subr.bf16.mxu0 0
      %1486 = vmatpush1.bf16.msra.mxu0 0
      %1487 = vmatprep.subr.bf16.mxu0 0
      %1488 = vmatpush1.bf16.msra.mxu0 0
      %1489 = vmatprep.subr.bf16.mxu0 0
      %1490 = vmatpush1.bf16.msra.mxu0 0
      %1491 = vmatprep.subr.bf16.mxu0 0
      %1492 = vmatpush1.bf16.msra.mxu0 0
      %1493 = vmatprep.subr.bf16.mxu0 0
      %1494 = vmatpush1.bf16.msra.mxu0 0
      %1495 = vmatprep.subr.bf16.mxu0 0
      %1496 = vmatpush1.bf16.msra.mxu0 0
      %1497 = vmatprep.subr.bf16.mxu0 0
      %1498 = vmatpush1.bf16.msra.mxu0 0
      %1499 = vmatprep.subr.bf16.mxu0 0
      %1500 = vmatpush1.bf16.msra.mxu0 0
      %1501 = vmatprep.subr.bf16.mxu0 0
      %1502 = vmatpush1.bf16.msra.mxu0 0
      %1503 = vmatprep.mubr.bf16.mxu0 0
      %1504 = vmatmul.mubr.bf16.gmra.mrb[0].mxu0 %v1466
      %v1505 = vpop.f32.mrb[0].mxu0
      %v1506 = vadd.f32 0.0, %v1505
      %v1507 = vpop.f32.mrb[0].mxu0
      %v1508 = vpop.f32.mrb[0].mxu0
      %v1509 = vpop.f32.mrb[0].mxu0
      %1510 = vdwg.mxu0
      %v1511 = vadd.f32 %v1351, %v1506
      %v1513 = vlaneseq
      %v1514 = vshrl.u32 %v1513, 7
      %v1515 = vsub.s32 0, %v1514
      %v1516 = vrot.slane %v782, %v1515
      %v1518 = vadd.f32 %v1511, %v1516
      %v1519 = vadd.f32 %v801, %v1518
      %v1520 = vsel %vm822, %v1519, 0.0
      %1521 = vadd.xlane.f32.xlu0 %v1520
      %v1522 = vpop.xlane.xlu0 %1521
      %v1523 = vrcp.pop 32.0
      %v1524 = vmul.f32 %v1522, %v1523
      %v1525 = vsub.f32 %v1519, %v1524
      %v1526 = vmul.f32 %v1525, %v1525
      %v1527 = vsel %vm822, %v1526, 0.0
      %1528 = vadd.xlane.f32.xlu0 %v1527
      %v1529 = vpop.xlane.xlu0 %1528
      %v1530 = vmul.f32 %v1529, %v1523
      %v1531 = vadd.f32 %v1530, 1e-12
      %v1532 = vrsqrt.pop %v1531
      %v1533 = vmul.f32 %v1525, %v1532
      %v1535 = vlaneseq
      %v1536 = vshrl.u32 %v1535, 7
      %v1537 = vsub.s32 0, %v1536
      %v1538 = vrot.slane %v797, %v1537
      %v1540 = vmul.f32 %v1533, %v1538
      %v1542 = vlaneseq
      %v1543 = vshrl.u32 %v1542, 7
      %v1544 = vsub.s32 0, %v1543
      %v1545 = vrot.slane %v798, %v1544
      %v1547 = vadd.f32 %v1540, %v1545
      %v1548 = vpack.c.bf16 %v1547, %v1547
      %v1550 = vlaneseq
      %v1551 = vshrl.u32 %v1550, 7
      %v1552 = vsub.s32 0, %v1551
      %v1553 = vrot.slane %v787, %v1552
      %v1559 = vunpack.c.l.b16 %v783
      %v1560 = vunpack.c.l.b16 %v784
      %v1561 = vunpack.c.l.b16 %v785
      %v1562 = vunpack.c.l.b16 %v786
      %v1563 = vpack.c.b16 %v1560, %v1559
      %v1564 = vpack.c.b16 %v1562, %v1561
      %v1568 = vsel %vm822, %v1548, 0
      %1570 = vmatprep.subr.bf16.mxu0 0
      %1571 = vmatpush1.bf16.msra.mxu0 %v1563
      %1572 = vmatprep.subr.bf16.mxu0 0
      %1573 = vmatpush1.bf16.msra.mxu0 %v1564
      %1574 = vmatprep.subr.bf16.mxu0 0
      %1575 = vmatpush1.bf16.msra.mxu0 0
      %1576 = vmatprep.subr.bf16.mxu0 0
      %1577 = vmatpush1.bf16.msra.mxu0 0
      %1578 = vmatprep.subr.bf16.mxu0 0
      %1579 = vmatpush1.bf16.msra.mxu0 0
      %1580 = vmatprep.subr.bf16.mxu0 0
      %1581 = vmatpush1.bf16.msra.mxu0 0
      %1582 = vmatprep.subr.bf16.mxu0 0
      %1583 = vmatpush1.bf16.msra.mxu0 0
      %1584 = vmatprep.subr.bf16.mxu0 0
      %1585 = vmatpush1.bf16.msra.mxu0 0
      %1586 = vmatprep.subr.bf16.mxu0 0
      %1587 = vmatpush1.bf16.msra.mxu0 0
      %1588 = vmatprep.subr.bf16.mxu0 0
      %1589 = vmatpush1.bf16.msra.mxu0 0
      %1590 = vmatprep.subr.bf16.mxu0 0
      %1591 = vmatpush1.bf16.msra.mxu0 0
      %1592 = vmatprep.subr.bf16.mxu0 0
      %1593 = vmatpush1.bf16.msra.mxu0 0
      %1594 = vmatprep.subr.bf16.mxu0 0
      %1595 = vmatpush1.bf16.msra.mxu0 0
      %1596 = vmatprep.subr.bf16.mxu0 0
      %1597 = vmatpush1.bf16.msra.mxu0 0
      %1598 = vmatprep.subr.bf16.mxu0 0
      %1599 = vmatpush1.bf16.msra.mxu0 0
      %1600 = vmatprep.subr.bf16.mxu0 0
      %1601 = vmatpush1.bf16.msra.mxu0 0
      %1602 = vmatprep.mubr.bf16.mxu0 0
      %1603 = vmatmul.mubr.bf16.gmra.mrb[0].mxu0 %v1568
      %v1604 = vpop.f32.mrb[0].mxu0
      %v1605 = vadd.f32 %v1553, %v1604
      %v1606 = vpop.f32.mrb[0].mxu0
      %v1607 = vpop.f32.mrb[0].mxu0
      %v1608 = vpop.f32.mrb[0].mxu0
      %1609 = vdwg.mxu0
      %v1610 = vmul.f32 %v1605, 0.5
      %v1611 = vmul.f32 %v1605, 0.044715
      %v1612 = vmul.f32 %v1611, %v1605
      %v1613 = vmul.f32 %v1612, %v1605
      %v1614 = vadd.f32 %v1605, %v1613
      %v1615 = vmul.f32 %v1614, 0.7978846
      %v1616 = vtanh.pop %v1615
      %v1617 = vadd.f32 %v1616, 1.0
      %v1618 = vmul.f32 %v1610, %v1617
      %v1619 = vpack.c.bf16 %v1618, %v1618
      %v1621 = vlaneseq
      %v1622 = vshrl.u32 %v1621, 7
      %v1623 = vsub.s32 0, %v1622
      %v1624 = vrot.slane %v796, %v1623
      %v1634 = vunpack.c.l.b16 %v788
      %v1635 = vunpack.c.l.b16 %v789
      %v1636 = vunpack.c.l.b16 %v790
      %v1637 = vunpack.c.l.b16 %v791
      %v1638 = vunpack.c.l.b16 %v792
      %v1639 = vunpack.c.l.b16 %v793
      %v1640 = vunpack.c.l.b16 %v794
      %v1641 = vunpack.c.l.b16 %v795
      %v1642 = vpack.c.b16 %v1635, %v1634
      %v1643 = vpack.c.b16 %v1637, %v1636
      %v1644 = vpack.c.b16 %v1639, %v1638
      %v1645 = vpack.c.b16 %v1641, %v1640
      %vm1650 = vcmask 523264
      %v1652 = vsel %vm1650, %v1619, 0
      %1654 = vmatprep.subr.bf16.mxu0 0
      %1655 = vmatpush1.bf16.msra.mxu0 %v1642
      %1656 = vmatprep.subr.bf16.mxu0 0
      %1657 = vmatpush1.bf16.msra.mxu0 %v1643
      %1658 = vmatprep.subr.bf16.mxu0 0
      %1659 = vmatpush1.bf16.msra.mxu0 %v1644
      %1660 = vmatprep.subr.bf16.mxu0 0
      %1661 = vmatpush1.bf16.msra.mxu0 %v1645
      %1662 = vmatprep.subr.bf16.mxu0 0
      %1663 = vmatpush1.bf16.msra.mxu0 0
      %1664 = vmatprep.subr.bf16.mxu0 0
      %1665 = vmatpush1.bf16.msra.mxu0 0
      %1666 = vmatprep.subr.bf16.mxu0 0
      %1667 = vmatpush1.bf16.msra.mxu0 0
      %1668 = vmatprep.subr.bf16.mxu0 0
      %1669 = vmatpush1.bf16.msra.mxu0 0
      %1670 = vmatprep.subr.bf16.mxu0 0
      %1671 = vmatpush1.bf16.msra.mxu0 0
      %1672 = vmatprep.subr.bf16.mxu0 0
      %1673 = vmatpush1.bf16.msra.mxu0 0
      %1674 = vmatprep.subr.bf16.mxu0 0
      %1675 = vmatpush1.bf16.msra.mxu0 0
      %1676 = vmatprep.subr.bf16.mxu0 0
      %1677 = vmatpush1.bf16.msra.mxu0 0
      %1678 = vmatprep.subr.bf16.mxu0 0
      %1679 = vmatpush1.bf16.msra.mxu0 0
      %1680 = vmatprep.subr.bf16.mxu0 0
      %1681 = vmatpush1.bf16.msra.mxu0 0
      %1682 = vmatprep.subr.bf16.mxu0 0
      %1683 = vmatpush1.bf16.msra.mxu0 0
      %1684 = vmatprep.subr.bf16.mxu0 0
      %1685 = vmatpush1.bf16.msra.mxu0 0
      %1686 = vmatprep.mubr.bf16.mxu0 0
      %1687 = vmatmul.mubr.bf16.gmra.mrb[0].mxu0 %v1652
      %v1688 = vpop.f32.mrb[0].mxu0
      %v1689 = vadd.f32 %v1624, %v1688
      %v1690 = vpop.f32.mrb[0].mxu0
      %v1691 = vpop.f32.mrb[0].mxu0
      %v1692 = vpop.f32.mrb[0].mxu0
      %1693 = vdwg.mxu0
      %v1694 = vadd.f32 %v1547, %v1689
      %v1695 = vsel %vm822, %v1694, 0.0
      %1696 = vadd.xlane.f32.xlu0 %v1695
      %v1697 = vpop.xlane.xlu0 %1696
      %v1698 = vmul.f32 %v1697, %v1523
      %v1699 = vsub.f32 %v1694, %v1698
      %v1700 = vmul.f32 %v1699, %v1699
      %v1701 = vsel %vm822, %v1700, 0.0
      %1702 = vadd.xlane.f32.xlu0 %v1701
      %v1703 = vpop.xlane.xlu0 %1702
      %v1704 = vmul.f32 %v1703, %v1523
      %v1705 = vadd.f32 %v1704, 1e-12
      %v1706 = vrsqrt.pop %v1705
      %v1707 = vmul.f32 %v1699, %v1706
      %v1709 = vlaneseq
      %v1710 = vshrl.u32 %v1709, 7
      %v1711 = vsub.s32 0, %v1710
      %v1712 = vrot.slane %v799, %v1711
      %v1714 = vmul.f32 %v1707, %v1712
      %v1716 = vlaneseq
      %v1717 = vshrl.u32 %v1716, 7
      %v1718 = vsub.s32 0, %v1717
      %v1719 = vrot.slane %v800, %v1718
      %v1721 = vadd.f32 %v1714, %v1719
      %1722 = vst.msk [vmem:[#allocation2] sm:$0xff] %vm822, %v1721
      %p1723 = scmp.eq.s32.totalorder %s32, 1
      // Predicated region
      $region89: #{bert_classifier_forward.4} parent=83 // pred_check
        %p1724 = pneg %p1723
      $region90: #{bert_classifier_forward.4} parent=83 // pred_check_branch
        %1726 = sbr.rel (%p1724) target = $region92
      $region91: #{bert_classifier_forward.4} parent=83 // pred_region
        %v1727 = vld [vmem:[#allocation2] sm:$0xff]
        %1728 = vst.msk [vmem:[%s734] sm:$0xff] %vm822, %v1727
      $region92: #{bert_classifier_forward.4} parent=83 // pred_fallthru
        _
      %p1729 = scmp.lt.s32.totalorder %s31, 1
      %s1730 = scalar_select %p1729, %s31, 1
      %s1731 = smul.addr %s1730, 8
      %s1732 = scalar_lea.vmem %s16, %s1731
      // Predicated region
      $region93: #{bert_classifier_forward.4} parent=83 // pred_check
        %p1733 = pneg %p463
      $region94: #{bert_classifier_forward.4} parent=83 // pred_check_branch
        %1735 = sbr.rel (%p1733) target = $region96
      $region95: #{bert_classifier_forward.4} parent=83 // pred_region
        _
      $region96: #{bert_classifier_forward.4} parent=83 // pred_fallthru
        _
    $region84: #{bert_classifier_forward.4} parent=5 // pred_fallthru
      _
    %p1736 = scmp.le.s32.totalorder 2, %s22
    // Predicated region
    $region97: #{bert_classifier_forward.4} parent=5 // pred_check
      %p1737 = pneg %p1736
    $region98: #{bert_classifier_forward.4} parent=5 // pred_check_branch
      %1739 = sbr.rel (%p1737) target = $region100
    $region99: #{bert_classifier_forward.4} parent=5 // pred_region
      %s1740 = ssub.s32 %s22, 2
      // Predicated region
      $region101: #{bert_classifier_forward.4} parent=99 // pred_check
        %p1741 = pneg %p469
      $region102: #{bert_classifier_forward.4} parent=99 // pred_check_branch
        %1743 = sbr.rel (%p1741) target = $region104
      $region103: #{bert_classifier_forward.4} parent=99 // pred_region
        %p1744 = scmp.lt.s32.totalorder %s33, 1
        %s1745 = scalar_select %p1744, %s33, 1
        %s1746 = smul.addr %s1745, 8
        %s1747 = scalar_lea.vmem %s16, %s1746
      $region104: #{bert_classifier_forward.4} parent=99 // pred_fallthru
        _
    $region100: #{bert_classifier_forward.4} parent=5 // pred_fallthru
      _
  $region6: #{bert_classifier_forward.4} parent=0 // loop_footer
    %s26 = sadd.s32 1, %s22
  $region7: #{bert_classifier_forward.4} parent=0 // loop_footer_branch
    %21 = sbr.rel target = $region3
  $region8: #{bert_classifier_forward.4} parent=0 // loop_exit
    _

// kernel: bert_classifier_forward.6
$region0: #{bert_classifier_forward.6}
  #allocation0 [shape = 'u32[]', space=smem, size = 0x4, offset = 0x4, fixed_abs, tag = 'smem constant byte address 0x4 - core index']
  #allocation1 [shape = 'u32[144,128]{1,0:T(1,128)}', space=vmem, size = 0x12000, scoped, tag = 'internal scratch']
  #allocation2 [shape = 'f32[4,2,32]{2,1,0:T(2,128)}', space=vmem, size = 0x1000, scoped, tag = 'scratch operand']
  %s0 = inlined_call_operand.vmem [shape: f32[8,2,32], index: 0, kind: input, shape index: {}]
  %s1 = inlined_call_operand.vmem [shape: f32[1,2,2], index: 1, kind: input, shape index: {}]
  %s2 = inlined_call_operand.vmem [shape: bf16[2,32,96], index: 2, kind: input, shape index: {}]
  %s3 = inlined_call_operand.vmem [shape: f32[2,1,96], index: 3, kind: input, shape index: {}]
  %s4 = inlined_call_operand.vmem [shape: bf16[2,32,32], index: 4, kind: input, shape index: {}]
  %s5 = inlined_call_operand.vmem [shape: f32[2,1,32], index: 5, kind: input, shape index: {}]
  %s6 = inlined_call_operand.vmem [shape: f32[2,1,32], index: 6, kind: input, shape index: {}]
  %s7 = inlined_call_operand.vmem [shape: f32[2,1,32], index: 7, kind: input, shape index: {}]
  %s8 = inlined_call_operand.vmem [shape: bf16[2,32,64], index: 8, kind: input, shape index: {}]
  %s9 = inlined_call_operand.vmem [shape: f32[2,1,64], index: 9, kind: input, shape index: {}]
  %s10 = inlined_call_operand.vmem [shape: bf16[2,64,32], index: 10, kind: input, shape index: {}]
  %s11 = inlined_call_operand.vmem [shape: f32[2,1,32], index: 11, kind: input, shape index: {}]
  %s12 = inlined_call_operand.vmem [shape: f32[2,1,32], index: 12, kind: input, shape index: {}]
  %s13 = inlined_call_operand.vmem [shape: f32[2,1,32], index: 13, kind: input, shape index: {}]
  %s14 = inlined_call_operand.vmem [shape: f32[8,2,32], index: 14, kind: output, shape index: {}]
  %s15 = sld [smem:[#allocation0]]
  $region97: #{bert_classifier_forward.6} parent=0
    _
  %s17 = ssub.s32 1, %s15
  %s18 = scalar_select 0, %s17, %s15
  loop: start=0, step=1, limit=6
  $region2: #{bert_classifier_forward.6} parent=0 // loop_pre_header
    _
  $region3: #{bert_classifier_forward.6} parent=0 // loop_header
    %s20 = sphi 0, %s24
    %p21 = scmp.ge.s32.totalorder %s20, 6
    %s27 = sphi 0, %s39
    %s28 = sphi 0, %s35
    %s29 = sphi 0, %s27
    %s30 = sphi 0, %s28
    %s31 = sphi 0, %s29
    %s32 = sphi 0, %s30
    %s42 = sphi 0, %s44
    %s45 = sphi 0, %s42
    %s46 = sphi 0, %s45
    %s62 = sphi 0, %s46
    %s66 = sphi 0, %s66
    %s68 = sphi 0, %s66
    %s69 = sphi 0, %s68
    %s83 = sphi 0, %s69
    %s89 = sphi 0, %s91
    %s92 = sphi 0, %s89
    %s93 = sphi 0, %s92
    %s109 = sphi 0, %s93
    %s115 = sphi 0, %s117
    %s118 = sphi 0, %s115
    %s119 = sphi 0, %s118
    %s135 = sphi 0, %s119
    %s141 = sphi 0, %s143
    %s144 = sphi 0, %s141
    %s145 = sphi 0, %s144
    %s161 = sphi 0, %s145
    %s167 = sphi 0, %s169
    %s170 = sphi 0, %s167
    %s171 = sphi 0, %s170
    %s187 = sphi 0, %s171
    %s193 = sphi 0, %s195
    %s196 = sphi 0, %s193
    %s197 = sphi 0, %s196
    %s213 = sphi 0, %s197
    %s219 = sphi 0, %s221
    %s222 = sphi 0, %s219
    %s223 = sphi 0, %s222
    %s239 = sphi 0, %s223
    %s245 = sphi 0, %s247
    %s248 = sphi 0, %s245
    %s249 = sphi 0, %s248
    %s265 = sphi 0, %s249
    %s271 = sphi 0, %s273
    %s274 = sphi 0, %s271
    %s275 = sphi 0, %s274
    %s291 = sphi 0, %s275
    %s297 = sphi 0, %s299
    %s300 = sphi 0, %s297
    %s301 = sphi 0, %s300
    %s317 = sphi 0, %s301
    %s323 = sphi 0, %s325
    %s326 = sphi 0, %s323
    %s327 = sphi 0, %s326
    %s343 = sphi 0, %s327
    %s349 = sphi 0, %s351
    %s352 = sphi 0, %s349
    %s353 = sphi 0, %s352
    %s369 = sphi 0, %s353
    %s375 = sphi 0, %s377
    %s378 = sphi 0, %s375
    %s379 = sphi 0, %s378
    %s395 = sphi 0, %s379
    %s401 = sphi 0, %s403
    %s404 = sphi 0, %s401
    %s405 = sphi 0, %s404
    %s421 = sphi 0, %s405
  $region4: #{bert_classifier_forward.6} parent=0 // loop_header_branch
    %23 = sbr.rel (%p21) target = $region8
  $region5: #{bert_classifier_forward.6} parent=0 // loop_body
    %s25 = ssub.s32 %s20, 1
    %s26 = ssub.s32 %s20, 2
    %s33 = sadd.s32 1, %s28
    %p34 = scmp.ge.s32.totalorder %s33, 2
    %s35 = scalar_select %p34, 0, %s33
    %s36 = sadd.s32 1, %s27
    %s37 = scalar_select %p34, %s36, %s27
    %p38 = scmp.ge.s32.totalorder %s37, 2
    %s39 = scalar_select %p38, 0, %s37
    %s40 = ssub.s32 %s27, %s39
    %p41 = scmp.eq.s32.totalorder %s40, 0
    %s43 = sadd.s32 %s42, 1
    %s44 = scalar_select %p41, %s42, %s43
    %p47 = pneg %p41
    %p48 = scmp.eq.s32.totalorder %s20, 3
    %p49 = por %p47, %p48
    %p50 = scmp.ne.s32.totalorder %s42, %s45
    %p51 = scmp.eq.s32.totalorder %s20, 0
    %p52 = por %p50, %p51
    %p53 = scmp.ne.s32.totalorder %s42, %s45
    %p54 = scmp.eq.s32.totalorder %s25, 3
    %p55 = por %p53, %p54
    %p56 = scmp.ne.s32.totalorder %s45, %s46
    %p57 = scmp.eq.s32.totalorder %s25, 0
    %p58 = por %p56, %p57
    %p59 = scmp.ne.s32.totalorder %s45, %s46
    %p60 = scmp.eq.s32.totalorder %s26, 3
    %p61 = por %p59, %p60
    %p63 = scmp.ne.s32.totalorder %s46, %s62
    %p64 = scmp.eq.s32.totalorder %s26, 0
    %p65 = por %p63, %p64
    %s67 = sadd.s32 %s66, 1
    %p70 = scmp.eq.s32.totalorder %s20, 3
    %p71 = scmp.ne.s32.totalorder %s66, %s68
    %p72 = scmp.eq.s32.totalorder %s20, 0
    %p73 = por %p71, %p72
    %p74 = scmp.ne.s32.totalorder %s66, %s68
    %p75 = scmp.eq.s32.totalorder %s25, 3
    %p76 = por %p74, %p75
    %p77 = scmp.ne.s32.totalorder %s68, %s69
    %p78 = scmp.eq.s32.totalorder %s25, 0
    %p79 = por %p77, %p78
    %p80 = scmp.ne.s32.totalorder %s68, %s69
    %p81 = scmp.eq.s32.totalorder %s26, 3
    %p82 = por %p80, %p81
    %p84 = scmp.ne.s32.totalorder %s69, %s83
    %p85 = scmp.eq.s32.totalorder %s26, 0
    %p86 = por %p84, %p85
    %s87 = ssub.s32 %s28, %s35
    %p88 = scmp.eq.s32.totalorder %s87, 0
    %s90 = sadd.s32 %s89, 1
    %s91 = scalar_select %p88, %s89, %s90
    %p94 = pneg %p88
    %p95 = scmp.eq.s32.totalorder %s20, 3
    %p96 = por %p94, %p95
    %p97 = scmp.ne.s32.totalorder %s89, %s92
    %p98 = scmp.eq.s32.totalorder %s20, 0
    %p99 = por %p97, %p98
    %p100 = scmp.ne.s32.totalorder %s89, %s92
    %p101 = scmp.eq.s32.totalorder %s25, 3
    %p102 = por %p100, %p101
    %p103 = scmp.ne.s32.totalorder %s92, %s93
    %p104 = scmp.eq.s32.totalorder %s25, 0
    %p105 = por %p103, %p104
    %p106 = scmp.ne.s32.totalorder %s92, %s93
    %p107 = scmp.eq.s32.totalorder %s26, 3
    %p108 = por %p106, %p107
    %p110 = scmp.ne.s32.totalorder %s93, %s109
    %p111 = scmp.eq.s32.totalorder %s26, 0
    %p112 = por %p110, %p111
    %s113 = ssub.s32 %s28, %s35
    %p114 = scmp.eq.s32.totalorder %s113, 0
    %s116 = sadd.s32 %s115, 1
    %s117 = scalar_select %p114, %s115, %s116
    %p120 = pneg %p114
    %p121 = scmp.eq.s32.totalorder %s20, 3
    %p122 = por %p120, %p121
    %p123 = scmp.ne.s32.totalorder %s115, %s118
    %p124 = scmp.eq.s32.totalorder %s20, 0
    %p125 = por %p123, %p124
    %p126 = scmp.ne.s32.totalorder %s115, %s118
    %p127 = scmp.eq.s32.totalorder %s25, 3
    %p128 = por %p126, %p127
    %p129 = scmp.ne.s32.totalorder %s118, %s119
    %p130 = scmp.eq.s32.totalorder %s25, 0
    %p131 = por %p129, %p130
    %p132 = scmp.ne.s32.totalorder %s118, %s119
    %p133 = scmp.eq.s32.totalorder %s26, 3
    %p134 = por %p132, %p133
    %p136 = scmp.ne.s32.totalorder %s119, %s135
    %p137 = scmp.eq.s32.totalorder %s26, 0
    %p138 = por %p136, %p137
    %s139 = ssub.s32 %s28, %s35
    %p140 = scmp.eq.s32.totalorder %s139, 0
    %s142 = sadd.s32 %s141, 1
    %s143 = scalar_select %p140, %s141, %s142
    %p146 = pneg %p140
    %p147 = scmp.eq.s32.totalorder %s20, 3
    %p148 = por %p146, %p147
    %p149 = scmp.ne.s32.totalorder %s141, %s144
    %p150 = scmp.eq.s32.totalorder %s20, 0
    %p151 = por %p149, %p150
    %p152 = scmp.ne.s32.totalorder %s141, %s144
    %p153 = scmp.eq.s32.totalorder %s25, 3
    %p154 = por %p152, %p153
    %p155 = scmp.ne.s32.totalorder %s144, %s145
    %p156 = scmp.eq.s32.totalorder %s25, 0
    %p157 = por %p155, %p156
    %p158 = scmp.ne.s32.totalorder %s144, %s145
    %p159 = scmp.eq.s32.totalorder %s26, 3
    %p160 = por %p158, %p159
    %p162 = scmp.ne.s32.totalorder %s145, %s161
    %p163 = scmp.eq.s32.totalorder %s26, 0
    %p164 = por %p162, %p163
    %s165 = ssub.s32 %s28, %s35
    %p166 = scmp.eq.s32.totalorder %s165, 0
    %s168 = sadd.s32 %s167, 1
    %s169 = scalar_select %p166, %s167, %s168
    %p172 = pneg %p166
    %p173 = scmp.eq.s32.totalorder %s20, 3
    %p174 = por %p172, %p173
    %p175 = scmp.ne.s32.totalorder %s167, %s170
    %p176 = scmp.eq.s32.totalorder %s20, 0
    %p177 = por %p175, %p176
    %p178 = scmp.ne.s32.totalorder %s167, %s170
    %p179 = scmp.eq.s32.totalorder %s25, 3
    %p180 = por %p178, %p179
    %p181 = scmp.ne.s32.totalorder %s170, %s171
    %p182 = scmp.eq.s32.totalorder %s25, 0
    %p183 = por %p181, %p182
    %p184 = scmp.ne.s32.totalorder %s170, %s171
    %p185 = scmp.eq.s32.totalorder %s26, 3
    %p186 = por %p184, %p185
    %p188 = scmp.ne.s32.totalorder %s171, %s187
    %p189 = scmp.eq.s32.totalorder %s26, 0
    %p190 = por %p188, %p189
    %s191 = ssub.s32 %s28, %s35
    %p192 = scmp.eq.s32.totalorder %s191, 0
    %s194 = sadd.s32 %s193, 1
    %s195 = scalar_select %p192, %s193, %s194
    %p198 = pneg %p192
    %p199 = scmp.eq.s32.totalorder %s20, 3
    %p200 = por %p198, %p199
    %p201 = scmp.ne.s32.totalorder %s193, %s196
    %p202 = scmp.eq.s32.totalorder %s20, 0
    %p203 = por %p201, %p202
    %p204 = scmp.ne.s32.totalorder %s193, %s196
    %p205 = scmp.eq.s32.totalorder %s25, 3
    %p206 = por %p204, %p205
    %p207 = scmp.ne.s32.totalorder %s196, %s197
    %p208 = scmp.eq.s32.totalorder %s25, 0
    %p209 = por %p207, %p208
    %p210 = scmp.ne.s32.totalorder %s196, %s197
    %p211 = scmp.eq.s32.totalorder %s26, 3
    %p212 = por %p210, %p211
    %p214 = scmp.ne.s32.totalorder %s197, %s213
    %p215 = scmp.eq.s32.totalorder %s26, 0
    %p216 = por %p214, %p215
    %s217 = ssub.s32 %s28, %s35
    %p218 = scmp.eq.s32.totalorder %s217, 0
    %s220 = sadd.s32 %s219, 1
    %s221 = scalar_select %p218, %s219, %s220
    %p224 = pneg %p218
    %p225 = scmp.eq.s32.totalorder %s20, 3
    %p226 = por %p224, %p225
    %p227 = scmp.ne.s32.totalorder %s219, %s222
    %p228 = scmp.eq.s32.totalorder %s20, 0
    %p229 = por %p227, %p228
    %p230 = scmp.ne.s32.totalorder %s219, %s222
    %p231 = scmp.eq.s32.totalorder %s25, 3
    %p232 = por %p230, %p231
    %p233 = scmp.ne.s32.totalorder %s222, %s223
    %p234 = scmp.eq.s32.totalorder %s25, 0
    %p235 = por %p233, %p234
    %p236 = scmp.ne.s32.totalorder %s222, %s223
    %p237 = scmp.eq.s32.totalorder %s26, 3
    %p238 = por %p236, %p237
    %p240 = scmp.ne.s32.totalorder %s223, %s239
    %p241 = scmp.eq.s32.totalorder %s26, 0
    %p242 = por %p240, %p241
    %s243 = ssub.s32 %s28, %s35
    %p244 = scmp.eq.s32.totalorder %s243, 0
    %s246 = sadd.s32 %s245, 1
    %s247 = scalar_select %p244, %s245, %s246
    %p250 = pneg %p244
    %p251 = scmp.eq.s32.totalorder %s20, 3
    %p252 = por %p250, %p251
    %p253 = scmp.ne.s32.totalorder %s245, %s248
    %p254 = scmp.eq.s32.totalorder %s20, 0
    %p255 = por %p253, %p254
    %p256 = scmp.ne.s32.totalorder %s245, %s248
    %p257 = scmp.eq.s32.totalorder %s25, 3
    %p258 = por %p256, %p257
    %p259 = scmp.ne.s32.totalorder %s248, %s249
    %p260 = scmp.eq.s32.totalorder %s25, 0
    %p261 = por %p259, %p260
    %p262 = scmp.ne.s32.totalorder %s248, %s249
    %p263 = scmp.eq.s32.totalorder %s26, 3
    %p264 = por %p262, %p263
    %p266 = scmp.ne.s32.totalorder %s249, %s265
    %p267 = scmp.eq.s32.totalorder %s26, 0
    %p268 = por %p266, %p267
    %s269 = ssub.s32 %s28, %s35
    %p270 = scmp.eq.s32.totalorder %s269, 0
    %s272 = sadd.s32 %s271, 1
    %s273 = scalar_select %p270, %s271, %s272
    %p276 = pneg %p270
    %p277 = scmp.eq.s32.totalorder %s20, 3
    %p278 = por %p276, %p277
    %p279 = scmp.ne.s32.totalorder %s271, %s274
    %p280 = scmp.eq.s32.totalorder %s20, 0
    %p281 = por %p279, %p280
    %p282 = scmp.ne.s32.totalorder %s271, %s274
    %p283 = scmp.eq.s32.totalorder %s25, 3
    %p284 = por %p282, %p283
    %p285 = scmp.ne.s32.totalorder %s274, %s275
    %p286 = scmp.eq.s32.totalorder %s25, 0
    %p287 = por %p285, %p286
    %p288 = scmp.ne.s32.totalorder %s274, %s275
    %p289 = scmp.eq.s32.totalorder %s26, 3
    %p290 = por %p288, %p289
    %p292 = scmp.ne.s32.totalorder %s275, %s291
    %p293 = scmp.eq.s32.totalorder %s26, 0
    %p294 = por %p292, %p293
    %s295 = ssub.s32 %s28, %s35
    %p296 = scmp.eq.s32.totalorder %s295, 0
    %s298 = sadd.s32 %s297, 1
    %s299 = scalar_select %p296, %s297, %s298
    %p302 = pneg %p296
    %p303 = scmp.eq.s32.totalorder %s20, 3
    %p304 = por %p302, %p303
    %p305 = scmp.ne.s32.totalorder %s297, %s300
    %p306 = scmp.eq.s32.totalorder %s20, 0
    %p307 = por %p305, %p306
    %p308 = scmp.ne.s32.totalorder %s297, %s300
    %p309 = scmp.eq.s32.totalorder %s25, 3
    %p310 = por %p308, %p309
    %p311 = scmp.ne.s32.totalorder %s300, %s301
    %p312 = scmp.eq.s32.totalorder %s25, 0
    %p313 = por %p311, %p312
    %p314 = scmp.ne.s32.totalorder %s300, %s301
    %p315 = scmp.eq.s32.totalorder %s26, 3
    %p316 = por %p314, %p315
    %p318 = scmp.ne.s32.totalorder %s301, %s317
    %p319 = scmp.eq.s32.totalorder %s26, 0
    %p320 = por %p318, %p319
    %s321 = ssub.s32 %s28, %s35
    %p322 = scmp.eq.s32.totalorder %s321, 0
    %s324 = sadd.s32 %s323, 1
    %s325 = scalar_select %p322, %s323, %s324
    %p328 = pneg %p322
    %p329 = scmp.eq.s32.totalorder %s20, 3
    %p330 = por %p328, %p329
    %p331 = scmp.ne.s32.totalorder %s323, %s326
    %p332 = scmp.eq.s32.totalorder %s20, 0
    %p333 = por %p331, %p332
    %p334 = scmp.ne.s32.totalorder %s323, %s326
    %p335 = scmp.eq.s32.totalorder %s25, 3
    %p336 = por %p334, %p335
    %p337 = scmp.ne.s32.totalorder %s326, %s327
    %p338 = scmp.eq.s32.totalorder %s25, 0
    %p339 = por %p337, %p338
    %p340 = scmp.ne.s32.totalorder %s326, %s327
    %p341 = scmp.eq.s32.totalorder %s26, 3
    %p342 = por %p340, %p341
    %p344 = scmp.ne.s32.totalorder %s327, %s343
    %p345 = scmp.eq.s32.totalorder %s26, 0
    %p346 = por %p344, %p345
    %s347 = ssub.s32 %s28, %s35
    %p348 = scmp.eq.s32.totalorder %s347, 0
    %s350 = sadd.s32 %s349, 1
    %s351 = scalar_select %p348, %s349, %s350
    %p354 = pneg %p348
    %p355 = scmp.eq.s32.totalorder %s20, 3
    %p356 = por %p354, %p355
    %p357 = scmp.ne.s32.totalorder %s349, %s352
    %p358 = scmp.eq.s32.totalorder %s20, 0
    %p359 = por %p357, %p358
    %p360 = scmp.ne.s32.totalorder %s349, %s352
    %p361 = scmp.eq.s32.totalorder %s25, 3
    %p362 = por %p360, %p361
    %p363 = scmp.ne.s32.totalorder %s352, %s353
    %p364 = scmp.eq.s32.totalorder %s25, 0
    %p365 = por %p363, %p364
    %p366 = scmp.ne.s32.totalorder %s352, %s353
    %p367 = scmp.eq.s32.totalorder %s26, 3
    %p368 = por %p366, %p367
    %p370 = scmp.ne.s32.totalorder %s353, %s369
    %p371 = scmp.eq.s32.totalorder %s26, 0
    %p372 = por %p370, %p371
    %s373 = ssub.s32 %s28, %s35
    %p374 = scmp.eq.s32.totalorder %s373, 0
    %s376 = sadd.s32 %s375, 1
    %s377 = scalar_select %p374, %s375, %s376
    %p380 = pneg %p374
    %p381 = scmp.eq.s32.totalorder %s20, 3
    %p382 = por %p380, %p381
    %p383 = scmp.ne.s32.totalorder %s375, %s378
    %p384 = scmp.eq.s32.totalorder %s20, 0
    %p385 = por %p383, %p384
    %p386 = scmp.ne.s32.totalorder %s375, %s378
    %p387 = scmp.eq.s32.totalorder %s25, 3
    %p388 = por %p386, %p387
    %p389 = scmp.ne.s32.totalorder %s378, %s379
    %p390 = scmp.eq.s32.totalorder %s25, 0
    %p391 = por %p389, %p390
    %p392 = scmp.ne.s32.totalorder %s378, %s379
    %p393 = scmp.eq.s32.totalorder %s26, 3
    %p394 = por %p392, %p393
    %p396 = scmp.ne.s32.totalorder %s379, %s395
    %p397 = scmp.eq.s32.totalorder %s26, 0
    %p398 = por %p396, %p397
    %s399 = ssub.s32 %s27, %s39
    %p400 = scmp.eq.s32.totalorder %s399, 0
    %s402 = sadd.s32 %s401, 1
    %s403 = scalar_select %p400, %s401, %s402
    %p406 = pneg %p400
    %p407 = scmp.eq.s32.totalorder %s20, 3
    %p408 = por %p406, %p407
    %p409 = scmp.ne.s32.totalorder %s401, %s404
    %p410 = scmp.eq.s32.totalorder %s20, 0
    %p411 = por %p409, %p410
    %p412 = scmp.ne.s32.totalorder %s401, %s404
    %p413 = scmp.eq.s32.totalorder %s25, 3
    %p414 = por %p412, %p413
    %p415 = scmp.ne.s32.totalorder %s404, %s405
    %p416 = scmp.eq.s32.totalorder %s25, 0
    %p417 = por %p415, %p416
    %p418 = scmp.ne.s32.totalorder %s404, %s405
    %p419 = scmp.eq.s32.totalorder %s26, 3
    %p420 = por %p418, %p419
    %p422 = scmp.ne.s32.totalorder %s405, %s421
    %p423 = scmp.eq.s32.totalorder %s26, 0
    %p424 = por %p422, %p423
    %p425 = scmp.le.s32.totalorder 1, %s20
    %p426 = scmp.lt.s32.totalorder %s20, 5
    %p427 = pnand %p425, %p426
    %p428 = pneg %p427
    // Predicated region
    $region9: #{bert_classifier_forward.6} parent=5 // pred_check
      _
    $region10: #{bert_classifier_forward.6} parent=5 // pred_check_branch
      %430 = sbr.rel (%p427) target = $region12
    $region11: #{bert_classifier_forward.6} parent=5 // pred_region
      %s431 = ssub.s32 %s20, 1
      // Predicated region
      $region13: #{bert_classifier_forward.6} parent=11 // pred_check
        %p432 = pneg %p79
      $region14: #{bert_classifier_forward.6} parent=11 // pred_check_branch
        %434 = sbr.rel (%p432) target = $region16
      $region15: #{bert_classifier_forward.6} parent=11 // pred_region
        _
      $region16: #{bert_classifier_forward.6} parent=11 // pred_fallthru
        _
    $region12: #{bert_classifier_forward.6} parent=5 // pred_fallthru
      _
    %p435 = scmp.lt.s32.totalorder %s20, 4
    // Predicated region
    $region17: #{bert_classifier_forward.6} parent=5 // pred_check
      %p436 = pneg %p435
    $region18: #{bert_classifier_forward.6} parent=5 // pred_check_branch
      %438 = sbr.rel (%p436) target = $region20
    $region19: #{bert_classifier_forward.6} parent=5 // pred_region
      // Predicated region
      $region21: #{bert_classifier_forward.6} parent=19 // pred_check
        %p439 = pneg %p52
      $region22: #{bert_classifier_forward.6} parent=19 // pred_check_branch
        %441 = sbr.rel (%p439) target = $region24
      $region23: #{bert_classifier_forward.6} parent=19 // pred_region
        %s442 = smul.u32 4, %s27
        %p443 = scmp.lt.s32.totalorder %s442, 7
        %s444 = scalar_select %p443, %s442, 7
        %s445 = smul.addr %s444, 2
        %s446 = scalar_lea.vmem %s0, %s445
        %s447 = smul.u32 4, %s27
      $region24: #{bert_classifier_forward.6} parent=19 // pred_fallthru
        _
      // Predicated region
      $region25: #{bert_classifier_forward.6} parent=19 // pred_check
        %p448 = pneg %p99
      $region26: #{bert_classifier_forward.6} parent=19 // pred_check_branch
        %450 = sbr.rel (%p448) target = $region28
      $region27: #{bert_classifier_forward.6} parent=19 // pred_region
        %p451 = scmp.lt.s32.totalorder %s28, 1
        %s452 = scalar_select %p451, %s28, 1
        %s453 = smul.addr %s452, 4
        %s454 = smul.addr %s453, 4
        %s455 = scalar_lea.vmem %s2, %s454
      $region28: #{bert_classifier_forward.6} parent=19 // pred_fallthru
        _
      // Predicated region
      $region29: #{bert_classifier_forward.6} parent=19 // pred_check
        %p456 = pneg %p125
      $region30: #{bert_classifier_forward.6} parent=19 // pred_check_branch
        %458 = sbr.rel (%p456) target = $region32
      $region31: #{bert_classifier_forward.6} parent=19 // pred_region
        %p459 = scmp.lt.s32.totalorder %s28, 1
        %s460 = scalar_select %p459, %s28, 1
        %s461 = scalar_lea.vmem %s3, %s460
      $region32: #{bert_classifier_forward.6} parent=19 // pred_fallthru
        _
      // Predicated region
      $region33: #{bert_classifier_forward.6} parent=19 // pred_check
        %p462 = pneg %p151
      $region34: #{bert_classifier_forward.6} parent=19 // pred_check_branch
        %464 = sbr.rel (%p462) target = $region36
      $region35: #{bert_classifier_forward.6} parent=19 // pred_region
        %p465 = scmp.lt.s32.totalorder %s28, 1
        %s466 = scalar_select %p465, %s28, 1
        %s467 = smul.addr %s466, 4
        %s468 = smul.addr %s467, 4
        %s469 = scalar_lea.vmem %s4, %s468
      $region36: #{bert_classifier_forward.6} parent=19 // pred_fallthru
        _
      // Predicated region
      $region37: #{bert_classifier_forward.6} parent=19 // pred_check
        %p470 = pneg %p177
      $region38: #{bert_classifier_forward.6} parent=19 // pred_check_branch
        %472 = sbr.rel (%p470) target = $region40
      $region39: #{bert_classifier_forward.6} parent=19 // pred_region
        %p473 = scmp.lt.s32.totalorder %s28, 1
        %s474 = scalar_select %p473, %s28, 1
        %s475 = scalar_lea.vmem %s5, %s474
      $region40: #{bert_classifier_forward.6} parent=19 // pred_fallthru
        _
      // Predicated region
      $region41: #{bert_classifier_forward.6} parent=19 // pred_check
        %p476 = pneg %p203
      $region42: #{bert_classifier_forward.6} parent=19 // pred_check_branch
        %478 = sbr.rel (%p476) target = $region44
      $region43: #{bert_classifier_forward.6} parent=19 // pred_region
        %p479 = scmp.lt.s32.totalorder %s28, 1
        %s480 = scalar_select %p479, %s28, 1
        %s481 = scalar_lea.vmem %s6, %s480
      $region44: #{bert_classifier_forward.6} parent=19 // pred_fallthru
        _
      // Predicated region
      $region45: #{bert_classifier_forward.6} parent=19 // pred_check
        %p482 = pneg %p229
      $region46: #{bert_classifier_forward.6} parent=19 // pred_check_branch
        %484 = sbr.rel (%p482) target = $region48
      $region47: #{bert_classifier_forward.6} parent=19 // pred_region
        %p485 = scmp.lt.s32.totalorder %s28, 1
        %s486 = scalar_select %p485, %s28, 1
        %s487 = scalar_lea.vmem %s7, %s486
      $region48: #{bert_classifier_forward.6} parent=19 // pred_fallthru
        _
      // Predicated region
      $region49: #{bert_classifier_forward.6} parent=19 // pred_check
        %p488 = pneg %p255
      $region50: #{bert_classifier_forward.6} parent=19 // pred_check_branch
        %490 = sbr.rel (%p488) target = $region52
      $region51: #{bert_classifier_forward.6} parent=19 // pred_region
        %p491 = scmp.lt.s32.totalorder %s28, 1
        %s492 = scalar_select %p491, %s28, 1
        %s493 = smul.addr %s492, 4
        %s494 = smul.addr %s493, 4
        %s495 = scalar_lea.vmem %s8, %s494
      $region52: #{bert_classifier_forward.6} parent=19 // pred_fallthru
        _
      // Predicated region
      $region53: #{bert_classifier_forward.6} parent=19 // pred_check
        %p496 = pneg %p281
      $region54: #{bert_classifier_forward.6} parent=19 // pred_check_branch
        %498 = sbr.rel (%p496) target = $region56
      $region55: #{bert_classifier_forward.6} parent=19 // pred_region
        %p499 = scmp.lt.s32.totalorder %s28, 1
        %s500 = scalar_select %p499, %s28, 1
        %s501 = scalar_lea.vmem %s9, %s500
      $region56: #{bert_classifier_forward.6} parent=19 // pred_fallthru
        _
      // Predicated region
      $region57: #{bert_classifier_forward.6} parent=19 // pred_check
        %p502 = pneg %p307
      $region58: #{bert_classifier_forward.6} parent=19 // pred_check_branch
        %504 = sbr.rel (%p502) target = $region60
      $region59: #{bert_classifier_forward.6} parent=19 // pred_region
        %p505 = scmp.lt.s32.totalorder %s28, 1
        %s506 = scalar_select %p505, %s28, 1
        %s507 = smul.addr %s506, 8
        %s508 = smul.addr %s507, 4
        %s509 = scalar_lea.vmem %s10, %s508
      $region60: #{bert_classifier_forward.6} parent=19 // pred_fallthru
        _
      // Predicated region
      $region61: #{bert_classifier_forward.6} parent=19 // pred_check
        %p510 = pneg %p333
      $region62: #{bert_classifier_forward.6} parent=19 // pred_check_branch
        %512 = sbr.rel (%p510) target = $region64
      $region63: #{bert_classifier_forward.6} parent=19 // pred_region
        %p513 = scmp.lt.s32.totalorder %s28, 1
        %s514 = scalar_select %p513, %s28, 1
        %s515 = scalar_lea.vmem %s11, %s514
      $region64: #{bert_classifier_forward.6} parent=19 // pred_fallthru
        _
      // Predicated region
      $region65: #{bert_classifier_forward.6} parent=19 // pred_check
        %p516 = pneg %p359
      $region66: #{bert_classifier_forward.6} parent=19 // pred_check_branch
        %518 = sbr.rel (%p516) target = $region68
      $region67: #{bert_classifier_forward.6} parent=19 // pred_region
        %p519 = scmp.lt.s32.totalorder %s28, 1
        %s520 = scalar_select %p519, %s28, 1
        %s521 = scalar_lea.vmem %s12, %s520
      $region68: #{bert_classifier_forward.6} parent=19 // pred_fallthru
        _
      // Predicated region
      $region69: #{bert_classifier_forward.6} parent=19 // pred_check
        %p522 = pneg %p385
      $region70: #{bert_classifier_forward.6} parent=19 // pred_check_branch
        %524 = sbr.rel (%p522) target = $region72
      $region71: #{bert_classifier_forward.6} parent=19 // pred_region
        %p525 = scmp.lt.s32.totalorder %s28, 1
        %s526 = scalar_select %p525, %s28, 1
        %s527 = scalar_lea.vmem %s13, %s526
      $region72: #{bert_classifier_forward.6} parent=19 // pred_fallthru
        _
    $region20: #{bert_classifier_forward.6} parent=5 // pred_fallthru
      _
    %p528 = scmp.le.s32.totalorder 1, %s20
    %p529 = scmp.lt.s32.totalorder %s20, 5
    %p530 = pnand %p528, %p529
    %p531 = pneg %p530
    // Predicated region
    $region73: #{bert_classifier_forward.6} parent=5 // pred_check
      _
    $region74: #{bert_classifier_forward.6} parent=5 // pred_check_branch
      %533 = sbr.rel (%p530) target = $region76
    $region75: #{bert_classifier_forward.6} parent=5 // pred_region
      %s534 = ssub.s32 %s20, 1
      %s535 = smul.u32 4, %s29
      %p536 = scmp.lt.s32.totalorder %s535, 7
      %s537 = scalar_select %p536, %s535, 7
      %s538 = smul.addr %s537, 2
      %s539 = scalar_lea.vmem %s0, %s538
      %p540 = pneg %p58
      %p541 = pneg %p55
      %p542 = pneg %p79
      %p543 = pneg %p76
      %p544 = scmp.lt.s32.totalorder %s30, 1
      %s545 = scalar_select %p544, %s30, 1
      %s546 = smul.addr %s545, 4
      %s547 = smul.addr %s546, 4
      %s548 = scalar_lea.vmem %s2, %s547
      %p549 = pneg %p105
      %p550 = pneg %p102
      %p551 = scmp.lt.s32.totalorder %s30, 1
      %s552 = scalar_select %p551, %s30, 1
      %s553 = scalar_lea.vmem %s3, %s552
      %p554 = pneg %p131
      %p555 = pneg %p128
      %p556 = scmp.lt.s32.totalorder %s30, 1
      %s557 = scalar_select %p556, %s30, 1
      %s558 = smul.addr %s557, 4
      %s559 = smul.addr %s558, 4
      %s560 = scalar_lea.vmem %s4, %s559
      %p561 = pneg %p157
      %p562 = pneg %p154
      %p563 = scmp.lt.s32.totalorder %s30, 1
      %s564 = scalar_select %p563, %s30, 1
      %s565 = scalar_lea.vmem %s5, %s564
      %p566 = pneg %p183
      %p567 = pneg %p180
      %p568 = scmp.lt.s32.totalorder %s30, 1
      %s569 = scalar_select %p568, %s30, 1
      %s570 = scalar_lea.vmem %s6, %s569
      %p571 = pneg %p209
      %p572 = pneg %p206
      %p573 = scmp.lt.s32.totalorder %s30, 1
      %s574 = scalar_select %p573, %s30, 1
      %s575 = scalar_lea.vmem %s7, %s574
      %p576 = pneg %p235
      %p577 = pneg %p232
      %p578 = scmp.lt.s32.totalorder %s30, 1
      %s579 = scalar_select %p578, %s30, 1
      %s580 = smul.addr %s579, 4
      %s581 = smul.addr %s580, 4
      %s582 = scalar_lea.vmem %s8, %s581
      %p583 = pneg %p261
      %p584 = pneg %p258
      %p585 = scmp.lt.s32.totalorder %s30, 1
      %s586 = scalar_select %p585, %s30, 1
      %s587 = scalar_lea.vmem %s9, %s586
      %p588 = pneg %p287
      %p589 = pneg %p284
      %p590 = scmp.lt.s32.totalorder %s30, 1
      %s591 = scalar_select %p590, %s30, 1
      %s592 = smul.addr %s591, 8
      %s593 = smul.addr %s592, 4
      %s594 = scalar_lea.vmem %s10, %s593
      %p595 = pneg %p313
      %p596 = pneg %p310
      %p597 = scmp.lt.s32.totalorder %s30, 1
      %s598 = scalar_select %p597, %s30, 1
      %s599 = scalar_lea.vmem %s11, %s598
      %p600 = pneg %p339
      %p601 = pneg %p336
      %p602 = scmp.lt.s32.totalorder %s30, 1
      %s603 = scalar_select %p602, %s30, 1
      %s604 = scalar_lea.vmem %s12, %s603
      %p605 = pneg %p365
      %p606 = pneg %p362
      %p607 = scmp.lt.s32.totalorder %s30, 1
      %s608 = scalar_select %p607, %s30, 1
      %s609 = scalar_lea.vmem %s13, %s608
      %p610 = pneg %p391
      %p611 = pneg %p388
      %p612 = pneg %p417
      %p613 = pneg %p414
      %s614 = smul.u32 4, %s29
      %p615 = scmp.lt.s32.totalorder %s614, 7
      %s616 = scalar_select %p615, %s614, 7
      %s617 = smul.addr %s616, 2
      %s618 = scalar_lea.vmem %s14, %s617
      %s619 = smul.u32 4, %s29
      %p620 = scmp.lt.s32.totalorder %s619, 7
      %s621 = scalar_select %p620, %s619, 7
      %s622 = smul.addr %s621, 2
      %s623 = scalar_lea.vmem %s0, %s622
      %s624 = smul.u32 4, %s29
      %p625 = scmp.lt.s32.totalorder %s30, 1
      %s626 = scalar_select %p625, %s30, 1
      %s627 = smul.addr %s626, 4
      %s628 = smul.addr %s627, 4
      %s629 = scalar_lea.vmem %s2, %s628
      %p630 = scmp.lt.s32.totalorder %s30, 1
      %s631 = scalar_select %p630, %s30, 1
      %s632 = scalar_lea.vmem %s3, %s631
      %p633 = scmp.lt.s32.totalorder %s30, 1
      %s634 = scalar_select %p633, %s30, 1
      %s635 = smul.addr %s634, 4
      %s636 = smul.addr %s635, 4
      %s637 = scalar_lea.vmem %s4, %s636
      %p638 = scmp.lt.s32.totalorder %s30, 1
      %s639 = scalar_select %p638, %s30, 1
      %s640 = scalar_lea.vmem %s5, %s639
      %p641 = scmp.lt.s32.totalorder %s30, 1
      %s642 = scalar_select %p641, %s30, 1
      %s643 = scalar_lea.vmem %s6, %s642
      %p644 = scmp.lt.s32.totalorder %s30, 1
      %s645 = scalar_select %p644, %s30, 1
      %s646 = scalar_lea.vmem %s7, %s645
      %p647 = scmp.lt.s32.totalorder %s30, 1
      %s648 = scalar_select %p647, %s30, 1
      %s649 = smul.addr %s648, 4
      %s650 = smul.addr %s649, 4
      %s651 = scalar_lea.vmem %s8, %s650
      %p652 = scmp.lt.s32.totalorder %s30, 1
      %s653 = scalar_select %p652, %s30, 1
      %s654 = scalar_lea.vmem %s9, %s653
      %p655 = scmp.lt.s32.totalorder %s30, 1
      %s656 = scalar_select %p655, %s30, 1
      %s657 = smul.addr %s656, 8
      %s658 = smul.addr %s657, 4
      %s659 = scalar_lea.vmem %s10, %s658
      %p660 = scmp.lt.s32.totalorder %s30, 1
      %s661 = scalar_select %p660, %s30, 1
      %s662 = scalar_lea.vmem %s11, %s661
      %p663 = scmp.lt.s32.totalorder %s30, 1
      %s664 = scalar_select %p663, %s30, 1
      %s665 = scalar_lea.vmem %s12, %s664
      %p666 = scmp.lt.s32.totalorder %s30, 1
      %s667 = scalar_select %p666, %s30, 1
      %s668 = scalar_lea.vmem %s13, %s667
      %s669 = smul.u32 4, %s29
      %p670 = scmp.lt.s32.totalorder %s669, 7
      %s671 = scalar_select %p670, %s669, 7
      %s672 = smul.addr %s671, 2
      %s673 = scalar_lea.vmem %s14, %s672
      %s674 = smul.u32 4, %s29
      %p676 = scmp.eq.s32.totalorder %s30, 0
      // Predicated region
      $region77: #{bert_classifier_forward.6} parent=75 // pred_check
        %p677 = pneg %p676
      $region78: #{bert_classifier_forward.6} parent=75 // pred_check_branch
        %679 = sbr.rel (%p677) target = $region80
      $region79: #{bert_classifier_forward.6} parent=75 // pred_region
        %v680 = vld [vmem:[%s623] sm:$0x3]
        %v681 = vld [vmem:[%s623 + $0x2] sm:$0x3]
        %v682 = vld [vmem:[%s623 + $0x4] sm:$0x3]
        %v683 = vld [vmem:[%s623 + $0x6] sm:$0x3]
        %vm684 = vcmask 254976
        %685 = vst.msk [vmem:[#allocation2] sm:$0x3] %vm684, %v680
        %686 = vst.msk [vmem:[#allocation2 + $0x2] sm:$0x3] %vm684, %v681
        %687 = vst.msk [vmem:[#allocation2 + $0x4] sm:$0x3] %vm684, %v682
        %688 = vst.msk [vmem:[#allocation2 + $0x6] sm:$0x3] %vm684, %v683
      $region80: #{bert_classifier_forward.6} parent=75 // pred_fallthru
        _
      %v689 = vld [vmem:[%s629] sm:$0xf]
      %v690 = vld [vmem:[%s629 + $0x4] sm:$0xf]
      %v691 = vld [vmem:[%s629 + $0x8] sm:$0xf]
      %v692 = vld [vmem:[%s629 + $0xc] sm:$0xf]
      %v693 = vld [vmem:[%s632] sm:$0x1]
      %v694 = vld [vmem:[%s637] sm:$0xf]
      %v695 = vld [vmem:[%s637 + $0x4] sm:$0xf]
      %v696 = vld [vmem:[%s637 + $0x8] sm:$0xf]
      %v697 = vld [vmem:[%s637 + $0xc] sm:$0xf]
      %v698 = vld [vmem:[%s640] sm:$0x1]
      %v699 = vld [vmem:[%s651] sm:$0xf]
      %v700 = vld [vmem:[%s651 + $0x4] sm:$0xf]
      %v701 = vld [vmem:[%s651 + $0x8] sm:$0xf]
      %v702 = vld [vmem:[%s651 + $0xc] sm:$0xf]
      %v703 = vld [vmem:[%s654] sm:$0x1]
      %v704 = vld [vmem:[%s659] sm:$0xf]
      %v705 = vld [vmem:[%s659 + $0x4] sm:$0xf]
      %v706 = vld [vmem:[%s659 + $0x8] sm:$0xf]
      %v707 = vld [vmem:[%s659 + $0xc] sm:$0xf]
      %v708 = vld [vmem:[%s659 + $0x10] sm:$0xf]
      %v709 = vld [vmem:[%s659 + $0x14] sm:$0xf]
      %v710 = vld [vmem:[%s659 + $0x18] sm:$0xf]
      %v711 = vld [vmem:[%s659 + $0x1c] sm:$0xf]
      %v712 = vld [vmem:[%s662] sm:$0x1]
      %v713 = vld [vmem:[%s643] sm:$0x1]
      %v714 = vld [vmem:[%s646] sm:$0x1]
      %v715 = vld [vmem:[%s665] sm:$0x1]
      %v716 = vld [vmem:[%s668] sm:$0x1]
      %v717 = vld [vmem:[#allocation2] sm:$0x3]
      %v718 = vld [vmem:[%s1] sm:$0x3]
      %v719 = vpack.c.bf16 %v717, %v717
      %v721 = vlaneseq
      %v722 = vshrl.u32 %v721, 7
      %v723 = vsub.s32 0, %v722
      %v724 = vrot.slane %v693, %v723
      %v730 = vunpack.c.l.b16 %v689
      %v731 = vunpack.c.l.b16 %v690
      %v732 = vunpack.c.l.b16 %v691
      %v733 = vunpack.c.l.b16 %v692
      %v734 = vpack.c.b16 %v731, %v730
      %v735 = vpack.c.b16 %v733, %v732
      %vm738 = vcmask 261120
      %v740 = vsel %vm738, %v719, 0
      %742 = vmatprep.subr.bf16.mxu0 0
      %743 = vmatpush1.bf16.msra.mxu0 %v734
      %744 = vmatprep.subr.bf16.mxu0 0
      %745 = vmatpush1.bf16.msra.mxu0 %v735
      %746 = vmatprep.subr.bf16.mxu0 0
      %747 = vmatpush1.bf16.msra.mxu0 0
      %748 = vmatprep.subr.bf16.mxu0 0
      %749 = vmatpush1.bf16.msra.mxu0 0
      %750 = vmatprep.subr.bf16.mxu0 0
      %751 = vmatpush1.bf16.msra.mxu0 0
      %752 = vmatprep.subr.bf16.mxu0 0
      %753 = vmatpush1.bf16.msra.mxu0 0
      %754 = vmatprep.subr.bf16.mxu0 0
      %755 = vmatpush1.bf16.msra.mxu0 0
      %756 = vmatprep.subr.bf16.mxu0 0
      %757 = vmatpush1.bf16.msra.mxu0 0
      %758 = vmatprep.subr.bf16.mxu0 0
      %759 = vmatpush1.bf16.msra.mxu0 0
      %760 = vmatprep.subr.bf16.mxu0 0
      %761 = vmatpush1.bf16.msra.mxu0 0
      %762 = vmatprep.subr.bf16.mxu0 0
      %763 = vmatpush1.bf16.msra.mxu0 0
      %764 = vmatprep.subr.bf16.mxu0 0
      %765 = vmatpush1.bf16.msra.mxu0 0
      %766 = vmatprep.subr.bf16.mxu0 0
      %767 = vmatpush1.bf16.msra.mxu0 0
      %768 = vmatprep.subr.bf16.mxu0 0
      %769 = vmatpush1.bf16.msra.mxu0 0
      %770 = vmatprep.subr.bf16.mxu0 0
      %771 = vmatpush1.bf16.msra.mxu0 0
      %772 = vmatprep.subr.bf16.mxu0 0
      %773 = vmatpush1.bf16.msra.mxu0 0
      %774 = vmatprep.mubr.bf16.mxu0 0
      %775 = vmatmul.mubr.bf16.gmra.mrb[0].mxu0 %v740
      %v776 = vpop.f32.mrb[0].mxu0
      %v777 = vadd.f32 %v724, %v776
      %v778 = vpop.f32.mrb[0].mxu0
      %v779 = vpop.f32.mrb[0].mxu0
      %v780 = vpop.f32.mrb[0].mxu0
      %781 = vdwg.mxu0
      %v782 = vpack.c.bf16 %v777, %v777
      %784 = vrot.lane.b32.xlu0 %v782, 96
      %v785 = vpop.permute.xlu0 %784
      %vm786 = vcmask 64512
      %v788 = vsel %vm786, %v782, 0
      %v791 = vsel %vm786, %v785, 0
      %793 = vmatprep.subr.bf16.mxu0 0
      %794 = vmatpush1.bf16.xpose.msra.mxu0 %v791
      %795 = vmatprep.subr.bf16.mxu0 0
      %796 = vmatpush1.bf16.xpose.msra.mxu0 0
      %797 = vmatprep.subr.bf16.mxu0 0
      %798 = vmatpush1.bf16.xpose.msra.mxu0 0
      %799 = vmatprep.subr.bf16.mxu0 0
      %800 = vmatpush1.bf16.xpose.msra.mxu0 0
      %801 = vmatprep.subr.bf16.mxu0 0
      %802 = vmatpush1.bf16.xpose.msra.mxu0 0
      %803 = vmatprep.subr.bf16.mxu0 0
      %804 = vmatpush1.bf16.xpose.msra.mxu0 0
      %805 = vmatprep.subr.bf16.mxu0 0
      %806 = vmatpush1.bf16.xpose.msra.mxu0 0
      %807 = vmatprep.subr.bf16.mxu0 0
      %808 = vmatpush1.bf16.xpose.msra.mxu0 0
      %809 = vmatprep.subr.bf16.mxu0 0
      %810 = vmatpush1.bf16.xpose.msra.mxu0 0
      %811 = vmatprep.subr.bf16.mxu0 0
      %812 = vmatpush1.bf16.xpose.msra.mxu0 0
      %813 = vmatprep.subr.bf16.mxu0 0
      %814 = vmatpush1.bf16.xpose.msra.mxu0 0
      %815 = vmatprep.subr.bf16.mxu0 0
      %816 = vmatpush1.bf16.xpose.msra.mxu0 0
      %817 = vmatprep.subr.bf16.mxu0 0
      %818 = vmatpush1.bf16.xpose.msra.mxu0 0
      %819 = vmatprep.subr.bf16.mxu0 0
      %820 = vmatpush1.bf16.xpose.msra.mxu0 0
      %821 = vmatprep.subr.bf16.mxu0 0
      %822 = vmatpush1.bf16.xpose.msra.mxu0 0
      %823 = vmatprep.subr.bf16.mxu0 0
      %824 = vmatpush1.bf16.xpose.msra.mxu0 0
      %825 = vmatprep.mubr.bf16.mxu0 0
      %826 = vmatmul.mubr.bf16.gmra.mrb[0].mxu0 %v788
      %v827 = vpop.f32.mrb[0].mxu0
      %v828 = vadd.f32 0.0, %v827
      %v829 = vpop.f32.mrb[0].mxu0
      %v830 = vpop.f32.mrb[0].mxu0
      %v831 = vpop.f32.mrb[0].mxu0
      %832 = vdwg.mxu0
      %v833 = vmul.f32 %v828, 0.35355338
      %v834 = vadd.f32 %v833, %v718
      %vm835 = vcmask 9216
      %v836 = vsel %vm835, %v834, -inf
      %837 = vmax.xlane.f32.xlu0 %v836
      %v838 = vpop.xlane.xlu0 %837
      %v839 = vsub.f32 %v834, %v838
      %v840 = vmul.f32 %v839, 1.442695
      %v841 = vpow.pop %v840
      %v842 = vsel %vm835, %v841, 0.0
      %843 = vadd.xlane.f32.xlu0 %v842
      %v844 = vpop.xlane.xlu0 %843
      %v845 = vrcp.pop %v844
      %v846 = vmul.f32 %v841, %v845
      %v847 = vpack.c.bf16 %v846, %v846
      %848 = vrot.lane.b32.xlu0 %v782, 64
      %v849 = vpop.permute.xlu0 %848
      %vm850 = vcmask 15360
      %v852 = vsel %vm850, %v847, 0
      %vm854 = vcmask 1040384
      %v856 = vsel %vm854, %v849, 0
      %858 = vmatprep.subr.bf16.mxu0 0
      %859 = vmatpush1.bf16.msra.mxu0 %v856
      %860 = vmatprep.subr.bf16.mxu0 0
      %861 = vmatpush1.bf16.msra.mxu0 0
      %862 = vmatprep.subr.bf16.mxu0 0
      %863 = vmatpush1.bf16.msra.mxu0 0
      %864 = vmatprep.subr.bf16.mxu0 0
      %865 = vmatpush1.bf16.msra.mxu0 0
      %866 = vmatprep.subr.bf16.mxu0 0
      %867 = vmatpush1.bf16.msra.mxu0 0
      %868 = vmatprep.subr.bf16.mxu0 0
      %869 = vmatpush1.bf16.msra.mxu0 0
      %870 = vmatprep.subr.bf16.mxu0 0
      %871 = vmatpush1.bf16.msra.mxu0 0
      %872 = vmatprep.subr.bf16.mxu0 0
      %873 = vmatpush1.bf16.msra.mxu0 0
      %874 = vmatprep.subr.bf16.mxu0 0
      %875 = vmatpush1.bf16.msra.mxu0 0
      %876 = vmatprep.subr.bf16.mxu0 0
      %877 = vmatpush1.bf16.msra.mxu0 0
      %878 = vmatprep.subr.bf16.mxu0 0
      %879 = vmatpush1.bf16.msra.mxu0 0
      %880 = vmatprep.subr.bf16.mxu0 0
      %881 = vmatpush1.bf16.msra.mxu0 0
      %882 = vmatprep.subr.bf16.mxu0 0
      %883 = vmatpush1.bf16.msra.mxu0 0
      %884 = vmatprep.subr.bf16.mxu0 0
      %885 = vmatpush1.bf16.msra.mxu0 0
      %886 = vmatprep.subr.bf16.mxu0 0
      %887 = vmatpush1.bf16.msra.mxu0 0
      %888 = vmatprep.subr.bf16.mxu0 0
      %889 = vmatpush1.bf16.msra.mxu0 0
      %890 = vmatprep.mubr.bf16.mxu0 0
      %891 = vmatmul.mubr.bf16.gmra.mrb[0].mxu0 %v852
      %v892 = vpop.f32.mrb[0].mxu0
      %v893 = vadd.f32 0.0, %v892
      %v894 = vpop.f32.mrb[0].mxu0
      %v895 = vpop.f32.mrb[0].mxu0
      %v896 = vpop.f32.mrb[0].mxu0
      %897 = vdwg.mxu0
      %v898 = vpack.c.bf16 %v893, %v893
      %899 = vrot.lane.b32.xlu0 %v782, 120
      %v900 = vpop.permute.xlu0 %899
      %901 = vrot.lane.b32.xlu0 %v782, 88
      %v902 = vpop.permute.xlu0 %901
      %v904 = vsel %vm786, %v900, 0
      %v907 = vsel %vm786, %v902, 0
      %909 = vmatprep.subr.bf16.mxu0 0
      %910 = vmatpush1.bf16.xpose.msra.mxu0 %v907
      %911 = vmatprep.subr.bf16.mxu0 0
      %912 = vmatpush1.bf16.xpose.msra.mxu0 0
      %913 = vmatprep.subr.bf16.mxu0 0
      %914 = vmatpush1.bf16.xpose.msra.mxu0 0
      %915 = vmatprep.subr.bf16.mxu0 0
      %916 = vmatpush1.bf16.xpose.msra.mxu0 0
      %917 = vmatprep.subr.bf16.mxu0 0
      %918 = vmatpush1.bf16.xpose.msra.mxu0 0
      %919 = vmatprep.subr.bf16.mxu0 0
      %920 = vmatpush1.bf16.xpose.msra.mxu0 0
      %921 = vmatprep.subr.bf16.mxu0 0
      %922 = vmatpush1.bf16.xpose.msra.mxu0 0
      %923 = vmatprep.subr.bf16.mxu0 0
      %924 = vmatpush1.bf16.xpose.msra.mxu0 0
      %925 = vmatprep.subr.bf16.mxu0 0
      %926 = vmatpush1.bf16.xpose.msra.mxu0 0
      %927 = vmatprep.subr.bf16.mxu0 0
      %928 = vmatpush1.bf16.xpose.msra.mxu0 0
      %929 = vmatprep.subr.bf16.mxu0 0
      %930 = vmatpush1.bf16.xpose.msra.mxu0 0
      %931 = vmatprep.subr.bf16.mxu0 0
      %932 = vmatpush1.bf16.xpose.msra.mxu0 0
      %933 = vmatprep.subr.bf16.mxu0 0
      %934 = vmatpush1.bf16.xpose.msra.mxu0 0
      %935 = vmatprep.subr.bf16.mxu0 0
      %936 = vmatpush1.bf16.xpose.msra.mxu0 0
      %937 = vmatprep.subr.bf16.mxu0 0
      %938 = vmatpush1.bf16.xpose.msra.mxu0 0
      %939 = vmatprep.subr.bf16.mxu0 0
      %940 = vmatpush1.bf16.xpose.msra.mxu0 0
      %941 = vmatprep.mubr.bf16.mxu0 0
      %942 = vmatmul.mubr.bf16.gmra.mrb[0].mxu0 %v904
      %v943 = vpop.f32.mrb[0].mxu0
      %v944 = vadd.f32 0.0, %v943
      %v945 = vpop.f32.mrb[0].mxu0
      %v946 = vpop.f32.mrb[0].mxu0
      %v947 = vpop.f32.mrb[0].mxu0
      %948 = vdwg.mxu0
      %v949 = vmul.f32 %v944, 0.35355338
      %v950 = vadd.f32 %v949, %v718
      %v951 = vsel %vm835, %v950, -inf
      %952 = vmax.xlane.f32.xlu0 %v951
      %v953 = vpop.xlane.xlu0 %952
      %v954 = vsub.f32 %v950, %v953
      %v955 = vmul.f32 %v954, 1.442695
      %v956 = vpow.pop %v955
      %v957 = vsel %vm835, %v956, 0.0
      %958 = vadd.xlane.f32.xlu0 %v957
      %v959 = vpop.xlane.xlu0 %958
      %v960 = vrcp.pop %v959
      %v961 = vmul.f32 %v956, %v960
      %v962 = vpack.c.bf16 %v961, %v961
      %963 = vrot.lane.b32.xlu0 %v782, 56
      %v964 = vpop.permute.xlu0 %963
      %v966 = vsel %vm850, %v962, 0
      %v969 = vsel %vm854, %v964, 0
      %971 = vmatprep.subr.bf16.mxu0 0
      %972 = vmatpush1.bf16.msra.mxu0 %v969
      %973 = vmatprep.subr.bf16.mxu0 0
      %974 = vmatpush1.bf16.msra.mxu0 0
      %975 = vmatprep.subr.bf16.mxu0 0
      %976 = vmatpush1.bf16.msra.mxu0 0
      %977 = vmatprep.subr.bf16.mxu0 0
      %978 = vmatpush1.bf16.msra.mxu0 0
      %979 = vmatprep.subr.bf16.mxu0 0
      %980 = vmatpush1.bf16.msra.mxu0 0
      %981 = vmatprep.subr.bf16.mxu0 0
      %982 = vmatpush1.bf16.msra.mxu0 0
      %983 = vmatprep.subr.bf16.mxu0 0
      %984 = vmatpush1.bf16.msra.mxu0 0
      %985 = vmatprep.subr.bf16.mxu0 0
      %986 = vmatpush1.bf16.msra.mxu0 0
      %987 = vmatprep.subr.bf16.mxu0 0
      %988 = vmatpush1.bf16.msra.mxu0 0
      %989 = vmatprep.subr.bf16.mxu0 0
      %990 = vmatpush1.bf16.msra.mxu0 0
      %991 = vmatprep.subr.bf16.mxu0 0
      %992 = vmatpush1.bf16.msra.mxu0 0
      %993 = vmatprep.subr.bf16.mxu0 0
      %994 = vmatpush1.bf16.msra.mxu0 0
      %995 = vmatprep.subr.bf16.mxu0 0
      %996 = vmatpush1.bf16.msra.mxu0 0
      %997 = vmatprep.subr.bf16.mxu0 0
      %998 = vmatpush1.bf16.msra.mxu0 0
      %999 = vmatprep.subr.bf16.mxu0 0
      %1000 = vmatpush1.bf16.msra.mxu0 0
      %1001 = vmatprep.subr.bf16.mxu0 0
      %1002 = vmatpush1.bf16.msra.mxu0 0
      %1003 = vmatprep.mubr.bf16.mxu0 0
      %1004 = vmatmul.mubr.bf16.gmra.mrb[0].mxu0 %v966
      %v1005 = vpop.f32.mrb[0].mxu0
      %v1006 = vadd.f32 0.0, %v1005
      %v1007 = vpop.f32.mrb[0].mxu0
      %v1008 = vpop.f32.mrb[0].mxu0
      %v1009 = vpop.f32.mrb[0].mxu0
      %1010 = vdwg.mxu0
      %v1011 = vpack.c.bf16 %v1006, %v1006
      %v1013 = vsel %vm786, %v1011, 0
      %vm1015 = vcmask 1043456
      %v1017 = vsel %vm1015, %v695, 0
      %1019 = vmatprep.subr.bf16.mxu0 0
      %1020 = vmatpush1.bf16.msra.mxu0 %v1017
      %1021 = vmatprep.subr.bf16.mxu0 0
      %1022 = vmatpush1.bf16.msra.mxu0 0
      %1023 = vmatprep.subr.bf16.mxu0 0
      %1024 = vmatpush1.bf16.msra.mxu0 0
      %1025 = vmatprep.subr.bf16.mxu0 0
      %1026 = vmatpush1.bf16.msra.mxu0 0
      %1027 = vmatprep.subr.bf16.mxu0 0
      %1028 = vmatpush1.bf16.msra.mxu0 0
      %1029 = vmatprep.subr.bf16.mxu0 0
      %1030 = vmatpush1.bf16.msra.mxu0 0
      %1031 = vmatprep.subr.bf16.mxu0 0
      %1032 = vmatpush1.bf16.msra.mxu0 0
      %1033 = vmatprep.subr.bf16.mxu0 0
      %1034 = vmatpush1.bf16.msra.mxu0 0
      %1035 = vmatprep.subr.bf16.mxu0 0
      %1036 = vmatpush1.bf16.msra.mxu0 0
      %1037 = vmatprep.subr.bf16.mxu0 0
      %1038 = vmatpush1.bf16.msra.mxu0 0
      %1039 = vmatprep.subr.bf16.mxu0 0
      %1040 = vmatpush1.bf16.msra.mxu0 0
      %1041 = vmatprep.subr.bf16.mxu0 0
      %1042 = vmatpush1.bf16.msra.mxu0 0
      %1043 = vmatprep.subr.bf16.mxu0 0
      %1044 = vmatpush1.bf16.msra.mxu0 0
      %1045 = vmatprep.subr.bf16.mxu0 0
      %1046 = vmatpush1.bf16.msra.mxu0 0
      %1047 = vmatprep.subr.bf16.mxu0 0
      %1048 = vmatpush1.bf16.msra.mxu0 0
      %1049 = vmatprep.subr.bf16.mxu0 0
      %1050 = vmatpush1.bf16.msra.mxu0 0
      %1051 = vmatprep.mubr.bf16.mxu0 0
      %1052 = vmatmul.mubr.bf16.gmra.mrb[0].mxu0 %v1013
      %v1053 = vpop.f32.mrb[0].mxu0
      %v1054 = vadd.f32 0.0, %v1053
      %v1055 = vpop.f32.mrb[0].mxu0
      %v1056 = vpop.f32.mrb[0].mxu0
      %v1057 = vpop.f32.mrb[0].mxu0
      %1058 = vdwg.mxu0
      %v1060 = vsel %vm786, %v898, 0
      %v1063 = vsel %vm1015, %v694, 0
      %1065 = vmatprep.subr.bf16.mxu0 0
      %1066 = vmatpush1.bf16.msra.mxu0 %v1063
      %1067 = vmatprep.subr.bf16.mxu0 0
      %1068 = vmatpush1.bf16.msra.mxu0 0
      %1069 = vmatprep.subr.bf16.mxu0 0
      %1070 = vmatpush1.bf16.msra.mxu0 0
      %1071 = vmatprep.subr.bf16.mxu0 0
      %1072 = vmatpush1.bf16.msra.mxu0 0
      %1073 = vmatprep.subr.bf16.mxu0 0
      %1074 = vmatpush1.bf16.msra.mxu0 0
      %1075 = vmatprep.subr.bf16.mxu0 0
      %1076 = vmatpush1.bf16.msra.mxu0 0
      %1077 = vmatprep.subr.bf16.mxu0 0
      %1078 = vmatpush1.bf16.msra.mxu0 0
      %1079 = vmatprep.subr.bf16.mxu0 0
      %1080 = vmatpush1.bf16.msra.mxu0 0
      %1081 = vmatprep.subr.bf16.mxu0 0
      %1082 = vmatpush1.bf16.msra.mxu0 0
      %1083 = vmatprep.subr.bf16.mxu0 0
      %1084 = vmatpush1.bf16.msra.mxu0 0
      %1085 = vmatprep.subr.bf16.mxu0 0
      %1086 = vmatpush1.bf16.msra.mxu0 0
      %1087 = vmatprep.subr.bf16.mxu0 0
      %1088 = vmatpush1.bf16.msra.mxu0 0
      %1089 = vmatprep.subr.bf16.mxu0 0
      %1090 = vmatpush1.bf16.msra.mxu0 0
      %1091 = vmatprep.subr.bf16.mxu0 0
      %1092 = vmatpush1.bf16.msra.mxu0 0
      %1093 = vmatprep.subr.bf16.mxu0 0
      %1094 = vmatpush1.bf16.msra.mxu0 0
      %1095 = vmatprep.subr.bf16.mxu0 0
      %1096 = vmatpush1.bf16.msra.mxu0 0
      %1097 = vmatprep.mubr.bf16.mxu0 0
      %1098 = vmatmul.mubr.bf16.gmra.mrb[0].mxu0 %v1060
      %v1099 = vpop.f32.mrb[0].mxu0
      %v1100 = vadd.f32 %v1054, %v1099
      %v1101 = vpop.f32.mrb[0].mxu0
      %v1102 = vpop.f32.mrb[0].mxu0
      %v1103 = vpop.f32.mrb[0].mxu0
      %1104 = vdwg.mxu0
      %1105 = vrot.lane.b32.xlu0 %v782, 112
      %v1106 = vpop.permute.xlu0 %1105
      %1107 = vrot.lane.b32.xlu0 %v782, 80
      %v1108 = vpop.permute.xlu0 %1107
      %v1110 = vsel %vm786, %v1106, 0
      %v1113 = vsel %vm786, %v1108, 0
      %1115 = vmatprep.subr.bf16.mxu0 0
      %1116 = vmatpush1.bf16.xpose.msra.mxu0 %v1113
      %1117 = vmatprep.subr.bf16.mxu0 0
      %1118 = vmatpush1.bf16.xpose.msra.mxu0 0
      %1119 = vmatprep.subr.bf16.mxu0 0
      %1120 = vmatpush1.bf16.xpose.msra.mxu0 0
      %1121 = vmatprep.subr.bf16.mxu0 0
      %1122 = vmatpush1.bf16.xpose.msra.mxu0 0
      %1123 = vmatprep.subr.bf16.mxu0 0
      %1124 = vmatpush1.bf16.xpose.msra.mxu0 0
      %1125 = vmatprep.subr.bf16.mxu0 0
      %1126 = vmatpush1.bf16.xpose.msra.mxu0 0
      %1127 = vmatprep.subr.bf16.mxu0 0
      %1128 = vmatpush1.bf16.xpose.msra.mxu0 0
      %1129 = vmatprep.subr.bf16.mxu0 0
      %1130 = vmatpush1.bf16.xpose.msra.mxu0 0
      %1131 = vmatprep.subr.bf16.mxu0 0
      %1132 = vmatpush1.bf16.xpose.msra.mxu0 0
      %1133 = vmatprep.subr.bf16.mxu0 0
      %1134 = vmatpush1.bf16.xpose.msra.mxu0 0
      %1135 = vmatprep.subr.bf16.mxu0 0
      %1136 = vmatpush1.bf16.xpose.msra.mxu0 0
      %1137 = vmatprep.subr.bf16.mxu0 0
      %1138 = vmatpush1.bf16.xpose.msra.mxu0 0
      %1139 = vmatprep.subr.bf16.mxu0 0
      %1140 = vmatpush1.bf16.xpose.msra.mxu0 0
      %1141 = vmatprep.subr.bf16.mxu0 0
      %1142 = vmatpush1.bf16.xpose.msra.mxu0 0
      %1143 = vmatprep.subr.bf16.mxu0 0
      %1144 = vmatpush1.bf16.xpose.msra.mxu0 0
      %1145 = vmatprep.subr.bf16.mxu0 0
      %1146 = vmatpush1.bf16.xpose.msra.mxu0 0
      %1147 = vmatprep.mubr.bf16.mxu0 0
      %1148 = vmatmul.mubr.bf16.gmra.mrb[0].mxu0 %v1110
      %v1149 = vpop.f32.mrb[0].mxu0
      %v1150 = vadd.f32 0.0, %v1149
      %v1151 = vpop.f32.mrb[0].mxu0
      %v1152 = vpop.f32.mrb[0].mxu0
      %v1153 = vpop.f32.mrb[0].mxu0
      %1154 = vdwg.mxu0
      %v1155 = vmul.f32 %v1150, 0.35355338
      %v1156 = vadd.f32 %v1155, %v718
      %v1157 = vsel %vm835, %v1156, -inf
      %1158 = vmax.xlane.f32.xlu0 %v1157
      %v1159 = vpop.xlane.xlu0 %1158
      %v1160 = vsub.f32 %v1156, %v1159
      %v1161 = vmul.f32 %v1160, 1.442695
      %v1162 = vpow.pop %v1161
      %v1163 = vsel %vm835, %v1162, 0.0
      %1164 = vadd.xlane.f32.xlu0 %v1163
      %v1165 = vpop.xlane.xlu0 %1164
      %v1166 = vrcp.pop %v1165
      %v1167 = vmul.f32 %v1162, %v1166
      %v1168 = vpack.c.bf16 %v1167, %v1167
      %1169 = vrot.lane.b32.xlu0 %v782, 48
      %v1170 = vpop.permute.xlu0 %1169
      %v1172 = vsel %vm850, %v1168, 0
      %v1175 = vsel %vm854, %v1170, 0
      %1177 = vmatprep.subr.bf16.mxu0 0
      %1178 = vmatpush1.bf16.msra.mxu0 %v1175
      %1179 = vmatprep.subr.bf16.mxu0 0
      %1180 = vmatpush1.bf16.msra.mxu0 0
      %1181 = vmatprep.subr.bf16.mxu0 0
      %1182 = vmatpush1.bf16.msra.mxu0 0
      %1183 = vmatprep.subr.bf16.mxu0 0
      %1184 = vmatpush1.bf16.msra.mxu0 0
      %1185 = vmatprep.subr.bf16.mxu0 0
      %1186 = vmatpush1.bf16.msra.mxu0 0
      %1187 = vmatprep.subr.bf16.mxu0 0
      %1188 = vmatpush1.bf16.msra.mxu0 0
      %1189 = vmatprep.subr.bf16.mxu0 0
      %1190 = vmatpush1.bf16.msra.mxu0 0
      %1191 = vmatprep.subr.bf16.mxu0 0
      %1192 = vmatpush1.bf16.msra.mxu0 0
      %1193 = vmatprep.subr.bf16.mxu0 0
      %1194 = vmatpush1.bf16.msra.mxu0 0
      %1195 = vmatprep.subr.bf16.mxu0 0
      %1196 = vmatpush1.bf16.msra.mxu0 0
      %1197 = vmatprep.subr.bf16.mxu0 0
      %1198 = vmatpush1.bf16.msra.mxu0 0
      %1199 = vmatprep.subr.bf16.mxu0 0
      %1200 = vmatpush1.bf16.msra.mxu0 0
      %1201 = vmatprep.subr.bf16.mxu0 0
      %1202 = vmatpush1.bf16.msra.mxu0 0
      %1203 = vmatprep.subr.bf16.mxu0 0
      %1204 = vmatpush1.bf16.msra.mxu0 0
      %1205 = vmatprep.subr.bf16.mxu0 0
      %1206 = vmatpush1.bf16.msra.mxu0 0
      %1207 = vmatprep.subr.bf16.mxu0 0
      %1208 = vmatpush1.bf16.msra.mxu0 0
      %1209 = vmatprep.mubr.bf16.mxu0 0
      %1210 = vmatmul.mubr.bf16.gmra.mrb[0].mxu0 %v1172
      %v1211 = vpop.f32.mrb[0].mxu0
      %v1212 = vadd.f32 0.0, %v1211
      %v1213 = vpop.f32.mrb[0].mxu0
      %v1214 = vpop.f32.mrb[0].mxu0
      %v1215 = vpop.f32.mrb[0].mxu0
      %1216 = vdwg.mxu0
      %v1217 = vpack.c.bf16 %v1212, %v1212
      %v1219 = vsel %vm786, %v1217, 0
      %v1222 = vsel %vm1015, %v696, 0
      %1224 = vmatprep.subr.bf16.mxu0 0
      %1225 = vmatpush1.bf16.msra.mxu0 %v1222
      %1226 = vmatprep.subr.bf16.mxu0 0
      %1227 = vmatpush1.bf16.msra.mxu0 0
      %1228 = vmatprep.subr.bf16.mxu0 0
      %1229 = vmatpush1.bf16.msra.mxu0 0
      %1230 = vmatprep.subr.bf16.mxu0 0
      %1231 = vmatpush1.bf16.msra.mxu0 0
      %1232 = vmatprep.subr.bf16.mxu0 0
      %1233 = vmatpush1.bf16.msra.mxu0 0
      %1234 = vmatprep.subr.bf16.mxu0 0
      %1235 = vmatpush1.bf16.msra.mxu0 0
      %1236 = vmatprep.subr.bf16.mxu0 0
      %1237 = vmatpush1.bf16.msra.mxu0 0
      %1238 = vmatprep.subr.bf16.mxu0 0
      %1239 = vmatpush1.bf16.msra.mxu0 0
      %1240 = vmatprep.subr.bf16.mxu0 0
      %1241 = vmatpush1.bf16.msra.mxu0 0
      %1242 = vmatprep.subr.bf16.mxu0 0
      %1243 = vmatpush1.bf16.msra.mxu0 0
      %1244 = vmatprep.subr.bf16.mxu0 0
      %1245 = vmatpush1.bf16.msra.mxu0 0
      %1246 = vmatprep.subr.bf16.mxu0 0
      %1247 = vmatpush1.bf16.msra.mxu0 0
      %1248 = vmatprep.subr.bf16.mxu0 0
      %1249 = vmatpush1.bf16.msra.mxu0 0
      %1250 = vmatprep.subr.bf16.mxu0 0
      %1251 = vmatpush1.bf16.msra.mxu0 0
      %1252 = vmatprep.subr.bf16.mxu0 0
      %1253 = vmatpush1.bf16.msra.mxu0 0
      %1254 = vmatprep.subr.bf16.mxu0 0
      %1255 = vmatpush1.bf16.msra.mxu0 0
      %1256 = vmatprep.mubr.bf16.mxu0 0
      %1257 = vmatmul.mubr.bf16.gmra.mrb[0].mxu0 %v1219
      %v1258 = vpop.f32.mrb[0].mxu0
      %v1259 = vadd.f32 0.0, %v1258
      %v1260 = vpop.f32.mrb[0].mxu0
      %v1261 = vpop.f32.mrb[0].mxu0
      %v1262 = vpop.f32.mrb[0].mxu0
      %1263 = vdwg.mxu0
      %v1264 = vadd.f32 %v1100, %v1259
      %1265 = vrot.lane.b32.xlu0 %v782, 104
      %v1266 = vpop.permute.xlu0 %1265
      %1267 = vrot.lane.b32.xlu0 %v782, 72
      %v1268 = vpop.permute.xlu0 %1267
      %v1270 = vsel %vm786, %v1266, 0
      %v1273 = vsel %vm786, %v1268, 0
      %1275 = vmatprep.subr.bf16.mxu0 0
      %1276 = vmatpush1.bf16.xpose.msra.mxu0 %v1273
      %1277 = vmatprep.subr.bf16.mxu0 0
      %1278 = vmatpush1.bf16.xpose.msra.mxu0 0
      %1279 = vmatprep.subr.bf16.mxu0 0
      %1280 = vmatpush1.bf16.xpose.msra.mxu0 0
      %1281 = vmatprep.subr.bf16.mxu0 0
      %1282 = vmatpush1.bf16.xpose.msra.mxu0 0
      %1283 = vmatprep.subr.bf16.mxu0 0
      %1284 = vmatpush1.bf16.xpose.msra.mxu0 0
      %1285 = vmatprep.subr.bf16.mxu0 0
      %1286 = vmatpush1.bf16.xpose.msra.mxu0 0
      %1287 = vmatprep.subr.bf16.mxu0 0
      %1288 = vmatpush1.bf16.xpose.msra.mxu0 0
      %1289 = vmatprep.subr.bf16.mxu0 0
      %1290 = vmatpush1.bf16.xpose.msra.mxu0 0
      %1291 = vmatprep.subr.bf16.mxu0 0
      %1292 = vmatpush1.bf16.xpose.msra.mxu0 0
      %1293 = vmatprep.subr.bf16.mxu0 0
      %1294 = vmatpush1.bf16.xpose.msra.mxu0 0
      %1295 = vmatprep.subr.bf16.mxu0 0
      %1296 = vmatpush1.bf16.xpose.msra.mxu0 0
      %1297 = vmatprep.subr.bf16.mxu0 0
      %1298 = vmatpush1.bf16.xpose.msra.mxu0 0
      %1299 = vmatprep.subr.bf16.mxu0 0
      %1300 = vmatpush1.bf16.xpose.msra.mxu0 0
      %1301 = vmatprep.subr.bf16.mxu0 0
      %1302 = vmatpush1.bf16.xpose.msra.mxu0 0
      %1303 = vmatprep.subr.bf16.mxu0 0
      %1304 = vmatpush1.bf16.xpose.msra.mxu0 0
      %1305 = vmatprep.subr.bf16.mxu0 0
      %1306 = vmatpush1.bf16.xpose.msra.mxu0 0
      %1307 = vmatprep.mubr.bf16.mxu0 0
      %1308 = vmatmul.mubr.bf16.gmra.mrb[0].mxu0 %v1270
      %v1309 = vpop.f32.mrb[0].mxu0
      %v1310 = vadd.f32 0.0, %v1309
      %v1311 = vpop.f32.mrb[0].mxu0
      %v1312 = vpop.f32.mrb[0].mxu0
      %v1313 = vpop.f32.mrb[0].mxu0
      %1314 = vdwg.mxu0
      %v1315 = vmul.f32 %v1310, 0.35355338
      %v1316 = vadd.f32 %v1315, %v718
      %v1317 = vsel %vm835, %v1316, -inf
      %1318 = vmax.xlane.f32.xlu0 %v1317
      %v1319 = vpop.xlane.xlu0 %1318
      %v1320 = vsub.f32 %v1316, %v1319
      %v1321 = vmul.f32 %v1320, 1.442695
      %v1322 = vpow.pop %v1321
      %v1323 = vsel %vm835, %v1322, 0.0
      %1324 = vadd.xlane.f32.xlu0 %v1323
      %v1325 = vpop.xlane.xlu0 %1324
      %v1326 = vrcp.pop %v1325
      %v1327 = vmul.f32 %v1322, %v1326
      %v1328 = vpack.c.bf16 %v1327, %v1327
      %1329 = vrot.lane.b32.xlu0 %v782, 40
      %v1330 = vpop.permute.xlu0 %1329
      %v1332 = vsel %vm850, %v1328, 0
      %v1335 = vsel %vm854, %v1330, 0
      %1337 = vmatprep.subr.bf16.mxu0 0
      %1338 = vmatpush1.bf16.msra.mxu0 %v1335
      %1339 = vmatprep.subr.bf16.mxu0 0
      %1340 = vmatpush1.bf16.msra.mxu0 0
      %1341 = vmatprep.subr.bf16.mxu0 0
      %1342 = vmatpush1.bf16.msra.mxu0 0
      %1343 = vmatprep.subr.bf16.mxu0 0
      %1344 = vmatpush1.bf16.msra.mxu0 0
      %1345 = vmatprep.subr.bf16.mxu0 0
      %1346 = vmatpush1.bf16.msra.mxu0 0
      %1347 = vmatprep.subr.bf16.mxu0 0
      %1348 = vmatpush1.bf16.msra.mxu0 0
      %1349 = vmatprep.subr.bf16.mxu0 0
      %1350 = vmatpush1.bf16.msra.mxu0 0
      %1351 = vmatprep.subr.bf16.mxu0 0
      %1352 = vmatpush1.bf16.msra.mxu0 0
      %1353 = vmatprep.subr.bf16.mxu0 0
      %1354 = vmatpush1.bf16.msra.mxu0 0
      %1355 = vmatprep.subr.bf16.mxu0 0
      %1356 = vmatpush1.bf16.msra.mxu0 0
      %1357 = vmatprep.subr.bf16.mxu0 0
      %1358 = vmatpush1.bf16.msra.mxu0 0
      %1359 = vmatprep.subr.bf16.mxu0 0
      %1360 = vmatpush1.bf16.msra.mxu0 0
      %1361 = vmatprep.subr.bf16.mxu0 0
      %1362 = vmatpush1.bf16.msra.mxu0 0
      %1363 = vmatprep.subr.bf16.mxu0 0
      %1364 = vmatpush1.bf16.msra.mxu0 0
      %1365 = vmatprep.subr.bf16.mxu0 0
      %1366 = vmatpush1.bf16.msra.mxu0 0
      %1367 = vmatprep.subr.bf16.mxu0 0
      %1368 = vmatpush1.bf16.msra.mxu0 0
      %1369 = vmatprep.mubr.bf16.mxu0 0
      %1370 = vmatmul.mubr.bf16.gmra.mrb[0].mxu0 %v1332
      %v1371 = vpop.f32.mrb[0].mxu0
      %v1372 = vadd.f32 0.0, %v1371
      %v1373 = vpop.f32.mrb[0].mxu0
      %v1374 = vpop.f32.mrb[0].mxu0
      %v1375 = vpop.f32.mrb[0].mxu0
      %1376 = vdwg.mxu0
      %v1377 = vpack.c.bf16 %v1372, %v1372
      %v1379 = vsel %vm786, %v1377, 0
      %v1382 = vsel %vm1015, %v697, 0
      %1384 = vmatprep.subr.bf16.mxu0 0
      %1385 = vmatpush1.bf16.msra.mxu0 %v1382
      %1386 = vmatprep.subr.bf16.mxu0 0
      %1387 = vmatpush1.bf16.msra.mxu0 0
      %1388 = vmatprep.subr.bf16.mxu0 0
      %1389 = vmatpush1.bf16.msra.mxu0 0
      %1390 = vmatprep.subr.bf16.mxu0 0
      %1391 = vmatpush1.bf16.msra.mxu0 0
      %1392 = vmatprep.subr.bf16.mxu0 0
      %1393 = vmatpush1.bf16.msra.mxu0 0
      %1394 = vmatprep.subr.bf16.mxu0 0
      %1395 = vmatpush1.bf16.msra.mxu0 0
      %1396 = vmatprep.subr.bf16.mxu0 0
      %1397 = vmatpush1.bf16.msra.mxu0 0
      %1398 = vmatprep.subr.bf16.mxu0 0
      %1399 = vmatpush1.bf16.msra.mxu0 0
      %1400 = vmatprep.subr.bf16.mxu0 0
      %1401 = vmatpush1.bf16.msra.mxu0 0
      %1402 = vmatprep.subr.bf16.mxu0 0
      %1403 = vmatpush1.bf16.msra.mxu0 0
      %1404 = vmatprep.subr.bf16.mxu0 0
      %1405 = vmatpush1.bf16.msra.mxu0 0
      %1406 = vmatprep.subr.bf16.mxu0 0
      %1407 = vmatpush1.bf16.msra.mxu0 0
      %1408 = vmatprep.subr.bf16.mxu0 0
      %1409 = vmatpush1.bf16.msra.mxu0 0
      %1410 = vmatprep.subr.bf16.mxu0 0
      %1411 = vmatpush1.bf16.msra.mxu0 0
      %1412 = vmatprep.subr.bf16.mxu0 0
      %1413 = vmatpush1.bf16.msra.mxu0 0
      %1414 = vmatprep.subr.bf16.mxu0 0
      %1415 = vmatpush1.bf16.msra.mxu0 0
      %1416 = vmatprep.mubr.bf16.mxu0 0
      %1417 = vmatmul.mubr.bf16.gmra.mrb[0].mxu0 %v1379
      %v1418 = vpop.f32.mrb[0].mxu0
      %v1419 = vadd.f32 0.0, %v1418
      %v1420 = vpop.f32.mrb[0].mxu0
      %v1421 = vpop.f32.mrb[0].mxu0
      %v1422 = vpop.f32.mrb[0].mxu0
      %1423 = vdwg.mxu0
      %v1424 = vadd.f32 %v1264, %v1419
      %v1426 = vlaneseq
      %v1427 = vshrl.u32 %v1426, 7
      %v1428 = vsub.s32 0, %v1427
      %v1429 = vrot.slane %v698, %v1428
      %v1431 = vadd.f32 %v1424, %v1429
      %v1432 = vadd.f32 %v717, %v1431
      %vm1433 = vcmask 254976
      %v1434 = vsel %vm1433, %v1432, 0.0
      %1435 = vadd.xlane.f32.xlu0 %v1434
      %v1436 = vpop.xlane.xlu0 %1435
      %v1437 = vrcp.pop 32.0
      %v1438 = vmul.f32 %v1436, %v1437
      %v1439 = vsub.f32 %v1432, %v1438
      %v1440 = vmul.f32 %v1439, %v1439
      %v1441 = vsel %vm1433, %v1440, 0.0
      %1442 = vadd.xlane.f32.xlu0 %v1441
      %v1443 = vpop.xlane.xlu0 %1442
      %v1444 = vmul.f32 %v1443, %v1437
      %v1445 = vadd.f32 %v1444, 1e-05
      %v1446 = vrsqrt.pop %v1445
      %v1447 = vmul.f32 %v1439, %v1446
      %v1449 = vlaneseq
      %v1450 = vshrl.u32 %v1449, 7
      %v1451 = vsub.s32 0, %v1450
      %v1452 = vrot.slane %v713, %v1451
      %v1454 = vmul.f32 %v1447, %v1452
      %v1456 = vlaneseq
      %v1457 = vshrl.u32 %v1456, 7
      %v1458 = vsub.s32 0, %v1457
      %v1459 = vrot.slane %v714, %v1458
      %v1461 = vadd.f32 %v1454, %v1459
      %v1462 = vpack.c.bf16 %v1461, %v1461
      %v1464 = vlaneseq
      %v1465 = vshrl.u32 %v1464, 7
      %v1466 = vsub.s32 0, %v1465
      %v1467 = vrot.slane %v703, %v1466
      %v1473 = vunpack.c.l.b16 %v699
      %v1474 = vunpack.c.l.b16 %v700
      %v1475 = vunpack.c.l.b16 %v701
      %v1476 = vunpack.c.l.b16 %v702
      %v1477 = vpack.c.b16 %v1474, %v1473
      %v1478 = vpack.c.b16 %v1476, %v1475
      %v1482 = vsel %vm738, %v1462, 0
      %1484 = vmatprep.subr.bf16.mxu0 0
      %1485 = vmatpush1.bf16.msra.mxu0 %v1477
      %1486 = vmatprep.subr.bf16.mxu0 0
      %1487 = vmatpush1.bf16.msra.mxu0 %v1478
      %1488 = vmatprep.subr.bf16.mxu0 0
      %1489 = vmatpush1.bf16.msra.mxu0 0
      %1490 = vmatprep.subr.bf16.mxu0 0
      %1491 = vmatpush1.bf16.msra.mxu0 0
      %1492 = vmatprep.subr.bf16.mxu0 0
      %1493 = vmatpush1.bf16.msra.mxu0 0
      %1494 = vmatprep.subr.bf16.mxu0 0
      %1495 = vmatpush1.bf16.msra.mxu0 0
      %1496 = vmatprep.subr.bf16.mxu0 0
      %1497 = vmatpush1.bf16.msra.mxu0 0
      %1498 = vmatprep.subr.bf16.mxu0 0
      %1499 = vmatpush1.bf16.msra.mxu0 0
      %1500 = vmatprep.subr.bf16.mxu0 0
      %1501 = vmatpush1.bf16.msra.mxu0 0
      %1502 = vmatprep.subr.bf16.mxu0 0
      %1503 = vmatpush1.bf16.msra.mxu0 0
      %1504 = vmatprep.subr.bf16.mxu0 0
      %1505 = vmatpush1.bf16.msra.mxu0 0
      %1506 = vmatprep.subr.bf16.mxu0 0
      %1507 = vmatpush1.bf16.msra.mxu0 0
      %1508 = vmatprep.subr.bf16.mxu0 0
      %1509 = vmatpush1.bf16.msra.mxu0 0
      %1510 = vmatprep.subr.bf16.mxu0 0
      %1511 = vmatpush1.bf16.msra.mxu0 0
      %1512 = vmatprep.subr.bf16.mxu0 0
      %1513 = vmatpush1.bf16.msra.mxu0 0
      %1514 = vmatprep.subr.bf16.mxu0 0
      %1515 = vmatpush1.bf16.msra.mxu0 0
      %1516 = vmatprep.mubr.bf16.mxu0 0
      %1517 = vmatmul.mubr.bf16.gmra.mrb[0].mxu0 %v1482
      %v1518 = vpop.f32.mrb[0].mxu0
      %v1519 = vadd.f32 %v1467, %v1518
      %v1520 = vpop.f32.mrb[0].mxu0
      %v1521 = vpop.f32.mrb[0].mxu0
      %v1522 = vpop.f32.mrb[0].mxu0
      %1523 = vdwg.mxu0
      %v1524 = vmax.f32 %v1519, 0.0
      %v1525 = vpack.c.bf16 %v1524, %v1524
      %v1527 = vlaneseq
      %v1528 = vshrl.u32 %v1527, 7
      %v1529 = vsub.s32 0, %v1528
      %v1530 = vrot.slane %v712, %v1529
      %v1540 = vunpack.c.l.b16 %v704
      %v1541 = vunpack.c.l.b16 %v705
      %v1542 = vunpack.c.l.b16 %v706
      %v1543 = vunpack.c.l.b16 %v707
      %v1544 = vunpack.c.l.b16 %v708
      %v1545 = vunpack.c.l.b16 %v709
      %v1546 = vunpack.c.l.b16 %v710
      %v1547 = vunpack.c.l.b16 %v711
      %v1548 = vpack.c.b16 %v1541, %v1540
      %v1549 = vpack.c.b16 %v1543, %v1542
      %v1550 = vpack.c.b16 %v1545, %v1544
      %v1551 = vpack.c.b16 %v1547, %v1546
      %vm1556 = vcmask 523264
      %v1558 = vsel %vm1556, %v1525, 0
      %1560 = vmatprep.subr.bf16.mxu0 0
      %1561 = vmatpush1.bf16.msra.mxu0 %v1548
      %1562 = vmatprep.subr.bf16.mxu0 0
      %1563 = vmatpush1.bf16.msra.mxu0 %v1549
      %1564 = vmatprep.subr.bf16.mxu0 0
      %1565 = vmatpush1.bf16.msra.mxu0 %v1550
      %1566 = vmatprep.subr.bf16.mxu0 0
      %1567 = vmatpush1.bf16.msra.mxu0 %v1551
      %1568 = vmatprep.subr.bf16.mxu0 0
      %1569 = vmatpush1.bf16.msra.mxu0 0
      %1570 = vmatprep.subr.bf16.mxu0 0
      %1571 = vmatpush1.bf16.msra.mxu0 0
      %1572 = vmatprep.subr.bf16.mxu0 0
      %1573 = vmatpush1.bf16.msra.mxu0 0
      %1574 = vmatprep.subr.bf16.mxu0 0
      %1575 = vmatpush1.bf16.msra.mxu0 0
      %1576 = vmatprep.subr.bf16.mxu0 0
      %1577 = vmatpush1.bf16.msra.mxu0 0
      %1578 = vmatprep.subr.bf16.mxu0 0
      %1579 = vmatpush1.bf16.msra.mxu0 0
      %1580 = vmatprep.subr.bf16.mxu0 0
      %1581 = vmatpush1.bf16.msra.mxu0 0
      %1582 = vmatprep.subr.bf16.mxu0 0
      %1583 = vmatpush1.bf16.msra.mxu0 0
      %1584 = vmatprep.subr.bf16.mxu0 0
      %1585 = vmatpush1.bf16.msra.mxu0 0
      %1586 = vmatprep.subr.bf16.mxu0 0
      %1587 = vmatpush1.bf16.msra.mxu0 0
      %1588 = vmatprep.subr.bf16.mxu0 0
      %1589 = vmatpush1.bf16.msra.mxu0 0
      %1590 = vmatprep.subr.bf16.mxu0 0
      %1591 = vmatpush1.bf16.msra.mxu0 0
      %1592 = vmatprep.mubr.bf16.mxu0 0
      %1593 = vmatmul.mubr.bf16.gmra.mrb[0].mxu0 %v1558
      %v1594 = vpop.f32.mrb[0].mxu0
      %v1595 = vadd.f32 %v1530, %v1594
      %v1596 = vpop.f32.mrb[0].mxu0
      %v1597 = vpop.f32.mrb[0].mxu0
      %v1598 = vpop.f32.mrb[0].mxu0
      %1599 = vdwg.mxu0
      %v1600 = vadd.f32 %v1461, %v1595
      %v1601 = vsel %vm1433, %v1600, 0.0
      %1602 = vadd.xlane.f32.xlu0 %v1601
      %v1603 = vpop.xlane.xlu0 %1602
      %v1604 = vmul.f32 %v1603, %v1437
      %v1605 = vsub.f32 %v1600, %v1604
      %v1606 = vmul.f32 %v1605, %v1605
      %v1607 = vsel %vm1433, %v1606, 0.0
      %1608 = vadd.xlane.f32.xlu0 %v1607
      %v1609 = vpop.xlane.xlu0 %1608
      %v1610 = vmul.f32 %v1609, %v1437
      %v1611 = vadd.f32 %v1610, 1e-05
      %v1612 = vrsqrt.pop %v1611
      %v1613 = vmul.f32 %v1605, %v1612
      %v1615 = vlaneseq
      %v1616 = vshrl.u32 %v1615, 7
      %v1617 = vsub.s32 0, %v1616
      %v1618 = vrot.slane %v715, %v1617
      %v1620 = vmul.f32 %v1613, %v1618
      %v1622 = vlaneseq
      %v1623 = vshrl.u32 %v1622, 7
      %v1624 = vsub.s32 0, %v1623
      %v1625 = vrot.slane %v716, %v1624
      %v1627 = vadd.f32 %v1620, %v1625
      %1628 = vst.msk [vmem:[#allocation2] sm:$0x3] %vm1433, %v1627
      %s1629 = scalar_lea.vmem [#allocation2], 2
      %v1630 = vld [vmem:[%s1629] sm:$0x3]
      %v1631 = vld [vmem:[%s1] sm:$0x3]
      %v1632 = vpack.c.bf16 %v1630, %v1630
      %v1634 = vsel %vm738, %v1632, 0
      %1636 = vmatprep.subr.bf16.mxu0 0
      %1637 = vmatpush1.bf16.msra.mxu0 %v734
      %1638 = vmatprep.subr.bf16.mxu0 0
      %1639 = vmatpush1.bf16.msra.mxu0 %v735
      %1640 = vmatprep.subr.bf16.mxu0 0
      %1641 = vmatpush1.bf16.msra.mxu0 0
      %1642 = vmatprep.subr.bf16.mxu0 0
      %1643 = vmatpush1.bf16.msra.mxu0 0
      %1644 = vmatprep.subr.bf16.mxu0 0
      %1645 = vmatpush1.bf16.msra.mxu0 0
      %1646 = vmatprep.subr.bf16.mxu0 0
      %1647 = vmatpush1.bf16.msra.mxu0 0
      %1648 = vmatprep.subr.bf16.mxu0 0
      %1649 = vmatpush1.bf16.msra.mxu0 0
      %1650 = vmatprep.subr.bf16.mxu0 0
      %1651 = vmatpush1.bf16.msra.mxu0 0
      %1652 = vmatprep.subr.bf16.mxu0 0
      %1653 = vmatpush1.bf16.msra.mxu0 0
      %1654 = vmatprep.subr.bf16.mxu0 0
      %1655 = vmatpush1.bf16.msra.mxu0 0
      %1656 = vmatprep.subr.bf16.mxu0 0
      %1657 = vmatpush1.bf16.msra.mxu0 0
      %1658 = vmatprep.subr.bf16.mxu0 0
      %1659 = vmatpush1.bf16.msra.mxu0 0
      %1660 = vmatprep.subr.bf16.mxu0 0
      %1661 = vmatpush1.bf16.msra.mxu0 0
      %1662 = vmatprep.subr.bf16.mxu0 0
      %1663 = vmatpush1.bf16.msra.mxu0 0
      %1664 = vmatprep.subr.bf16.mxu0 0
      %1665 = vmatpush1.bf16.msra.mxu0 0
      %1666 = vmatprep.subr.bf16.mxu0 0
      %1667 = vmatpush1.bf16.msra.mxu0 0
      %1668 = vmatprep.mubr.bf16.mxu0 0
      %1669 = vmatmul.mubr.bf16.gmra.mrb[0].mxu0 %v1634
      %v1670 = vpop.f32.mrb[0].mxu0
      %v1671 = vadd.f32 %v724, %v1670
      %v1672 = vpop.f32.mrb[0].mxu0
      %v1673 = vpop.f32.mrb[0].mxu0
      %v1674 = vpop.f32.mrb[0].mxu0
      %1675 = vdwg.mxu0
      %v1676 = vpack.c.bf16 %v1671, %v1671
      %1678 = vrot.lane.b32.xlu0 %v1676, 96
      %v1679 = vpop.permute.xlu0 %1678
      %v1681 = vsel %vm786, %v1676, 0
      %v1684 = vsel %vm786, %v1679, 0
      %1686 = vmatprep.subr.bf16.mxu0 0
      %1687 = vmatpush1.bf16.xpose.msra.mxu0 %v1684
      %1688 = vmatprep.subr.bf16.mxu0 0
      %1689 = vmatpush1.bf16.xpose.msra.mxu0 0
      %1690 = vmatprep.subr.bf16.mxu0 0
      %1691 = vmatpush1.bf16.xpose.msra.mxu0 0
      %1692 = vmatprep.subr.bf16.mxu0 0
      %1693 = vmatpush1.bf16.xpose.msra.mxu0 0
      %1694 = vmatprep.subr.bf16.mxu0 0
      %1695 = vmatpush1.bf16.xpose.msra.mxu0 0
      %1696 = vmatprep.subr.bf16.mxu0 0
      %1697 = vmatpush1.bf16.xpose.msra.mxu0 0
      %1698 = vmatprep.subr.bf16.mxu0 0
      %1699 = vmatpush1.bf16.xpose.msra.mxu0 0
      %1700 = vmatprep.subr.bf16.mxu0 0
      %1701 = vmatpush1.bf16.xpose.msra.mxu0 0
      %1702 = vmatprep.subr.bf16.mxu0 0
      %1703 = vmatpush1.bf16.xpose.msra.mxu0 0
      %1704 = vmatprep.subr.bf16.mxu0 0
      %1705 = vmatpush1.bf16.xpose.msra.mxu0 0
      %1706 = vmatprep.subr.bf16.mxu0 0
      %1707 = vmatpush1.bf16.xpose.msra.mxu0 0
      %1708 = vmatprep.subr.bf16.mxu0 0
      %1709 = vmatpush1.bf16.xpose.msra.mxu0 0
      %1710 = vmatprep.subr.bf16.mxu0 0
      %1711 = vmatpush1.bf16.xpose.msra.mxu0 0
      %1712 = vmatprep.subr.bf16.mxu0 0
      %1713 = vmatpush1.bf16.xpose.msra.mxu0 0
      %1714 = vmatprep.subr.bf16.mxu0 0
      %1715 = vmatpush1.bf16.xpose.msra.mxu0 0
      %1716 = vmatprep.subr.bf16.mxu0 0
      %1717 = vmatpush1.bf16.xpose.msra.mxu0 0
      %1718 = vmatprep.mubr.bf16.mxu0 0
      %1719 = vmatmul.mubr.bf16.gmra.mrb[0].mxu0 %v1681
      %v1720 = vpop.f32.mrb[0].mxu0
      %v1721 = vadd.f32 0.0, %v1720
      %v1722 = vpop.f32.mrb[0].mxu0
      %v1723 = vpop.f32.mrb[0].mxu0
      %v1724 = vpop.f32.mrb[0].mxu0
      %1725 = vdwg.mxu0
      %v1726 = vmul.f32 %v1721, 0.35355338
      %v1727 = vadd.f32 %v1726, %v1631
      %v1728 = vsel %vm835, %v1727, -inf
      %1729 = vmax.xlane.f32.xlu0 %v1728
      %v1730 = vpop.xlane.xlu0 %1729
      %v1731 = vsub.f32 %v1727, %v1730
      %v1732 = vmul.f32 %v1731, 1.442695
      %v1733 = vpow.pop %v1732
      %v1734 = vsel %vm835, %v1733, 0.0
      %1735 = vadd.xlane.f32.xlu0 %v1734
      %v1736 = vpop.xlane.xlu0 %1735
      %v1737 = vrcp.pop %v1736
      %v1738 = vmul.f32 %v1733, %v1737
      %v1739 = vpack.c.bf16 %v1738, %v1738
      %1740 = vrot.lane.b32.xlu0 %v1676, 64
      %v1741 = vpop.permute.xlu0 %1740
      %v1743 = vsel %vm850, %v1739, 0
      %v1746 = vsel %vm854, %v1741, 0
      %1748 = vmatprep.subr.bf16.mxu0 0
      %1749 = vmatpush1.bf16.msra.mxu0 %v1746
      %1750 = vmatprep.subr.bf16.mxu0 0
      %1751 = vmatpush1.bf16.msra.mxu0 0
      %1752 = vmatprep.subr.bf16.mxu0 0
      %1753 = vmatpush1.bf16.msra.mxu0 0
      %1754 = vmatprep.subr.bf16.mxu0 0
      %1755 = vmatpush1.bf16.msra.mxu0 0
      %1756 = vmatprep.subr.bf16.mxu0 0
      %1757 = vmatpush1.bf16.msra.mxu0 0
      %1758 = vmatprep.subr.bf16.mxu0 0
      %1759 = vmatpush1.bf16.msra.mxu0 0
      %1760 = vmatprep.subr.bf16.mxu0 0
      %1761 = vmatpush1.bf16.msra.mxu0 0
      %1762 = vmatprep.subr.bf16.mxu0 0
      %1763 = vmatpush1.bf16.msra.mxu0 0
      %1764 = vmatprep.subr.bf16.mxu0 0
      %1765 = vmatpush1.bf16.msra.mxu0 0
      %1766 = vmatprep.subr.bf16.mxu0 0
      %1767 = vmatpush1.bf16.msra.mxu0 0
      %1768 = vmatprep.subr.bf16.mxu0 0
      %1769 = vmatpush1.bf16.msra.mxu0 0
      %1770 = vmatprep.subr.bf16.mxu0 0
      %1771 = vmatpush1.bf16.msra.mxu0 0
      %1772 = vmatprep.subr.bf16.mxu0 0
      %1773 = vmatpush1.bf16.msra.mxu0 0
      %1774 = vmatprep.subr.bf16.mxu0 0
      %1775 = vmatpush1.bf16.msra.mxu0 0
      %1776 = vmatprep.subr.bf16.mxu0 0
      %1777 = vmatpush1.bf16.msra.mxu0 0
      %1778 = vmatprep.subr.bf16.mxu0 0
      %1779 = vmatpush1.bf16.msra.mxu0 0
      %1780 = vmatprep.mubr.bf16.mxu0 0
      %1781 = vmatmul.mubr.bf16.gmra.mrb[0].mxu0 %v1743
      %v1782 = vpop.f32.mrb[0].mxu0
      %v1783 = vadd.f32 0.0, %v1782
      %v1784 = vpop.f32.mrb[0].mxu0
      %v1785 = vpop.f32.mrb[0].mxu0
      %v1786 = vpop.f32.mrb[0].mxu0
      %1787 = vdwg.mxu0
      %v1788 = vpack.c.bf16 %v1783, %v1783
      %1789 = vrot.lane.b32.xlu0 %v1676, 120
      %v1790 = vpop.permute.xlu0 %1789
      %1791 = vrot.lane.b32.xlu0 %v1676, 88
      %v1792 = vpop.permute.xlu0 %1791
      %v1794 = vsel %vm786, %v1790, 0
      %v1797 = vsel %vm786, %v1792, 0
      %1799 = vmatprep.subr.bf16.mxu0 0
      %1800 = vmatpush1.bf16.xpose.msra.mxu0 %v1797
      %1801 = vmatprep.subr.bf16.mxu0 0
      %1802 = vmatpush1.bf16.xpose.msra.mxu0 0
      %1803 = vmatprep.subr.bf16.mxu0 0
      %1804 = vmatpush1.bf16.xpose.msra.mxu0 0
      %1805 = vmatprep.subr.bf16.mxu0 0
      %1806 = vmatpush1.bf16.xpose.msra.mxu0 0
      %1807 = vmatprep.subr.bf16.mxu0 0
      %1808 = vmatpush1.bf16.xpose.msra.mxu0 0
      %1809 = vmatprep.subr.bf16.mxu0 0
      %1810 = vmatpush1.bf16.xpose.msra.mxu0 0
      %1811 = vmatprep.subr.bf16.mxu0 0
      %1812 = vmatpush1.bf16.xpose.msra.mxu0 0
      %1813 = vmatprep.subr.bf16.mxu0 0
      %1814 = vmatpush1.bf16.xpose.msra.mxu0 0
      %1815 = vmatprep.subr.bf16.mxu0 0
      %1816 = vmatpush1.bf16.xpose.msra.mxu0 0
      %1817 = vmatprep.subr.bf16.mxu0 0
      %1818 = vmatpush1.bf16.xpose.msra.mxu0 0
      %1819 = vmatprep.subr.bf16.mxu0 0
      %1820 = vmatpush1.bf16.xpose.msra.mxu0 0
      %1821 = vmatprep.subr.bf16.mxu0 0
      %1822 = vmatpush1.bf16.xpose.msra.mxu0 0
      %1823 = vmatprep.subr.bf16.mxu0 0
      %1824 = vmatpush1.bf16.xpose.msra.mxu0 0
      %1825 = vmatprep.subr.bf16.mxu0 0
      %1826 = vmatpush1.bf16.xpose.msra.mxu0 0
      %1827 = vmatprep.subr.bf16.mxu0 0
      %1828 = vmatpush1.bf16.xpose.msra.mxu0 0
      %1829 = vmatprep.subr.bf16.mxu0 0
      %1830 = vmatpush1.bf16.xpose.msra.mxu0 0
      %1831 = vmatprep.mubr.bf16.mxu0 0
      %1832 = vmatmul.mubr.bf16.gmra.mrb[0].mxu0 %v1794
      %v1833 = vpop.f32.mrb[0].mxu0
      %v1834 = vadd.f32 0.0, %v1833
      %v1835 = vpop.f32.mrb[0].mxu0
      %v1836 = vpop.f32.mrb[0].mxu0
      %v1837 = vpop.f32.mrb[0].mxu0
      %1838 = vdwg.mxu0
      %v1839 = vmul.f32 %v1834, 0.35355338
      %v1840 = vadd.f32 %v1839, %v1631
      %v1841 = vsel %vm835, %v1840, -inf
      %1842 = vmax.xlane.f32.xlu0 %v1841
      %v1843 = vpop.xlane.xlu0 %1842
      %v1844 = vsub.f32 %v1840, %v1843
      %v1845 = vmul.f32 %v1844, 1.442695
      %v1846 = vpow.pop %v1845
      %v1847 = vsel %vm835, %v1846, 0.0
      %1848 = vadd.xlane.f32.xlu0 %v1847
      %v1849 = vpop.xlane.xlu0 %1848
      %v1850 = vrcp.pop %v1849
      %v1851 = vmul.f32 %v1846, %v1850
      %v1852 = vpack.c.bf16 %v1851, %v1851
      %1853 = vrot.lane.b32.xlu0 %v1676, 56
      %v1854 = vpop.permute.xlu0 %1853
      %v1856 = vsel %vm850, %v1852, 0
      %v1859 = vsel %vm854, %v1854, 0
      %1861 = vmatprep.subr.bf16.mxu0 0
      %1862 = vmatpush1.bf16.msra.mxu0 %v1859
      %1863 = vmatprep.subr.bf16.mxu0 0
      %1864 = vmatpush1.bf16.msra.mxu0 0
      %1865 = vmatprep.subr.bf16.mxu0 0
      %1866 = vmatpush1.bf16.msra.mxu0 0
      %1867 = vmatprep.subr.bf16.mxu0 0
      %1868 = vmatpush1.bf16.msra.mxu0 0
      %1869 = vmatprep.subr.bf16.mxu0 0
      %1870 = vmatpush1.bf16.msra.mxu0 0
      %1871 = vmatprep.subr.bf16.mxu0 0
      %1872 = vmatpush1.bf16.msra.mxu0 0
      %1873 = vmatprep.subr.bf16.mxu0 0
      %1874 = vmatpush1.bf16.msra.mxu0 0
      %1875 = vmatprep.subr.bf16.mxu0 0
      %1876 = vmatpush1.bf16.msra.mxu0 0
      %1877 = vmatprep.subr.bf16.mxu0 0
      %1878 = vmatpush1.bf16.msra.mxu0 0
      %1879 = vmatprep.subr.bf16.mxu0 0
      %1880 = vmatpush1.bf16.msra.mxu0 0
      %1881 = vmatprep.subr.bf16.mxu0 0
      %1882 = vmatpush1.bf16.msra.mxu0 0
      %1883 = vmatprep.subr.bf16.mxu0 0
      %1884 = vmatpush1.bf16.msra.mxu0 0
      %1885 = vmatprep.subr.bf16.mxu0 0
      %1886 = vmatpush1.bf16.msra.mxu0 0
      %1887 = vmatprep.subr.bf16.mxu0 0
      %1888 = vmatpush1.bf16.msra.mxu0 0
      %1889 = vmatprep.subr.bf16.mxu0 0
      %1890 = vmatpush1.bf16.msra.mxu0 0
      %1891 = vmatprep.subr.bf16.mxu0 0
      %1892 = vmatpush1.bf16.msra.mxu0 0
      %1893 = vmatprep.mubr.bf16.mxu0 0
      %1894 = vmatmul.mubr.bf16.gmra.mrb[0].mxu0 %v1856
      %v1895 = vpop.f32.mrb[0].mxu0
      %v1896 = vadd.f32 0.0, %v1895
      %v1897 = vpop.f32.mrb[0].mxu0
      %v1898 = vpop.f32.mrb[0].mxu0
      %v1899 = vpop.f32.mrb[0].mxu0
      %1900 = vdwg.mxu0
      %v1901 = vpack.c.bf16 %v1896, %v1896
      %v1903 = vsel %vm786, %v1901, 0
      %1905 = vmatprep.subr.bf16.mxu0 0
      %1906 = vmatpush1.bf16.msra.mxu0 %v1017
      %1907 = vmatprep.subr.bf16.mxu0 0
      %1908 = vmatpush1.bf16.msra.mxu0 0
      %1909 = vmatprep.subr.bf16.mxu0 0
      %1910 = vmatpush1.bf16.msra.mxu0 0
      %1911 = vmatprep.subr.bf16.mxu0 0
      %1912 = vmatpush1.bf16.msra.mxu0 0
      %1913 = vmatprep.subr.bf16.mxu0 0
      %1914 = vmatpush1.bf16.msra.mxu0 0
      %1915 = vmatprep.subr.bf16.mxu0 0
      %1916 = vmatpush1.bf16.msra.mxu0 0
      %1917 = vmatprep.subr.bf16.mxu0 0
      %1918 = vmatpush1.bf16.msra.mxu0 0
      %1919 = vmatprep.subr.bf16.mxu0 0
      %1920 = vmatpush1.bf16.msra.mxu0 0
      %1921 = vmatprep.subr.bf16.mxu0 0
      %1922 = vmatpush1.bf16.msra.mxu0 0
      %1923 = vmatprep.subr.bf16.mxu0 0
      %1924 = vmatpush1.bf16.msra.mxu0 0
      %1925 = vmatprep.subr.bf16.mxu0 0
      %1926 = vmatpush1.bf16.msra.mxu0 0
      %1927 = vmatprep.subr.bf16.mxu0 0
      %1928 = vmatpush1.bf16.msra.mxu0 0
      %1929 = vmatprep.subr.bf16.mxu0 0
      %1930 = vmatpush1.bf16.msra.mxu0 0
      %1931 = vmatprep.subr.bf16.mxu0 0
      %1932 = vmatpush1.bf16.msra.mxu0 0
      %1933 = vmatprep.subr.bf16.mxu0 0
      %1934 = vmatpush1.bf16.msra.mxu0 0
      %1935 = vmatprep.subr.bf16.mxu0 0
      %1936 = vmatpush1.bf16.msra.mxu0 0
      %1937 = vmatprep.mubr.bf16.mxu0 0
      %1938 = vmatmul.mubr.bf16.gmra.mrb[0].mxu0 %v1903
      %v1939 = vpop.f32.mrb[0].mxu0
      %v1940 = vadd.f32 0.0, %v1939
      %v1941 = vpop.f32.mrb[0].mxu0
      %v1942 = vpop.f32.mrb[0].mxu0
      %v1943 = vpop.f32.mrb[0].mxu0
      %1944 = vdwg.mxu0
      %v1946 = vsel %vm786, %v1788, 0
      %1948 = vmatprep.subr.bf16.mxu0 0
      %1949 = vmatpush1.bf16.msra.mxu0 %v1063
      %1950 = vmatprep.subr.bf16.mxu0 0
      %1951 = vmatpush1.bf16.msra.mxu0 0
      %1952 = vmatprep.subr.bf16.mxu0 0
      %1953 = vmatpush1.bf16.msra.mxu0 0
      %1954 = vmatprep.subr.bf16.mxu0 0
      %1955 = vmatpush1.bf16.msra.mxu0 0
      %1956 = vmatprep.subr.bf16.mxu0 0
      %1957 = vmatpush1.bf16.msra.mxu0 0
      %1958 = vmatprep.subr.bf16.mxu0 0
      %1959 = vmatpush1.bf16.msra.mxu0 0
      %1960 = vmatprep.subr.bf16.mxu0 0
      %1961 = vmatpush1.bf16.msra.mxu0 0
      %1962 = vmatprep.subr.bf16.mxu0 0
      %1963 = vmatpush1.bf16.msra.mxu0 0
      %1964 = vmatprep.subr.bf16.mxu0 0
      %1965 = vmatpush1.bf16.msra.mxu0 0
      %1966 = vmatprep.subr.bf16.mxu0 0
      %1967 = vmatpush1.bf16.msra.mxu0 0
      %1968 = vmatprep.subr.bf16.mxu0 0
      %1969 = vmatpush1.bf16.msra.mxu0 0
      %1970 = vmatprep.subr.bf16.mxu0 0
      %1971 = vmatpush1.bf16.msra.mxu0 0
      %1972 = vmatprep.subr.bf16.mxu0 0
      %1973 = vmatpush1.bf16.msra.mxu0 0
      %1974 = vmatprep.subr.bf16.mxu0 0
      %1975 = vmatpush1.bf16.msra.mxu0 0
      %1976 = vmatprep.subr.bf16.mxu0 0
      %1977 = vmatpush1.bf16.msra.mxu0 0
      %1978 = vmatprep.subr.bf16.mxu0 0
      %1979 = vmatpush1.bf16.msra.mxu0 0
      %1980 = vmatprep.mubr.bf16.mxu0 0
      %1981 = vmatmul.mubr.bf16.gmra.mrb[0].mxu0 %v1946
      %v1982 = vpop.f32.mrb[0].mxu0
      %v1983 = vadd.f32 %v1940, %v1982
      %v1984 = vpop.f32.mrb[0].mxu0
      %v1985 = vpop.f32.mrb[0].mxu0
      %v1986 = vpop.f32.mrb[0].mxu0
      %1987 = vdwg.mxu0
      %1988 = vrot.lane.b32.xlu0 %v1676, 112
      %v1989 = vpop.permute.xlu0 %1988
      %1990 = vrot.lane.b32.xlu0 %v1676, 80
      %v1991 = vpop.permute.xlu0 %1990
      %v1993 = vsel %vm786, %v1989, 0
      %v1996 = vsel %vm786, %v1991, 0
      %1998 = vmatprep.subr.bf16.mxu0 0
      %1999 = vmatpush1.bf16.xpose.msra.mxu0 %v1996
      %2000 = vmatprep.subr.bf16.mxu0 0
      %2001 = vmatpush1.bf16.xpose.msra.mxu0 0
      %2002 = vmatprep.subr.bf16.mxu0 0
      %2003 = vmatpush1.bf16.xpose.msra.mxu0 0
      %2004 = vmatprep.subr.bf16.mxu0 0
      %2005 = vmatpush1.bf16.xpose.msra.mxu0 0
      %2006 = vmatprep.subr.bf16.mxu0 0
      %2007 = vmatpush1.bf16.xpose.msra.mxu0 0
      %2008 = vmatprep.subr.bf16.mxu0 0
      %2009 = vmatpush1.bf16.xpose.msra.mxu0 0
      %2010 = vmatprep.subr.bf16.mxu0 0
      %2011 = vmatpush1.bf16.xpose.msra.mxu0 0
      %2012 = vmatprep.subr.bf16.mxu0 0
      %2013 = vmatpush1.bf16.xpose.msra.mxu0 0
      %2014 = vmatprep.subr.bf16.mxu0 0
      %2015 = vmatpush1.bf16.xpose.msra.mxu0 0
      %2016 = vmatprep.subr.bf16.mxu0 0
      %2017 = vmatpush1.bf16.xpose.msra.mxu0 0
      %2018 = vmatprep.subr.bf16.mxu0 0
      %2019 = vmatpush1.bf16.xpose.msra.mxu0 0
      %2020 = vmatprep.subr.bf16.mxu0 0
      %2021 = vmatpush1.bf16.xpose.msra.mxu0 0
      %2022 = vmatprep.subr.bf16.mxu0 0
      %2023 = vmatpush1.bf16.xpose.msra.mxu0 0
      %2024 = vmatprep.subr.bf16.mxu0 0
      %2025 = vmatpush1.bf16.xpose.msra.mxu0 0
      %2026 = vmatprep.subr.bf16.mxu0 0
      %2027 = vmatpush1.bf16.xpose.msra.mxu0 0
      %2028 = vmatprep.subr.bf16.mxu0 0
      %2029 = vmatpush1.bf16.xpose.msra.mxu0 0
      %2030 = vmatprep.mubr.bf16.mxu0 0
      %2031 = vmatmul.mubr.bf16.gmra.mrb[0].mxu0 %v1993
      %v2032 = vpop.f32.mrb[0].mxu0
      %v2033 = vadd.f32 0.0, %v2032
      %v2034 = vpop.f32.mrb[0].mxu0
      %v2035 = vpop.f32.mrb[0].mxu0
      %v2036 = vpop.f32.mrb[0].mxu0
      %2037 = vdwg.mxu0
      %v2038 = vmul.f32 %v2033, 0.35355338
      %v2039 = vadd.f32 %v2038, %v1631
      %v2040 = vsel %vm835, %v2039, -inf
      %2041 = vmax.xlane.f32.xlu0 %v2040
      %v2042 = vpop.xlane.xlu0 %2041
      %v2043 = vsub.f32 %v2039, %v2042
      %v2044 = vmul.f32 %v2043, 1.442695
      %v2045 = vpow.pop %v2044
      %v2046 = vsel %vm835, %v2045, 0.0
      %2047 = vadd.xlane.f32.xlu0 %v2046
      %v2048 = vpop.xlane.xlu0 %2047
      %v2049 = vrcp.pop %v2048
      %v2050 = vmul.f32 %v2045, %v2049
      %v2051 = vpack.c.bf16 %v2050, %v2050
      %2052 = vrot.lane.b32.xlu0 %v1676, 48
      %v2053 = vpop.permute.xlu0 %2052
      %v2055 = vsel %vm850, %v2051, 0
      %v2058 = vsel %vm854, %v2053, 0
      %2060 = vmatprep.subr.bf16.mxu0 0
      %2061 = vmatpush1.bf16.msra.mxu0 %v2058
      %2062 = vmatprep.subr.bf16.mxu0 0
      %2063 = vmatpush1.bf16.msra.mxu0 0
      %2064 = vmatprep.subr.bf16.mxu0 0
      %2065 = vmatpush1.bf16.msra.mxu0 0
      %2066 = vmatprep.subr.bf16.mxu0 0
      %2067 = vmatpush1.bf16.msra.mxu0 0
      %2068 = vmatprep.subr.bf16.mxu0 0
      %2069 = vmatpush1.bf16.msra.mxu0 0
      %2070 = vmatprep.subr.bf16.mxu0 0
      %2071 = vmatpush1.bf16.msra.mxu0 0
      %2072 = vmatprep.subr.bf16.mxu0 0
      %2073 = vmatpush1.bf16.msra.mxu0 0
      %2074 = vmatprep.subr.bf16.mxu0 0
      %2075 = vmatpush1.bf16.msra.mxu0 0
      %2076 = vmatprep.subr.bf16.mxu0 0
      %2077 = vmatpush1.bf16.msra.mxu0 0
      %2078 = vmatprep.subr.bf16.mxu0 0
      %2079 = vmatpush1.bf16.msra.mxu0 0
      %2080 = vmatprep.subr.bf16.mxu0 0
      %2081 = vmatpush1.bf16.msra.mxu0 0
      %2082 = vmatprep.subr.bf16.mxu0 0
      %2083 = vmatpush1.bf16.msra.mxu0 0
      %2084 = vmatprep.subr.bf16.mxu0 0
      %2085 = vmatpush1.bf16.msra.mxu0 0
      %2086 = vmatprep.subr.bf16.mxu0 0
      %2087 = vmatpush1.bf16.msra.mxu0 0
      %2088 = vmatprep.subr.bf16.mxu0 0
      %2089 = vmatpush1.bf16.msra.mxu0 0
      %2090 = vmatprep.subr.bf16.mxu0 0
      %2091 = vmatpush1.bf16.msra.mxu0 0
      %2092 = vmatprep.mubr.bf16.mxu0 0
      %2093 = vmatmul.mubr.bf16.gmra.mrb[0].mxu0 %v2055
      %v2094 = vpop.f32.mrb[0].mxu0
      %v2095 = vadd.f32 0.0, %v2094
      %v2096 = vpop.f32.mrb[0].mxu0
      %v2097 = vpop.f32.mrb[0].mxu0
      %v2098 = vpop.f32.mrb[0].mxu0
      %2099 = vdwg.mxu0
      %v2100 = vpack.c.bf16 %v2095, %v2095
      %v2102 = vsel %vm786, %v2100, 0
      %2104 = vmatprep.subr.bf16.mxu0 0
      %2105 = vmatpush1.bf16.msra.mxu0 %v1222
      %2106 = vmatprep.subr.bf16.mxu0 0
      %2107 = vmatpush1.bf16.msra.mxu0 0
      %2108 = vmatprep.subr.bf16.mxu0 0
      %2109 = vmatpush1.bf16.msra.mxu0 0
      %2110 = vmatprep.subr.bf16.mxu0 0
      %2111 = vmatpush1.bf16.msra.mxu0 0
      %2112 = vmatprep.subr.bf16.mxu0 0
      %2113 = vmatpush1.bf16.msra.mxu0 0
      %2114 = vmatprep.subr.bf16.mxu0 0
      %2115 = vmatpush1.bf16.msra.mxu0 0
      %2116 = vmatprep.subr.bf16.mxu0 0
      %2117 = vmatpush1.bf16.msra.mxu0 0
      %2118 = vmatprep.subr.bf16.mxu0 0
      %2119 = vmatpush1.bf16.msra.mxu0 0
      %2120 = vmatprep.subr.bf16.mxu0 0
      %2121 = vmatpush1.bf16.msra.mxu0 0
      %2122 = vmatprep.subr.bf16.mxu0 0
      %2123 = vmatpush1.bf16.msra.mxu0 0
      %2124 = vmatprep.subr.bf16.mxu0 0
      %2125 = vmatpush1.bf16.msra.mxu0 0
      %2126 = vmatprep.subr.bf16.mxu0 0
      %2127 = vmatpush1.bf16.msra.mxu0 0
      %2128 = vmatprep.subr.bf16.mxu0 0
      %2129 = vmatpush1.bf16.msra.mxu0 0
      %2130 = vmatprep.subr.bf16.mxu0 0
      %2131 = vmatpush1.bf16.msra.mxu0 0
      %2132 = vmatprep.subr.bf16.mxu0 0
      %2133 = vmatpush1.bf16.msra.mxu0 0
      %2134 = vmatprep.subr.bf16.mxu0 0
      %2135 = vmatpush1.bf16.msra.mxu0 0
      %2136 = vmatprep.mubr.bf16.mxu0 0
      %2137 = vmatmul.mubr.bf16.gmra.mrb[0].mxu0 %v2102
      %v2138 = vpop.f32.mrb[0].mxu0
      %v2139 = vadd.f32 0.0, %v2138
      %v2140 = vpop.f32.mrb[0].mxu0
      %v2141 = vpop.f32.mrb[0].mxu0
      %v2142 = vpop.f32.mrb[0].mxu0
      %2143 = vdwg.mxu0
      %v2144 = vadd.f32 %v1983, %v2139
      %2145 = vrot.lane.b32.xlu0 %v1676, 104
      %v2146 = vpop.permute.xlu0 %2145
      %2147 = vrot.lane.b32.xlu0 %v1676, 72
      %v2148 = vpop.permute.xlu0 %2147
      %v2150 = vsel %vm786, %v2146, 0
      %v2153 = vsel %vm786, %v2148, 0
      %2155 = vmatprep.subr.bf16.mxu0 0
      %2156 = vmatpush1.bf16.xpose.msra.mxu0 %v2153
      %2157 = vmatprep.subr.bf16.mxu0 0
      %2158 = vmatpush1.bf16.xpose.msra.mxu0 0
      %2159 = vmatprep.subr.bf16.mxu0 0
      %2160 = vmatpush1.bf16.xpose.msra.mxu0 0
      %2161 = vmatprep.subr.bf16.mxu0 0
      %2162 = vmatpush1.bf16.xpose.msra.mxu0 0
      %2163 = vmatprep.subr.bf16.mxu0 0
      %2164 = vmatpush1.bf16.xpose.msra.mxu0 0
      %2165 = vmatprep.subr.bf16.mxu0 0
      %2166 = vmatpush1.bf16.xpose.msra.mxu0 0
      %2167 = vmatprep.subr.bf16.mxu0 0
      %2168 = vmatpush1.bf16.xpose.msra.mxu0 0
      %2169 = vmatprep.subr.bf16.mxu0 0
      %2170 = vmatpush1.bf16.xpose.msra.mxu0 0
      %2171 = vmatprep.subr.bf16.mxu0 0
      %2172 = vmatpush1.bf16.xpose.msra.mxu0 0
      %2173 = vmatprep.subr.bf16.mxu0 0
      %2174 = vmatpush1.bf16.xpose.msra.mxu0 0
      %2175 = vmatprep.subr.bf16.mxu0 0
      %2176 = vmatpush1.bf16.xpose.msra.mxu0 0
      %2177 = vmatprep.subr.bf16.mxu0 0
      %2178 = vmatpush1.bf16.xpose.msra.mxu0 0
      %2179 = vmatprep.subr.bf16.mxu0 0
      %2180 = vmatpush1.bf16.xpose.msra.mxu0 0
      %2181 = vmatprep.subr.bf16.mxu0 0
      %2182 = vmatpush1.bf16.xpose.msra.mxu0 0
      %2183 = vmatprep.subr.bf16.mxu0 0
      %2184 = vmatpush1.bf16.xpose.msra.mxu0 0
      %2185 = vmatprep.subr.bf16.mxu0 0
      %2186 = vmatpush1.bf16.xpose.msra.mxu0 0
      %2187 = vmatprep.mubr.bf16.mxu0 0
      %2188 = vmatmul.mubr.bf16.gmra.mrb[0].mxu0 %v2150
      %v2189 = vpop.f32.mrb[0].mxu0
      %v2190 = vadd.f32 0.0, %v2189
      %v2191 = vpop.f32.mrb[0].mxu0
      %v2192 = vpop.f32.mrb[0].mxu0
      %v2193 = vpop.f32.mrb[0].mxu0
      %2194 = vdwg.mxu0
      %v2195 = vmul.f32 %v2190, 0.35355338
      %v2196 = vadd.f32 %v2195, %v1631
      %v2197 = vsel %vm835, %v2196, -inf
      %2198 = vmax.xlane.f32.xlu0 %v2197
      %v2199 = vpop.xlane.xlu0 %2198
      %v2200 = vsub.f32 %v2196, %v2199
      %v2201 = vmul.f32 %v2200, 1.442695
      %v2202 = vpow.pop %v2201
      %v2203 = vsel %vm835, %v2202, 0.0
      %2204 = vadd.xlane.f32.xlu0 %v2203
      %v2205 = vpop.xlane.xlu0 %2204
      %v2206 = vrcp.pop %v2205
      %v2207 = vmul.f32 %v2202, %v2206
      %v2208 = vpack.c.bf16 %v2207, %v2207
      %2209 = vrot.lane.b32.xlu0 %v1676, 40
      %v2210 = vpop.permute.xlu0 %2209
      %v2212 = vsel %vm850, %v2208, 0
      %v2215 = vsel %vm854, %v2210, 0
      %2217 = vmatprep.subr.bf16.mxu0 0
      %2218 = vmatpush1.bf16.msra.mxu0 %v2215
      %2219 = vmatprep.subr.bf16.mxu0 0
      %2220 = vmatpush1.bf16.msra.mxu0 0
      %2221 = vmatprep.subr.bf16.mxu0 0
      %2222 = vmatpush1.bf16.msra.mxu0 0
      %2223 = vmatprep.subr.bf16.mxu0 0
      %2224 = vmatpush1.bf16.msra.mxu0 0
      %2225 = vmatprep.subr.bf16.mxu0 0
      %2226 = vmatpush1.bf16.msra.mxu0 0
      %2227 = vmatprep.subr.bf16.mxu0 0
      %2228 = vmatpush1.bf16.msra.mxu0 0
      %2229 = vmatprep.subr.bf16.mxu0 0
      %2230 = vmatpush1.bf16.msra.mxu0 0
      %2231 = vmatprep.subr.bf16.mxu0 0
      %2232 = vmatpush1.bf16.msra.mxu0 0
      %2233 = vmatprep.subr.bf16.mxu0 0
      %2234 = vmatpush1.bf16.msra.mxu0 0
      %2235 = vmatprep.subr.bf16.mxu0 0
      %2236 = vmatpush1.bf16.msra.mxu0 0
      %2237 = vmatprep.subr.bf16.mxu0 0
      %2238 = vmatpush1.bf16.msra.mxu0 0
      %2239 = vmatprep.subr.bf16.mxu0 0
      %2240 = vmatpush1.bf16.msra.mxu0 0
      %2241 = vmatprep.subr.bf16.mxu0 0
      %2242 = vmatpush1.bf16.msra.mxu0 0
      %2243 = vmatprep.subr.bf16.mxu0 0
      %2244 = vmatpush1.bf16.msra.mxu0 0
      %2245 = vmatprep.subr.bf16.mxu0 0
      %2246 = vmatpush1.bf16.msra.mxu0 0
      %2247 = vmatprep.subr.bf16.mxu0 0
      %2248 = vmatpush1.bf16.msra.mxu0 0
      %2249 = vmatprep.mubr.bf16.mxu0 0
      %2250 = vmatmul.mubr.bf16.gmra.mrb[0].mxu0 %v2212
      %v2251 = vpop.f32.mrb[0].mxu0
      %v2252 = vadd.f32 0.0, %v2251
      %v2253 = vpop.f32.mrb[0].mxu0
      %v2254 = vpop.f32.mrb[0].mxu0
      %v2255 = vpop.f32.mrb[0].mxu0
      %2256 = vdwg.mxu0
      %v2257 = vpack.c.bf16 %v2252, %v2252
      %v2259 = vsel %vm786, %v2257, 0
      %2261 = vmatprep.subr.bf16.mxu0 0
      %2262 = vmatpush1.bf16.msra.mxu0 %v1382
      %2263 = vmatprep.subr.bf16.mxu0 0
      %2264 = vmatpush1.bf16.msra.mxu0 0
      %2265 = vmatprep.subr.bf16.mxu0 0
      %2266 = vmatpush1.bf16.msra.mxu0 0
      %2267 = vmatprep.subr.bf16.mxu0 0
      %2268 = vmatpush1.bf16.msra.mxu0 0
      %2269 = vmatprep.subr.bf16.mxu0 0
      %2270 = vmatpush1.bf16.msra.mxu0 0
      %2271 = vmatprep.subr.bf16.mxu0 0
      %2272 = vmatpush1.bf16.msra.mxu0 0
      %2273 = vmatprep.subr.bf16.mxu0 0
      %2274 = vmatpush1.bf16.msra.mxu0 0
      %2275 = vmatprep.subr.bf16.mxu0 0
      %2276 = vmatpush1.bf16.msra.mxu0 0
      %2277 = vmatprep.subr.bf16.mxu0 0
      %2278 = vmatpush1.bf16.msra.mxu0 0
      %2279 = vmatprep.subr.bf16.mxu0 0
      %2280 = vmatpush1.bf16.msra.mxu0 0
      %2281 = vmatprep.subr.bf16.mxu0 0
      %2282 = vmatpush1.bf16.msra.mxu0 0
      %2283 = vmatprep.subr.bf16.mxu0 0
      %2284 = vmatpush1.bf16.msra.mxu0 0
      %2285 = vmatprep.subr.bf16.mxu0 0
      %2286 = vmatpush1.bf16.msra.mxu0 0
      %2287 = vmatprep.subr.bf16.mxu0 0
      %2288 = vmatpush1.bf16.msra.mxu0 0
      %2289 = vmatprep.subr.bf16.mxu0 0
      %2290 = vmatpush1.bf16.msra.mxu0 0
      %2291 = vmatprep.subr.bf16.mxu0 0
      %2292 = vmatpush1.bf16.msra.mxu0 0
      %2293 = vmatprep.mubr.bf16.mxu0 0
      %2294 = vmatmul.mubr.bf16.gmra.mrb[0].mxu0 %v2259
      %v2295 = vpop.f32.mrb[0].mxu0
      %v2296 = vadd.f32 0.0, %v2295
      %v2297 = vpop.f32.mrb[0].mxu0
      %v2298 = vpop.f32.mrb[0].mxu0
      %v2299 = vpop.f32.mrb[0].mxu0
      %2300 = vdwg.mxu0
      %v2301 = vadd.f32 %v2144, %v2296
      %v2302 = vadd.f32 %v2301, %v1429
      %v2303 = vadd.f32 %v1630, %v2302
      %v2304 = vsel %vm1433, %v2303, 0.0
      %2305 = vadd.xlane.f32.xlu0 %v2304
      %v2306 = vpop.xlane.xlu0 %2305
      %v2307 = vmul.f32 %v2306, %v1437
      %v2308 = vsub.f32 %v2303, %v2307
      %v2309 = vmul.f32 %v2308, %v2308
      %v2310 = vsel %vm1433, %v2309, 0.0
      %2311 = vadd.xlane.f32.xlu0 %v2310
      %v2312 = vpop.xlane.xlu0 %2311
      %v2313 = vmul.f32 %v2312, %v1437
      %v2314 = vadd.f32 %v2313, 1e-05
      %v2315 = vrsqrt.pop %v2314
      %v2316 = vmul.f32 %v2308, %v2315
      %v2317 = vmul.f32 %v2316, %v1452
      %v2318 = vadd.f32 %v2317, %v1459
      %v2319 = vpack.c.bf16 %v2318, %v2318
      %v2321 = vsel %vm738, %v2319, 0
      %2323 = vmatprep.subr.bf16.mxu0 0
      %2324 = vmatpush1.bf16.msra.mxu0 %v1477
      %2325 = vmatprep.subr.bf16.mxu0 0
      %2326 = vmatpush1.bf16.msra.mxu0 %v1478
      %2327 = vmatprep.subr.bf16.mxu0 0
      %2328 = vmatpush1.bf16.msra.mxu0 0
      %2329 = vmatprep.subr.bf16.mxu0 0
      %2330 = vmatpush1.bf16.msra.mxu0 0
      %2331 = vmatprep.subr.bf16.mxu0 0
      %2332 = vmatpush1.bf16.msra.mxu0 0
      %2333 = vmatprep.subr.bf16.mxu0 0
      %2334 = vmatpush1.bf16.msra.mxu0 0
      %2335 = vmatprep.subr.bf16.mxu0 0
      %2336 = vmatpush1.bf16.msra.mxu0 0
      %2337 = vmatprep.subr.bf16.mxu0 0
      %2338 = vmatpush1.bf16.msra.mxu0 0
      %2339 = vmatprep.subr.bf16.mxu0 0
      %2340 = vmatpush1.bf16.msra.mxu0 0
      %2341 = vmatprep.subr.bf16.mxu0 0
      %2342 = vmatpush1.bf16.msra.mxu0 0
      %2343 = vmatprep.subr.bf16.mxu0 0
      %2344 = vmatpush1.bf16.msra.mxu0 0
      %2345 = vmatprep.subr.bf16.mxu0 0
      %2346 = vmatpush1.bf16.msra.mxu0 0
      %2347 = vmatprep.subr.bf16.mxu0 0
      %2348 = vmatpush1.bf16.msra.mxu0 0
      %2349 = vmatprep.subr.bf16.mxu0 0
      %2350 = vmatpush1.bf16.msra.mxu0 0
      %2351 = vmatprep.subr.bf16.mxu0 0
      %2352 = vmatpush1.bf16.msra.mxu0 0
      %2353 = vmatprep.subr.bf16.mxu0 0
      %2354 = vmatpush1.bf16.msra.mxu0 0
      %2355 = vmatprep.mubr.bf16.mxu0 0
      %2356 = vmatmul.mubr.bf16.gmra.mrb[0].mxu0 %v2321
      %v2357 = vpop.f32.mrb[0].mxu0
      %v2358 = vadd.f32 %v1467, %v2357
      %v2359 = vpop.f32.mrb[0].mxu0
      %v2360 = vpop.f32.mrb[0].mxu0
      %v2361 = vpop.f32.mrb[0].mxu0
      %2362 = vdwg.mxu0
      %v2363 = vmax.f32 %v2358, 0.0
      %v2364 = vpack.c.bf16 %v2363, %v2363
      %v2366 = vsel %vm1556, %v2364, 0
      %2368 = vmatprep.subr.bf16.mxu0 0
      %2369 = vmatpush1.bf16.msra.mxu0 %v1548
      %2370 = vmatprep.subr.bf16.mxu0 0
      %2371 = vmatpush1.bf16.msra.mxu0 %v1549
      %2372 = vmatprep.subr.bf16.mxu0 0
      %2373 = vmatpush1.bf16.msra.mxu0 %v1550
      %2374 = vmatprep.subr.bf16.mxu0 0
      %2375 = vmatpush1.bf16.msra.mxu0 %v1551
      %2376 = vmatprep.subr.bf16.mxu0 0
      %2377 = vmatpush1.bf16.msra.mxu0 0
      %2378 = vmatprep.subr.bf16.mxu0 0
      %2379 = vmatpush1.bf16.msra.mxu0 0
      %2380 = vmatprep.subr.bf16.mxu0 0
      %2381 = vmatpush1.bf16.msra.mxu0 0
      %2382 = vmatprep.subr.bf16.mxu0 0
      %2383 = vmatpush1.bf16.msra.mxu0 0
      %2384 = vmatprep.subr.bf16.mxu0 0
      %2385 = vmatpush1.bf16.msra.mxu0 0
      %2386 = vmatprep.subr.bf16.mxu0 0
      %2387 = vmatpush1.bf16.msra.mxu0 0
      %2388 = vmatprep.subr.bf16.mxu0 0
      %2389 = vmatpush1.bf16.msra.mxu0 0
      %2390 = vmatprep.subr.bf16.mxu0 0
      %2391 = vmatpush1.bf16.msra.mxu0 0
      %2392 = vmatprep.subr.bf16.mxu0 0
      %2393 = vmatpush1.bf16.msra.mxu0 0
      %2394 = vmatprep.subr.bf16.mxu0 0
      %2395 = vmatpush1.bf16.msra.mxu0 0
      %2396 = vmatprep.subr.bf16.mxu0 0
      %2397 = vmatpush1.bf16.msra.mxu0 0
      %2398 = vmatprep.subr.bf16.mxu0 0
      %2399 = vmatpush1.bf16.msra.mxu0 0
      %2400 = vmatprep.mubr.bf16.mxu0 0
      %2401 = vmatmul.mubr.bf16.gmra.mrb[0].mxu0 %v2366
      %v2402 = vpop.f32.mrb[0].mxu0
      %v2403 = vadd.f32 %v1530, %v2402
      %v2404 = vpop.f32.mrb[0].mxu0
      %v2405 = vpop.f32.mrb[0].mxu0
      %v2406 = vpop.f32.mrb[0].mxu0
      %2407 = vdwg.mxu0
      %v2408 = vadd.f32 %v2318, %v2403
      %v2409 = vsel %vm1433, %v2408, 0.0
      %2410 = vadd.xlane.f32.xlu0 %v2409
      %v2411 = vpop.xlane.xlu0 %2410
      %v2412 = vmul.f32 %v2411, %v1437
      %v2413 = vsub.f32 %v2408, %v2412
      %v2414 = vmul.f32 %v2413, %v2413
      %v2415 = vsel %vm1433, %v2414, 0.0
      %2416 = vadd.xlane.f32.xlu0 %v2415
      %v2417 = vpop.xlane.xlu0 %2416
      %v2418 = vmul.f32 %v2417, %v1437
      %v2419 = vadd.f32 %v2418, 1e-05
      %v2420 = vrsqrt.pop %v2419
      %v2421 = vmul.f32 %v2413, %v2420
      %v2422 = vmul.f32 %v2421, %v1618
      %v2423 = vadd.f32 %v2422, %v1625
      %2424 = vst.msk [vmem:[%s1629] sm:$0x3] %vm1433, %v2423
      %s2425 = scalar_lea.vmem [#allocation2], 4
      %v2426 = vld [vmem:[%s2425] sm:$0x3]
      %v2427 = vld [vmem:[%s1] sm:$0x3]
      %v2428 = vpack.c.bf16 %v2426, %v2426
      %v2430 = vsel %vm738, %v2428, 0
      %2432 = vmatprep.subr.bf16.mxu0 0
      %2433 = vmatpush1.bf16.msra.mxu0 %v734
      %2434 = vmatprep.subr.bf16.mxu0 0
      %2435 = vmatpush1.bf16.msra.mxu0 %v735
      %2436 = vmatprep.subr.bf16.mxu0 0
      %2437 = vmatpush1.bf16.msra.mxu0 0
      %2438 = vmatprep.subr.bf16.mxu0 0
      %2439 = vmatpush1.bf16.msra.mxu0 0
      %2440 = vmatprep.subr.bf16.mxu0 0
      %2441 = vmatpush1.bf16.msra.mxu0 0
      %2442 = vmatprep.subr.bf16.mxu0 0
      %2443 = vmatpush1.bf16.msra.mxu0 0
      %2444 = vmatprep.subr.bf16.mxu0 0
      %2445 = vmatpush1.bf16.msra.mxu0 0
      %2446 = vmatprep.subr.bf16.mxu0 0
      %2447 = vmatpush1.bf16.msra.mxu0 0
      %2448 = vmatprep.subr.bf16.mxu0 0
      %2449 = vmatpush1.bf16.msra.mxu0 0
      %2450 = vmatprep.subr.bf16.mxu0 0
      %2451 = vmatpush1.bf16.msra.mxu0 0
      %2452 = vmatprep.subr.bf16.mxu0 0
      %2453 = vmatpush1.bf16.msra.mxu0 0
      %2454 = vmatprep.subr.bf16.mxu0 0
      %2455 = vmatpush1.bf16.msra.mxu0 0
      %2456 = vmatprep.subr.bf16.mxu0 0
      %2457 = vmatpush1.bf16.msra.mxu0 0
      %2458 = vmatprep.subr.bf16.mxu0 0
      %2459 = vmatpush1.bf16.msra.mxu0 0
      %2460 = vmatprep.subr.bf16.mxu0 0
      %2461 = vmatpush1.bf16.msra.mxu0 0
      %2462 = vmatprep.subr.bf16.mxu0 0
      %2463 = vmatpush1.bf16.msra.mxu0 0
      %2464 = vmatprep.mubr.bf16.mxu0 0
      %2465 = vmatmul.mubr.bf16.gmra.mrb[0].mxu0 %v2430
      %v2466 = vpop.f32.mrb[0].mxu0
      %v2467 = vadd.f32 %v724, %v2466
      %v2468 = vpop.f32.mrb[0].mxu0
      %v2469 = vpop.f32.mrb[0].mxu0
      %v2470 = vpop.f32.mrb[0].mxu0
      %2471 = vdwg.mxu0
      %v2472 = vpack.c.bf16 %v2467, %v2467
      %2474 = vrot.lane.b32.xlu0 %v2472, 96
      %v2475 = vpop.permute.xlu0 %2474
      %v2477 = vsel %vm786, %v2472, 0
      %v2480 = vsel %vm786, %v2475, 0
      %2482 = vmatprep.subr.bf16.mxu0 0
      %2483 = vmatpush1.bf16.xpose.msra.mxu0 %v2480
      %2484 = vmatprep.subr.bf16.mxu0 0
      %2485 = vmatpush1.bf16.xpose.msra.mxu0 0
      %2486 = vmatprep.subr.bf16.mxu0 0
      %2487 = vmatpush1.bf16.xpose.msra.mxu0 0
      %2488 = vmatprep.subr.bf16.mxu0 0
      %2489 = vmatpush1.bf16.xpose.msra.mxu0 0
      %2490 = vmatprep.subr.bf16.mxu0 0
      %2491 = vmatpush1.bf16.xpose.msra.mxu0 0
      %2492 = vmatprep.subr.bf16.mxu0 0
      %2493 = vmatpush1.bf16.xpose.msra.mxu0 0
      %2494 = vmatprep.subr.bf16.mxu0 0
      %2495 = vmatpush1.bf16.xpose.msra.mxu0 0
      %2496 = vmatprep.subr.bf16.mxu0 0
      %2497 = vmatpush1.bf16.xpose.msra.mxu0 0
      %2498 = vmatprep.subr.bf16.mxu0 0
      %2499 = vmatpush1.bf16.xpose.msra.mxu0 0
      %2500 = vmatprep.subr.bf16.mxu0 0
      %2501 = vmatpush1.bf16.xpose.msra.mxu0 0
      %2502 = vmatprep.subr.bf16.mxu0 0
      %2503 = vmatpush1.bf16.xpose.msra.mxu0 0
      %2504 = vmatprep.subr.bf16.mxu0 0
      %2505 = vmatpush1.bf16.xpose.msra.mxu0 0
      %2506 = vmatprep.subr.bf16.mxu0 0
      %2507 = vmatpush1.bf16.xpose.msra.mxu0 0
      %2508 = vmatprep.subr.bf16.mxu0 0
      %2509 = vmatpush1.bf16.xpose.msra.mxu0 0
      %2510 = vmatprep.subr.bf16.mxu0 0
      %2511 = vmatpush1.bf16.xpose.msra.mxu0 0
      %2512 = vmatprep.subr.bf16.mxu0 0
      %2513 = vmatpush1.bf16.xpose.msra.mxu0 0
      %2514 = vmatprep.mubr.bf16.mxu0 0
      %2515 = vmatmul.mubr.bf16.gmra.mrb[0].mxu0 %v2477
      %v2516 = vpop.f32.mrb[0].mxu0
      %v2517 = vadd.f32 0.0, %v2516
      %v2518 = vpop.f32.mrb[0].mxu0
      %v2519 = vpop.f32.mrb[0].mxu0
      %v2520 = vpop.f32.mrb[0].mxu0
      %2521 = vdwg.mxu0
      %v2522 = vmul.f32 %v2517, 0.35355338
      %v2523 = vadd.f32 %v2522, %v2427
      %v2524 = vsel %vm835, %v2523, -inf
      %2525 = vmax.xlane.f32.xlu0 %v2524
      %v2526 = vpop.xlane.xlu0 %2525
      %v2527 = vsub.f32 %v2523, %v2526
      %v2528 = vmul.f32 %v2527, 1.442695
      %v2529 = vpow.pop %v2528
      %v2530 = vsel %vm835, %v2529, 0.0
      %2531 = vadd.xlane.f32.xlu0 %v2530
      %v2532 = vpop.xlane.xlu0 %2531
      %v2533 = vrcp.pop %v2532
      %v2534 = vmul.f32 %v2529, %v2533
      %v2535 = vpack.c.bf16 %v2534, %v2534
      %2536 = vrot.lane.b32.xlu0 %v2472, 64
      %v2537 = vpop.permute.xlu0 %2536
      %v2539 = vsel %vm850, %v2535, 0
      %v2542 = vsel %vm854, %v2537, 0
      %2544 = vmatprep.subr.bf16.mxu0 0
      %2545 = vmatpush1.bf16.msra.mxu0 %v2542
      %2546 = vmatprep.subr.bf16.mxu0 0
      %2547 = vmatpush1.bf16.msra.mxu0 0
      %2548 = vmatprep.subr.bf16.mxu0 0
      %2549 = vmatpush1.bf16.msra.mxu0 0
      %2550 = vmatprep.subr.bf16.mxu0 0
      %2551 = vmatpush1.bf16.msra.mxu0 0
      %2552 = vmatprep.subr.bf16.mxu0 0
      %2553 = vmatpush1.bf16.msra.mxu0 0
      %2554 = vmatprep.subr.bf16.mxu0 0
      %2555 = vmatpush1.bf16.msra.mxu0 0
      %2556 = vmatprep.subr.bf16.mxu0 0
      %2557 = vmatpush1.bf16.msra.mxu0 0
      %2558 = vmatprep.subr.bf16.mxu0 0
      %2559 = vmatpush1.bf16.msra.mxu0 0
      %2560 = vmatprep.subr.bf16.mxu0 0
      %2561 = vmatpush1.bf16.msra.mxu0 0
      %2562 = vmatprep.subr.bf16.mxu0 0
      %2563 = vmatpush1.bf16.msra.mxu0 0
      %2564 = vmatprep.subr.bf16.mxu0 0
      %2565 = vmatpush1.bf16.msra.mxu0 0
      %2566 = vmatprep.subr.bf16.mxu0 0
      %2567 = vmatpush1.bf16.msra.mxu0 0
      %2568 = vmatprep.subr.bf16.mxu0 0
      %2569 = vmatpush1.bf16.msra.mxu0 0
      %2570 = vmatprep.subr.bf16.mxu0 0
      %2571 = vmatpush1.bf16.msra.mxu0 0
      %2572 = vmatprep.subr.bf16.mxu0 0
      %2573 = vmatpush1.bf16.msra.mxu0 0
      %2574 = vmatprep.subr.bf16.mxu0 0
      %2575 = vmatpush1.bf16.msra.mxu0 0
      %2576 = vmatprep.mubr.bf16.mxu0 0
      %2577 = vmatmul.mubr.bf16.gmra.mrb[0].mxu0 %v2539
      %v2578 = vpop.f32.mrb[0].mxu0
      %v2579 = vadd.f32 0.0, %v2578
      %v2580 = vpop.f32.mrb[0].mxu0
      %v2581 = vpop.f32.mrb[0].mxu0
      %v2582 = vpop.f32.mrb[0].mxu0
      %2583 = vdwg.mxu0
      %v2584 = vpack.c.bf16 %v2579, %v2579
      %2585 = vrot.lane.b32.xlu0 %v2472, 120
      %v2586 = vpop.permute.xlu0 %2585
      %2587 = vrot.lane.b32.xlu0 %v2472, 88
      %v2588 = vpop.permute.xlu0 %2587
      %v2590 = vsel %vm786, %v2586, 0
      %v2593 = vsel %vm786, %v2588, 0
      %2595 = vmatprep.subr.bf16.mxu0 0
      %2596 = vmatpush1.bf16.xpose.msra.mxu0 %v2593
      %2597 = vmatprep.subr.bf16.mxu0 0
      %2598 = vmatpush1.bf16.xpose.msra.mxu0 0
      %2599 = vmatprep.subr.bf16.mxu0 0
      %2600 = vmatpush1.bf16.xpose.msra.mxu0 0
      %2601 = vmatprep.subr.bf16.mxu0 0
      %2602 = vmatpush1.bf16.xpose.msra.mxu0 0
      %2603 = vmatprep.subr.bf16.mxu0 0
      %2604 = vmatpush1.bf16.xpose.msra.mxu0 0
      %2605 = vmatprep.subr.bf16.mxu0 0
      %2606 = vmatpush1.bf16.xpose.msra.mxu0 0
      %2607 = vmatprep.subr.bf16.mxu0 0
      %2608 = vmatpush1.bf16.xpose.msra.mxu0 0
      %2609 = vmatprep.subr.bf16.mxu0 0
      %2610 = vmatpush1.bf16.xpose.msra.mxu0 0
      %2611 = vmatprep.subr.bf16.mxu0 0
      %2612 = vmatpush1.bf16.xpose.msra.mxu0 0
      %2613 = vmatprep.subr.bf16.mxu0 0
      %2614 = vmatpush1.bf16.xpose.msra.mxu0 0
      %2615 = vmatprep.subr.bf16.mxu0 0
      %2616 = vmatpush1.bf16.xpose.msra.mxu0 0
      %2617 = vmatprep.subr.bf16.mxu0 0
      %2618 = vmatpush1.bf16.xpose.msra.mxu0 0
      %2619 = vmatprep.subr.bf16.mxu0 0
      %2620 = vmatpush1.bf16.xpose.msra.mxu0 0
      %2621 = vmatprep.subr.bf16.mxu0 0
      %2622 = vmatpush1.bf16.xpose.msra.mxu0 0
      %2623 = vmatprep.subr.bf16.mxu0 0
      %2624 = vmatpush1.bf16.xpose.msra.mxu0 0
      %2625 = vmatprep.subr.bf16.mxu0 0
      %2626 = vmatpush1.bf16.xpose.msra.mxu0 0
      %2627 = vmatprep.mubr.bf16.mxu0 0
      %2628 = vmatmul.mubr.bf16.gmra.mrb[0].mxu0 %v2590
      %v2629 = vpop.f32.mrb[0].mxu0
      %v2630 = vadd.f32 0.0, %v2629
      %v2631 = vpop.f32.mrb[0].mxu0
      %v2632 = vpop.f32.mrb[0].mxu0
      %v2633 = vpop.f32.mrb[0].mxu0
      %2634 = vdwg.mxu0
      %v2635 = vmul.f32 %v2630, 0.35355338
      %v2636 = vadd.f32 %v2635, %v2427
      %v2637 = vsel %vm835, %v2636, -inf
      %2638 = vmax.xlane.f32.xlu0 %v2637
      %v2639 = vpop.xlane.xlu0 %2638
      %v2640 = vsub.f32 %v2636, %v2639
      %v2641 = vmul.f32 %v2640, 1.442695
      %v2642 = vpow.pop %v2641
      %v2643 = vsel %vm835, %v2642, 0.0
      %2644 = vadd.xlane.f32.xlu0 %v2643
      %v2645 = vpop.xlane.xlu0 %2644
      %v2646 = vrcp.pop %v2645
      %v2647 = vmul.f32 %v2642, %v2646
      %v2648 = vpack.c.bf16 %v2647, %v2647
      %2649 = vrot.lane.b32.xlu0 %v2472, 56
      %v2650 = vpop.permute.xlu0 %2649
      %v2652 = vsel %vm850, %v2648, 0
      %v2655 = vsel %vm854, %v2650, 0
      %2657 = vmatprep.subr.bf16.mxu0 0
      %2658 = vmatpush1.bf16.msra.mxu0 %v2655
      %2659 = vmatprep.subr.bf16.mxu0 0
      %2660 = vmatpush1.bf16.msra.mxu0 0
      %2661 = vmatprep.subr.bf16.mxu0 0
      %2662 = vmatpush1.bf16.msra.mxu0 0
      %2663 = vmatprep.subr.bf16.mxu0 0
      %2664 = vmatpush1.bf16.msra.mxu0 0
      %2665 = vmatprep.subr.bf16.mxu0 0
      %2666 = vmatpush1.bf16.msra.mxu0 0
      %2667 = vmatprep.subr.bf16.mxu0 0
      %2668 = vmatpush1.bf16.msra.mxu0 0
      %2669 = vmatprep.subr.bf16.mxu0 0
      %2670 = vmatpush1.bf16.msra.mxu0 0
      %2671 = vmatprep.subr.bf16.mxu0 0
      %2672 = vmatpush1.bf16.msra.mxu0 0
      %2673 = vmatprep.subr.bf16.mxu0 0
      %2674 = vmatpush1.bf16.msra.mxu0 0
      %2675 = vmatprep.subr.bf16.mxu0 0
      %2676 = vmatpush1.bf16.msra.mxu0 0
      %2677 = vmatprep.subr.bf16.mxu0 0
      %2678 = vmatpush1.bf16.msra.mxu0 0
      %2679 = vmatprep.subr.bf16.mxu0 0
      %2680 = vmatpush1.bf16.msra.mxu0 0
      %2681 = vmatprep.subr.bf16.mxu0 0
      %2682 = vmatpush1.bf16.msra.mxu0 0
      %2683 = vmatprep.subr.bf16.mxu0 0
      %2684 = vmatpush1.bf16.msra.mxu0 0
      %2685 = vmatprep.subr.bf16.mxu0 0
      %2686 = vmatpush1.bf16.msra.mxu0 0
      %2687 = vmatprep.subr.bf16.mxu0 0
      %2688 = vmatpush1.bf16.msra.mxu0 0
      %2689 = vmatprep.mubr.bf16.mxu0 0
      %2690 = vmatmul.mubr.bf16.gmra.mrb[0].mxu0 %v2652
      %v2691 = vpop.f32.mrb[0].mxu0
      %v2692 = vadd.f32 0.0, %v2691
      %v2693 = vpop.f32.mrb[0].mxu0
      %v2694 = vpop.f32.mrb[0].mxu0
      %v2695 = vpop.f32.mrb[0].mxu0
      %2696 = vdwg.mxu0
      %v2697 = vpack.c.bf16 %v2692, %v2692
      %v2699 = vsel %vm786, %v2697, 0
      %2701 = vmatprep.subr.bf16.mxu0 0
      %2702 = vmatpush1.bf16.msra.mxu0 %v1017
      %2703 = vmatprep.subr.bf16.mxu0 0
      %2704 = vmatpush1.bf16.msra.mxu0 0
      %2705 = vmatprep.subr.bf16.mxu0 0
      %2706 = vmatpush1.bf16.msra.mxu0 0
      %2707 = vmatprep.subr.bf16.mxu0 0
      %2708 = vmatpush1.bf16.msra.mxu0 0
      %2709 = vmatprep.subr.bf16.mxu0 0
      %2710 = vmatpush1.bf16.msra.mxu0 0
      %2711 = vmatprep.subr.bf16.mxu0 0
      %2712 = vmatpush1.bf16.msra.mxu0 0
      %2713 = vmatprep.subr.bf16.mxu0 0
      %2714 = vmatpush1.bf16.msra.mxu0 0
      %2715 = vmatprep.subr.bf16.mxu0 0
      %2716 = vmatpush1.bf16.msra.mxu0 0
      %2717 = vmatprep.subr.bf16.mxu0 0
      %2718 = vmatpush1.bf16.msra.mxu0 0
      %2719 = vmatprep.subr.bf16.mxu0 0
      %2720 = vmatpush1.bf16.msra.mxu0 0
      %2721 = vmatprep.subr.bf16.mxu0 0
      %2722 = vmatpush1.bf16.msra.mxu0 0
      %2723 = vmatprep.subr.bf16.mxu0 0
      %2724 = vmatpush1.bf16.msra.mxu0 0
      %2725 = vmatprep.subr.bf16.mxu0 0
      %2726 = vmatpush1.bf16.msra.mxu0 0
      %2727 = vmatprep.subr.bf16.mxu0 0
      %2728 = vmatpush1.bf16.msra.mxu0 0
      %2729 = vmatprep.subr.bf16.mxu0 0
      %2730 = vmatpush1.bf16.msra.mxu0 0
      %2731 = vmatprep.subr.bf16.mxu0 0
      %2732 = vmatpush1.bf16.msra.mxu0 0
      %2733 = vmatprep.mubr.bf16.mxu0 0
      %2734 = vmatmul.mubr.bf16.gmra.mrb[0].mxu0 %v2699
      %v2735 = vpop.f32.mrb[0].mxu0
      %v2736 = vadd.f32 0.0, %v2735
      %v2737 = vpop.f32.mrb[0].mxu0
      %v2738 = vpop.f32.mrb[0].mxu0
      %v2739 = vpop.f32.mrb[0].mxu0
      %2740 = vdwg.mxu0
      %v2742 = vsel %vm786, %v2584, 0
      %2744 = vmatprep.subr.bf16.mxu0 0
      %2745 = vmatpush1.bf16.msra.mxu0 %v1063
      %2746 = vmatprep.subr.bf16.mxu0 0
      %2747 = vmatpush1.bf16.msra.mxu0 0
      %2748 = vmatprep.subr.bf16.mxu0 0
      %2749 = vmatpush1.bf16.msra.mxu0 0
      %2750 = vmatprep.subr.bf16.mxu0 0
      %2751 = vmatpush1.bf16.msra.mxu0 0
      %2752 = vmatprep.subr.bf16.mxu0 0
      %2753 = vmatpush1.bf16.msra.mxu0 0
      %2754 = vmatprep.subr.bf16.mxu0 0
      %2755 = vmatpush1.bf16.msra.mxu0 0
      %2756 = vmatprep.subr.bf16.mxu0 0
      %2757 = vmatpush1.bf16.msra.mxu0 0
      %2758 = vmatprep.subr.bf16.mxu0 0
      %2759 = vmatpush1.bf16.msra.mxu0 0
      %2760 = vmatprep.subr.bf16.mxu0 0
      %2761 = vmatpush1.bf16.msra.mxu0 0
      %2762 = vmatprep.subr.bf16.mxu0 0
      %2763 = vmatpush1.bf16.msra.mxu0 0
      %2764 = vmatprep.subr.bf16.mxu0 0
      %2765 = vmatpush1.bf16.msra.mxu0 0
      %2766 = vmatprep.subr.bf16.mxu0 0
      %2767 = vmatpush1.bf16.msra.mxu0 0
      %2768 = vmatprep.subr.bf16.mxu0 0
      %2769 = vmatpush1.bf16.msra.mxu0 0
      %2770 = vmatprep.subr.bf16.mxu0 0
      %2771 = vmatpush1.bf16.msra.mxu0 0
      %2772 = vmatprep.subr.bf16.mxu0 0
      %2773 = vmatpush1.bf16.msra.mxu0 0
      %2774 = vmatprep.subr.bf16.mxu0 0
      %2775 = vmatpush1.bf16.msra.mxu0 0
      %2776 = vmatprep.mubr.bf16.mxu0 0
      %2777 = vmatmul.mubr.bf16.gmra.mrb[0].mxu0 %v2742
      %v2778 = vpop.f32.mrb[0].mxu0
      %v2779 = vadd.f32 %v2736, %v2778
      %v2780 = vpop.f32.mrb[0].mxu0
      %v2781 = vpop.f32.mrb[0].mxu0
      %v2782 = vpop.f32.mrb[0].mxu0
      %2783 = vdwg.mxu0
      %2784 = vrot.lane.b32.xlu0 %v2472, 112
      %v2785 = vpop.permute.xlu0 %2784
      %2786 = vrot.lane.b32.xlu0 %v2472, 80
      %v2787 = vpop.permute.xlu0 %2786
      %v2789 = vsel %vm786, %v2785, 0
      %v2792 = vsel %vm786, %v2787, 0
      %2794 = vmatprep.subr.bf16.mxu0 0
      %2795 = vmatpush1.bf16.xpose.msra.mxu0 %v2792
      %2796 = vmatprep.subr.bf16.mxu0 0
      %2797 = vmatpush1.bf16.xpose.msra.mxu0 0
      %2798 = vmatprep.subr.bf16.mxu0 0
      %2799 = vmatpush1.bf16.xpose.msra.mxu0 0
      %2800 = vmatprep.subr.bf16.mxu0 0
      %2801 = vmatpush1.bf16.xpose.msra.mxu0 0
      %2802 = vmatprep.subr.bf16.mxu0 0
      %2803 = vmatpush1.bf16.xpose.msra.mxu0 0
      %2804 = vmatprep.subr.bf16.mxu0 0
      %2805 = vmatpush1.bf16.xpose.msra.mxu0 0
      %2806 = vmatprep.subr.bf16.mxu0 0
      %2807 = vmatpush1.bf16.xpose.msra.mxu0 0
      %2808 = vmatprep.subr.bf16.mxu0 0
      %2809 = vmatpush1.bf16.xpose.msra.mxu0 0
      %2810 = vmatprep.subr.bf16.mxu0 0
      %2811 = vmatpush1.bf16.xpose.msra.mxu0 0
      %2812 = vmatprep.subr.bf16.mxu0 0
      %2813 = vmatpush1.bf16.xpose.msra.mxu0 0
      %2814 = vmatprep.subr.bf16.mxu0 0
      %2815 = vmatpush1.bf16.xpose.msra.mxu0 0
      %2816 = vmatprep.subr.bf16.mxu0 0
      %2817 = vmatpush1.bf16.xpose.msra.mxu0 0
      %2818 = vmatprep.subr.bf16.mxu0 0
      %2819 = vmatpush1.bf16.xpose.msra.mxu0 0
      %2820 = vmatprep.subr.bf16.mxu0 0
      %2821 = vmatpush1.bf16.xpose.msra.mxu0 0
      %2822 = vmatprep.subr.bf16.mxu0 0
      %2823 = vmatpush1.bf16.xpose.msra.mxu0 0
      %2824 = vmatprep.subr.bf16.mxu0 0
      %2825 = vmatpush1.bf16.xpose.msra.mxu0 0
      %2826 = vmatprep.mubr.bf16.mxu0 0
      %2827 = vmatmul.mubr.bf16.gmra.mrb[0].mxu0 %v2789
      %v2828 = vpop.f32.mrb[0].mxu0
      %v2829 = vadd.f32 0.0, %v2828
      %v2830 = vpop.f32.mrb[0].mxu0
      %v2831 = vpop.f32.mrb[0].mxu0
      %v2832 = vpop.f32.mrb[0].mxu0
      %2833 = vdwg.mxu0
      %v2834 = vmul.f32 %v2829, 0.35355338
      %v2835 = vadd.f32 %v2834, %v2427
      %v2836 = vsel %vm835, %v2835, -inf
      %2837 = vmax.xlane.f32.xlu0 %v2836
      %v2838 = vpop.xlane.xlu0 %2837
      %v2839 = vsub.f32 %v2835, %v2838
      %v2840 = vmul.f32 %v2839, 1.442695
      %v2841 = vpow.pop %v2840
      %v2842 = vsel %vm835, %v2841, 0.0
      %2843 = vadd.xlane.f32.xlu0 %v2842
      %v2844 = vpop.xlane.xlu0 %2843
      %v2845 = vrcp.pop %v2844
      %v2846 = vmul.f32 %v2841, %v2845
      %v2847 = vpack.c.bf16 %v2846, %v2846
      %2848 = vrot.lane.b32.xlu0 %v2472, 48
      %v2849 = vpop.permute.xlu0 %2848
      %v2851 = vsel %vm850, %v2847, 0
      %v2854 = vsel %vm854, %v2849, 0
      %2856 = vmatprep.subr.bf16.mxu0 0
      %2857 = vmatpush1.bf16.msra.mxu0 %v2854
      %2858 = vmatprep.subr.bf16.mxu0 0
      %2859 = vmatpush1.bf16.msra.mxu0 0
      %2860 = vmatprep.subr.bf16.mxu0 0
      %2861 = vmatpush1.bf16.msra.mxu0 0
      %2862 = vmatprep.subr.bf16.mxu0 0
      %2863 = vmatpush1.bf16.msra.mxu0 0
      %2864 = vmatprep.subr.bf16.mxu0 0
      %2865 = vmatpush1.bf16.msra.mxu0 0
      %2866 = vmatprep.subr.bf16.mxu0 0
      %2867 = vmatpush1.bf16.msra.mxu0 0
      %2868 = vmatprep.subr.bf16.mxu0 0
      %2869 = vmatpush1.bf16.msra.mxu0 0
      %2870 = vmatprep.subr.bf16.mxu0 0
      %2871 = vmatpush1.bf16.msra.mxu0 0
      %2872 = vmatprep.subr.bf16.mxu0 0
      %2873 = vmatpush1.bf16.msra.mxu0 0
      %2874 = vmatprep.subr.bf16.mxu0 0
      %2875 = vmatpush1.bf16.msra.mxu0 0
      %2876 = vmatprep.subr.bf16.mxu0 0
      %2877 = vmatpush1.bf16.msra.mxu0 0
      %2878 = vmatprep.subr.bf16.mxu0 0
      %2879 = vmatpush1.bf16.msra.mxu0 0
      %2880 = vmatprep.subr.bf16.mxu0 0
      %2881 = vmatpush1.bf16.msra.mxu0 0
      %2882 = vmatprep.subr.bf16.mxu0 0
      %2883 = vmatpush1.bf16.msra.mxu0 0
      %2884 = vmatprep.subr.bf16.mxu0 0
      %2885 = vmatpush1.bf16.msra.mxu0 0
      %2886 = vmatprep.subr.bf16.mxu0 0
      %2887 = vmatpush1.bf16.msra.mxu0 0
      %2888 = vmatprep.mubr.bf16.mxu0 0
      %2889 = vmatmul.mubr.bf16.gmra.mrb[0].mxu0 %v2851
      %v2890 = vpop.f32.mrb[0].mxu0
      %v2891 = vadd.f32 0.0, %v2890
      %v2892 = vpop.f32.mrb[0].mxu0
      %v2893 = vpop.f32.mrb[0].mxu0
      %v2894 = vpop.f32.mrb[0].mxu0
      %2895 = vdwg.mxu0
      %v2896 = vpack.c.bf16 %v2891, %v2891
      %v2898 = vsel %vm786, %v2896, 0
      %2900 = vmatprep.subr.bf16.mxu0 0
      %2901 = vmatpush1.bf16.msra.mxu0 %v1222
      %2902 = vmatprep.subr.bf16.mxu0 0
      %2903 = vmatpush1.bf16.msra.mxu0 0
      %2904 = vmatprep.subr.bf16.mxu0 0
      %2905 = vmatpush1.bf16.msra.mxu0 0
      %2906 = vmatprep.subr.bf16.mxu0 0
      %2907 = vmatpush1.bf16.msra.mxu0 0
      %2908 = vmatprep.subr.bf16.mxu0 0
      %2909 = vmatpush1.bf16.msra.mxu0 0
      %2910 = vmatprep.subr.bf16.mxu0 0
      %2911 = vmatpush1.bf16.msra.mxu0 0
      %2912 = vmatprep.subr.bf16.mxu0 0
      %2913 = vmatpush1.bf16.msra.mxu0 0
      %2914 = vmatprep.subr.bf16.mxu0 0
      %2915 = vmatpush1.bf16.msra.mxu0 0
      %2916 = vmatprep.subr.bf16.mxu0 0
      %2917 = vmatpush1.bf16.msra.mxu0 0
      %2918 = vmatprep.subr.bf16.mxu0 0
      %2919 = vmatpush1.bf16.msra.mxu0 0
      %2920 = vmatprep.subr.bf16.mxu0 0
      %2921 = vmatpush1.bf16.msra.mxu0 0
      %2922 = vmatprep.subr.bf16.mxu0 0
      %2923 = vmatpush1.bf16.msra.mxu0 0
      %2924 = vmatprep.subr.bf16.mxu0 0
      %2925 = vmatpush1.bf16.msra.mxu0 0
      %2926 = vmatprep.subr.bf16.mxu0 0
      %2927 = vmatpush1.bf16.msra.mxu0 0
      %2928 = vmatprep.subr.bf16.mxu0 0
      %2929 = vmatpush1.bf16.msra.mxu0 0
      %2930 = vmatprep.subr.bf16.mxu0 0
      %2931 = vmatpush1.bf16.msra.mxu0 0
      %2932 = vmatprep.mubr.bf16.mxu0 0
      %2933 = vmatmul.mubr.bf16.gmra.mrb[0].mxu0 %v2898
      %v2934 = vpop.f32.mrb[0].mxu0
      %v2935 = vadd.f32 0.0, %v2934
      %v2936 = vpop.f32.mrb[0].mxu0
      %v2937 = vpop.f32.mrb[0].mxu0
      %v2938 = vpop.f32.mrb[0].mxu0
      %2939 = vdwg.mxu0
      %v2940 = vadd.f32 %v2779, %v2935
      %2941 = vrot.lane.b32.xlu0 %v2472, 104
      %v2942 = vpop.permute.xlu0 %2941
      %2943 = vrot.lane.b32.xlu0 %v2472, 72
      %v2944 = vpop.permute.xlu0 %2943
      %v2946 = vsel %vm786, %v2942, 0
      %v2949 = vsel %vm786, %v2944, 0
      %2951 = vmatprep.subr.bf16.mxu0 0
      %2952 = vmatpush1.bf16.xpose.msra.mxu0 %v2949
      %2953 = vmatprep.subr.bf16.mxu0 0
      %2954 = vmatpush1.bf16.xpose.msra.mxu0 0
      %2955 = vmatprep.subr.bf16.mxu0 0
      %2956 = vmatpush1.bf16.xpose.msra.mxu0 0
      %2957 = vmatprep.subr.bf16.mxu0 0
      %2958 = vmatpush1.bf16.xpose.msra.mxu0 0
      %2959 = vmatprep.subr.bf16.mxu0 0
      %2960 = vmatpush1.bf16.xpose.msra.mxu0 0
      %2961 = vmatprep.subr.bf16.mxu0 0
      %2962 = vmatpush1.bf16.xpose.msra.mxu0 0
      %2963 = vmatprep.subr.bf16.mxu0 0
      %2964 = vmatpush1.bf16.xpose.msra.mxu0 0
      %2965 = vmatprep.subr.bf16.mxu0 0
      %2966 = vmatpush1.bf16.xpose.msra.mxu0 0
      %2967 = vmatprep.subr.bf16.mxu0 0
      %2968 = vmatpush1.bf16.xpose.msra.mxu0 0
      %2969 = vmatprep.subr.bf16.mxu0 0
      %2970 = vmatpush1.bf16.xpose.msra.mxu0 0
      %2971 = vmatprep.subr.bf16.mxu0 0
      %2972 = vmatpush1.bf16.xpose.msra.mxu0 0
      %2973 = vmatprep.subr.bf16.mxu0 0
      %2974 = vmatpush1.bf16.xpose.msra.mxu0 0
      %2975 = vmatprep.subr.bf16.mxu0 0
      %2976 = vmatpush1.bf16.xpose.msra.mxu0 0
      %2977 = vmatprep.subr.bf16.mxu0 0
      %2978 = vmatpush1.bf16.xpose.msra.mxu0 0
      %2979 = vmatprep.subr.bf16.mxu0 0
      %2980 = vmatpush1.bf16.xpose.msra.mxu0 0
      %2981 = vmatprep.subr.bf16.mxu0 0
      %2982 = vmatpush1.bf16.xpose.msra.mxu0 0
      %2983 = vmatprep.mubr.bf16.mxu0 0
      %2984 = vmatmul.mubr.bf16.gmra.mrb[0].mxu0 %v2946
      %v2985 = vpop.f32.mrb[0].mxu0
      %v2986 = vadd.f32 0.0, %v2985
      %v2987 = vpop.f32.mrb[0].mxu0
      %v2988 = vpop.f32.mrb[0].mxu0
      %v2989 = vpop.f32.mrb[0].mxu0
      %2990 = vdwg.mxu0
      %v2991 = vmul.f32 %v2986, 0.35355338
      %v2992 = vadd.f32 %v2991, %v2427
      %v2993 = vsel %vm835, %v2992, -inf
      %2994 = vmax.xlane.f32.xlu0 %v2993
      %v2995 = vpop.xlane.xlu0 %2994
      %v2996 = vsub.f32 %v2992, %v2995
      %v2997 = vmul.f32 %v2996, 1.442695
      %v2998 = vpow.pop %v2997
      %v2999 = vsel %vm835, %v2998, 0.0
      %3000 = vadd.xlane.f32.xlu0 %v2999
      %v3001 = vpop.xlane.xlu0 %3000
      %v3002 = vrcp.pop %v3001
      %v3003 = vmul.f32 %v2998, %v3002
      %v3004 = vpack.c.bf16 %v3003, %v3003
      %3005 = vrot.lane.b32.xlu0 %v2472, 40
      %v3006 = vpop.permute.xlu0 %3005
      %v3008 = vsel %vm850, %v3004, 0
      %v3011 = vsel %vm854, %v3006, 0
      %3013 = vmatprep.subr.bf16.mxu0 0
      %3014 = vmatpush1.bf16.msra.mxu0 %v3011
      %3015 = vmatprep.subr.bf16.mxu0 0
      %3016 = vmatpush1.bf16.msra.mxu0 0
      %3017 = vmatprep.subr.bf16.mxu0 0
      %3018 = vmatpush1.bf16.msra.mxu0 0
      %3019 = vmatprep.subr.bf16.mxu0 0
      %3020 = vmatpush1.bf16.msra.mxu0 0
      %3021 = vmatprep.subr.bf16.mxu0 0
      %3022 = vmatpush1.bf16.msra.mxu0 0
      %3023 = vmatprep.subr.bf16.mxu0 0
      %3024 = vmatpush1.bf16.msra.mxu0 0
      %3025 = vmatprep.subr.bf16.mxu0 0
      %3026 = vmatpush1.bf16.msra.mxu0 0
      %3027 = vmatprep.subr.bf16.mxu0 0
      %3028 = vmatpush1.bf16.msra.mxu0 0
      %3029 = vmatprep.subr.bf16.mxu0 0
      %3030 = vmatpush1.bf16.msra.mxu0 0
      %3031 = vmatprep.subr.bf16.mxu0 0
      %3032 = vmatpush1.bf16.msra.mxu0 0
      %3033 = vmatprep.subr.bf16.mxu0 0
      %3034 = vmatpush1.bf16.msra.mxu0 0
      %3035 = vmatprep.subr.bf16.mxu0 0
      %3036 = vmatpush1.bf16.msra.mxu0 0
      %3037 = vmatprep.subr.bf16.mxu0 0
      %3038 = vmatpush1.bf16.msra.mxu0 0
      %3039 = vmatprep.subr.bf16.mxu0 0
      %3040 = vmatpush1.bf16.msra.mxu0 0
      %3041 = vmatprep.subr.bf16.mxu0 0
      %3042 = vmatpush1.bf16.msra.mxu0 0
      %3043 = vmatprep.subr.bf16.mxu0 0
      %3044 = vmatpush1.bf16.msra.mxu0 0
      %3045 = vmatprep.mubr.bf16.mxu0 0
      %3046 = vmatmul.mubr.bf16.gmra.mrb[0].mxu0 %v3008
      %v3047 = vpop.f32.mrb[0].mxu0
      %v3048 = vadd.f32 0.0, %v3047
      %v3049 = vpop.f32.mrb[0].mxu0
      %v3050 = vpop.f32.mrb[0].mxu0
      %v3051 = vpop.f32.mrb[0].mxu0
      %3052 = vdwg.mxu0
      %v3053 = vpack.c.bf16 %v3048, %v3048
      %v3055 = vsel %vm786, %v3053, 0
      %3057 = vmatprep.subr.bf16.mxu0 0
      %3058 = vmatpush1.bf16.msra.mxu0 %v1382
      %3059 = vmatprep.subr.bf16.mxu0 0
      %3060 = vmatpush1.bf16.msra.mxu0 0
      %3061 = vmatprep.subr.bf16.mxu0 0
      %3062 = vmatpush1.bf16.msra.mxu0 0
      %3063 = vmatprep.subr.bf16.mxu0 0
      %3064 = vmatpush1.bf16.msra.mxu0 0
      %3065 = vmatprep.subr.bf16.mxu0 0
      %3066 = vmatpush1.bf16.msra.mxu0 0
      %3067 = vmatprep.subr.bf16.mxu0 0
      %3068 = vmatpush1.bf16.msra.mxu0 0
      %3069 = vmatprep.subr.bf16.mxu0 0
      %3070 = vmatpush1.bf16.msra.mxu0 0
      %3071 = vmatprep.subr.bf16.mxu0 0
      %3072 = vmatpush1.bf16.msra.mxu0 0
      %3073 = vmatprep.subr.bf16.mxu0 0
      %3074 = vmatpush1.bf16.msra.mxu0 0
      %3075 = vmatprep.subr.bf16.mxu0 0
      %3076 = vmatpush1.bf16.msra.mxu0 0
      %3077 = vmatprep.subr.bf16.mxu0 0
      %3078 = vmatpush1.bf16.msra.mxu0 0
      %3079 = vmatprep.subr.bf16.mxu0 0
      %3080 = vmatpush1.bf16.msra.mxu0 0
      %3081 = vmatprep.subr.bf16.mxu0 0
      %3082 = vmatpush1.bf16.msra.mxu0 0
      %3083 = vmatprep.subr.bf16.mxu0 0
      %3084 = vmatpush1.bf16.msra.mxu0 0
      %3085 = vmatprep.subr.bf16.mxu0 0
      %3086 = vmatpush1.bf16.msra.mxu0 0
      %3087 = vmatprep.subr.bf16.mxu0 0
      %3088 = vmatpush1.bf16.msra.mxu0 0
      %3089 = vmatprep.mubr.bf16.mxu0 0
      %3090 = vmatmul.mubr.bf16.gmra.mrb[0].mxu0 %v3055
      %v3091 = vpop.f32.mrb[0].mxu0
      %v3092 = vadd.f32 0.0, %v3091
      %v3093 = vpop.f32.mrb[0].mxu0
      %v3094 = vpop.f32.mrb[0].mxu0
      %v3095 = vpop.f32.mrb[0].mxu0
      %3096 = vdwg.mxu0
      %v3097 = vadd.f32 %v2940, %v3092
      %v3098 = vadd.f32 %v3097, %v1429
      %v3099 = vadd.f32 %v2426, %v3098
      %v3100 = vsel %vm1433, %v3099, 0.0
      %3101 = vadd.xlane.f32.xlu0 %v3100
      %v3102 = vpop.xlane.xlu0 %3101
      %v3103 = vmul.f32 %v3102, %v1437
      %v3104 = vsub.f32 %v3099, %v3103
      %v3105 = vmul.f32 %v3104, %v3104
      %v3106 = vsel %vm1433, %v3105, 0.0
      %3107 = vadd.xlane.f32.xlu0 %v3106
      %v3108 = vpop.xlane.xlu0 %3107
      %v3109 = vmul.f32 %v3108, %v1437
      %v3110 = vadd.f32 %v3109, 1e-05
      %v3111 = vrsqrt.pop %v3110
      %v3112 = vmul.f32 %v3104, %v3111
      %v3113 = vmul.f32 %v3112, %v1452
      %v3114 = vadd.f32 %v3113, %v1459
      %v3115 = vpack.c.bf16 %v3114, %v3114
      %v3117 = vsel %vm738, %v3115, 0
      %3119 = vmatprep.subr.bf16.mxu0 0
      %3120 = vmatpush1.bf16.msra.mxu0 %v1477
      %3121 = vmatprep.subr.bf16.mxu0 0
      %3122 = vmatpush1.bf16.msra.mxu0 %v1478
      %3123 = vmatprep.subr.bf16.mxu0 0
      %3124 = vmatpush1.bf16.msra.mxu0 0
      %3125 = vmatprep.subr.bf16.mxu0 0
      %3126 = vmatpush1.bf16.msra.mxu0 0
      %3127 = vmatprep.subr.bf16.mxu0 0
      %3128 = vmatpush1.bf16.msra.mxu0 0
      %3129 = vmatprep.subr.bf16.mxu0 0
      %3130 = vmatpush1.bf16.msra.mxu0 0
      %3131 = vmatprep.subr.bf16.mxu0 0
      %3132 = vmatpush1.bf16.msra.mxu0 0
      %3133 = vmatprep.subr.bf16.mxu0 0
      %3134 = vmatpush1.bf16.msra.mxu0 0
      %3135 = vmatprep.subr.bf16.mxu0 0
      %3136 = vmatpush1.bf16.msra.mxu0 0
      %3137 = vmatprep.subr.bf16.mxu0 0
      %3138 = vmatpush1.bf16.msra.mxu0 0
      %3139 = vmatprep.subr.bf16.mxu0 0
      %3140 = vmatpush1.bf16.msra.mxu0 0
      %3141 = vmatprep.subr.bf16.mxu0 0
      %3142 = vmatpush1.bf16.msra.mxu0 0
      %3143 = vmatprep.subr.bf16.mxu0 0
      %3144 = vmatpush1.bf16.msra.mxu0 0
      %3145 = vmatprep.subr.bf16.mxu0 0
      %3146 = vmatpush1.bf16.msra.mxu0 0
      %3147 = vmatprep.subr.bf16.mxu0 0
      %3148 = vmatpush1.bf16.msra.mxu0 0
      %3149 = vmatprep.subr.bf16.mxu0 0
      %3150 = vmatpush1.bf16.msra.mxu0 0
      %3151 = vmatprep.mubr.bf16.mxu0 0
      %3152 = vmatmul.mubr.bf16.gmra.mrb[0].mxu0 %v3117
      %v3153 = vpop.f32.mrb[0].mxu0
      %v3154 = vadd.f32 %v1467, %v3153
      %v3155 = vpop.f32.mrb[0].mxu0
      %v3156 = vpop.f32.mrb[0].mxu0
      %v3157 = vpop.f32.mrb[0].mxu0
      %3158 = vdwg.mxu0
      %v3159 = vmax.f32 %v3154, 0.0
      %v3160 = vpack.c.bf16 %v3159, %v3159
      %v3162 = vsel %vm1556, %v3160, 0
      %3164 = vmatprep.subr.bf16.mxu0 0
      %3165 = vmatpush1.bf16.msra.mxu0 %v1548
      %3166 = vmatprep.subr.bf16.mxu0 0
      %3167 = vmatpush1.bf16.msra.mxu0 %v1549
      %3168 = vmatprep.subr.bf16.mxu0 0
      %3169 = vmatpush1.bf16.msra.mxu0 %v1550
      %3170 = vmatprep.subr.bf16.mxu0 0
      %3171 = vmatpush1.bf16.msra.mxu0 %v1551
      %3172 = vmatprep.subr.bf16.mxu0 0
      %3173 = vmatpush1.bf16.msra.mxu0 0
      %3174 = vmatprep.subr.bf16.mxu0 0
      %3175 = vmatpush1.bf16.msra.mxu0 0
      %3176 = vmatprep.subr.bf16.mxu0 0
      %3177 = vmatpush1.bf16.msra.mxu0 0
      %3178 = vmatprep.subr.bf16.mxu0 0
      %3179 = vmatpush1.bf16.msra.mxu0 0
      %3180 = vmatprep.subr.bf16.mxu0 0
      %3181 = vmatpush1.bf16.msra.mxu0 0
      %3182 = vmatprep.subr.bf16.mxu0 0
      %3183 = vmatpush1.bf16.msra.mxu0 0
      %3184 = vmatprep.subr.bf16.mxu0 0
      %3185 = vmatpush1.bf16.msra.mxu0 0
      %3186 = vmatprep.subr.bf16.mxu0 0
      %3187 = vmatpush1.bf16.msra.mxu0 0
      %3188 = vmatprep.subr.bf16.mxu0 0
      %3189 = vmatpush1.bf16.msra.mxu0 0
      %3190 = vmatprep.subr.bf16.mxu0 0
      %3191 = vmatpush1.bf16.msra.mxu0 0
      %3192 = vmatprep.subr.bf16.mxu0 0
      %3193 = vmatpush1.bf16.msra.mxu0 0
      %3194 = vmatprep.subr.bf16.mxu0 0
      %3195 = vmatpush1.bf16.msra.mxu0 0
      %3196 = vmatprep.mubr.bf16.mxu0 0
      %3197 = vmatmul.mubr.bf16.gmra.mrb[0].mxu0 %v3162
      %v3198 = vpop.f32.mrb[0].mxu0
      %v3199 = vadd.f32 %v1530, %v3198
      %v3200 = vpop.f32.mrb[0].mxu0
      %v3201 = vpop.f32.mrb[0].mxu0
      %v3202 = vpop.f32.mrb[0].mxu0
      %3203 = vdwg.mxu0
      %v3204 = vadd.f32 %v3114, %v3199
      %v3205 = vsel %vm1433, %v3204, 0.0
      %3206 = vadd.xlane.f32.xlu0 %v3205
      %v3207 = vpop.xlane.xlu0 %3206
      %v3208 = vmul.f32 %v3207, %v1437
      %v3209 = vsub.f32 %v3204, %v3208
      %v3210 = vmul.f32 %v3209, %v3209
      %v3211 = vsel %vm1433, %v3210, 0.0
      %3212 = vadd.xlane.f32.xlu0 %v3211
      %v3213 = vpop.xlane.xlu0 %3212
      %v3214 = vmul.f32 %v3213, %v1437
      %v3215 = vadd.f32 %v3214, 1e-05
      %v3216 = vrsqrt.pop %v3215
      %v3217 = vmul.f32 %v3209, %v3216
      %v3218 = vmul.f32 %v3217, %v1618
      %v3219 = vadd.f32 %v3218, %v1625
      %3220 = vst.msk [vmem:[%s2425] sm:$0x3] %vm1433, %v3219
      %s3221 = scalar_lea.vmem [#allocation2], 6
      %v3222 = vld [vmem:[%s3221] sm:$0x3]
      %v3223 = vld [vmem:[%s1] sm:$0x3]
      %v3224 = vpack.c.bf16 %v3222, %v3222
      %v3226 = vsel %vm738, %v3224, 0
      %3228 = vmatprep.subr.bf16.mxu0 0
      %3229 = vmatpush1.bf16.msra.mxu0 %v734
      %3230 = vmatprep.subr.bf16.mxu0 0
      %3231 = vmatpush1.bf16.msra.mxu0 %v735
      %3232 = vmatprep.subr.bf16.mxu0 0
      %3233 = vmatpush1.bf16.msra.mxu0 0
      %3234 = vmatprep.subr.bf16.mxu0 0
      %3235 = vmatpush1.bf16.msra.mxu0 0
      %3236 = vmatprep.subr.bf16.mxu0 0
      %3237 = vmatpush1.bf16.msra.mxu0 0
      %3238 = vmatprep.subr.bf16.mxu0 0
      %3239 = vmatpush1.bf16.msra.mxu0 0
      %3240 = vmatprep.subr.bf16.mxu0 0
      %3241 = vmatpush1.bf16.msra.mxu0 0
      %3242 = vmatprep.subr.bf16.mxu0 0
      %3243 = vmatpush1.bf16.msra.mxu0 0
      %3244 = vmatprep.subr.bf16.mxu0 0
      %3245 = vmatpush1.bf16.msra.mxu0 0
      %3246 = vmatprep.subr.bf16.mxu0 0
      %3247 = vmatpush1.bf16.msra.mxu0 0
      %3248 = vmatprep.subr.bf16.mxu0 0
      %3249 = vmatpush1.bf16.msra.mxu0 0
      %3250 = vmatprep.subr.bf16.mxu0 0
      %3251 = vmatpush1.bf16.msra.mxu0 0
      %3252 = vmatprep.subr.bf16.mxu0 0
      %3253 = vmatpush1.bf16.msra.mxu0 0
      %3254 = vmatprep.subr.bf16.mxu0 0
      %3255 = vmatpush1.bf16.msra.mxu0 0
      %3256 = vmatprep.subr.bf16.mxu0 0
      %3257 = vmatpush1.bf16.msra.mxu0 0
      %3258 = vmatprep.subr.bf16.mxu0 0
      %3259 = vmatpush1.bf16.msra.mxu0 0
      %3260 = vmatprep.mubr.bf16.mxu0 0
      %3261 = vmatmul.mubr.bf16.gmra.mrb[0].mxu0 %v3226
      %v3262 = vpop.f32.mrb[0].mxu0
      %v3263 = vadd.f32 %v724, %v3262
      %v3264 = vpop.f32.mrb[0].mxu0
      %v3265 = vpop.f32.mrb[0].mxu0
      %v3266 = vpop.f32.mrb[0].mxu0
      %3267 = vdwg.mxu0
      %v3268 = vpack.c.bf16 %v3263, %v3263
      %3270 = vrot.lane.b32.xlu0 %v3268, 96
      %v3271 = vpop.permute.xlu0 %3270
      %v3273 = vsel %vm786, %v3268, 0
      %v3276 = vsel %vm786, %v3271, 0
      %3278 = vmatprep.subr.bf16.mxu0 0
      %3279 = vmatpush1.bf16.xpose.msra.mxu0 %v3276
      %3280 = vmatprep.subr.bf16.mxu0 0
      %3281 = vmatpush1.bf16.xpose.msra.mxu0 0
      %3282 = vmatprep.subr.bf16.mxu0 0
      %3283 = vmatpush1.bf16.xpose.msra.mxu0 0
      %3284 = vmatprep.subr.bf16.mxu0 0
      %3285 = vmatpush1.bf16.xpose.msra.mxu0 0
      %3286 = vmatprep.subr.bf16.mxu0 0
      %3287 = vmatpush1.bf16.xpose.msra.mxu0 0
      %3288 = vmatprep.subr.bf16.mxu0 0
      %3289 = vmatpush1.bf16.xpose.msra.mxu0 0
      %3290 = vmatprep.subr.bf16.mxu0 0
      %3291 = vmatpush1.bf16.xpose.msra.mxu0 0
      %3292 = vmatprep.subr.bf16.mxu0 0
      %3293 = vmatpush1.bf16.xpose.msra.mxu0 0
      %3294 = vmatprep.subr.bf16.mxu0 0
      %3295 = vmatpush1.bf16.xpose.msra.mxu0 0
      %3296 = vmatprep.subr.bf16.mxu0 0
      %3297 = vmatpush1.bf16.xpose.msra.mxu0 0
      %3298 = vmatprep.subr.bf16.mxu0 0
      %3299 = vmatpush1.bf16.xpose.msra.mxu0 0
      %3300 = vmatprep.subr.bf16.mxu0 0
      %3301 = vmatpush1.bf16.xpose.msra.mxu0 0
      %3302 = vmatprep.subr.bf16.mxu0 0
      %3303 = vmatpush1.bf16.xpose.msra.mxu0 0
      %3304 = vmatprep.subr.bf16.mxu0 0
      %3305 = vmatpush1.bf16.xpose.msra.mxu0 0
      %3306 = vmatprep.subr.bf16.mxu0 0
      %3307 = vmatpush1.bf16.xpose.msra.mxu0 0
      %3308 = vmatprep.subr.bf16.mxu0 0
      %3309 = vmatpush1.bf16.xpose.msra.mxu0 0
      %3310 = vmatprep.mubr.bf16.mxu0 0
      %3311 = vmatmul.mubr.bf16.gmra.mrb[0].mxu0 %v3273
      %v3312 = vpop.f32.mrb[0].mxu0
      %v3313 = vadd.f32 0.0, %v3312
      %v3314 = vpop.f32.mrb[0].mxu0
      %v3315 = vpop.f32.mrb[0].mxu0
      %v3316 = vpop.f32.mrb[0].mxu0
      %3317 = vdwg.mxu0
      %v3318 = vmul.f32 %v3313, 0.35355338
      %v3319 = vadd.f32 %v3318, %v3223
      %v3320 = vsel %vm835, %v3319, -inf
      %3321 = vmax.xlane.f32.xlu0 %v3320
      %v3322 = vpop.xlane.xlu0 %3321
      %v3323 = vsub.f32 %v3319, %v3322
      %v3324 = vmul.f32 %v3323, 1.442695
      %v3325 = vpow.pop %v3324
      %v3326 = vsel %vm835, %v3325, 0.0
      %3327 = vadd.xlane.f32.xlu0 %v3326
      %v3328 = vpop.xlane.xlu0 %3327
      %v3329 = vrcp.pop %v3328
      %v3330 = vmul.f32 %v3325, %v3329
      %v3331 = vpack.c.bf16 %v3330, %v3330
      %3332 = vrot.lane.b32.xlu0 %v3268, 64
      %v3333 = vpop.permute.xlu0 %3332
      %v3335 = vsel %vm850, %v3331, 0
      %v3338 = vsel %vm854, %v3333, 0
      %3340 = vmatprep.subr.bf16.mxu0 0
      %3341 = vmatpush1.bf16.msra.mxu0 %v3338
      %3342 = vmatprep.subr.bf16.mxu0 0
      %3343 = vmatpush1.bf16.msra.mxu0 0
      %3344 = vmatprep.subr.bf16.mxu0 0
      %3345 = vmatpush1.bf16.msra.mxu0 0
      %3346 = vmatprep.subr.bf16.mxu0 0
      %3347 = vmatpush1.bf16.msra.mxu0 0
      %3348 = vmatprep.subr.bf16.mxu0 0
      %3349 = vmatpush1.bf16.msra.mxu0 0
      %3350 = vmatprep.subr.bf16.mxu0 0
      %3351 = vmatpush1.bf16.msra.mxu0 0
      %3352 = vmatprep.subr.bf16.mxu0 0
      %3353 = vmatpush1.bf16.msra.mxu0 0
      %3354 = vmatprep.subr.bf16.mxu0 0
      %3355 = vmatpush1.bf16.msra.mxu0 0
      %3356 = vmatprep.subr.bf16.mxu0 0
      %3357 = vmatpush1.bf16.msra.mxu0 0
      %3358 = vmatprep.subr.bf16.mxu0 0
      %3359 = vmatpush1.bf16.msra.mxu0 0
      %3360 = vmatprep.subr.bf16.mxu0 0
      %3361 = vmatpush1.bf16.msra.mxu0 0
      %3362 = vmatprep.subr.bf16.mxu0 0
      %3363 = vmatpush1.bf16.msra.mxu0 0
      %3364 = vmatprep.subr.bf16.mxu0 0
      %3365 = vmatpush1.bf16.msra.mxu0 0
      %3366 = vmatprep.subr.bf16.mxu0 0
      %3367 = vmatpush1.bf16.msra.mxu0 0
      %3368 = vmatprep.subr.bf16.mxu0 0
      %3369 = vmatpush1.bf16.msra.mxu0 0
      %3370 = vmatprep.subr.bf16.mxu0 0
      %3371 = vmatpush1.bf16.msra.mxu0 0
      %3372 = vmatprep.mubr.bf16.mxu0 0
      %3373 = vmatmul.mubr.bf16.gmra.mrb[0].mxu0 %v3335
      %v3374 = vpop.f32.mrb[0].mxu0
      %v3375 = vadd.f32 0.0, %v3374
      %v3376 = vpop.f32.mrb[0].mxu0
      %v3377 = vpop.f32.mrb[0].mxu0
      %v3378 = vpop.f32.mrb[0].mxu0
      %3379 = vdwg.mxu0
      %v3380 = vpack.c.bf16 %v3375, %v3375
      %3381 = vrot.lane.b32.xlu0 %v3268, 120
      %v3382 = vpop.permute.xlu0 %3381
      %3383 = vrot.lane.b32.xlu0 %v3268, 88
      %v3384 = vpop.permute.xlu0 %3383
      %v3386 = vsel %vm786, %v3382, 0
      %v3389 = vsel %vm786, %v3384, 0
      %3391 = vmatprep.subr.bf16.mxu0 0
      %3392 = vmatpush1.bf16.xpose.msra.mxu0 %v3389
      %3393 = vmatprep.subr.bf16.mxu0 0
      %3394 = vmatpush1.bf16.xpose.msra.mxu0 0
      %3395 = vmatprep.subr.bf16.mxu0 0
      %3396 = vmatpush1.bf16.xpose.msra.mxu0 0
      %3397 = vmatprep.subr.bf16.mxu0 0
      %3398 = vmatpush1.bf16.xpose.msra.mxu0 0
      %3399 = vmatprep.subr.bf16.mxu0 0
      %3400 = vmatpush1.bf16.xpose.msra.mxu0 0
      %3401 = vmatprep.subr.bf16.mxu0 0
      %3402 = vmatpush1.bf16.xpose.msra.mxu0 0
      %3403 = vmatprep.subr.bf16.mxu0 0
      %3404 = vmatpush1.bf16.xpose.msra.mxu0 0
      %3405 = vmatprep.subr.bf16.mxu0 0
      %3406 = vmatpush1.bf16.xpose.msra.mxu0 0
      %3407 = vmatprep.subr.bf16.mxu0 0
      %3408 = vmatpush1.bf16.xpose.msra.mxu0 0
      %3409 = vmatprep.subr.bf16.mxu0 0
      %3410 = vmatpush1.bf16.xpose.msra.mxu0 0
      %3411 = vmatprep.subr.bf16.mxu0 0
      %3412 = vmatpush1.bf16.xpose.msra.mxu0 0
      %3413 = vmatprep.subr.bf16.mxu0 0
      %3414 = vmatpush1.bf16.xpose.msra.mxu0 0
      %3415 = vmatprep.subr.bf16.mxu0 0
      %3416 = vmatpush1.bf16.xpose.msra.mxu0 0
      %3417 = vmatprep.subr.bf16.mxu0 0
      %3418 = vmatpush1.bf16.xpose.msra.mxu0 0
      %3419 = vmatprep.subr.bf16.mxu0 0
      %3420 = vmatpush1.bf16.xpose.msra.mxu0 0
      %3421 = vmatprep.subr.bf16.mxu0 0
      %3422 = vmatpush1.bf16.xpose.msra.mxu0 0
      %3423 = vmatprep.mubr.bf16.mxu0 0
      %3424 = vmatmul.mubr.bf16.gmra.mrb[0].mxu0 %v3386
      %v3425 = vpop.f32.mrb[0].mxu0
      %v3426 = vadd.f32 0.0, %v3425
      %v3427 = vpop.f32.mrb[0].mxu0
      %v3428 = vpop.f32.mrb[0].mxu0
      %v3429 = vpop.f32.mrb[0].mxu0
      %3430 = vdwg.mxu0
      %v3431 = vmul.f32 %v3426, 0.35355338
      %v3432 = vadd.f32 %v3431, %v3223
      %v3433 = vsel %vm835, %v3432, -inf
      %3434 = vmax.xlane.f32.xlu0 %v3433
      %v3435 = vpop.xlane.xlu0 %3434
      %v3436 = vsub.f32 %v3432, %v3435
      %v3437 = vmul.f32 %v3436, 1.442695
      %v3438 = vpow.pop %v3437
      %v3439 = vsel %vm835, %v3438, 0.0
      %3440 = vadd.xlane.f32.xlu0 %v3439
      %v3441 = vpop.xlane.xlu0 %3440
      %v3442 = vrcp.pop %v3441
      %v3443 = vmul.f32 %v3438, %v3442
      %v3444 = vpack.c.bf16 %v3443, %v3443
      %3445 = vrot.lane.b32.xlu0 %v3268, 56
      %v3446 = vpop.permute.xlu0 %3445
      %v3448 = vsel %vm850, %v3444, 0
      %v3451 = vsel %vm854, %v3446, 0
      %3453 = vmatprep.subr.bf16.mxu0 0
      %3454 = vmatpush1.bf16.msra.mxu0 %v3451
      %3455 = vmatprep.subr.bf16.mxu0 0
      %3456 = vmatpush1.bf16.msra.mxu0 0
      %3457 = vmatprep.subr.bf16.mxu0 0
      %3458 = vmatpush1.bf16.msra.mxu0 0
      %3459 = vmatprep.subr.bf16.mxu0 0
      %3460 = vmatpush1.bf16.msra.mxu0 0
      %3461 = vmatprep.subr.bf16.mxu0 0
      %3462 = vmatpush1.bf16.msra.mxu0 0
      %3463 = vmatprep.subr.bf16.mxu0 0
      %3464 = vmatpush1.bf16.msra.mxu0 0
      %3465 = vmatprep.subr.bf16.mxu0 0
      %3466 = vmatpush1.bf16.msra.mxu0 0
      %3467 = vmatprep.subr.bf16.mxu0 0
      %3468 = vmatpush1.bf16.msra.mxu0 0
      %3469 = vmatprep.subr.bf16.mxu0 0
      %3470 = vmatpush1.bf16.msra.mxu0 0
      %3471 = vmatprep.subr.bf16.mxu0 0
      %3472 = vmatpush1.bf16.msra.mxu0 0
      %3473 = vmatprep.subr.bf16.mxu0 0
      %3474 = vmatpush1.bf16.msra.mxu0 0
      %3475 = vmatprep.subr.bf16.mxu0 0
      %3476 = vmatpush1.bf16.msra.mxu0 0
      %3477 = vmatprep.subr.bf16.mxu0 0
      %3478 = vmatpush1.bf16.msra.mxu0 0
      %3479 = vmatprep.subr.bf16.mxu0 0
      %3480 = vmatpush1.bf16.msra.mxu0 0
      %3481 = vmatprep.subr.bf16.mxu0 0
      %3482 = vmatpush1.bf16.msra.mxu0 0
      %3483 = vmatprep.subr.bf16.mxu0 0
      %3484 = vmatpush1.bf16.msra.mxu0 0
      %3485 = vmatprep.mubr.bf16.mxu0 0
      %3486 = vmatmul.mubr.bf16.gmra.mrb[0].mxu0 %v3448
      %v3487 = vpop.f32.mrb[0].mxu0
      %v3488 = vadd.f32 0.0, %v3487
      %v3489 = vpop.f32.mrb[0].mxu0
      %v3490 = vpop.f32.mrb[0].mxu0
      %v3491 = vpop.f32.mrb[0].mxu0
      %3492 = vdwg.mxu0
      %v3493 = vpack.c.bf16 %v3488, %v3488
      %v3495 = vsel %vm786, %v3493, 0
      %3497 = vmatprep.subr.bf16.mxu0 0
      %3498 = vmatpush1.bf16.msra.mxu0 %v1017
      %3499 = vmatprep.subr.bf16.mxu0 0
      %3500 = vmatpush1.bf16.msra.mxu0 0
      %3501 = vmatprep.subr.bf16.mxu0 0
      %3502 = vmatpush1.bf16.msra.mxu0 0
      %3503 = vmatprep.subr.bf16.mxu0 0
      %3504 = vmatpush1.bf16.msra.mxu0 0
      %3505 = vmatprep.subr.bf16.mxu0 0
      %3506 = vmatpush1.bf16.msra.mxu0 0
      %3507 = vmatprep.subr.bf16.mxu0 0
      %3508 = vmatpush1.bf16.msra.mxu0 0
      %3509 = vmatprep.subr.bf16.mxu0 0
      %3510 = vmatpush1.bf16.msra.mxu0 0
      %3511 = vmatprep.subr.bf16.mxu0 0
      %3512 = vmatpush1.bf16.msra.mxu0 0
      %3513 = vmatprep.subr.bf16.mxu0 0
      %3514 = vmatpush1.bf16.msra.mxu0 0
      %3515 = vmatprep.subr.bf16.mxu0 0
      %3516 = vmatpush1.bf16.msra.mxu0 0
      %3517 = vmatprep.subr.bf16.mxu0 0
      %3518 = vmatpush1.bf16.msra.mxu0 0
      %3519 = vmatprep.subr.bf16.mxu0 0
      %3520 = vmatpush1.bf16.msra.mxu0 0
      %3521 = vmatprep.subr.bf16.mxu0 0
      %3522 = vmatpush1.bf16.msra.mxu0 0
      %3523 = vmatprep.subr.bf16.mxu0 0
      %3524 = vmatpush1.bf16.msra.mxu0 0
      %3525 = vmatprep.subr.bf16.mxu0 0
      %3526 = vmatpush1.bf16.msra.mxu0 0
      %3527 = vmatprep.subr.bf16.mxu0 0
      %3528 = vmatpush1.bf16.msra.mxu0 0
      %3529 = vmatprep.mubr.bf16.mxu0 0
      %3530 = vmatmul.mubr.bf16.gmra.mrb[0].mxu0 %v3495
      %v3531 = vpop.f32.mrb[0].mxu0
      %v3532 = vadd.f32 0.0, %v3531
      %v3533 = vpop.f32.mrb[0].mxu0
      %v3534 = vpop.f32.mrb[0].mxu0
      %v3535 = vpop.f32.mrb[0].mxu0
      %3536 = vdwg.mxu0
      %v3538 = vsel %vm786, %v3380, 0
      %3540 = vmatprep.subr.bf16.mxu0 0
      %3541 = vmatpush1.bf16.msra.mxu0 %v1063
      %3542 = vmatprep.subr.bf16.mxu0 0
      %3543 = vmatpush1.bf16.msra.mxu0 0
      %3544 = vmatprep.subr.bf16.mxu0 0
      %3545 = vmatpush1.bf16.msra.mxu0 0
      %3546 = vmatprep.subr.bf16.mxu0 0
      %3547 = vmatpush1.bf16.msra.mxu0 0
      %3548 = vmatprep.subr.bf16.mxu0 0
      %3549 = vmatpush1.bf16.msra.mxu0 0
      %3550 = vmatprep.subr.bf16.mxu0 0
      %3551 = vmatpush1.bf16.msra.mxu0 0
      %3552 = vmatprep.subr.bf16.mxu0 0
      %3553 = vmatpush1.bf16.msra.mxu0 0
      %3554 = vmatprep.subr.bf16.mxu0 0
      %3555 = vmatpush1.bf16.msra.mxu0 0
      %3556 = vmatprep.subr.bf16.mxu0 0
      %3557 = vmatpush1.bf16.msra.mxu0 0
      %3558 = vmatprep.subr.bf16.mxu0 0
      %3559 = vmatpush1.bf16.msra.mxu0 0
      %3560 = vmatprep.subr.bf16.mxu0 0
      %3561 = vmatpush1.bf16.msra.mxu0 0
      %3562 = vmatprep.subr.bf16.mxu0 0
      %3563 = vmatpush1.bf16.msra.mxu0 0
      %3564 = vmatprep.subr.bf16.mxu0 0
      %3565 = vmatpush1.bf16.msra.mxu0 0
      %3566 = vmatprep.subr.bf16.mxu0 0
      %3567 = vmatpush1.bf16.msra.mxu0 0
      %3568 = vmatprep.subr.bf16.mxu0 0
      %3569 = vmatpush1.bf16.msra.mxu0 0
      %3570 = vmatprep.subr.bf16.mxu0 0
      %3571 = vmatpush1.bf16.msra.mxu0 0
      %3572 = vmatprep.mubr.bf16.mxu0 0
      %3573 = vmatmul.mubr.bf16.gmra.mrb[0].mxu0 %v3538
      %v3574 = vpop.f32.mrb[0].mxu0
      %v3575 = vadd.f32 %v3532, %v3574
      %v3576 = vpop.f32.mrb[0].mxu0
      %v3577 = vpop.f32.mrb[0].mxu0
      %v3578 = vpop.f32.mrb[0].mxu0
      %3579 = vdwg.mxu0
      %3580 = vrot.lane.b32.xlu0 %v3268, 112
      %v3581 = vpop.permute.xlu0 %3580
      %3582 = vrot.lane.b32.xlu0 %v3268, 80
      %v3583 = vpop.permute.xlu0 %3582
      %v3585 = vsel %vm786, %v3581, 0
      %v3588 = vsel %vm786, %v3583, 0
      %3590 = vmatprep.subr.bf16.mxu0 0
      %3591 = vmatpush1.bf16.xpose.msra.mxu0 %v3588
      %3592 = vmatprep.subr.bf16.mxu0 0
      %3593 = vmatpush1.bf16.xpose.msra.mxu0 0
      %3594 = vmatprep.subr.bf16.mxu0 0
      %3595 = vmatpush1.bf16.xpose.msra.mxu0 0
      %3596 = vmatprep.subr.bf16.mxu0 0
      %3597 = vmatpush1.bf16.xpose.msra.mxu0 0
      %3598 = vmatprep.subr.bf16.mxu0 0
      %3599 = vmatpush1.bf16.xpose.msra.mxu0 0
      %3600 = vmatprep.subr.bf16.mxu0 0
      %3601 = vmatpush1.bf16.xpose.msra.mxu0 0
      %3602 = vmatprep.subr.bf16.mxu0 0
      %3603 = vmatpush1.bf16.xpose.msra.mxu0 0
      %3604 = vmatprep.subr.bf16.mxu0 0
      %3605 = vmatpush1.bf16.xpose.msra.mxu0 0
      %3606 = vmatprep.subr.bf16.mxu0 0
      %3607 = vmatpush1.bf16.xpose.msra.mxu0 0
      %3608 = vmatprep.subr.bf16.mxu0 0
      %3609 = vmatpush1.bf16.xpose.msra.mxu0 0
      %3610 = vmatprep.subr.bf16.mxu0 0
      %3611 = vmatpush1.bf16.xpose.msra.mxu0 0
      %3612 = vmatprep.subr.bf16.mxu0 0
      %3613 = vmatpush1.bf16.xpose.msra.mxu0 0
      %3614 = vmatprep.subr.bf16.mxu0 0
      %3615 = vmatpush1.bf16.xpose.msra.mxu0 0
      %3616 = vmatprep.subr.bf16.mxu0 0
      %3617 = vmatpush1.bf16.xpose.msra.mxu0 0
      %3618 = vmatprep.subr.bf16.mxu0 0
      %3619 = vmatpush1.bf16.xpose.msra.mxu0 0
      %3620 = vmatprep.subr.bf16.mxu0 0
      %3621 = vmatpush1.bf16.xpose.msra.mxu0 0
      %3622 = vmatprep.mubr.bf16.mxu0 0
      %3623 = vmatmul.mubr.bf16.gmra.mrb[0].mxu0 %v3585
      %v3624 = vpop.f32.mrb[0].mxu0
      %v3625 = vadd.f32 0.0, %v3624
      %v3626 = vpop.f32.mrb[0].mxu0
      %v3627 = vpop.f32.mrb[0].mxu0
      %v3628 = vpop.f32.mrb[0].mxu0
      %3629 = vdwg.mxu0
      %v3630 = vmul.f32 %v3625, 0.35355338
      %v3631 = vadd.f32 %v3630, %v3223
      %v3632 = vsel %vm835, %v3631, -inf
      %3633 = vmax.xlane.f32.xlu0 %v3632
      %v3634 = vpop.xlane.xlu0 %3633
      %v3635 = vsub.f32 %v3631, %v3634
      %v3636 = vmul.f32 %v3635, 1.442695
      %v3637 = vpow.pop %v3636
      %v3638 = vsel %vm835, %v3637, 0.0
      %3639 = vadd.xlane.f32.xlu0 %v3638
      %v3640 = vpop.xlane.xlu0 %3639
      %v3641 = vrcp.pop %v3640
      %v3642 = vmul.f32 %v3637, %v3641
      %v3643 = vpack.c.bf16 %v3642, %v3642
      %3644 = vrot.lane.b32.xlu0 %v3268, 48
      %v3645 = vpop.permute.xlu0 %3644
      %v3647 = vsel %vm850, %v3643, 0
      %v3650 = vsel %vm854, %v3645, 0
      %3652 = vmatprep.subr.bf16.mxu0 0
      %3653 = vmatpush1.bf16.msra.mxu0 %v3650
      %3654 = vmatprep.subr.bf16.mxu0 0
      %3655 = vmatpush1.bf16.msra.mxu0 0
      %3656 = vmatprep.subr.bf16.mxu0 0
      %3657 = vmatpush1.bf16.msra.mxu0 0
      %3658 = vmatprep.subr.bf16.mxu0 0
      %3659 = vmatpush1.bf16.msra.mxu0 0
      %3660 = vmatprep.subr.bf16.mxu0 0
      %3661 = vmatpush1.bf16.msra.mxu0 0
      %3662 = vmatprep.subr.bf16.mxu0 0
      %3663 = vmatpush1.bf16.msra.mxu0 0
      %3664 = vmatprep.subr.bf16.mxu0 0
      %3665 = vmatpush1.bf16.msra.mxu0 0
      %3666 = vmatprep.subr.bf16.mxu0 0
      %3667 = vmatpush1.bf16.msra.mxu0 0
      %3668 = vmatprep.subr.bf16.mxu0 0
      %3669 = vmatpush1.bf16.msra.mxu0 0
      %3670 = vmatprep.subr.bf16.mxu0 0
      %3671 = vmatpush1.bf16.msra.mxu0 0
      %3672 = vmatprep.subr.bf16.mxu0 0
      %3673 = vmatpush1.bf16.msra.mxu0 0
      %3674 = vmatprep.subr.bf16.mxu0 0
      %3675 = vmatpush1.bf16.msra.mxu0 0
      %3676 = vmatprep.subr.bf16.mxu0 0
      %3677 = vmatpush1.bf16.msra.mxu0 0
      %3678 = vmatprep.subr.bf16.mxu0 0
      %3679 = vmatpush1.bf16.msra.mxu0 0
      %3680 = vmatprep.subr.bf16.mxu0 0
      %3681 = vmatpush1.bf16.msra.mxu0 0
      %3682 = vmatprep.subr.bf16.mxu0 0
      %3683 = vmatpush1.bf16.msra.mxu0 0
      %3684 = vmatprep.mubr.bf16.mxu0 0
      %3685 = vmatmul.mubr.bf16.gmra.mrb[0].mxu0 %v3647
      %v3686 = vpop.f32.mrb[0].mxu0
      %v3687 = vadd.f32 0.0, %v3686
      %v3688 = vpop.f32.mrb[0].mxu0
      %v3689 = vpop.f32.mrb[0].mxu0
      %v3690 = vpop.f32.mrb[0].mxu0
      %3691 = vdwg.mxu0
      %v3692 = vpack.c.bf16 %v3687, %v3687
      %v3694 = vsel %vm786, %v3692, 0
      %3696 = vmatprep.subr.bf16.mxu0 0
      %3697 = vmatpush1.bf16.msra.mxu0 %v1222
      %3698 = vmatprep.subr.bf16.mxu0 0
      %3699 = vmatpush1.bf16.msra.mxu0 0
      %3700 = vmatprep.subr.bf16.mxu0 0
      %3701 = vmatpush1.bf16.msra.mxu0 0
      %3702 = vmatprep.subr.bf16.mxu0 0
      %3703 = vmatpush1.bf16.msra.mxu0 0
      %3704 = vmatprep.subr.bf16.mxu0 0
      %3705 = vmatpush1.bf16.msra.mxu0 0
      %3706 = vmatprep.subr.bf16.mxu0 0
      %3707 = vmatpush1.bf16.msra.mxu0 0
      %3708 = vmatprep.subr.bf16.mxu0 0
      %3709 = vmatpush1.bf16.msra.mxu0 0
      %3710 = vmatprep.subr.bf16.mxu0 0
      %3711 = vmatpush1.bf16.msra.mxu0 0
      %3712 = vmatprep.subr.bf16.mxu0 0
      %3713 = vmatpush1.bf16.msra.mxu0 0
      %3714 = vmatprep.subr.bf16.mxu0 0
      %3715 = vmatpush1.bf16.msra.mxu0 0
      %3716 = vmatprep.subr.bf16.mxu0 0
      %3717 = vmatpush1.bf16.msra.mxu0 0
      %3718 = vmatprep.subr.bf16.mxu0 0
      %3719 = vmatpush1.bf16.msra.mxu0 0
      %3720 = vmatprep.subr.bf16.mxu0 0
      %3721 = vmatpush1.bf16.msra.mxu0 0
      %3722 = vmatprep.subr.bf16.mxu0 0
      %3723 = vmatpush1.bf16.msra.mxu0 0
      %3724 = vmatprep.subr.bf16.mxu0 0
      %3725 = vmatpush1.bf16.msra.mxu0 0
      %3726 = vmatprep.subr.bf16.mxu0 0
      %3727 = vmatpush1.bf16.msra.mxu0 0
      %3728 = vmatprep.mubr.bf16.mxu0 0
      %3729 = vmatmul.mubr.bf16.gmra.mrb[0].mxu0 %v3694
      %v3730 = vpop.f32.mrb[0].mxu0
      %v3731 = vadd.f32 0.0, %v3730
      %v3732 = vpop.f32.mrb[0].mxu0
      %v3733 = vpop.f32.mrb[0].mxu0
      %v3734 = vpop.f32.mrb[0].mxu0
      %3735 = vdwg.mxu0
      %v3736 = vadd.f32 %v3575, %v3731
      %3737 = vrot.lane.b32.xlu0 %v3268, 104
      %v3738 = vpop.permute.xlu0 %3737
      %3739 = vrot.lane.b32.xlu0 %v3268, 72
      %v3740 = vpop.permute.xlu0 %3739
      %v3742 = vsel %vm786, %v3738, 0
      %v3745 = vsel %vm786, %v3740, 0
      %3747 = vmatprep.subr.bf16.mxu0 0
      %3748 = vmatpush1.bf16.xpose.msra.mxu0 %v3745
      %3749 = vmatprep.subr.bf16.mxu0 0
      %3750 = vmatpush1.bf16.xpose.msra.mxu0 0
      %3751 = vmatprep.subr.bf16.mxu0 0
      %3752 = vmatpush1.bf16.xpose.msra.mxu0 0
      %3753 = vmatprep.subr.bf16.mxu0 0
      %3754 = vmatpush1.bf16.xpose.msra.mxu0 0
      %3755 = vmatprep.subr.bf16.mxu0 0
      %3756 = vmatpush1.bf16.xpose.msra.mxu0 0
      %3757 = vmatprep.subr.bf16.mxu0 0
      %3758 = vmatpush1.bf16.xpose.msra.mxu0 0
      %3759 = vmatprep.subr.bf16.mxu0 0
      %3760 = vmatpush1.bf16.xpose.msra.mxu0 0
      %3761 = vmatprep.subr.bf16.mxu0 0
      %3762 = vmatpush1.bf16.xpose.msra.mxu0 0
      %3763 = vmatprep.subr.bf16.mxu0 0
      %3764 = vmatpush1.bf16.xpose.msra.mxu0 0
      %3765 = vmatprep.subr.bf16.mxu0 0
      %3766 = vmatpush1.bf16.xpose.msra.mxu0 0
      %3767 = vmatprep.subr.bf16.mxu0 0
      %3768 = vmatpush1.bf16.xpose.msra.mxu0 0
      %3769 = vmatprep.subr.bf16.mxu0 0
      %3770 = vmatpush1.bf16.xpose.msra.mxu0 0
      %3771 = vmatprep.subr.bf16.mxu0 0
      %3772 = vmatpush1.bf16.xpose.msra.mxu0 0
      %3773 = vmatprep.subr.bf16.mxu0 0
      %3774 = vmatpush1.bf16.xpose.msra.mxu0 0
      %3775 = vmatprep.subr.bf16.mxu0 0
      %3776 = vmatpush1.bf16.xpose.msra.mxu0 0
      %3777 = vmatprep.subr.bf16.mxu0 0
      %3778 = vmatpush1.bf16.xpose.msra.mxu0 0
      %3779 = vmatprep.mubr.bf16.mxu0 0
      %3780 = vmatmul.mubr.bf16.gmra.mrb[0].mxu0 %v3742
      %v3781 = vpop.f32.mrb[0].mxu0
      %v3782 = vadd.f32 0.0, %v3781
      %v3783 = vpop.f32.mrb[0].mxu0
      %v3784 = vpop.f32.mrb[0].mxu0
      %v3785 = vpop.f32.mrb[0].mxu0
      %3786 = vdwg.mxu0
      %v3787 = vmul.f32 %v3782, 0.35355338
      %v3788 = vadd.f32 %v3787, %v3223
      %v3789 = vsel %vm835, %v3788, -inf
      %3790 = vmax.xlane.f32.xlu0 %v3789
      %v3791 = vpop.xlane.xlu0 %3790
      %v3792 = vsub.f32 %v3788, %v3791
      %v3793 = vmul.f32 %v3792, 1.442695
      %v3794 = vpow.pop %v3793
      %v3795 = vsel %vm835, %v3794, 0.0
      %3796 = vadd.xlane.f32.xlu0 %v3795
      %v3797 = vpop.xlane.xlu0 %3796
      %v3798 = vrcp.pop %v3797
      %v3799 = vmul.f32 %v3794, %v3798
      %v3800 = vpack.c.bf16 %v3799, %v3799
      %3801 = vrot.lane.b32.xlu0 %v3268, 40
      %v3802 = vpop.permute.xlu0 %3801
      %v3804 = vsel %vm850, %v3800, 0
      %v3807 = vsel %vm854, %v3802, 0
      %3809 = vmatprep.subr.bf16.mxu0 0
      %3810 = vmatpush1.bf16.msra.mxu0 %v3807
      %3811 = vmatprep.subr.bf16.mxu0 0
      %3812 = vmatpush1.bf16.msra.mxu0 0
      %3813 = vmatprep.subr.bf16.mxu0 0
      %3814 = vmatpush1.bf16.msra.mxu0 0
      %3815 = vmatprep.subr.bf16.mxu0 0
      %3816 = vmatpush1.bf16.msra.mxu0 0
      %3817 = vmatprep.subr.bf16.mxu0 0
      %3818 = vmatpush1.bf16.msra.mxu0 0
      %3819 = vmatprep.subr.bf16.mxu0 0
      %3820 = vmatpush1.bf16.msra.mxu0 0
      %3821 = vmatprep.subr.bf16.mxu0 0
      %3822 = vmatpush1.bf16.msra.mxu0 0
      %3823 = vmatprep.subr.bf16.mxu0 0
      %3824 = vmatpush1.bf16.msra.mxu0 0
      %3825 = vmatprep.subr.bf16.mxu0 0
      %3826 = vmatpush1.bf16.msra.mxu0 0
      %3827 = vmatprep.subr.bf16.mxu0 0
      %3828 = vmatpush1.bf16.msra.mxu0 0
      %3829 = vmatprep.subr.bf16.mxu0 0
      %3830 = vmatpush1.bf16.msra.mxu0 0
      %3831 = vmatprep.subr.bf16.mxu0 0
      %3832 = vmatpush1.bf16.msra.mxu0 0
      %3833 = vmatprep.subr.bf16.mxu0 0
      %3834 = vmatpush1.bf16.msra.mxu0 0
      %3835 = vmatprep.subr.bf16.mxu0 0
      %3836 = vmatpush1.bf16.msra.mxu0 0
      %3837 = vmatprep.subr.bf16.mxu0 0
      %3838 = vmatpush1.bf16.msra.mxu0 0
      %3839 = vmatprep.subr.bf16.mxu0 0
      %3840 = vmatpush1.bf16.msra.mxu0 0
      %3841 = vmatprep.mubr.bf16.mxu0 0
      %3842 = vmatmul.mubr.bf16.gmra.mrb[0].mxu0 %v3804
      %v3843 = vpop.f32.mrb[0].mxu0
      %v3844 = vadd.f32 0.0, %v3843
      %v3845 = vpop.f32.mrb[0].mxu0
      %v3846 = vpop.f32.mrb[0].mxu0
      %v3847 = vpop.f32.mrb[0].mxu0
      %3848 = vdwg.mxu0
      %v3849 = vpack.c.bf16 %v3844, %v3844
      %v3851 = vsel %vm786, %v3849, 0
      %3853 = vmatprep.subr.bf16.mxu0 0
      %3854 = vmatpush1.bf16.msra.mxu0 %v1382
      %3855 = vmatprep.subr.bf16.mxu0 0
      %3856 = vmatpush1.bf16.msra.mxu0 0
      %3857 = vmatprep.subr.bf16.mxu0 0
      %3858 = vmatpush1.bf16.msra.mxu0 0
      %3859 = vmatprep.subr.bf16.mxu0 0
      %3860 = vmatpush1.bf16.msra.mxu0 0
      %3861 = vmatprep.subr.bf16.mxu0 0
      %3862 = vmatpush1.bf16.msra.mxu0 0
      %3863 = vmatprep.subr.bf16.mxu0 0
      %3864 = vmatpush1.bf16.msra.mxu0 0
      %3865 = vmatprep.subr.bf16.mxu0 0
      %3866 = vmatpush1.bf16.msra.mxu0 0
      %3867 = vmatprep.subr.bf16.mxu0 0
      %3868 = vmatpush1.bf16.msra.mxu0 0
      %3869 = vmatprep.subr.bf16.mxu0 0
      %3870 = vmatpush1.bf16.msra.mxu0 0
      %3871 = vmatprep.subr.bf16.mxu0 0
      %3872 = vmatpush1.bf16.msra.mxu0 0
      %3873 = vmatprep.subr.bf16.mxu0 0
      %3874 = vmatpush1.bf16.msra.mxu0 0
      %3875 = vmatprep.subr.bf16.mxu0 0
      %3876 = vmatpush1.bf16.msra.mxu0 0
      %3877 = vmatprep.subr.bf16.mxu0 0
      %3878 = vmatpush1.bf16.msra.mxu0 0
      %3879 = vmatprep.subr.bf16.mxu0 0
      %3880 = vmatpush1.bf16.msra.mxu0 0
      %3881 = vmatprep.subr.bf16.mxu0 0
      %3882 = vmatpush1.bf16.msra.mxu0 0
      %3883 = vmatprep.subr.bf16.mxu0 0
      %3884 = vmatpush1.bf16.msra.mxu0 0
      %3885 = vmatprep.mubr.bf16.mxu0 0
      %3886 = vmatmul.mubr.bf16.gmra.mrb[0].mxu0 %v3851
      %v3887 = vpop.f32.mrb[0].mxu0
      %v3888 = vadd.f32 0.0, %v3887
      %v3889 = vpop.f32.mrb[0].mxu0
      %v3890 = vpop.f32.mrb[0].mxu0
      %v3891 = vpop.f32.mrb[0].mxu0
      %3892 = vdwg.mxu0
      %v3893 = vadd.f32 %v3736, %v3888
      %v3894 = vadd.f32 %v3893, %v1429
      %v3895 = vadd.f32 %v3222, %v3894
      %v3896 = vsel %vm1433, %v3895, 0.0
      %3897 = vadd.xlane.f32.xlu0 %v3896
      %v3898 = vpop.xlane.xlu0 %3897
      %v3899 = vmul.f32 %v3898, %v1437
      %v3900 = vsub.f32 %v3895, %v3899
      %v3901 = vmul.f32 %v3900, %v3900
      %v3902 = vsel %vm1433, %v3901, 0.0
      %3903 = vadd.xlane.f32.xlu0 %v3902
      %v3904 = vpop.xlane.xlu0 %3903
      %v3905 = vmul.f32 %v3904, %v1437
      %v3906 = vadd.f32 %v3905, 1e-05
      %v3907 = vrsqrt.pop %v3906
      %v3908 = vmul.f32 %v3900, %v3907
      %v3909 = vmul.f32 %v3908, %v1452
      %v3910 = vadd.f32 %v3909, %v1459
      %v3911 = vpack.c.bf16 %v3910, %v3910
      %v3913 = vsel %vm738, %v3911, 0
      %3915 = vmatprep.subr.bf16.mxu0 0
      %3916 = vmatpush1.bf16.msra.mxu0 %v1477
      %3917 = vmatprep.subr.bf16.mxu0 0
      %3918 = vmatpush1.bf16.msra.mxu0 %v1478
      %3919 = vmatprep.subr.bf16.mxu0 0
      %3920 = vmatpush1.bf16.msra.mxu0 0
      %3921 = vmatprep.subr.bf16.mxu0 0
      %3922 = vmatpush1.bf16.msra.mxu0 0
      %3923 = vmatprep.subr.bf16.mxu0 0
      %3924 = vmatpush1.bf16.msra.mxu0 0
      %3925 = vmatprep.subr.bf16.mxu0 0
      %3926 = vmatpush1.bf16.msra.mxu0 0
      %3927 = vmatprep.subr.bf16.mxu0 0
      %3928 = vmatpush1.bf16.msra.mxu0 0
      %3929 = vmatprep.subr.bf16.mxu0 0
      %3930 = vmatpush1.bf16.msra.mxu0 0
      %3931 = vmatprep.subr.bf16.mxu0 0
      %3932 = vmatpush1.bf16.msra.mxu0 0
      %3933 = vmatprep.subr.bf16.mxu0 0
      %3934 = vmatpush1.bf16.msra.mxu0 0
      %3935 = vmatprep.subr.bf16.mxu0 0
      %3936 = vmatpush1.bf16.msra.mxu0 0
      %3937 = vmatprep.subr.bf16.mxu0 0
      %3938 = vmatpush1.bf16.msra.mxu0 0
      %3939 = vmatprep.subr.bf16.mxu0 0
      %3940 = vmatpush1.bf16.msra.mxu0 0
      %3941 = vmatprep.subr.bf16.mxu0 0
      %3942 = vmatpush1.bf16.msra.mxu0 0
      %3943 = vmatprep.subr.bf16.mxu0 0
      %3944 = vmatpush1.bf16.msra.mxu0 0
      %3945 = vmatprep.subr.bf16.mxu0 0
      %3946 = vmatpush1.bf16.msra.mxu0 0
      %3947 = vmatprep.mubr.bf16.mxu0 0
      %3948 = vmatmul.mubr.bf16.gmra.mrb[0].mxu0 %v3913
      %v3949 = vpop.f32.mrb[0].mxu0
      %v3950 = vadd.f32 %v1467, %v3949
      %v3951 = vpop.f32.mrb[0].mxu0
      %v3952 = vpop.f32.mrb[0].mxu0
      %v3953 = vpop.f32.mrb[0].mxu0
      %3954 = vdwg.mxu0
      %v3955 = vmax.f32 %v3950, 0.0
      %v3956 = vpack.c.bf16 %v3955, %v3955
      %v3958 = vsel %vm1556, %v3956, 0
      %3960 = vmatprep.subr.bf16.mxu0 0
      %3961 = vmatpush1.bf16.msra.mxu0 %v1548
      %3962 = vmatprep.subr.bf16.mxu0 0
      %3963 = vmatpush1.bf16.msra.mxu0 %v1549
      %3964 = vmatprep.subr.bf16.mxu0 0
      %3965 = vmatpush1.bf16.msra.mxu0 %v1550
      %3966 = vmatprep.subr.bf16.mxu0 0
      %3967 = vmatpush1.bf16.msra.mxu0 %v1551
      %3968 = vmatprep.subr.bf16.mxu0 0
      %3969 = vmatpush1.bf16.msra.mxu0 0
      %3970 = vmatprep.subr.bf16.mxu0 0
      %3971 = vmatpush1.bf16.msra.mxu0 0
      %3972 = vmatprep.subr.bf16.mxu0 0
      %3973 = vmatpush1.bf16.msra.mxu0 0
      %3974 = vmatprep.subr.bf16.mxu0 0
      %3975 = vmatpush1.bf16.msra.mxu0 0
      %3976 = vmatprep.subr.bf16.mxu0 0
      %3977 = vmatpush1.bf16.msra.mxu0 0
      %3978 = vmatprep.subr.bf16.mxu0 0
      %3979 = vmatpush1.bf16.msra.mxu0 0
      %3980 = vmatprep.subr.bf16.mxu0 0
      %3981 = vmatpush1.bf16.msra.mxu0 0
      %3982 = vmatprep.subr.bf16.mxu0 0
      %3983 = vmatpush1.bf16.msra.mxu0 0
      %3984 = vmatprep.subr.bf16.mxu0 0
      %3985 = vmatpush1.bf16.msra.mxu0 0
      %3986 = vmatprep.subr.bf16.mxu0 0
      %3987 = vmatpush1.bf16.msra.mxu0 0
      %3988 = vmatprep.subr.bf16.mxu0 0
      %3989 = vmatpush1.bf16.msra.mxu0 0
      %3990 = vmatprep.subr.bf16.mxu0 0
      %3991 = vmatpush1.bf16.msra.mxu0 0
      %3992 = vmatprep.mubr.bf16.mxu0 0
      %3993 = vmatmul.mubr.bf16.gmra.mrb[0].mxu0 %v3958
      %v3994 = vpop.f32.mrb[0].mxu0
      %v3995 = vadd.f32 %v1530, %v3994
      %v3996 = vpop.f32.mrb[0].mxu0
      %v3997 = vpop.f32.mrb[0].mxu0
      %v3998 = vpop.f32.mrb[0].mxu0
      %3999 = vdwg.mxu0
      %v4000 = vadd.f32 %v3910, %v3995
      %v4001 = vsel %vm1433, %v4000, 0.0
      %4002 = vadd.xlane.f32.xlu0 %v4001
      %v4003 = vpop.xlane.xlu0 %4002
      %v4004 = vmul.f32 %v4003, %v1437
      %v4005 = vsub.f32 %v4000, %v4004
      %v4006 = vmul.f32 %v4005, %v4005
      %v4007 = vsel %vm1433, %v4006, 0.0
      %4008 = vadd.xlane.f32.xlu0 %v4007
      %v4009 = vpop.xlane.xlu0 %4008
      %v4010 = vmul.f32 %v4009, %v1437
      %v4011 = vadd.f32 %v4010, 1e-05
      %v4012 = vrsqrt.pop %v4011
      %v4013 = vmul.f32 %v4005, %v4012
      %v4014 = vmul.f32 %v4013, %v1618
      %v4015 = vadd.f32 %v4014, %v1625
      %4016 = vst.msk [vmem:[%s3221] sm:$0x3] %vm1433, %v4015
      %p4017 = scmp.eq.s32.totalorder %s30, 1
      // Predicated region
      $region81: #{bert_classifier_forward.6} parent=75 // pred_check
        %p4018 = pneg %p4017
      $region82: #{bert_classifier_forward.6} parent=75 // pred_check_branch
        %4020 = sbr.rel (%p4018) target = $region84
      $region83: #{bert_classifier_forward.6} parent=75 // pred_region
        %v4021 = vld [vmem:[#allocation2] sm:$0x3]
        %v4022 = vld [vmem:[#allocation2 + $0x2] sm:$0x3]
        %v4023 = vld [vmem:[#allocation2 + $0x4] sm:$0x3]
        %v4024 = vld [vmem:[#allocation2 + $0x6] sm:$0x3]
        %4025 = vst.msk [vmem:[%s673] sm:$0x3] %vm1433, %v4021
        %4026 = vst.msk [vmem:[%s673 + $0x2] sm:$0x3] %vm1433, %v4022
        %4027 = vst.msk [vmem:[%s673 + $0x4] sm:$0x3] %vm1433, %v4023
        %4028 = vst.msk [vmem:[%s673 + $0x6] sm:$0x3] %vm1433, %v4024
      $region84: #{bert_classifier_forward.6} parent=75 // pred_fallthru
        _
      %s4029 = smul.u32 4, %s29
      %p4030 = scmp.lt.s32.totalorder %s4029, 7
      %s4031 = scalar_select %p4030, %s4029, 7
      %s4032 = smul.addr %s4031, 2
      %s4033 = scalar_lea.vmem %s14, %s4032
      // Predicated region
      $region85: #{bert_classifier_forward.6} parent=75 // pred_check
        %p4034 = pneg %p414
      $region86: #{bert_classifier_forward.6} parent=75 // pred_check_branch
        %4036 = sbr.rel (%p4034) target = $region88
      $region87: #{bert_classifier_forward.6} parent=75 // pred_region
        %s4037 = smul.u32 4, %s29
      $region88: #{bert_classifier_forward.6} parent=75 // pred_fallthru
        _
    $region76: #{bert_classifier_forward.6} parent=5 // pred_fallthru
      _
    %p4038 = scmp.le.s32.totalorder 2, %s20
    // Predicated region
    $region89: #{bert_classifier_forward.6} parent=5 // pred_check
      %p4039 = pneg %p4038
    $region90: #{bert_classifier_forward.6} parent=5 // pred_check_branch
      %4041 = sbr.rel (%p4039) target = $region92
    $region91: #{bert_classifier_forward.6} parent=5 // pred_region
      %s4042 = ssub.s32 %s20, 2
      // Predicated region
      $region93: #{bert_classifier_forward.6} parent=91 // pred_check
        %p4043 = pneg %p420
      $region94: #{bert_classifier_forward.6} parent=91 // pred_check_branch
        %4045 = sbr.rel (%p4043) target = $region96
      $region95: #{bert_classifier_forward.6} parent=91 // pred_region
        %s4046 = smul.u32 4, %s31
        %p4047 = scmp.lt.s32.totalorder %s4046, 7
        %s4048 = scalar_select %p4047, %s4046, 7
        %s4049 = smul.addr %s4048, 2
        %s4050 = scalar_lea.vmem %s14, %s4049
      $region96: #{bert_classifier_forward.6} parent=91 // pred_fallthru
        _
    $region92: #{bert_classifier_forward.6} parent=5 // pred_fallthru
      _
  $region6: #{bert_classifier_forward.6} parent=0 // loop_footer
    %s24 = sadd.s32 1, %s20
  $region7: #{bert_classifier_forward.6} parent=0 // loop_footer_branch
    %19 = sbr.rel target = $region3
  $region8: #{bert_classifier_forward.6} parent=0 // loop_exit
    _

</llo_original>
